<compile_context>
chip_gen: v5e
topology: v5e:2x2
jax: 0.10.0
libtpu: 0.0.40
codegen_flags: <defaults>
</compile_context>

<pallas_src>
import functools

import jax
import jax.numpy as jnp
from jax.experimental import pallas as pl
from jax.experimental.pallas import tpu as pltpu


def _round_up(v, m):
    return ((v + m - 1) // m) * m


# ----------------------------------------------------------------------------
# Shared in-kernel helpers.
# ----------------------------------------------------------------------------
def _stage_shifted_rows(xp_ref, sbuf_ref, h0, n_rows, Cin):
    """Fill sbuf_ref[r, dw*Cin:(dw+1)*Cin, :] with the dw-shifted (lane dir,
    zero-filled at the W boundary) copy of padded input row h0 + r (bf16).
    This is the K-stacked im2col slab shared by all output rows of the block:
    each padded row is rolled 5x once per block instead of 25x per output row.
    """
    Kc = sbuf_ref.shape[1]
    W = sbuf_ref.shape[2]
    pad_sub = Kc - 5 * Cin                       # K padding (only for Cin == 1)
    lane = jax.lax.broadcasted_iota(jnp.int32, (Cin, W), 1)

    def body(r, carry):
        row = xp_ref[0, h0 + r].astype(jnp.float32)           # (Cin, W)
        for dw in range(5):                                    # static unroll
            s = dw - 2                                         # lane offset
            if s == 0:
                v = row
            else:
                v = pltpu.roll(row, shift=(-s) % W, axis=1)    # v[w] = row[w+s]
                if s > 0:
                    v = jnp.where(lane < W - s, v, 0.0)
                else:
                    v = jnp.where(lane >= -s, v, 0.0)
            sbuf_ref[r, dw * Cin:(dw + 1) * Cin, :] = v.astype(jnp.bfloat16)
        if pad_sub:
            sbuf_ref[r, 5 * Cin:, :] = jnp.zeros((pad_sub, W), jnp.bfloat16)
        return carry

    jax.lax.fori_loop(0, n_rows, body, 0)


def _conv_row(sbuf_ref, w_ref, r):
    """25-tap conv for one output row as 5 K-stacked bf16 MXU dots (K=5*Cin)."""
    Cout = w_ref.shape[1]
    W = sbuf_ref.shape[2]
    acc = jnp.zeros((Cout, W), jnp.float32)
    for dh in range(5):                                        # static unroll
        rhs = sbuf_ref[r + dh]                                 # (Kc, W) bf16
        acc = acc + jnp.dot(w_ref[dh], rhs,
                            preferred_element_type=jnp.float32)
    return acc                                                 # (Cout, W) f32


# ----------------------------------------------------------------------------
# Kernel 1: 5x5 "same" convolution (stride 1, padding 2) + bias, bf16 output.
# ----------------------------------------------------------------------------
def conv5x5_kernel(xp_ref, w_ref, b_ref, o_ref, sbuf_ref, *, Cin):
    # xp_ref : (1, Hp, Cin, W)   padded-H image for this batch element (resident)
    # w_ref  : (5, Cout, Kc)     K-stacked taps (dh major, dw*Cin+ci minor), bf16
    # b_ref  : (Cout, 1)         f32
    # o_ref  : (1, TH, Cout, W)  bf16
    TH = o_ref.shape[1]
    h0 = pl.program_id(1) * TH
    _stage_shifted_rows(xp_ref, sbuf_ref, h0, TH + 4, Cin)
    bias = b_ref[...]

    def body(r, carry):
        acc = _conv_row(sbuf_ref, w_ref, r)
        o_ref[0, r] = (acc + bias).astype(o_ref.dtype)
        return carry

    jax.lax.fori_loop(0, TH, body, 0)


# ----------------------------------------------------------------------------
# Kernel 2: 5x5 conv -> (eval BatchNorm affine with conv bias folded in)
#           -> ReLU -> 2x2 MaxPool, fused.  Lane-direction pooling is done
#           with exact 0/1 selection matmuls (gather on the MXU).
# ----------------------------------------------------------------------------
def conv5x5_bn_relu_pool_kernel(xp_ref, w_ref, sc_ref, sh_ref, ce_ref, co_ref,
                                o_ref, sbuf_ref, *, Cin):
    # o_ref: (1, TH//2, Cout, W//2) bf16; ce/co: (W, W//2) bf16 selectors.
    THo = o_ref.shape[1]
    TH = 2 * THo
    h0 = pl.program_id(1) * TH
    _stage_shifted_rows(xp_ref, sbuf_ref, h0, TH + 4, Cin)
    sc = sc_ref[...]                                           # (Cout, 1) f32
    sh = sh_ref[...]

    def body(q, carry):
        y0 = jnp.maximum(_conv_row(sbuf_ref, w_ref, 2 * q) * sc + sh, 0.0)
        y1 = jnp.maximum(_conv_row(sbuf_ref, w_ref, 2 * q + 1) * sc + sh, 0.0)
        rm = jnp.maximum(y0, y1).astype(jnp.bfloat16)          # row-pair max
        pe = jnp.dot(rm, ce_ref[...], preferred_element_type=jnp.float32)
        po = jnp.dot(rm, co_ref[...], preferred_element_type=jnp.float32)
        o_ref[0, q] = jnp.maximum(pe, po).astype(o_ref.dtype)  # col-pair max
        return carry

    jax.lax.fori_loop(0, THo, body, 0)


# ----------------------------------------------------------------------------
# Kernel 3: fully-connected layer + softmax, K-tiled, lane-dense (N, F) weight.
# ----------------------------------------------------------------------------
def fc_softmax_kernel(x_ref, w_ref, b_ref, o_ref, acc_ref):
    k = pl.program_id(0)

    @pl.when(k == 0)
    def _init():
        acc_ref[...] = jnp.zeros_like(acc_ref)

    # (B, TK) . (N, TK)^T -> (B, N), bf16 inputs, f32 accumulate.
    acc_ref[...] += jax.lax.dot_general(
        x_ref[...], w_ref[...],
        dimension_numbers=(((1,), (1,)), ((), ())),
        preferred_element_type=jnp.float32)

    @pl.when(k == pl.num_programs(0) - 1)
    def _finalize():
        logits = acc_ref[...] + b_ref[...]
        m = jnp.max(logits, axis=-1, keepdims=True)
        e = jnp.exp(logits - m)
        o_ref[...] = e / jnp.sum(e, axis=-1, keepdims=True)


# ----------------------------------------------------------------------------
# Host-side wrappers.
# ----------------------------------------------------------------------------
def _stack_weight(w, Kc):
    # torch layout (Cout, Cin, 5, 5) -> (5, Cout, Kc), K index = dw*Cin + ci.
    Cout, Cin = w.shape[0], w.shape[1]
    wp = jnp.transpose(w, (2, 0, 3, 1)).reshape(5, Cout, 5 * Cin)
    if Kc > 5 * Cin:
        wp = jnp.pad(wp, ((0, 0), (0, 0), (0, Kc - 5 * Cin)))
    return wp.astype(jnp.bfloat16)


def conv5x5_same(x, w, b, *, block_h=32):
    # x: (B, H, Cin, W) bf16; w: (Cout, Cin, 5, 5) f32; b: (Cout,) f32.
    B, H, Cin, W = x.shape
    Cout = w.shape[0]
    Kc = _round_up(5 * Cin, 16)                 # bf16 sublane tile = 16
    TH = block_h
    assert H % TH == 0 and W % 128 == 0
    xp = jnp.pad(x, ((0, 0), (2, 2), (0, 0), (0, 0)))     # pad H only
    Hp = H + 4
    kernel = functools.partial(conv5x5_kernel, Cin=Cin)
    return pl.pallas_call(
        kernel,
        out_shape=jax.ShapeDtypeStruct((B, H, Cout, W), jnp.bfloat16),
        grid=(B, H // TH),
        in_specs=[
            pl.BlockSpec((1, Hp, Cin, W), lambda nb, i: (nb, 0, 0, 0)),
            pl.BlockSpec((5, Cout, Kc), lambda nb, i: (0, 0, 0)),
            pl.BlockSpec((Cout, 1), lambda nb, i: (0, 0)),
        ],
        out_specs=pl.BlockSpec((1, TH, Cout, W), lambda nb, i: (nb, i, 0, 0)),
        scratch_shapes=[pltpu.VMEM((TH + 4, Kc, W), jnp.bfloat16)],
        compiler_params=pltpu.CompilerParams(
            dimension_semantics=("parallel", "parallel")),
    )(xp, _stack_weight(w, Kc), b.reshape(Cout, 1).astype(jnp.float32))


def conv5x5_bn_relu_pool(x, w, scale, shift, *, block_h=32):
    # Fused conv -> BN(eval, conv bias folded into shift) -> ReLU -> 2x2 maxpool.
    B, H, Cin, W = x.shape
    Cout = w.shape[0]
    Kc = _round_up(5 * Cin, 16)
    TH = block_h
    assert H % TH == 0 and TH % 2 == 0 and W % 128 == 0
    Ho, Wo, THo = H // 2, W // 2, TH // 2
    xp = jnp.pad(x, ((0, 0), (2, 2), (0, 0), (0, 0)))
    Hp = H + 4
    colsel = jnp.arange(W)[:, None]
    ce = (colsel == 2 * jnp.arange(Wo)[None, :]).astype(jnp.bfloat16)
    co = (colsel == 2 * jnp.arange(Wo)[None, :] + 1).astype(jnp.bfloat16)
    kernel = functools.partial(conv5x5_bn_relu_pool_kernel, Cin=Cin)
    return pl.pallas_call(
        kernel,
        out_shape=jax.ShapeDtypeStruct((B, Ho, Cout, Wo), jnp.bfloat16),
        grid=(B, H // TH),
        in_specs=[
            pl.BlockSpec((1, Hp, Cin, W), lambda nb, i: (nb, 0, 0, 0)),
            pl.BlockSpec((5, Cout, Kc), lambda nb, i: (0, 0, 0)),
            pl.BlockSpec((Cout, 1), lambda nb, i: (0, 0)),
            pl.BlockSpec((Cout, 1), lambda nb, i: (0, 0)),
            pl.BlockSpec((W, Wo), lambda nb, i: (0, 0)),
            pl.BlockSpec((W, Wo), lambda nb, i: (0, 0)),
        ],
        out_specs=pl.BlockSpec((1, THo, Cout, Wo), lambda nb, i: (nb, i, 0, 0)),
        scratch_shapes=[pltpu.VMEM((TH + 4, Kc, W), jnp.bfloat16)],
        compiler_params=pltpu.CompilerParams(
            dimension_semantics=("parallel", "parallel")),
    )(xp, _stack_weight(w, Kc),
      scale.reshape(Cout, 1).astype(jnp.float32),
      shift.reshape(Cout, 1).astype(jnp.float32), ce, co)


def fc_softmax(x, w, b, *, block_k=8192):
    # x: (B, F) bf16; w: (N, F) bf16 (torch Linear.weight layout); b: (N,) f32.
    B, F = x.shape
    N = w.shape[0]
    TK = block_k
    assert F % TK == 0
    return pl.pallas_call(
        fc_softmax_kernel,
        out_shape=jax.ShapeDtypeStruct((B, N), jnp.float32),
        grid=(F // TK,),
        in_specs=[
            pl.BlockSpec((B, TK), lambda k: (0, k)),
            pl.BlockSpec((N, TK), lambda k: (0, k)),
            pl.BlockSpec((1, N), lambda k: (0, 0)),
        ],
        out_specs=pl.BlockSpec((B, N), lambda k: (0, 0)),
        scratch_shapes=[pltpu.VMEM((B, N), jnp.float32)],
        compiler_params=pltpu.CompilerParams(
            dimension_semantics=("arbitrary",)),
    )(x, w, b.reshape(1, N).astype(jnp.float32))


# ----------------------------------------------------------------------------
# Model glue
# ----------------------------------------------------------------------------
def bn_eval_affine(gamma, beta, mean, var, eps=1e-5):
    scale = gamma / jnp.sqrt(var + eps)
    shift = beta - mean * scale
    return scale, shift


def convnet_b_forward(x_nchw, p):
    # x_nchw: (B, 1, 256, 256) float32 (PyTorch NCHW).
    x = jnp.transpose(x_nchw, (0, 2, 1, 3)).astype(jnp.bfloat16)   # (B, H, C, W)

    # conv block 1: conv1 -> conv12 + BN + ReLU + pool (Dropout2d(0.5): identity at eval)
    x = conv5x5_same(x, p["conv1_w"], p["conv1_b"])
    s1, t1 = bn_eval_affine(p["bn1_gamma"], p["bn1_beta"], p["bn1_mean"], p["bn1_var"])
    x = conv5x5_bn_relu_pool(x, p["conv12_w"], s1, t1 + s1 * p["conv12_b"])

    # conv block 2: conv2 -> conv22 + BN + ReLU + pool (Dropout2d(0.25): identity at eval)
    x = conv5x5_same(x, p["conv2_w"], p["conv2_b"])
    s2, t2 = bn_eval_affine(p["bn2_gamma"], p["bn2_beta"], p["bn2_mean"], p["bn2_var"])
    x = conv5x5_bn_relu_pool(x, p["conv22_w"], s2, t2 + s2 * p["conv22_b"])

    # PyTorch NCHW flatten: (B, C, H, W) -> (B, C*H*W) = (B, 32*64*64)
    # TODO(synk): could fuse this transpose into the last pool kernel's out_spec.
    B = x.shape[0]
    x_flat = jnp.transpose(x, (0, 2, 1, 3)).reshape(B, -1)
    return fc_softmax(x_flat, p["fc_w"].astype(jnp.bfloat16), p["fc_b"])


def init_params(key, num_classes):
    ks = jax.random.split(key, 14)

    def u(k, shape, fan_in):
        bound = 1.0 / (fan_in ** 0.5)
        return jax.random.uniform(k, shape, jnp.float32, -bound, bound)

    F = 32 * 64 * 64
    p = {
        "conv1_w": u(ks[0], (16, 1, 5, 5), 1 * 25),
        "conv1_b": u(ks[1], (16,), 1 * 25),
        "conv12_w": u(ks[2], (16, 16, 5, 5), 16 * 25),
        "conv12_b": u(ks[3], (16,), 16 * 25),
        "bn1_gamma": jnp.ones((16,), jnp.float32),
        "bn1_beta": jnp.zeros((16,), jnp.float32),
        "bn1_mean": 0.1 * jax.random.normal(ks[4], (16,), jnp.float32),
        "bn1_var": jax.random.uniform(ks[5], (16,), jnp.float32, 0.5, 1.5),
        "conv2_w": u(ks[6], (32, 16, 5, 5), 16 * 25),
        "conv2_b": u(ks[7], (32,), 16 * 25),
        "conv22_w": u(ks[8], (32, 32, 5, 5), 32 * 25),
        "conv22_b": u(ks[9], (32,), 32 * 25),
        "bn2_gamma": jnp.ones((32,), jnp.float32),
        "bn2_beta": jnp.zeros((32,), jnp.float32),
        "bn2_mean": 0.1 * jax.random.normal(ks[10], (32,), jnp.float32),
        "bn2_var": jax.random.uniform(ks[11], (32,), jnp.float32, 0.5, 1.5),
        "fc_w": u(ks[12], (num_classes, F), F),   # torch Linear.weight layout (N, F)
        "fc_b": u(ks[13], (num_classes,), F),
    }
    return p


if __name__ == "__main__":
    num_classes = 10
    B = 2
    key = jax.random.PRNGKey(0)
    kp, kx = jax.random.split(key)
    params = init_params(kp, num_classes)
    # input spatial must be 256x256 so that 32*64*64 matches the fc in-features
    x = jax.random.normal(kx, (B, 1, 256, 256), jnp.float32)

    fwd = jax.jit(convnet_b_forward)
    out = jax.block_until_ready(fwd(x, params))

    assert out.shape == (B, num_classes)
    assert bool(jnp.all(jnp.isfinite(out)))
    assert bool(jnp.allclose(jnp.sum(out, axis=1), 1.0, atol=1e-4))
    print("KERNEL_OK")
</pallas_src>

<mosaic_0001>
module attributes {stable_mosaic.version = 11 : i64} {
  func.func @conv5x5_kernel(%arg0: i32, %arg1: i32, %arg2: memref<1x260x1x256xbf16, #tpu.memory_space<vmem>>, %arg3: memref<5x16x16xbf16, #tpu.memory_space<vmem>>, %arg4: memref<16x1xf32, #tpu.memory_space<vmem>>, %arg5: memref<1x32x16x256xbf16, #tpu.memory_space<vmem>>, %arg6: memref<36x16x256xbf16, #tpu.memory_space<vmem>>) attributes {dimension_semantics = [#tpu.dimension_semantics<parallel>, #tpu.dimension_semantics<parallel>], iteration_bounds = array<i64: 2, 8>, scalar_prefetch = 0 : i64, scratch_operands = 1 : i64, tpu.core_type = #tpu.core_type<tc>, window_params = [{transform_indices = @transform_0, window_bounds = array<i64: 1, 260, 1, 256>}, {pipeline_mode = #tpu.pipeline_mode<synchronous>, transform_indices = @transform_1, window_bounds = array<i64: 5, 16, 16>}, {pipeline_mode = #tpu.pipeline_mode<synchronous>, transform_indices = @transform_2, window_bounds = array<i64: 16, 1>}, {transform_indices = @transform_3, window_bounds = array<i64: 1, 32, 16, 256>}]} {
    %c32_i32 = arith.constant 32 : i32
    %0 = arith.muli %arg1, %c32_i32 : i32
    %1 = tpu.iota {dimensions = array<i32: 1>} : vector<1x256xi32>
    %c0_i32 = arith.constant 0 : i32
    %c36_i32 = arith.constant 36 : i32
    %2 = arith.addi %c0_i32, %c36_i32 : i32
    %c1_i32 = arith.constant 1 : i32
    scf.for %arg7 = %c0_i32 to %2 step %c1_i32  : i32 {
      %5 = arith.addi %0, %arg7 : i32
      %c0_6 = arith.constant 0 : index
      %6 = arith.index_cast %5 : i32 to index
      %c0_7 = arith.constant 0 : index
      %c0_8 = arith.constant 0 : index
      %7 = vector.load %arg2[%c0_6, %6, %c0_7, %c0_8] : memref<1x260x1x256xbf16, #tpu.memory_space<vmem>>, vector<1x1x1x256xbf16>
      %8 = vector.shape_cast %7 : vector<1x1x1x256xbf16> to vector<1x256xbf16>
      %9 = arith.extf %8 : vector<1x256xbf16> to vector<1x256xf32>
      %c2_i32 = arith.constant 2 : i32
      %10 = tpu.dynamic_rotate %9 by %c2_i32 dim 1 : vector<1x256xf32>, i32 -> vector<1x256xf32>
      %c2_i32_9 = arith.constant 2 : i32
      %11 = vector.broadcast %c2_i32_9 : i32 to vector<1x256xi32>
      %12 = arith.cmpi sge, %1, %11 : vector<1x256xi32>
      %cst = arith.constant 0.000000e+00 : f32
      %13 = vector.broadcast %cst : f32 to vector<1x256xf32>
      %14 = arith.select %12, %10, %13 : vector<1x256xi1>, vector<1x256xf32>
      %15 = arith.truncf %14 : vector<1x256xf32> to vector<1x256xbf16>
      %16 = arith.index_cast %arg7 : i32 to index
      %c0_10 = arith.constant 0 : index
      %c0_11 = arith.constant 0 : index
      %17 = vector.load %arg6[%16, %c0_10, %c0_11] : memref<36x16x256xbf16, #tpu.memory_space<vmem>>, vector<1x1x256xbf16>
      %18 = vector.shape_cast %17 : vector<1x1x256xbf16> to vector<1x256xbf16>
      %19 = vector.shape_cast %15 : vector<1x256xbf16> to vector<1x1x256xbf16>
      tpu.vector_store %arg6[%16, %c0_10, %c0_11], %19 {strides = array<i32>} : memref<36x16x256xbf16, #tpu.memory_space<vmem>>, vector<1x1x256xbf16>,
      %c1_i32_12 = arith.constant 1 : i32
      %20 = tpu.dynamic_rotate %9 by %c1_i32_12 dim 1 : vector<1x256xf32>, i32 -> vector<1x256xf32>
      %c1_i32_13 = arith.constant 1 : i32
      %21 = vector.broadcast %c1_i32_13 : i32 to vector<1x256xi32>
      %22 = arith.cmpi sge, %1, %21 : vector<1x256xi32>
      %cst_14 = arith.constant 0.000000e+00 : f32
      %23 = vector.broadcast %cst_14 : f32 to vector<1x256xf32>
      %24 = arith.select %22, %20, %23 : vector<1x256xi1>, vector<1x256xf32>
      %25 = arith.truncf %24 : vector<1x256xf32> to vector<1x256xbf16>
      %26 = arith.index_cast %arg7 : i32 to index
      %c1 = arith.constant 1 : index
      %c0_15 = arith.constant 0 : index
      %27 = vector.load %arg6[%26, %c1, %c0_15] : memref<36x16x256xbf16, #tpu.memory_space<vmem>>, vector<1x1x256xbf16>
      %28 = vector.shape_cast %27 : vector<1x1x256xbf16> to vector<1x256xbf16>
      %29 = vector.shape_cast %25 : vector<1x256xbf16> to vector<1x1x256xbf16>
      tpu.vector_store %arg6[%26, %c1, %c0_15], %29 {strides = array<i32>} : memref<36x16x256xbf16, #tpu.memory_space<vmem>>, vector<1x1x256xbf16>,
      %30 = arith.truncf %9 : vector<1x256xf32> to vector<1x256xbf16>
      %31 = arith.index_cast %arg7 : i32 to index
      %c2 = arith.constant 2 : index
      %c0_16 = arith.constant 0 : index
      %32 = vector.load %arg6[%31, %c2, %c0_16] : memref<36x16x256xbf16, #tpu.memory_space<vmem>>, vector<1x1x256xbf16>
      %33 = vector.shape_cast %32 : vector<1x1x256xbf16> to vector<1x256xbf16>
      %34 = vector.shape_cast %30 : vector<1x256xbf16> to vector<1x1x256xbf16>
      tpu.vector_store %arg6[%31, %c2, %c0_16], %34 {strides = array<i32>} : memref<36x16x256xbf16, #tpu.memory_space<vmem>>, vector<1x1x256xbf16>,
      %c255_i32 = arith.constant 255 : i32
      %35 = tpu.dynamic_rotate %9 by %c255_i32 dim 1 : vector<1x256xf32>, i32 -> vector<1x256xf32>
      %c255_i32_17 = arith.constant 255 : i32
      %36 = vector.broadcast %c255_i32_17 : i32 to vector<1x256xi32>
      %37 = arith.cmpi slt, %1, %36 : vector<1x256xi32>
      %cst_18 = arith.constant 0.000000e+00 : f32
      %38 = vector.broadcast %cst_18 : f32 to vector<1x256xf32>
      %39 = arith.select %37, %35, %38 : vector<1x256xi1>, vector<1x256xf32>
      %40 = arith.truncf %39 : vector<1x256xf32> to vector<1x256xbf16>
      %41 = arith.index_cast %arg7 : i32 to index
      %c3 = arith.constant 3 : index
      %c0_19 = arith.constant 0 : index
      %42 = vector.load %arg6[%41, %c3, %c0_19] : memref<36x16x256xbf16, #tpu.memory_space<vmem>>, vector<1x1x256xbf16>
      %43 = vector.shape_cast %42 : vector<1x1x256xbf16> to vector<1x256xbf16>
      %44 = vector.shape_cast %40 : vector<1x256xbf16> to vector<1x1x256xbf16>
      tpu.vector_store %arg6[%41, %c3, %c0_19], %44 {strides = array<i32>} : memref<36x16x256xbf16, #tpu.memory_space<vmem>>, vector<1x1x256xbf16>,
      %c254_i32 = arith.constant 254 : i32
      %45 = tpu.dynamic_rotate %9 by %c254_i32 dim 1 : vector<1x256xf32>, i32 -> vector<1x256xf32>
      %c254_i32_20 = arith.constant 254 : i32
      %46 = vector.broadcast %c254_i32_20 : i32 to vector<1x256xi32>
      %47 = arith.cmpi slt, %1, %46 : vector<1x256xi32>
      %cst_21 = arith.constant 0.000000e+00 : f32
      %48 = vector.broadcast %cst_21 : f32 to vector<1x256xf32>
      %49 = arith.select %47, %45, %48 : vector<1x256xi1>, vector<1x256xf32>
      %50 = arith.truncf %49 : vector<1x256xf32> to vector<1x256xbf16>
      %51 = arith.index_cast %arg7 : i32 to index
      %c4 = arith.constant 4 : index
      %c0_22 = arith.constant 0 : index
      %52 = vector.load %arg6[%51, %c4, %c0_22] : memref<36x16x256xbf16, #tpu.memory_space<vmem>>, vector<1x1x256xbf16>
      %53 = vector.shape_cast %52 : vector<1x1x256xbf16> to vector<1x256xbf16>
      %54 = vector.shape_cast %50 : vector<1x256xbf16> to vector<1x1x256xbf16>
      tpu.vector_store %arg6[%51, %c4, %c0_22], %54 {strides = array<i32>} : memref<36x16x256xbf16, #tpu.memory_space<vmem>>, vector<1x1x256xbf16>,
      %cst_23 = arith.constant 0.000000e+00 : bf16
      %55 = vector.broadcast %cst_23 : bf16 to vector<11x256xbf16>
      %56 = arith.index_cast %arg7 : i32 to index
      %c5 = arith.constant 5 : index
      %c0_24 = arith.constant 0 : index
      %57 = vector.load %arg6[%56, %c5, %c0_24] : memref<36x16x256xbf16, #tpu.memory_space<vmem>>, vector<1x11x256xbf16>
      %58 = vector.shape_cast %57 : vector<1x11x256xbf16> to vector<11x256xbf16>
      %59 = vector.shape_cast %55 : vector<11x256xbf16> to vector<1x11x256xbf16>
      tpu.vector_store %arg6[%56, %c5, %c0_24], %59 {strides = array<i32>} : memref<36x16x256xbf16, #tpu.memory_space<vmem>>, vector<1x11x256xbf16>,
    }
    %c36_i32_0 = arith.constant 36 : i32
    %c0 = arith.constant 0 : index
    %c0_1 = arith.constant 0 : index
    %3 = vector.load %arg4[%c0, %c0_1] : memref<16x1xf32, #tpu.memory_space<vmem>>, vector<16x1xf32>
    %c0_i32_2 = arith.constant 0 : i32
    %c32_i32_3 = arith.constant 32 : i32
    %4 = arith.addi %c0_i32_2, %c32_i32_3 : i32
    %c1_i32_4 = arith.constant 1 : i32
    scf.for %arg7 = %c0_i32_2 to %4 step %c1_i32_4  : i32 {
      %cst = arith.constant 0.000000e+00 : f32
      %5 = vector.broadcast %cst : f32 to vector<16x256xf32>
      %c0_i32_6 = arith.constant 0 : i32
      %6 = arith.addi %arg7, %c0_i32_6 : i32
      %7 = arith.index_cast %6 : i32 to index
      %c0_7 = arith.constant 0 : index
      %c0_8 = arith.constant 0 : index
      %8 = vector.load %arg6[%7, %c0_7, %c0_8] : memref<36x16x256xbf16, #tpu.memory_space<vmem>>, vector<1x16x256xbf16>
      %9 = vector.shape_cast %8 : vector<1x16x256xbf16> to vector<16x256xbf16>
      %c0_9 = arith.constant 0 : index
      %c0_10 = arith.constant 0 : index
      %c0_11 = arith.constant 0 : index
      %10 = vector.load %arg3[%c0_9, %c0_10, %c0_11] : memref<5x16x16xbf16, #tpu.memory_space<vmem>>, vector<1x16x16xbf16>
      %11 = vector.shape_cast %10 : vector<1x16x16xbf16> to vector<16x16xbf16>
      %cst_12 = arith.constant dense<0.000000e+00> : vector<16x256xf32>
      %12 = tpu.matmul %11, %9, %cst_12 {dimension_numbers = #tpu.dot_dimension_numbers<[1], [0], [0], [1], [0, 0, 1, 1], [], []>} : vector<16x16xbf16>, vector<16x256xbf16>, vector<16x256xf32> -> vector<16x256xf32>
      %13 = arith.addf %5, %12 : vector<16x256xf32>
      %c1_i32_13 = arith.constant 1 : i32
      %14 = arith.addi %arg7, %c1_i32_13 : i32
      %15 = arith.index_cast %14 : i32 to index
      %c0_14 = arith.constant 0 : index
      %c0_15 = arith.constant 0 : index
      %16 = vector.load %arg6[%15, %c0_14, %c0_15] : memref<36x16x256xbf16, #tpu.memory_space<vmem>>, vector<1x16x256xbf16>
      %17 = vector.shape_cast %16 : vector<1x16x256xbf16> to vector<16x256xbf16>
      %c1 = arith.constant 1 : index
      %c0_16 = arith.constant 0 : index
      %c0_17 = arith.constant 0 : index
      %18 = vector.load %arg3[%c1, %c0_16, %c0_17] : memref<5x16x16xbf16, #tpu.memory_space<vmem>>, vector<1x16x16xbf16>
      %19 = vector.shape_cast %18 : vector<1x16x16xbf16> to vector<16x16xbf16>
      %cst_18 = arith.constant dense<0.000000e+00> : vector<16x256xf32>
      %20 = tpu.matmul %19, %17, %cst_18 {dimension_numbers = #tpu.dot_dimension_numbers<[1], [0], [0], [1], [0, 0, 1, 1], [], []>} : vector<16x16xbf16>, vector<16x256xbf16>, vector<16x256xf32> -> vector<16x256xf32>
      %21 = arith.addf %13, %20 : vector<16x256xf32>
      %c2_i32 = arith.constant 2 : i32
      %22 = arith.addi %arg7, %c2_i32 : i32
      %23 = arith.index_cast %22 : i32 to index
      %c0_19 = arith.constant 0 : index
      %c0_20 = arith.constant 0 : index
      %24 = vector.load %arg6[%23, %c0_19, %c0_20] : memref<36x16x256xbf16, #tpu.memory_space<vmem>>, vector<1x16x256xbf16>
      %25 = vector.shape_cast %24 : vector<1x16x256xbf16> to vector<16x256xbf16>
      %c2 = arith.constant 2 : index
      %c0_21 = arith.constant 0 : index
      %c0_22 = arith.constant 0 : index
      %26 = vector.load %arg3[%c2, %c0_21, %c0_22] : memref<5x16x16xbf16, #tpu.memory_space<vmem>>, vector<1x16x16xbf16>
      %27 = vector.shape_cast %26 : vector<1x16x16xbf16> to vector<16x16xbf16>
      %cst_23 = arith.constant dense<0.000000e+00> : vector<16x256xf32>
      %28 = tpu.matmul %27, %25, %cst_23 {dimension_numbers = #tpu.dot_dimension_numbers<[1], [0], [0], [1], [0, 0, 1, 1], [], []>} : vector<16x16xbf16>, vector<16x256xbf16>, vector<16x256xf32> -> vector<16x256xf32>
      %29 = arith.addf %21, %28 : vector<16x256xf32>
      %c3_i32 = arith.constant 3 : i32
      %30 = arith.addi %arg7, %c3_i32 : i32
      %31 = arith.index_cast %30 : i32 to index
      %c0_24 = arith.constant 0 : index
      %c0_25 = arith.constant 0 : index
      %32 = vector.load %arg6[%31, %c0_24, %c0_25] : memref<36x16x256xbf16, #tpu.memory_space<vmem>>, vector<1x16x256xbf16>
      %33 = vector.shape_cast %32 : vector<1x16x256xbf16> to vector<16x256xbf16>
      %c3 = arith.constant 3 : index
      %c0_26 = arith.constant 0 : index
      %c0_27 = arith.constant 0 : index
      %34 = vector.load %arg3[%c3, %c0_26, %c0_27] : memref<5x16x16xbf16, #tpu.memory_space<vmem>>, vector<1x16x16xbf16>
      %35 = vector.shape_cast %34 : vector<1x16x16xbf16> to vector<16x16xbf16>
      %cst_28 = arith.constant dense<0.000000e+00> : vector<16x256xf32>
      %36 = tpu.matmul %35, %33, %cst_28 {dimension_numbers = #tpu.dot_dimension_numbers<[1], [0], [0], [1], [0, 0, 1, 1], [], []>} : vector<16x16xbf16>, vector<16x256xbf16>, vector<16x256xf32> -> vector<16x256xf32>
      %37 = arith.addf %29, %36 : vector<16x256xf32>
      %c4_i32 = arith.constant 4 : i32
      %38 = arith.addi %arg7, %c4_i32 : i32
      %39 = arith.index_cast %38 : i32 to index
      %c0_29 = arith.constant 0 : index
      %c0_30 = arith.constant 0 : index
      %40 = vector.load %arg6[%39, %c0_29, %c0_30] : memref<36x16x256xbf16, #tpu.memory_space<vmem>>, vector<1x16x256xbf16>
      %41 = vector.shape_cast %40 : vector<1x16x256xbf16> to vector<16x256xbf16>
      %c4 = arith.constant 4 : index
      %c0_31 = arith.constant 0 : index
      %c0_32 = arith.constant 0 : index
      %42 = vector.load %arg3[%c4, %c0_31, %c0_32] : memref<5x16x16xbf16, #tpu.memory_space<vmem>>, vector<1x16x16xbf16>
      %43 = vector.shape_cast %42 : vector<1x16x16xbf16> to vector<16x16xbf16>
      %cst_33 = arith.constant dense<0.000000e+00> : vector<16x256xf32>
      %44 = tpu.matmul %43, %41, %cst_33 {dimension_numbers = #tpu.dot_dimension_numbers<[1], [0], [0], [1], [0, 0, 1, 1], [], []>} : vector<16x16xbf16>, vector<16x256xbf16>, vector<16x256xf32> -> vector<16x256xf32>
      %45 = arith.addf %37, %44 : vector<16x256xf32>
      %46 = vector.broadcast %3 : vector<16x1xf32> to vector<16x256xf32>
      %47 = arith.addf %45, %46 : vector<16x256xf32>
      %48 = arith.truncf %47 : vector<16x256xf32> to vector<16x256xbf16>
      %c0_34 = arith.constant 0 : index
      %49 = arith.index_cast %arg7 : i32 to index
      %c0_35 = arith.constant 0 : index
      %c0_36 = arith.constant 0 : index
      %50 = vector.load %arg5[%c0_34, %49, %c0_35, %c0_36] : memref<1x32x16x256xbf16, #tpu.memory_space<vmem>>, vector<1x1x16x256xbf16>
      %51 = vector.shape_cast %50 : vector<1x1x16x256xbf16> to vector<16x256xbf16>
      %52 = vector.shape_cast %48 : vector<16x256xbf16> to vector<1x1x16x256xbf16>
      tpu.vector_store %arg5[%c0_34, %49, %c0_35, %c0_36], %52 {strides = array<i32>} : memref<1x32x16x256xbf16, #tpu.memory_space<vmem>>, vector<1x1x16x256xbf16>,
    }
    %c32_i32_5 = arith.constant 32 : i32
    return
  }
  func.func @transform_0(%arg0: i32, %arg1: i32) -> (i32, i32, i32, i32) {
    %c0_i32 = arith.constant 0 : i32
    %c0_i32_0 = arith.constant 0 : i32
    %c0_i32_1 = arith.constant 0 : i32
    %c0_i32_2 = arith.constant 0 : i32
    return %arg0, %c0_i32, %c0_i32_0, %c0_i32_1 : i32, i32, i32, i32
  }
  func.func @transform_1(%arg0: i32, %arg1: i32) -> (i32, i32, i32) {
    %c0_i32 = arith.constant 0 : i32
    %c0_i32_0 = arith.constant 0 : i32
    %c0_i32_1 = arith.constant 0 : i32
    %c0_i32_2 = arith.constant 0 : i32
    return %c0_i32, %c0_i32_0, %c0_i32_1 : i32, i32, i32
  }
  func.func @transform_2(%arg0: i32, %arg1: i32) -> (i32, i32) {
    %c0_i32 = arith.constant 0 : i32
    %c0_i32_0 = arith.constant 0 : i32
    %c0_i32_1 = arith.constant 0 : i32
    return %c0_i32, %c0_i32_0 : i32, i32
  }
  func.func @transform_3(%arg0: i32, %arg1: i32) -> (i32, i32, i32, i32) {
    %c0_i32 = arith.constant 0 : i32
    %c0_i32_0 = arith.constant 0 : i32
    %c0_i32_1 = arith.constant 0 : i32
    return %arg0, %arg1, %c0_i32, %c0_i32_0 : i32, i32, i32, i32
  }
}

module attributes {stable_mosaic.version = 11 : i64} {
  func.func @conv5x5_bn_relu_pool_kernel(%arg0: i32, %arg1: i32, %arg2: memref<1x260x16x256xbf16, #tpu.memory_space<vmem>>, %arg3: memref<5x16x80xbf16, #tpu.memory_space<vmem>>, %arg4: memref<16x1xf32, #tpu.memory_space<vmem>>, %arg5: memref<16x1xf32, #tpu.memory_space<vmem>>, %arg6: memref<256x128xbf16, #tpu.memory_space<vmem>>, %arg7: memref<256x128xbf16, #tpu.memory_space<vmem>>, %arg8: memref<1x16x16x128xbf16, #tpu.memory_space<vmem>>, %arg9: memref<36x80x256xbf16, #tpu.memory_space<vmem>>) attributes {dimension_semantics = [#tpu.dimension_semantics<parallel>, #tpu.dimension_semantics<parallel>], iteration_bounds = array<i64: 2, 8>, scalar_prefetch = 0 : i64, scratch_operands = 1 : i64, tpu.core_type = #tpu.core_type<tc>, window_params = [{transform_indices = @transform_0, window_bounds = array<i64: 1, 260, 16, 256>}, {pipeline_mode = #tpu.pipeline_mode<synchronous>, transform_indices = @transform_1, window_bounds = array<i64: 5, 16, 80>}, {pipeline_mode = #tpu.pipeline_mode<synchronous>, transform_indices = @transform_2, window_bounds = array<i64: 16, 1>}, {pipeline_mode = #tpu.pipeline_mode<synchronous>, transform_indices = @transform_3, window_bounds = array<i64: 16, 1>}, {pipeline_mode = #tpu.pipeline_mode<synchronous>, transform_indices = @transform_4, window_bounds = array<i64: 256, 128>}, {pipeline_mode = #tpu.pipeline_mode<synchronous>, transform_indices = @transform_5, window_bounds = array<i64: 256, 128>}, {transform_indices = @transform_6, window_bounds = array<i64: 1, 16, 16, 128>}]} {
    %c32_i32 = arith.constant 32 : i32
    %0 = arith.muli %arg1, %c32_i32 : i32
    %1 = tpu.iota {dimensions = array<i32: 1>} : vector<16x256xi32>
    %c0_i32 = arith.constant 0 : i32
    %c36_i32 = arith.constant 36 : i32
    %2 = arith.addi %c0_i32, %c36_i32 : i32
    %c1_i32 = arith.constant 1 : i32
    scf.for %arg10 = %c0_i32 to %2 step %c1_i32  : i32 {
      %6 = arith.addi %0, %arg10 : i32
      %c0_7 = arith.constant 0 : index
      %7 = arith.index_cast %6 : i32 to index
      %c0_8 = arith.constant 0 : index
      %c0_9 = arith.constant 0 : index
      %8 = vector.load %arg2[%c0_7, %7, %c0_8, %c0_9] : memref<1x260x16x256xbf16, #tpu.memory_space<vmem>>, vector<1x1x16x256xbf16>
      %9 = vector.shape_cast %8 : vector<1x1x16x256xbf16> to vector<16x256xbf16>
      %10 = arith.extf %9 : vector<16x256xbf16> to vector<16x256xf32>
      %c2_i32 = arith.constant 2 : i32
      %11 = tpu.dynamic_rotate %10 by %c2_i32 dim 1 : vector<16x256xf32>, i32 -> vector<16x256xf32>
      %c2_i32_10 = arith.constant 2 : i32
      %12 = vector.broadcast %c2_i32_10 : i32 to vector<16x256xi32>
      %13 = arith.cmpi sge, %1, %12 : vector<16x256xi32>
      %cst = arith.constant 0.000000e+00 : f32
      %14 = vector.broadcast %cst : f32 to vector<16x256xf32>
      %15 = arith.select %13, %11, %14 : vector<16x256xi1>, vector<16x256xf32>
      %16 = arith.truncf %15 : vector<16x256xf32> to vector<16x256xbf16>
      %17 = arith.index_cast %arg10 : i32 to index
      %c0_11 = arith.constant 0 : index
      %c0_12 = arith.constant 0 : index
      %18 = vector.load %arg9[%17, %c0_11, %c0_12] : memref<36x80x256xbf16, #tpu.memory_space<vmem>>, vector<1x16x256xbf16>
      %19 = vector.shape_cast %18 : vector<1x16x256xbf16> to vector<16x256xbf16>
      %20 = vector.shape_cast %16 : vector<16x256xbf16> to vector<1x16x256xbf16>
      tpu.vector_store %arg9[%17, %c0_11, %c0_12], %20 {strides = array<i32>} : memref<36x80x256xbf16, #tpu.memory_space<vmem>>, vector<1x16x256xbf16>,
      %c1_i32_13 = arith.constant 1 : i32
      %21 = tpu.dynamic_rotate %10 by %c1_i32_13 dim 1 : vector<16x256xf32>, i32 -> vector<16x256xf32>
      %c1_i32_14 = arith.constant 1 : i32
      %22 = vector.broadcast %c1_i32_14 : i32 to vector<16x256xi32>
      %23 = arith.cmpi sge, %1, %22 : vector<16x256xi32>
      %cst_15 = arith.constant 0.000000e+00 : f32
      %24 = vector.broadcast %cst_15 : f32 to vector<16x256xf32>
      %25 = arith.select %23, %21, %24 : vector<16x256xi1>, vector<16x256xf32>
      %26 = arith.truncf %25 : vector<16x256xf32> to vector<16x256xbf16>
      %27 = arith.index_cast %arg10 : i32 to index
      %c16 = arith.constant 16 : index
      %c0_16 = arith.constant 0 : index
      %28 = vector.load %arg9[%27, %c16, %c0_16] : memref<36x80x256xbf16, #tpu.memory_space<vmem>>, vector<1x16x256xbf16>
      %29 = vector.shape_cast %28 : vector<1x16x256xbf16> to vector<16x256xbf16>
      %30 = vector.shape_cast %26 : vector<16x256xbf16> to vector<1x16x256xbf16>
      tpu.vector_store %arg9[%27, %c16, %c0_16], %30 {strides = array<i32>} : memref<36x80x256xbf16, #tpu.memory_space<vmem>>, vector<1x16x256xbf16>,
      %31 = arith.truncf %10 : vector<16x256xf32> to vector<16x256xbf16>
      %32 = arith.index_cast %arg10 : i32 to index
      %c32 = arith.constant 32 : index
      %c0_17 = arith.constant 0 : index
      %33 = vector.load %arg9[%32, %c32, %c0_17] : memref<36x80x256xbf16, #tpu.memory_space<vmem>>, vector<1x16x256xbf16>
      %34 = vector.shape_cast %33 : vector<1x16x256xbf16> to vector<16x256xbf16>
      %35 = vector.shape_cast %31 : vector<16x256xbf16> to vector<1x16x256xbf16>
      tpu.vector_store %arg9[%32, %c32, %c0_17], %35 {strides = array<i32>} : memref<36x80x256xbf16, #tpu.memory_space<vmem>>, vector<1x16x256xbf16>,
      %c255_i32 = arith.constant 255 : i32
      %36 = tpu.dynamic_rotate %10 by %c255_i32 dim 1 : vector<16x256xf32>, i32 -> vector<16x256xf32>
      %c255_i32_18 = arith.constant 255 : i32
      %37 = vector.broadcast %c255_i32_18 : i32 to vector<16x256xi32>
      %38 = arith.cmpi slt, %1, %37 : vector<16x256xi32>
      %cst_19 = arith.constant 0.000000e+00 : f32
      %39 = vector.broadcast %cst_19 : f32 to vector<16x256xf32>
      %40 = arith.select %38, %36, %39 : vector<16x256xi1>, vector<16x256xf32>
      %41 = arith.truncf %40 : vector<16x256xf32> to vector<16x256xbf16>
      %42 = arith.index_cast %arg10 : i32 to index
      %c48 = arith.constant 48 : index
      %c0_20 = arith.constant 0 : index
      %43 = vector.load %arg9[%42, %c48, %c0_20] : memref<36x80x256xbf16, #tpu.memory_space<vmem>>, vector<1x16x256xbf16>
      %44 = vector.shape_cast %43 : vector<1x16x256xbf16> to vector<16x256xbf16>
      %45 = vector.shape_cast %41 : vector<16x256xbf16> to vector<1x16x256xbf16>
      tpu.vector_store %arg9[%42, %c48, %c0_20], %45 {strides = array<i32>} : memref<36x80x256xbf16, #tpu.memory_space<vmem>>, vector<1x16x256xbf16>,
      %c254_i32 = arith.constant 254 : i32
      %46 = tpu.dynamic_rotate %10 by %c254_i32 dim 1 : vector<16x256xf32>, i32 -> vector<16x256xf32>
      %c254_i32_21 = arith.constant 254 : i32
      %47 = vector.broadcast %c254_i32_21 : i32 to vector<16x256xi32>
      %48 = arith.cmpi slt, %1, %47 : vector<16x256xi32>
      %cst_22 = arith.constant 0.000000e+00 : f32
      %49 = vector.broadcast %cst_22 : f32 to vector<16x256xf32>
      %50 = arith.select %48, %46, %49 : vector<16x256xi1>, vector<16x256xf32>
      %51 = arith.truncf %50 : vector<16x256xf32> to vector<16x256xbf16>
      %52 = arith.index_cast %arg10 : i32 to index
      %c64 = arith.constant 64 : index
      %c0_23 = arith.constant 0 : index
      %53 = vector.load %arg9[%52, %c64, %c0_23] : memref<36x80x256xbf16, #tpu.memory_space<vmem>>, vector<1x16x256xbf16>
      %54 = vector.shape_cast %53 : vector<1x16x256xbf16> to vector<16x256xbf16>
      %55 = vector.shape_cast %51 : vector<16x256xbf16> to vector<1x16x256xbf16>
      tpu.vector_store %arg9[%52, %c64, %c0_23], %55 {strides = array<i32>} : memref<36x80x256xbf16, #tpu.memory_space<vmem>>, vector<1x16x256xbf16>,
    }
    %c36_i32_0 = arith.constant 36 : i32
    %c0 = arith.constant 0 : index
    %c0_1 = arith.constant 0 : index
    %3 = vector.load %arg4[%c0, %c0_1] : memref<16x1xf32, #tpu.memory_space<vmem>>, vector<16x1xf32>
    %c0_2 = arith.constant 0 : index
    %c0_3 = arith.constant 0 : index
    %4 = vector.load %arg5[%c0_2, %c0_3] : memref<16x1xf32, #tpu.memory_space<vmem>>, vector<16x1xf32>
    %c0_i32_4 = arith.constant 0 : i32
    %c16_i32 = arith.constant 16 : i32
    %5 = arith.addi %c0_i32_4, %c16_i32 : i32
    %c1_i32_5 = arith.constant 1 : i32
    scf.for %arg10 = %c0_i32_4 to %5 step %c1_i32_5  : i32 {
      %c2_i32 = arith.constant 2 : i32
      %6 = arith.muli %c2_i32, %arg10 : i32
      %cst = arith.constant 0.000000e+00 : f32
      %7 = vector.broadcast %cst : f32 to vector<16x256xf32>
      %c0_i32_7 = arith.constant 0 : i32
      %8 = arith.addi %6, %c0_i32_7 : i32
      %9 = arith.index_cast %8 : i32 to index
      %c0_8 = arith.constant 0 : index
      %c0_9 = arith.constant 0 : index
      %10 = vector.load %arg9[%9, %c0_8, %c0_9] : memref<36x80x256xbf16, #tpu.memory_space<vmem>>, vector<1x80x256xbf16>
      %11 = vector.shape_cast %10 : vector<1x80x256xbf16> to vector<80x256xbf16>
      %c0_10 = arith.constant 0 : index
      %c0_11 = arith.constant 0 : index
      %c0_12 = arith.constant 0 : index
      %12 = vector.load %arg3[%c0_10, %c0_11, %c0_12] : memref<5x16x80xbf16, #tpu.memory_space<vmem>>, vector<1x16x80xbf16>
      %13 = vector.shape_cast %12 : vector<1x16x80xbf16> to vector<16x80xbf16>
      %cst_13 = arith.constant dense<0.000000e+00> : vector<16x256xf32>
      %14 = tpu.matmul %13, %11, %cst_13 {dimension_numbers = #tpu.dot_dimension_numbers<[1], [0], [0], [1], [0, 0, 1, 1], [], []>} : vector<16x80xbf16>, vector<80x256xbf16>, vector<16x256xf32> -> vector<16x256xf32>
      %15 = arith.addf %7, %14 : vector<16x256xf32>
      %c1_i32_14 = arith.constant 1 : i32
      %16 = arith.addi %6, %c1_i32_14 : i32
      %17 = arith.index_cast %16 : i32 to index
      %c0_15 = arith.constant 0 : index
      %c0_16 = arith.constant 0 : index
      %18 = vector.load %arg9[%17, %c0_15, %c0_16] : memref<36x80x256xbf16, #tpu.memory_space<vmem>>, vector<1x80x256xbf16>
      %19 = vector.shape_cast %18 : vector<1x80x256xbf16> to vector<80x256xbf16>
      %c1 = arith.constant 1 : index
      %c0_17 = arith.constant 0 : index
      %c0_18 = arith.constant 0 : index
      %20 = vector.load %arg3[%c1, %c0_17, %c0_18] : memref<5x16x80xbf16, #tpu.memory_space<vmem>>, vector<1x16x80xbf16>
      %21 = vector.shape_cast %20 : vector<1x16x80xbf16> to vector<16x80xbf16>
      %cst_19 = arith.constant dense<0.000000e+00> : vector<16x256xf32>
      %22 = tpu.matmul %21, %19, %cst_19 {dimension_numbers = #tpu.dot_dimension_numbers<[1], [0], [0], [1], [0, 0, 1, 1], [], []>} : vector<16x80xbf16>, vector<80x256xbf16>, vector<16x256xf32> -> vector<16x256xf32>
      %23 = arith.addf %15, %22 : vector<16x256xf32>
      %c2_i32_20 = arith.constant 2 : i32
      %24 = arith.addi %6, %c2_i32_20 : i32
      %25 = arith.index_cast %24 : i32 to index
      %c0_21 = arith.constant 0 : index
      %c0_22 = arith.constant 0 : index
      %26 = vector.load %arg9[%25, %c0_21, %c0_22] : memref<36x80x256xbf16, #tpu.memory_space<vmem>>, vector<1x80x256xbf16>
      %27 = vector.shape_cast %26 : vector<1x80x256xbf16> to vector<80x256xbf16>
      %c2 = arith.constant 2 : index
      %c0_23 = arith.constant 0 : index
      %c0_24 = arith.constant 0 : index
      %28 = vector.load %arg3[%c2, %c0_23, %c0_24] : memref<5x16x80xbf16, #tpu.memory_space<vmem>>, vector<1x16x80xbf16>
      %29 = vector.shape_cast %28 : vector<1x16x80xbf16> to vector<16x80xbf16>
      %cst_25 = arith.constant dense<0.000000e+00> : vector<16x256xf32>
      %30 = tpu.matmul %29, %27, %cst_25 {dimension_numbers = #tpu.dot_dimension_numbers<[1], [0], [0], [1], [0, 0, 1, 1], [], []>} : vector<16x80xbf16>, vector<80x256xbf16>, vector<16x256xf32> -> vector<16x256xf32>
      %31 = arith.addf %23, %30 : vector<16x256xf32>
      %c3_i32 = arith.constant 3 : i32
      %32 = arith.addi %6, %c3_i32 : i32
      %33 = arith.index_cast %32 : i32 to index
      %c0_26 = arith.constant 0 : index
      %c0_27 = arith.constant 0 : index
      %34 = vector.load %arg9[%33, %c0_26, %c0_27] : memref<36x80x256xbf16, #tpu.memory_space<vmem>>, vector<1x80x256xbf16>
      %35 = vector.shape_cast %34 : vector<1x80x256xbf16> to vector<80x256xbf16>
      %c3 = arith.constant 3 : index
      %c0_28 = arith.constant 0 : index
      %c0_29 = arith.constant 0 : index
      %36 = vector.load %arg3[%c3, %c0_28, %c0_29] : memref<5x16x80xbf16, #tpu.memory_space<vmem>>, vector<1x16x80xbf16>
      %37 = vector.shape_cast %36 : vector<1x16x80xbf16> to vector<16x80xbf16>
      %cst_30 = arith.constant dense<0.000000e+00> : vector<16x256xf32>
      %38 = tpu.matmul %37, %35, %cst_30 {dimension_numbers = #tpu.dot_dimension_numbers<[1], [0], [0], [1], [0, 0, 1, 1], [], []>} : vector<16x80xbf16>, vector<80x256xbf16>, vector<16x256xf32> -> vector<16x256xf32>
      %39 = arith.addf %31, %38 : vector<16x256xf32>
      %c4_i32 = arith.constant 4 : i32
      %40 = arith.addi %6, %c4_i32 : i32
      %41 = arith.index_cast %40 : i32 to index
      %c0_31 = arith.constant 0 : index
      %c0_32 = arith.constant 0 : index
      %42 = vector.load %arg9[%41, %c0_31, %c0_32] : memref<36x80x256xbf16, #tpu.memory_space<vmem>>, vector<1x80x256xbf16>
      %43 = vector.shape_cast %42 : vector<1x80x256xbf16> to vector<80x256xbf16>
      %c4 = arith.constant 4 : index
      %c0_33 = arith.constant 0 : index
      %c0_34 = arith.constant 0 : index
      %44 = vector.load %arg3[%c4, %c0_33, %c0_34] : memref<5x16x80xbf16, #tpu.memory_space<vmem>>, vector<1x16x80xbf16>
      %45 = vector.shape_cast %44 : vector<1x16x80xbf16> to vector<16x80xbf16>
      %cst_35 = arith.constant dense<0.000000e+00> : vector<16x256xf32>
      %46 = tpu.matmul %45, %43, %cst_35 {dimension_numbers = #tpu.dot_dimension_numbers<[1], [0], [0], [1], [0, 0, 1, 1], [], []>} : vector<16x80xbf16>, vector<80x256xbf16>, vector<16x256xf32> -> vector<16x256xf32>
      %47 = arith.addf %39, %46 : vector<16x256xf32>
      %48 = vector.broadcast %3 : vector<16x1xf32> to vector<16x256xf32>
      %49 = arith.mulf %47, %48 : vector<16x256xf32>
      %50 = vector.broadcast %4 : vector<16x1xf32> to vector<16x256xf32>
      %51 = arith.addf %49, %50 : vector<16x256xf32>
      %cst_36 = arith.constant 0.000000e+00 : f32
      %52 = vector.broadcast %cst_36 : f32 to vector<16x256xf32>
      %53 = arith.maximumf %51, %52 : vector<16x256xf32>
      %c2_i32_37 = arith.constant 2 : i32
      %54 = arith.muli %c2_i32_37, %arg10 : i32
      %c1_i32_38 = arith.constant 1 : i32
      %55 = arith.addi %54, %c1_i32_38 : i32
      %cst_39 = arith.constant 0.000000e+00 : f32
      %56 = vector.broadcast %cst_39 : f32 to vector<16x256xf32>
      %c0_i32_40 = arith.constant 0 : i32
      %57 = arith.addi %55, %c0_i32_40 : i32
      %58 = arith.index_cast %57 : i32 to index
      %c0_41 = arith.constant 0 : index
      %c0_42 = arith.constant 0 : index
      %59 = vector.load %arg9[%58, %c0_41, %c0_42] : memref<36x80x256xbf16, #tpu.memory_space<vmem>>, vector<1x80x256xbf16>
      %60 = vector.shape_cast %59 : vector<1x80x256xbf16> to vector<80x256xbf16>
      %c0_43 = arith.constant 0 : index
      %c0_44 = arith.constant 0 : index
      %c0_45 = arith.constant 0 : index
      %61 = vector.load %arg3[%c0_43, %c0_44, %c0_45] : memref<5x16x80xbf16, #tpu.memory_space<vmem>>, vector<1x16x80xbf16>
      %62 = vector.shape_cast %61 : vector<1x16x80xbf16> to vector<16x80xbf16>
      %cst_46 = arith.constant dense<0.000000e+00> : vector<16x256xf32>
      %63 = tpu.matmul %62, %60, %cst_46 {dimension_numbers = #tpu.dot_dimension_numbers<[1], [0], [0], [1], [0, 0, 1, 1], [], []>} : vector<16x80xbf16>, vector<80x256xbf16>, vector<16x256xf32> -> vector<16x256xf32>
      %64 = arith.addf %56, %63 : vector<16x256xf32>
      %c1_i32_47 = arith.constant 1 : i32
      %65 = arith.addi %55, %c1_i32_47 : i32
      %66 = arith.index_cast %65 : i32 to index
      %c0_48 = arith.constant 0 : index
      %c0_49 = arith.constant 0 : index
      %67 = vector.load %arg9[%66, %c0_48, %c0_49] : memref<36x80x256xbf16, #tpu.memory_space<vmem>>, vector<1x80x256xbf16>
      %68 = vector.shape_cast %67 : vector<1x80x256xbf16> to vector<80x256xbf16>
      %c1_50 = arith.constant 1 : index
      %c0_51 = arith.constant 0 : index
      %c0_52 = arith.constant 0 : index
      %69 = vector.load %arg3[%c1_50, %c0_51, %c0_52] : memref<5x16x80xbf16, #tpu.memory_space<vmem>>, vector<1x16x80xbf16>
      %70 = vector.shape_cast %69 : vector<1x16x80xbf16> to vector<16x80xbf16>
      %cst_53 = arith.constant dense<0.000000e+00> : vector<16x256xf32>
      %71 = tpu.matmul %70, %68, %cst_53 {dimension_numbers = #tpu.dot_dimension_numbers<[1], [0], [0], [1], [0, 0, 1, 1], [], []>} : vector<16x80xbf16>, vector<80x256xbf16>, vector<16x256xf32> -> vector<16x256xf32>
      %72 = arith.addf %64, %71 : vector<16x256xf32>
      %c2_i32_54 = arith.constant 2 : i32
      %73 = arith.addi %55, %c2_i32_54 : i32
      %74 = arith.index_cast %73 : i32 to index
      %c0_55 = arith.constant 0 : index
      %c0_56 = arith.constant 0 : index
      %75 = vector.load %arg9[%74, %c0_55, %c0_56] : memref<36x80x256xbf16, #tpu.memory_space<vmem>>, vector<1x80x256xbf16>
      %76 = vector.shape_cast %75 : vector<1x80x256xbf16> to vector<80x256xbf16>
      %c2_57 = arith.constant 2 : index
      %c0_58 = arith.constant 0 : index
      %c0_59 = arith.constant 0 : index
      %77 = vector.load %arg3[%c2_57, %c0_58, %c0_59] : memref<5x16x80xbf16, #tpu.memory_space<vmem>>, vector<1x16x80xbf16>
      %78 = vector.shape_cast %77 : vector<1x16x80xbf16> to vector<16x80xbf16>
      %cst_60 = arith.constant dense<0.000000e+00> : vector<16x256xf32>
      %79 = tpu.matmul %78, %76, %cst_60 {dimension_numbers = #tpu.dot_dimension_numbers<[1], [0], [0], [1], [0, 0, 1, 1], [], []>} : vector<16x80xbf16>, vector<80x256xbf16>, vector<16x256xf32> -> vector<16x256xf32>
      %80 = arith.addf %72, %79 : vector<16x256xf32>
      %c3_i32_61 = arith.constant 3 : i32
      %81 = arith.addi %55, %c3_i32_61 : i32
      %82 = arith.index_cast %81 : i32 to index
      %c0_62 = arith.constant 0 : index
      %c0_63 = arith.constant 0 : index
      %83 = vector.load %arg9[%82, %c0_62, %c0_63] : memref<36x80x256xbf16, #tpu.memory_space<vmem>>, vector<1x80x256xbf16>
      %84 = vector.shape_cast %83 : vector<1x80x256xbf16> to vector<80x256xbf16>
      %c3_64 = arith.constant 3 : index
      %c0_65 = arith.constant 0 : index
      %c0_66 = arith.constant 0 : index
      %85 = vector.load %arg3[%c3_64, %c0_65, %c0_66] : memref<5x16x80xbf16, #tpu.memory_space<vmem>>, vector<1x16x80xbf16>
      %86 = vector.shape_cast %85 : vector<1x16x80xbf16> to vector<16x80xbf16>
      %cst_67 = arith.constant dense<0.000000e+00> : vector<16x256xf32>
      %87 = tpu.matmul %86, %84, %cst_67 {dimension_numbers = #tpu.dot_dimension_numbers<[1], [0], [0], [1], [0, 0, 1, 1], [], []>} : vector<16x80xbf16>, vector<80x256xbf16>, vector<16x256xf32> -> vector<16x256xf32>
      %88 = arith.addf %80, %87 : vector<16x256xf32>
      %c4_i32_68 = arith.constant 4 : i32
      %89 = arith.addi %55, %c4_i32_68 : i32
      %90 = arith.index_cast %89 : i32 to index
      %c0_69 = arith.constant 0 : index
      %c0_70 = arith.constant 0 : index
      %91 = vector.load %arg9[%90, %c0_69, %c0_70] : memref<36x80x256xbf16, #tpu.memory_space<vmem>>, vector<1x80x256xbf16>
      %92 = vector.shape_cast %91 : vector<1x80x256xbf16> to vector<80x256xbf16>
      %c4_71 = arith.constant 4 : index
      %c0_72 = arith.constant 0 : index
      %c0_73 = arith.constant 0 : index
      %93 = vector.load %arg3[%c4_71, %c0_72, %c0_73] : memref<5x16x80xbf16, #tpu.memory_space<vmem>>, vector<1x16x80xbf16>
      %94 = vector.shape_cast %93 : vector<1x16x80xbf16> to vector<16x80xbf16>
      %cst_74 = arith.constant dense<0.000000e+00> : vector<16x256xf32>
      %95 = tpu.matmul %94, %92, %cst_74 {dimension_numbers = #tpu.dot_dimension_numbers<[1], [0], [0], [1], [0, 0, 1, 1], [], []>} : vector<16x80xbf16>, vector<80x256xbf16>, vector<16x256xf32> -> vector<16x256xf32>
      %96 = arith.addf %88, %95 : vector<16x256xf32>
      %97 = vector.broadcast %3 : vector<16x1xf32> to vector<16x256xf32>
      %98 = arith.mulf %96, %97 : vector<16x256xf32>
      %99 = vector.broadcast %4 : vector<16x1xf32> to vector<16x256xf32>
      %100 = arith.addf %98, %99 : vector<16x256xf32>
      %cst_75 = arith.constant 0.000000e+00 : f32
      %101 = vector.broadcast %cst_75 : f32 to vector<16x256xf32>
      %102 = arith.maximumf %100, %101 : vector<16x256xf32>
      %103 = arith.maximumf %53, %102 : vector<16x256xf32>
      %104 = arith.truncf %103 : vector<16x256xf32> to vector<16x256xbf16>
      %c0_76 = arith.constant 0 : index
      %c0_77 = arith.constant 0 : index
      %105 = vector.load %arg6[%c0_76, %c0_77] : memref<256x128xbf16, #tpu.memory_space<vmem>>, vector<256x128xbf16>
      %cst_78 = arith.constant dense<0.000000e+00> : vector<16x128xf32>
      %106 = tpu.matmul %104, %105, %cst_78 {dimension_numbers = #tpu.dot_dimension_numbers<[1], [0], [0], [1], [0, 0, 1, 1], [], []>} : vector<16x256xbf16>, vector<256x128xbf16>, vector<16x128xf32> -> vector<16x128xf32>
      %c0_79 = arith.constant 0 : index
      %c0_80 = arith.constant 0 : index
      %107 = vector.load %arg7[%c0_79, %c0_80] : memref<256x128xbf16, #tpu.memory_space<vmem>>, vector<256x128xbf16>
      %cst_81 = arith.constant dense<0.000000e+00> : vector<16x128xf32>
      %108 = tpu.matmul %104, %107, %cst_81 {dimension_numbers = #tpu.dot_dimension_numbers<[1], [0], [0], [1], [0, 0, 1, 1], [], []>} : vector<16x256xbf16>, vector<256x128xbf16>, vector<16x128xf32> -> vector<16x128xf32>
      %109 = arith.maximumf %106, %108 : vector<16x128xf32>
      %110 = arith.truncf %109 : vector<16x128xf32> to vector<16x128xbf16>
      %c0_82 = arith.constant 0 : index
      %111 = arith.index_cast %arg10 : i32 to index
      %c0_83 = arith.constant 0 : index
      %c0_84 = arith.constant 0 : index
      %112 = vector.load %arg8[%c0_82, %111, %c0_83, %c0_84] : memref<1x16x16x128xbf16, #tpu.memory_space<vmem>>, vector<1x1x16x128xbf16>
      %113 = vector.shape_cast %112 : vector<1x1x16x128xbf16> to vector<16x128xbf16>
      %114 = vector.shape_cast %110 : vector<16x128xbf16> to vector<1x1x16x128xbf16>
      tpu.vector_store %arg8[%c0_82, %111, %c0_83, %c0_84], %114 {strides = array<i32>} : memref<1x16x16x128xbf16, #tpu.memory_space<vmem>>, vector<1x1x16x128xbf16>,
    }
    %c16_i32_6 = arith.constant 16 : i32
    return
  }
  func.func @transform_0(%arg0: i32, %arg1: i32) -> (i32, i32, i32, i32) {
    %c0_i32 = arith.constant 0 : i32
    %c0_i32_0 = arith.constant 0 : i32
    %c0_i32_1 = arith.constant 0 : i32
    %c0_i32_2 = arith.constant 0 : i32
    return %arg0, %c0_i32, %c0_i32_0, %c0_i32_1 : i32, i32, i32, i32
  }
  func.func @transform_1(%arg0: i32, %arg1: i32) -> (i32, i32, i32) {
    %c0_i32 = arith.constant 0 : i32
    %c0_i32_0 = arith.constant 0 : i32
    %c0_i32_1 = arith.constant 0 : i32
    %c0_i32_2 = arith.constant 0 : i32
    return %c0_i32, %c0_i32_0, %c0_i32_1 : i32, i32, i32
  }
  func.func @transform_2(%arg0: i32, %arg1: i32) -> (i32, i32) {
    %c0_i32 = arith.constant 0 : i32
    %c0_i32_0 = arith.constant 0 : i32
    %c0_i32_1 = arith.constant 0 : i32
    return %c0_i32, %c0_i32_0 : i32, i32
  }
  func.func @transform_3(%arg0: i32, %arg1: i32) -> (i32, i32) {
    %c0_i32 = arith.constant 0 : i32
    %c0_i32_0 = arith.constant 0 : i32
    %c0_i32_1 = arith.constant 0 : i32
    return %c0_i32, %c0_i32_0 : i32, i32
  }
  func.func @transform_4(%arg0: i32, %arg1: i32) -> (i32, i32) {
    %c0_i32 = arith.constant 0 : i32
    %c0_i32_0 = arith.constant 0 : i32
    %c0_i32_1 = arith.constant 0 : i32
    return %c0_i32, %c0_i32_0 : i32, i32
  }
  func.func @transform_5(%arg0: i32, %arg1: i32) -> (i32, i32) {
    %c0_i32 = arith.constant 0 : i32
    %c0_i32_0 = arith.constant 0 : i32
    %c0_i32_1 = arith.constant 0 : i32
    return %c0_i32, %c0_i32_0 : i32, i32
  }
  func.func @transform_6(%arg0: i32, %arg1: i32) -> (i32, i32, i32, i32) {
    %c0_i32 = arith.constant 0 : i32
    %c0_i32_0 = arith.constant 0 : i32
    %c0_i32_1 = arith.constant 0 : i32
    return %arg0, %arg1, %c0_i32, %c0_i32_0 : i32, i32, i32, i32
  }
}

module attributes {stable_mosaic.version = 11 : i64} {
  func.func @conv5x5_kernel(%arg0: i32, %arg1: i32, %arg2: memref<1x132x16x128xbf16, #tpu.memory_space<vmem>>, %arg3: memref<5x32x80xbf16, #tpu.memory_space<vmem>>, %arg4: memref<32x1xf32, #tpu.memory_space<vmem>>, %arg5: memref<1x32x32x128xbf16, #tpu.memory_space<vmem>>, %arg6: memref<36x80x128xbf16, #tpu.memory_space<vmem>>) attributes {dimension_semantics = [#tpu.dimension_semantics<parallel>, #tpu.dimension_semantics<parallel>], iteration_bounds = array<i64: 2, 4>, scalar_prefetch = 0 : i64, scratch_operands = 1 : i64, tpu.core_type = #tpu.core_type<tc>, window_params = [{transform_indices = @transform_0, window_bounds = array<i64: 1, 132, 16, 128>}, {pipeline_mode = #tpu.pipeline_mode<synchronous>, transform_indices = @transform_1, window_bounds = array<i64: 5, 32, 80>}, {pipeline_mode = #tpu.pipeline_mode<synchronous>, transform_indices = @transform_2, window_bounds = array<i64: 32, 1>}, {transform_indices = @transform_3, window_bounds = array<i64: 1, 32, 32, 128>}]} {
    %c32_i32 = arith.constant 32 : i32
    %0 = arith.muli %arg1, %c32_i32 : i32
    %1 = tpu.iota {dimensions = array<i32: 1>} : vector<16x128xi32>
    %c0_i32 = arith.constant 0 : i32
    %c36_i32 = arith.constant 36 : i32
    %2 = arith.addi %c0_i32, %c36_i32 : i32
    %c1_i32 = arith.constant 1 : i32
    scf.for %arg7 = %c0_i32 to %2 step %c1_i32  : i32 {
      %5 = arith.addi %0, %arg7 : i32
      %c0_6 = arith.constant 0 : index
      %6 = arith.index_cast %5 : i32 to index
      %c0_7 = arith.constant 0 : index
      %c0_8 = arith.constant 0 : index
      %7 = vector.load %arg2[%c0_6, %6, %c0_7, %c0_8] : memref<1x132x16x128xbf16, #tpu.memory_space<vmem>>, vector<1x1x16x128xbf16>
      %8 = vector.shape_cast %7 : vector<1x1x16x128xbf16> to vector<16x128xbf16>
      %9 = arith.extf %8 : vector<16x128xbf16> to vector<16x128xf32>
      %c2_i32 = arith.constant 2 : i32
      %10 = tpu.dynamic_rotate %9 by %c2_i32 dim 1 : vector<16x128xf32>, i32 -> vector<16x128xf32>
      %c2_i32_9 = arith.constant 2 : i32
      %11 = vector.broadcast %c2_i32_9 : i32 to vector<16x128xi32>
      %12 = arith.cmpi sge, %1, %11 : vector<16x128xi32>
      %cst = arith.constant 0.000000e+00 : f32
      %13 = vector.broadcast %cst : f32 to vector<16x128xf32>
      %14 = arith.select %12, %10, %13 : vector<16x128xi1>, vector<16x128xf32>
      %15 = arith.truncf %14 : vector<16x128xf32> to vector<16x128xbf16>
      %16 = arith.index_cast %arg7 : i32 to index
      %c0_10 = arith.constant 0 : index
      %c0_11 = arith.constant 0 : index
      %17 = vector.load %arg6[%16, %c0_10, %c0_11] : memref<36x80x128xbf16, #tpu.memory_space<vmem>>, vector<1x16x128xbf16>
      %18 = vector.shape_cast %17 : vector<1x16x128xbf16> to vector<16x128xbf16>
      %19 = vector.shape_cast %15 : vector<16x128xbf16> to vector<1x16x128xbf16>
      tpu.vector_store %arg6[%16, %c0_10, %c0_11], %19 {strides = array<i32>} : memref<36x80x128xbf16, #tpu.memory_space<vmem>>, vector<1x16x128xbf16>,
      %c1_i32_12 = arith.constant 1 : i32
      %20 = tpu.dynamic_rotate %9 by %c1_i32_12 dim 1 : vector<16x128xf32>, i32 -> vector<16x128xf32>
      %c1_i32_13 = arith.constant 1 : i32
      %21 = vector.broadcast %c1_i32_13 : i32 to vector<16x128xi32>
      %22 = arith.cmpi sge, %1, %21 : vector<16x128xi32>
      %cst_14 = arith.constant 0.000000e+00 : f32
      %23 = vector.broadcast %cst_14 : f32 to vector<16x128xf32>
      %24 = arith.select %22, %20, %23 : vector<16x128xi1>, vector<16x128xf32>
      %25 = arith.truncf %24 : vector<16x128xf32> to vector<16x128xbf16>
      %26 = arith.index_cast %arg7 : i32 to index
      %c16 = arith.constant 16 : index
      %c0_15 = arith.constant 0 : index
      %27 = vector.load %arg6[%26, %c16, %c0_15] : memref<36x80x128xbf16, #tpu.memory_space<vmem>>, vector<1x16x128xbf16>
      %28 = vector.shape_cast %27 : vector<1x16x128xbf16> to vector<16x128xbf16>
      %29 = vector.shape_cast %25 : vector<16x128xbf16> to vector<1x16x128xbf16>
      tpu.vector_store %arg6[%26, %c16, %c0_15], %29 {strides = array<i32>} : memref<36x80x128xbf16, #tpu.memory_space<vmem>>, vector<1x16x128xbf16>,
      %30 = arith.truncf %9 : vector<16x128xf32> to vector<16x128xbf16>
      %31 = arith.index_cast %arg7 : i32 to index
      %c32 = arith.constant 32 : index
      %c0_16 = arith.constant 0 : index
      %32 = vector.load %arg6[%31, %c32, %c0_16] : memref<36x80x128xbf16, #tpu.memory_space<vmem>>, vector<1x16x128xbf16>
      %33 = vector.shape_cast %32 : vector<1x16x128xbf16> to vector<16x128xbf16>
      %34 = vector.shape_cast %30 : vector<16x128xbf16> to vector<1x16x128xbf16>
      tpu.vector_store %arg6[%31, %c32, %c0_16], %34 {strides = array<i32>} : memref<36x80x128xbf16, #tpu.memory_space<vmem>>, vector<1x16x128xbf16>,
      %c127_i32 = arith.constant 127 : i32
      %35 = tpu.dynamic_rotate %9 by %c127_i32 dim 1 : vector<16x128xf32>, i32 -> vector<16x128xf32>
      %c127_i32_17 = arith.constant 127 : i32
      %36 = vector.broadcast %c127_i32_17 : i32 to vector<16x128xi32>
      %37 = arith.cmpi slt, %1, %36 : vector<16x128xi32>
      %cst_18 = arith.constant 0.000000e+00 : f32
      %38 = vector.broadcast %cst_18 : f32 to vector<16x128xf32>
      %39 = arith.select %37, %35, %38 : vector<16x128xi1>, vector<16x128xf32>
      %40 = arith.truncf %39 : vector<16x128xf32> to vector<16x128xbf16>
      %41 = arith.index_cast %arg7 : i32 to index
      %c48 = arith.constant 48 : index
      %c0_19 = arith.constant 0 : index
      %42 = vector.load %arg6[%41, %c48, %c0_19] : memref<36x80x128xbf16, #tpu.memory_space<vmem>>, vector<1x16x128xbf16>
      %43 = vector.shape_cast %42 : vector<1x16x128xbf16> to vector<16x128xbf16>
      %44 = vector.shape_cast %40 : vector<16x128xbf16> to vector<1x16x128xbf16>
      tpu.vector_store %arg6[%41, %c48, %c0_19], %44 {strides = array<i32>} : memref<36x80x128xbf16, #tpu.memory_space<vmem>>, vector<1x16x128xbf16>,
      %c126_i32 = arith.constant 126 : i32
      %45 = tpu.dynamic_rotate %9 by %c126_i32 dim 1 : vector<16x128xf32>, i32 -> vector<16x128xf32>
      %c126_i32_20 = arith.constant 126 : i32
      %46 = vector.broadcast %c126_i32_20 : i32 to vector<16x128xi32>
      %47 = arith.cmpi slt, %1, %46 : vector<16x128xi32>
      %cst_21 = arith.constant 0.000000e+00 : f32
      %48 = vector.broadcast %cst_21 : f32 to vector<16x128xf32>
      %49 = arith.select %47, %45, %48 : vector<16x128xi1>, vector<16x128xf32>
      %50 = arith.truncf %49 : vector<16x128xf32> to vector<16x128xbf16>
      %51 = arith.index_cast %arg7 : i32 to index
      %c64 = arith.constant 64 : index
      %c0_22 = arith.constant 0 : index
      %52 = vector.load %arg6[%51, %c64, %c0_22] : memref<36x80x128xbf16, #tpu.memory_space<vmem>>, vector<1x16x128xbf16>
      %53 = vector.shape_cast %52 : vector<1x16x128xbf16> to vector<16x128xbf16>
      %54 = vector.shape_cast %50 : vector<16x128xbf16> to vector<1x16x128xbf16>
      tpu.vector_store %arg6[%51, %c64, %c0_22], %54 {strides = array<i32>} : memref<36x80x128xbf16, #tpu.memory_space<vmem>>, vector<1x16x128xbf16>,
    }
    %c36_i32_0 = arith.constant 36 : i32
    %c0 = arith.constant 0 : index
    %c0_1 = arith.constant 0 : index
    %3 = vector.load %arg4[%c0, %c0_1] : memref<32x1xf32, #tpu.memory_space<vmem>>, vector<32x1xf32>
    %c0_i32_2 = arith.constant 0 : i32
    %c32_i32_3 = arith.constant 32 : i32
    %4 = arith.addi %c0_i32_2, %c32_i32_3 : i32
    %c1_i32_4 = arith.constant 1 : i32
    scf.for %arg7 = %c0_i32_2 to %4 step %c1_i32_4  : i32 {
      %cst = arith.constant 0.000000e+00 : f32
      %5 = vector.broadcast %cst : f32 to vector<32x128xf32>
      %c0_i32_6 = arith.constant 0 : i32
      %6 = arith.addi %arg7, %c0_i32_6 : i32
      %7 = arith.index_cast %6 : i32 to index
      %c0_7 = arith.constant 0 : index
      %c0_8 = arith.constant 0 : index
      %8 = vector.load %arg6[%7, %c0_7, %c0_8] : memref<36x80x128xbf16, #tpu.memory_space<vmem>>, vector<1x80x128xbf16>
      %9 = vector.shape_cast %8 : vector<1x80x128xbf16> to vector<80x128xbf16>
      %c0_9 = arith.constant 0 : index
      %c0_10 = arith.constant 0 : index
      %c0_11 = arith.constant 0 : index
      %10 = vector.load %arg3[%c0_9, %c0_10, %c0_11] : memref<5x32x80xbf16, #tpu.memory_space<vmem>>, vector<1x32x80xbf16>
      %11 = vector.shape_cast %10 : vector<1x32x80xbf16> to vector<32x80xbf16>
      %cst_12 = arith.constant dense<0.000000e+00> : vector<32x128xf32>
      %12 = tpu.matmul %11, %9, %cst_12 {dimension_numbers = #tpu.dot_dimension_numbers<[1], [0], [0], [1], [0, 0, 1, 1], [], []>} : vector<32x80xbf16>, vector<80x128xbf16>, vector<32x128xf32> -> vector<32x128xf32>
      %13 = arith.addf %5, %12 : vector<32x128xf32>
      %c1_i32_13 = arith.constant 1 : i32
      %14 = arith.addi %arg7, %c1_i32_13 : i32
      %15 = arith.index_cast %14 : i32 to index
      %c0_14 = arith.constant 0 : index
      %c0_15 = arith.constant 0 : index
      %16 = vector.load %arg6[%15, %c0_14, %c0_15] : memref<36x80x128xbf16, #tpu.memory_space<vmem>>, vector<1x80x128xbf16>
      %17 = vector.shape_cast %16 : vector<1x80x128xbf16> to vector<80x128xbf16>
      %c1 = arith.constant 1 : index
      %c0_16 = arith.constant 0 : index
      %c0_17 = arith.constant 0 : index
      %18 = vector.load %arg3[%c1, %c0_16, %c0_17] : memref<5x32x80xbf16, #tpu.memory_space<vmem>>, vector<1x32x80xbf16>
      %19 = vector.shape_cast %18 : vector<1x32x80xbf16> to vector<32x80xbf16>
      %cst_18 = arith.constant dense<0.000000e+00> : vector<32x128xf32>
      %20 = tpu.matmul %19, %17, %cst_18 {dimension_numbers = #tpu.dot_dimension_numbers<[1], [0], [0], [1], [0, 0, 1, 1], [], []>} : vector<32x80xbf16>, vector<80x128xbf16>, vector<32x128xf32> -> vector<32x128xf32>
      %21 = arith.addf %13, %20 : vector<32x128xf32>
      %c2_i32 = arith.constant 2 : i32
      %22 = arith.addi %arg7, %c2_i32 : i32
      %23 = arith.index_cast %22 : i32 to index
      %c0_19 = arith.constant 0 : index
      %c0_20 = arith.constant 0 : index
      %24 = vector.load %arg6[%23, %c0_19, %c0_20] : memref<36x80x128xbf16, #tpu.memory_space<vmem>>, vector<1x80x128xbf16>
      %25 = vector.shape_cast %24 : vector<1x80x128xbf16> to vector<80x128xbf16>
      %c2 = arith.constant 2 : index
      %c0_21 = arith.constant 0 : index
      %c0_22 = arith.constant 0 : index
      %26 = vector.load %arg3[%c2, %c0_21, %c0_22] : memref<5x32x80xbf16, #tpu.memory_space<vmem>>, vector<1x32x80xbf16>
      %27 = vector.shape_cast %26 : vector<1x32x80xbf16> to vector<32x80xbf16>
      %cst_23 = arith.constant dense<0.000000e+00> : vector<32x128xf32>
      %28 = tpu.matmul %27, %25, %cst_23 {dimension_numbers = #tpu.dot_dimension_numbers<[1], [0], [0], [1], [0, 0, 1, 1], [], []>} : vector<32x80xbf16>, vector<80x128xbf16>, vector<32x128xf32> -> vector<32x128xf32>
      %29 = arith.addf %21, %28 : vector<32x128xf32>
      %c3_i32 = arith.constant 3 : i32
      %30 = arith.addi %arg7, %c3_i32 : i32
      %31 = arith.index_cast %30 : i32 to index
      %c0_24 = arith.constant 0 : index
      %c0_25 = arith.constant 0 : index
      %32 = vector.load %arg6[%31, %c0_24, %c0_25] : memref<36x80x128xbf16, #tpu.memory_space<vmem>>, vector<1x80x128xbf16>
      %33 = vector.shape_cast %32 : vector<1x80x128xbf16> to vector<80x128xbf16>
      %c3 = arith.constant 3 : index
      %c0_26 = arith.constant 0 : index
      %c0_27 = arith.constant 0 : index
      %34 = vector.load %arg3[%c3, %c0_26, %c0_27] : memref<5x32x80xbf16, #tpu.memory_space<vmem>>, vector<1x32x80xbf16>
      %35 = vector.shape_cast %34 : vector<1x32x80xbf16> to vector<32x80xbf16>
      %cst_28 = arith.constant dense<0.000000e+00> : vector<32x128xf32>
      %36 = tpu.matmul %35, %33, %cst_28 {dimension_numbers = #tpu.dot_dimension_numbers<[1], [0], [0], [1], [0, 0, 1, 1], [], []>} : vector<32x80xbf16>, vector<80x128xbf16>, vector<32x128xf32> -> vector<32x128xf32>
      %37 = arith.addf %29, %36 : vector<32x128xf32>
      %c4_i32 = arith.constant 4 : i32
      %38 = arith.addi %arg7, %c4_i32 : i32
      %39 = arith.index_cast %38 : i32 to index
      %c0_29 = arith.constant 0 : index
      %c0_30 = arith.constant 0 : index
      %40 = vector.load %arg6[%39, %c0_29, %c0_30] : memref<36x80x128xbf16, #tpu.memory_space<vmem>>, vector<1x80x128xbf16>
      %41 = vector.shape_cast %40 : vector<1x80x128xbf16> to vector<80x128xbf16>
      %c4 = arith.constant 4 : index
      %c0_31 = arith.constant 0 : index
      %c0_32 = arith.constant 0 : index
      %42 = vector.load %arg3[%c4, %c0_31, %c0_32] : memref<5x32x80xbf16, #tpu.memory_space<vmem>>, vector<1x32x80xbf16>
      %43 = vector.shape_cast %42 : vector<1x32x80xbf16> to vector<32x80xbf16>
      %cst_33 = arith.constant dense<0.000000e+00> : vector<32x128xf32>
      %44 = tpu.matmul %43, %41, %cst_33 {dimension_numbers = #tpu.dot_dimension_numbers<[1], [0], [0], [1], [0, 0, 1, 1], [], []>} : vector<32x80xbf16>, vector<80x128xbf16>, vector<32x128xf32> -> vector<32x128xf32>
      %45 = arith.addf %37, %44 : vector<32x128xf32>
      %46 = vector.broadcast %3 : vector<32x1xf32> to vector<32x128xf32>
      %47 = arith.addf %45, %46 : vector<32x128xf32>
      %48 = arith.truncf %47 : vector<32x128xf32> to vector<32x128xbf16>
      %c0_34 = arith.constant 0 : index
      %49 = arith.index_cast %arg7 : i32 to index
      %c0_35 = arith.constant 0 : index
      %c0_36 = arith.constant 0 : index
      %50 = vector.load %arg5[%c0_34, %49, %c0_35, %c0_36] : memref<1x32x32x128xbf16, #tpu.memory_space<vmem>>, vector<1x1x32x128xbf16>
      %51 = vector.shape_cast %50 : vector<1x1x32x128xbf16> to vector<32x128xbf16>
      %52 = vector.shape_cast %48 : vector<32x128xbf16> to vector<1x1x32x128xbf16>
      tpu.vector_store %arg5[%c0_34, %49, %c0_35, %c0_36], %52 {strides = array<i32>} : memref<1x32x32x128xbf16, #tpu.memory_space<vmem>>, vector<1x1x32x128xbf16>,
    }
    %c32_i32_5 = arith.constant 32 : i32
    return
  }
  func.func @transform_0(%arg0: i32, %arg1: i32) -> (i32, i32, i32, i32) {
    %c0_i32 = arith.constant 0 : i32
    %c0_i32_0 = arith.constant 0 : i32
    %c0_i32_1 = arith.constant 0 : i32
    %c0_i32_2 = arith.constant 0 : i32
    return %arg0, %c0_i32, %c0_i32_0, %c0_i32_1 : i32, i32, i32, i32
  }
  func.func @transform_1(%arg0: i32, %arg1: i32) -> (i32, i32, i32) {
    %c0_i32 = arith.constant 0 : i32
    %c0_i32_0 = arith.constant 0 : i32
    %c0_i32_1 = arith.constant 0 : i32
    %c0_i32_2 = arith.constant 0 : i32
    return %c0_i32, %c0_i32_0, %c0_i32_1 : i32, i32, i32
  }
  func.func @transform_2(%arg0: i32, %arg1: i32) -> (i32, i32) {
    %c0_i32 = arith.constant 0 : i32
    %c0_i32_0 = arith.constant 0 : i32
    %c0_i32_1 = arith.constant 0 : i32
    return %c0_i32, %c0_i32_0 : i32, i32
  }
  func.func @transform_3(%arg0: i32, %arg1: i32) -> (i32, i32, i32, i32) {
    %c0_i32 = arith.constant 0 : i32
    %c0_i32_0 = arith.constant 0 : i32
    %c0_i32_1 = arith.constant 0 : i32
    return %arg0, %arg1, %c0_i32, %c0_i32_0 : i32, i32, i32, i32
  }
}

module attributes {stable_mosaic.version = 11 : i64} {
  func.func @conv5x5_bn_relu_pool_kernel(%arg0: i32, %arg1: i32, %arg2: memref<1x132x32x128xbf16, #tpu.memory_space<vmem>>, %arg3: memref<5x32x160xbf16, #tpu.memory_space<vmem>>, %arg4: memref<32x1xf32, #tpu.memory_space<vmem>>, %arg5: memref<32x1xf32, #tpu.memory_space<vmem>>, %arg6: memref<128x64xbf16, #tpu.memory_space<vmem>>, %arg7: memref<128x64xbf16, #tpu.memory_space<vmem>>, %arg8: memref<1x16x32x64xbf16, #tpu.memory_space<vmem>>, %arg9: memref<36x160x128xbf16, #tpu.memory_space<vmem>>) attributes {dimension_semantics = [#tpu.dimension_semantics<parallel>, #tpu.dimension_semantics<parallel>], iteration_bounds = array<i64: 2, 4>, scalar_prefetch = 0 : i64, scratch_operands = 1 : i64, tpu.core_type = #tpu.core_type<tc>, window_params = [{transform_indices = @transform_0, window_bounds = array<i64: 1, 132, 32, 128>}, {pipeline_mode = #tpu.pipeline_mode<synchronous>, transform_indices = @transform_1, window_bounds = array<i64: 5, 32, 160>}, {pipeline_mode = #tpu.pipeline_mode<synchronous>, transform_indices = @transform_2, window_bounds = array<i64: 32, 1>}, {pipeline_mode = #tpu.pipeline_mode<synchronous>, transform_indices = @transform_3, window_bounds = array<i64: 32, 1>}, {pipeline_mode = #tpu.pipeline_mode<synchronous>, transform_indices = @transform_4, window_bounds = array<i64: 128, 64>}, {pipeline_mode = #tpu.pipeline_mode<synchronous>, transform_indices = @transform_5, window_bounds = array<i64: 128, 64>}, {transform_indices = @transform_6, window_bounds = array<i64: 1, 16, 32, 64>}]} {
    %c32_i32 = arith.constant 32 : i32
    %0 = arith.muli %arg1, %c32_i32 : i32
    %1 = tpu.iota {dimensions = array<i32: 1>} : vector<32x128xi32>
    %c0_i32 = arith.constant 0 : i32
    %c36_i32 = arith.constant 36 : i32
    %2 = arith.addi %c0_i32, %c36_i32 : i32
    %c1_i32 = arith.constant 1 : i32
    scf.for %arg10 = %c0_i32 to %2 step %c1_i32  : i32 {
      %6 = arith.addi %0, %arg10 : i32
      %c0_7 = arith.constant 0 : index
      %7 = arith.index_cast %6 : i32 to index
      %c0_8 = arith.constant 0 : index
      %c0_9 = arith.constant 0 : index
      %8 = vector.load %arg2[%c0_7, %7, %c0_8, %c0_9] : memref<1x132x32x128xbf16, #tpu.memory_space<vmem>>, vector<1x1x32x128xbf16>
      %9 = vector.shape_cast %8 : vector<1x1x32x128xbf16> to vector<32x128xbf16>
      %10 = arith.extf %9 : vector<32x128xbf16> to vector<32x128xf32>
      %c2_i32 = arith.constant 2 : i32
      %11 = tpu.dynamic_rotate %10 by %c2_i32 dim 1 : vector<32x128xf32>, i32 -> vector<32x128xf32>
      %c2_i32_10 = arith.constant 2 : i32
      %12 = vector.broadcast %c2_i32_10 : i32 to vector<32x128xi32>
      %13 = arith.cmpi sge, %1, %12 : vector<32x128xi32>
      %cst = arith.constant 0.000000e+00 : f32
      %14 = vector.broadcast %cst : f32 to vector<32x128xf32>
      %15 = arith.select %13, %11, %14 : vector<32x128xi1>, vector<32x128xf32>
      %16 = arith.truncf %15 : vector<32x128xf32> to vector<32x128xbf16>
      %17 = arith.index_cast %arg10 : i32 to index
      %c0_11 = arith.constant 0 : index
      %c0_12 = arith.constant 0 : index
      %18 = vector.load %arg9[%17, %c0_11, %c0_12] : memref<36x160x128xbf16, #tpu.memory_space<vmem>>, vector<1x32x128xbf16>
      %19 = vector.shape_cast %18 : vector<1x32x128xbf16> to vector<32x128xbf16>
      %20 = vector.shape_cast %16 : vector<32x128xbf16> to vector<1x32x128xbf16>
      tpu.vector_store %arg9[%17, %c0_11, %c0_12], %20 {strides = array<i32>} : memref<36x160x128xbf16, #tpu.memory_space<vmem>>, vector<1x32x128xbf16>,
      %c1_i32_13 = arith.constant 1 : i32
      %21 = tpu.dynamic_rotate %10 by %c1_i32_13 dim 1 : vector<32x128xf32>, i32 -> vector<32x128xf32>
      %c1_i32_14 = arith.constant 1 : i32
      %22 = vector.broadcast %c1_i32_14 : i32 to vector<32x128xi32>
      %23 = arith.cmpi sge, %1, %22 : vector<32x128xi32>
      %cst_15 = arith.constant 0.000000e+00 : f32
      %24 = vector.broadcast %cst_15 : f32 to vector<32x128xf32>
      %25 = arith.select %23, %21, %24 : vector<32x128xi1>, vector<32x128xf32>
      %26 = arith.truncf %25 : vector<32x128xf32> to vector<32x128xbf16>
      %27 = arith.index_cast %arg10 : i32 to index
      %c32 = arith.constant 32 : index
      %c0_16 = arith.constant 0 : index
      %28 = vector.load %arg9[%27, %c32, %c0_16] : memref<36x160x128xbf16, #tpu.memory_space<vmem>>, vector<1x32x128xbf16>
      %29 = vector.shape_cast %28 : vector<1x32x128xbf16> to vector<32x128xbf16>
      %30 = vector.shape_cast %26 : vector<32x128xbf16> to vector<1x32x128xbf16>
      tpu.vector_store %arg9[%27, %c32, %c0_16], %30 {strides = array<i32>} : memref<36x160x128xbf16, #tpu.memory_space<vmem>>, vector<1x32x128xbf16>,
      %31 = arith.truncf %10 : vector<32x128xf32> to vector<32x128xbf16>
      %32 = arith.index_cast %arg10 : i32 to index
      %c64 = arith.constant 64 : index
      %c0_17 = arith.constant 0 : index
      %33 = vector.load %arg9[%32, %c64, %c0_17] : memref<36x160x128xbf16, #tpu.memory_space<vmem>>, vector<1x32x128xbf16>
      %34 = vector.shape_cast %33 : vector<1x32x128xbf16> to vector<32x128xbf16>
      %35 = vector.shape_cast %31 : vector<32x128xbf16> to vector<1x32x128xbf16>
      tpu.vector_store %arg9[%32, %c64, %c0_17], %35 {strides = array<i32>} : memref<36x160x128xbf16, #tpu.memory_space<vmem>>, vector<1x32x128xbf16>,
      %c127_i32 = arith.constant 127 : i32
      %36 = tpu.dynamic_rotate %10 by %c127_i32 dim 1 : vector<32x128xf32>, i32 -> vector<32x128xf32>
      %c127_i32_18 = arith.constant 127 : i32
      %37 = vector.broadcast %c127_i32_18 : i32 to vector<32x128xi32>
      %38 = arith.cmpi slt, %1, %37 : vector<32x128xi32>
      %cst_19 = arith.constant 0.000000e+00 : f32
      %39 = vector.broadcast %cst_19 : f32 to vector<32x128xf32>
      %40 = arith.select %38, %36, %39 : vector<32x128xi1>, vector<32x128xf32>
      %41 = arith.truncf %40 : vector<32x128xf32> to vector<32x128xbf16>
      %42 = arith.index_cast %arg10 : i32 to index
      %c96 = arith.constant 96 : index
      %c0_20 = arith.constant 0 : index
      %43 = vector.load %arg9[%42, %c96, %c0_20] : memref<36x160x128xbf16, #tpu.memory_space<vmem>>, vector<1x32x128xbf16>
      %44 = vector.shape_cast %43 : vector<1x32x128xbf16> to vector<32x128xbf16>
      %45 = vector.shape_cast %41 : vector<32x128xbf16> to vector<1x32x128xbf16>
      tpu.vector_store %arg9[%42, %c96, %c0_20], %45 {strides = array<i32>} : memref<36x160x128xbf16, #tpu.memory_space<vmem>>, vector<1x32x128xbf16>,
      %c126_i32 = arith.constant 126 : i32
      %46 = tpu.dynamic_rotate %10 by %c126_i32 dim 1 : vector<32x128xf32>, i32 -> vector<32x128xf32>
      %c126_i32_21 = arith.constant 126 : i32
      %47 = vector.broadcast %c126_i32_21 : i32 to vector<32x128xi32>
      %48 = arith.cmpi slt, %1, %47 : vector<32x128xi32>
      %cst_22 = arith.constant 0.000000e+00 : f32
      %49 = vector.broadcast %cst_22 : f32 to vector<32x128xf32>
      %50 = arith.select %48, %46, %49 : vector<32x128xi1>, vector<32x128xf32>
      %51 = arith.truncf %50 : vector<32x128xf32> to vector<32x128xbf16>
      %52 = arith.index_cast %arg10 : i32 to index
      %c128 = arith.constant 128 : index
      %c0_23 = arith.constant 0 : index
      %53 = vector.load %arg9[%52, %c128, %c0_23] : memref<36x160x128xbf16, #tpu.memory_space<vmem>>, vector<1x32x128xbf16>
      %54 = vector.shape_cast %53 : vector<1x32x128xbf16> to vector<32x128xbf16>
      %55 = vector.shape_cast %51 : vector<32x128xbf16> to vector<1x32x128xbf16>
      tpu.vector_store %arg9[%52, %c128, %c0_23], %55 {strides = array<i32>} : memref<36x160x128xbf16, #tpu.memory_space<vmem>>, vector<1x32x128xbf16>,
    }
    %c36_i32_0 = arith.constant 36 : i32
    %c0 = arith.constant 0 : index
    %c0_1 = arith.constant 0 : index
    %3 = vector.load %arg4[%c0, %c0_1] : memref<32x1xf32, #tpu.memory_space<vmem>>, vector<32x1xf32>
    %c0_2 = arith.constant 0 : index
    %c0_3 = arith.constant 0 : index
    %4 = vector.load %arg5[%c0_2, %c0_3] : memref<32x1xf32, #tpu.memory_space<vmem>>, vector<32x1xf32>
    %c0_i32_4 = arith.constant 0 : i32
    %c16_i32 = arith.constant 16 : i32
    %5 = arith.addi %c0_i32_4, %c16_i32 : i32
    %c1_i32_5 = arith.constant 1 : i32
    scf.for %arg10 = %c0_i32_4 to %5 step %c1_i32_5  : i32 {
      %c2_i32 = arith.constant 2 : i32
      %6 = arith.muli %c2_i32, %arg10 : i32
      %cst = arith.constant 0.000000e+00 : f32
      %7 = vector.broadcast %cst : f32 to vector<32x128xf32>
      %c0_i32_7 = arith.constant 0 : i32
      %8 = arith.addi %6, %c0_i32_7 : i32
      %9 = arith.index_cast %8 : i32 to index
      %c0_8 = arith.constant 0 : index
      %c0_9 = arith.constant 0 : index
      %10 = vector.load %arg9[%9, %c0_8, %c0_9] : memref<36x160x128xbf16, #tpu.memory_space<vmem>>, vector<1x160x128xbf16>
      %11 = vector.shape_cast %10 : vector<1x160x128xbf16> to vector<160x128xbf16>
      %c0_10 = arith.constant 0 : index
      %c0_11 = arith.constant 0 : index
      %c0_12 = arith.constant 0 : index
      %12 = vector.load %arg3[%c0_10, %c0_11, %c0_12] : memref<5x32x160xbf16, #tpu.memory_space<vmem>>, vector<1x32x160xbf16>
      %13 = vector.shape_cast %12 : vector<1x32x160xbf16> to vector<32x160xbf16>
      %cst_13 = arith.constant dense<0.000000e+00> : vector<32x128xf32>
      %14 = tpu.matmul %13, %11, %cst_13 {dimension_numbers = #tpu.dot_dimension_numbers<[1], [0], [0], [1], [0, 0, 1, 1], [], []>} : vector<32x160xbf16>, vector<160x128xbf16>, vector<32x128xf32> -> vector<32x128xf32>
      %15 = arith.addf %7, %14 : vector<32x128xf32>
      %c1_i32_14 = arith.constant 1 : i32
      %16 = arith.addi %6, %c1_i32_14 : i32
      %17 = arith.index_cast %16 : i32 to index
      %c0_15 = arith.constant 0 : index
      %c0_16 = arith.constant 0 : index
      %18 = vector.load %arg9[%17, %c0_15, %c0_16] : memref<36x160x128xbf16, #tpu.memory_space<vmem>>, vector<1x160x128xbf16>
      %19 = vector.shape_cast %18 : vector<1x160x128xbf16> to vector<160x128xbf16>
      %c1 = arith.constant 1 : index
      %c0_17 = arith.constant 0 : index
      %c0_18 = arith.constant 0 : index
      %20 = vector.load %arg3[%c1, %c0_17, %c0_18] : memref<5x32x160xbf16, #tpu.memory_space<vmem>>, vector<1x32x160xbf16>
      %21 = vector.shape_cast %20 : vector<1x32x160xbf16> to vector<32x160xbf16>
      %cst_19 = arith.constant dense<0.000000e+00> : vector<32x128xf32>
      %22 = tpu.matmul %21, %19, %cst_19 {dimension_numbers = #tpu.dot_dimension_numbers<[1], [0], [0], [1], [0, 0, 1, 1], [], []>} : vector<32x160xbf16>, vector<160x128xbf16>, vector<32x128xf32> -> vector<32x128xf32>
      %23 = arith.addf %15, %22 : vector<32x128xf32>
      %c2_i32_20 = arith.constant 2 : i32
      %24 = arith.addi %6, %c2_i32_20 : i32
      %25 = arith.index_cast %24 : i32 to index
      %c0_21 = arith.constant 0 : index
      %c0_22 = arith.constant 0 : index
      %26 = vector.load %arg9[%25, %c0_21, %c0_22] : memref<36x160x128xbf16, #tpu.memory_space<vmem>>, vector<1x160x128xbf16>
      %27 = vector.shape_cast %26 : vector<1x160x128xbf16> to vector<160x128xbf16>
      %c2 = arith.constant 2 : index
      %c0_23 = arith.constant 0 : index
      %c0_24 = arith.constant 0 : index
      %28 = vector.load %arg3[%c2, %c0_23, %c0_24] : memref<5x32x160xbf16, #tpu.memory_space<vmem>>, vector<1x32x160xbf16>
      %29 = vector.shape_cast %28 : vector<1x32x160xbf16> to vector<32x160xbf16>
      %cst_25 = arith.constant dense<0.000000e+00> : vector<32x128xf32>
      %30 = tpu.matmul %29, %27, %cst_25 {dimension_numbers = #tpu.dot_dimension_numbers<[1], [0], [0], [1], [0, 0, 1, 1], [], []>} : vector<32x160xbf16>, vector<160x128xbf16>, vector<32x128xf32> -> vector<32x128xf32>
      %31 = arith.addf %23, %30 : vector<32x128xf32>
      %c3_i32 = arith.constant 3 : i32
      %32 = arith.addi %6, %c3_i32 : i32
      %33 = arith.index_cast %32 : i32 to index
      %c0_26 = arith.constant 0 : index
      %c0_27 = arith.constant 0 : index
      %34 = vector.load %arg9[%33, %c0_26, %c0_27] : memref<36x160x128xbf16, #tpu.memory_space<vmem>>, vector<1x160x128xbf16>
      %35 = vector.shape_cast %34 : vector<1x160x128xbf16> to vector<160x128xbf16>
      %c3 = arith.constant 3 : index
      %c0_28 = arith.constant 0 : index
      %c0_29 = arith.constant 0 : index
      %36 = vector.load %arg3[%c3, %c0_28, %c0_29] : memref<5x32x160xbf16, #tpu.memory_space<vmem>>, vector<1x32x160xbf16>
      %37 = vector.shape_cast %36 : vector<1x32x160xbf16> to vector<32x160xbf16>
      %cst_30 = arith.constant dense<0.000000e+00> : vector<32x128xf32>
      %38 = tpu.matmul %37, %35, %cst_30 {dimension_numbers = #tpu.dot_dimension_numbers<[1], [0], [0], [1], [0, 0, 1, 1], [], []>} : vector<32x160xbf16>, vector<160x128xbf16>, vector<32x128xf32> -> vector<32x128xf32>
      %39 = arith.addf %31, %38 : vector<32x128xf32>
      %c4_i32 = arith.constant 4 : i32
      %40 = arith.addi %6, %c4_i32 : i32
      %41 = arith.index_cast %40 : i32 to index
      %c0_31 = arith.constant 0 : index
      %c0_32 = arith.constant 0 : index
      %42 = vector.load %arg9[%41, %c0_31, %c0_32] : memref<36x160x128xbf16, #tpu.memory_space<vmem>>, vector<1x160x128xbf16>
      %43 = vector.shape_cast %42 : vector<1x160x128xbf16> to vector<160x128xbf16>
      %c4 = arith.constant 4 : index
      %c0_33 = arith.constant 0 : index
      %c0_34 = arith.constant 0 : index
      %44 = vector.load %arg3[%c4, %c0_33, %c0_34] : memref<5x32x160xbf16, #tpu.memory_space<vmem>>, vector<1x32x160xbf16>
      %45 = vector.shape_cast %44 : vector<1x32x160xbf16> to vector<32x160xbf16>
      %cst_35 = arith.constant dense<0.000000e+00> : vector<32x128xf32>
      %46 = tpu.matmul %45, %43, %cst_35 {dimension_numbers = #tpu.dot_dimension_numbers<[1], [0], [0], [1], [0, 0, 1, 1], [], []>} : vector<32x160xbf16>, vector<160x128xbf16>, vector<32x128xf32> -> vector<32x128xf32>
      %47 = arith.addf %39, %46 : vector<32x128xf32>
      %48 = vector.broadcast %3 : vector<32x1xf32> to vector<32x128xf32>
      %49 = arith.mulf %47, %48 : vector<32x128xf32>
      %50 = vector.broadcast %4 : vector<32x1xf32> to vector<32x128xf32>
      %51 = arith.addf %49, %50 : vector<32x128xf32>
      %cst_36 = arith.constant 0.000000e+00 : f32
      %52 = vector.broadcast %cst_36 : f32 to vector<32x128xf32>
      %53 = arith.maximumf %51, %52 : vector<32x128xf32>
      %c2_i32_37 = arith.constant 2 : i32
      %54 = arith.muli %c2_i32_37, %arg10 : i32
      %c1_i32_38 = arith.constant 1 : i32
      %55 = arith.addi %54, %c1_i32_38 : i32
      %cst_39 = arith.constant 0.000000e+00 : f32
      %56 = vector.broadcast %cst_39 : f32 to vector<32x128xf32>
      %c0_i32_40 = arith.constant 0 : i32
      %57 = arith.addi %55, %c0_i32_40 : i32
      %58 = arith.index_cast %57 : i32 to index
      %c0_41 = arith.constant 0 : index
      %c0_42 = arith.constant 0 : index
      %59 = vector.load %arg9[%58, %c0_41, %c0_42] : memref<36x160x128xbf16, #tpu.memory_space<vmem>>, vector<1x160x128xbf16>
      %60 = vector.shape_cast %59 : vector<1x160x128xbf16> to vector<160x128xbf16>
      %c0_43 = arith.constant 0 : index
      %c0_44 = arith.constant 0 : index
      %c0_45 = arith.constant 0 : index
      %61 = vector.load %arg3[%c0_43, %c0_44, %c0_45] : memref<5x32x160xbf16, #tpu.memory_space<vmem>>, vector<1x32x160xbf16>
      %62 = vector.shape_cast %61 : vector<1x32x160xbf16> to vector<32x160xbf16>
      %cst_46 = arith.constant dense<0.000000e+00> : vector<32x128xf32>
      %63 = tpu.matmul %62, %60, %cst_46 {dimension_numbers = #tpu.dot_dimension_numbers<[1], [0], [0], [1], [0, 0, 1, 1], [], []>} : vector<32x160xbf16>, vector<160x128xbf16>, vector<32x128xf32> -> vector<32x128xf32>
      %64 = arith.addf %56, %63 : vector<32x128xf32>
      %c1_i32_47 = arith.constant 1 : i32
      %65 = arith.addi %55, %c1_i32_47 : i32
      %66 = arith.index_cast %65 : i32 to index
      %c0_48 = arith.constant 0 : index
      %c0_49 = arith.constant 0 : index
      %67 = vector.load %arg9[%66, %c0_48, %c0_49] : memref<36x160x128xbf16, #tpu.memory_space<vmem>>, vector<1x160x128xbf16>
      %68 = vector.shape_cast %67 : vector<1x160x128xbf16> to vector<160x128xbf16>
      %c1_50 = arith.constant 1 : index
      %c0_51 = arith.constant 0 : index
      %c0_52 = arith.constant 0 : index
      %69 = vector.load %arg3[%c1_50, %c0_51, %c0_52] : memref<5x32x160xbf16, #tpu.memory_space<vmem>>, vector<1x32x160xbf16>
      %70 = vector.shape_cast %69 : vector<1x32x160xbf16> to vector<32x160xbf16>
      %cst_53 = arith.constant dense<0.000000e+00> : vector<32x128xf32>
      %71 = tpu.matmul %70, %68, %cst_53 {dimension_numbers = #tpu.dot_dimension_numbers<[1], [0], [0], [1], [0, 0, 1, 1], [], []>} : vector<32x160xbf16>, vector<160x128xbf16>, vector<32x128xf32> -> vector<32x128xf32>
      %72 = arith.addf %64, %71 : vector<32x128xf32>
      %c2_i32_54 = arith.constant 2 : i32
      %73 = arith.addi %55, %c2_i32_54 : i32
      %74 = arith.index_cast %73 : i32 to index
      %c0_55 = arith.constant 0 : index
      %c0_56 = arith.constant 0 : index
      %75 = vector.load %arg9[%74, %c0_55, %c0_56] : memref<36x160x128xbf16, #tpu.memory_space<vmem>>, vector<1x160x128xbf16>
      %76 = vector.shape_cast %75 : vector<1x160x128xbf16> to vector<160x128xbf16>
      %c2_57 = arith.constant 2 : index
      %c0_58 = arith.constant 0 : index
      %c0_59 = arith.constant 0 : index
      %77 = vector.load %arg3[%c2_57, %c0_58, %c0_59] : memref<5x32x160xbf16, #tpu.memory_space<vmem>>, vector<1x32x160xbf16>
      %78 = vector.shape_cast %77 : vector<1x32x160xbf16> to vector<32x160xbf16>
      %cst_60 = arith.constant dense<0.000000e+00> : vector<32x128xf32>
      %79 = tpu.matmul %78, %76, %cst_60 {dimension_numbers = #tpu.dot_dimension_numbers<[1], [0], [0], [1], [0, 0, 1, 1], [], []>} : vector<32x160xbf16>, vector<160x128xbf16>, vector<32x128xf32> -> vector<32x128xf32>
      %80 = arith.addf %72, %79 : vector<32x128xf32>
      %c3_i32_61 = arith.constant 3 : i32
      %81 = arith.addi %55, %c3_i32_61 : i32
      %82 = arith.index_cast %81 : i32 to index
      %c0_62 = arith.constant 0 : index
      %c0_63 = arith.constant 0 : index
      %83 = vector.load %arg9[%82, %c0_62, %c0_63] : memref<36x160x128xbf16, #tpu.memory_space<vmem>>, vector<1x160x128xbf16>
      %84 = vector.shape_cast %83 : vector<1x160x128xbf16> to vector<160x128xbf16>
      %c3_64 = arith.constant 3 : index
      %c0_65 = arith.constant 0 : index
      %c0_66 = arith.constant 0 : index
      %85 = vector.load %arg3[%c3_64, %c0_65, %c0_66] : memref<5x32x160xbf16, #tpu.memory_space<vmem>>, vector<1x32x160xbf16>
      %86 = vector.shape_cast %85 : vector<1x32x160xbf16> to vector<32x160xbf16>
      %cst_67 = arith.constant dense<0.000000e+00> : vector<32x128xf32>
      %87 = tpu.matmul %86, %84, %cst_67 {dimension_numbers = #tpu.dot_dimension_numbers<[1], [0], [0], [1], [0, 0, 1, 1], [], []>} : vector<32x160xbf16>, vector<160x128xbf16>, vector<32x128xf32> -> vector<32x128xf32>
      %88 = arith.addf %80, %87 : vector<32x128xf32>
      %c4_i32_68 = arith.constant 4 : i32
      %89 = arith.addi %55, %c4_i32_68 : i32
      %90 = arith.index_cast %89 : i32 to index
      %c0_69 = arith.constant 0 : index
      %c0_70 = arith.constant 0 : index
      %91 = vector.load %arg9[%90, %c0_69, %c0_70] : memref<36x160x128xbf16, #tpu.memory_space<vmem>>, vector<1x160x128xbf16>
      %92 = vector.shape_cast %91 : vector<1x160x128xbf16> to vector<160x128xbf16>
      %c4_71 = arith.constant 4 : index
      %c0_72 = arith.constant 0 : index
      %c0_73 = arith.constant 0 : index
      %93 = vector.load %arg3[%c4_71, %c0_72, %c0_73] : memref<5x32x160xbf16, #tpu.memory_space<vmem>>, vector<1x32x160xbf16>
      %94 = vector.shape_cast %93 : vector<1x32x160xbf16> to vector<32x160xbf16>
      %cst_74 = arith.constant dense<0.000000e+00> : vector<32x128xf32>
      %95 = tpu.matmul %94, %92, %cst_74 {dimension_numbers = #tpu.dot_dimension_numbers<[1], [0], [0], [1], [0, 0, 1, 1], [], []>} : vector<32x160xbf16>, vector<160x128xbf16>, vector<32x128xf32> -> vector<32x128xf32>
      %96 = arith.addf %88, %95 : vector<32x128xf32>
      %97 = vector.broadcast %3 : vector<32x1xf32> to vector<32x128xf32>
      %98 = arith.mulf %96, %97 : vector<32x128xf32>
      %99 = vector.broadcast %4 : vector<32x1xf32> to vector<32x128xf32>
      %100 = arith.addf %98, %99 : vector<32x128xf32>
      %cst_75 = arith.constant 0.000000e+00 : f32
      %101 = vector.broadcast %cst_75 : f32 to vector<32x128xf32>
      %102 = arith.maximumf %100, %101 : vector<32x128xf32>
      %103 = arith.maximumf %53, %102 : vector<32x128xf32>
      %104 = arith.truncf %103 : vector<32x128xf32> to vector<32x128xbf16>
      %c0_76 = arith.constant 0 : index
      %c0_77 = arith.constant 0 : index
      %105 = vector.load %arg6[%c0_76, %c0_77] : memref<128x64xbf16, #tpu.memory_space<vmem>>, vector<128x64xbf16>
      %cst_78 = arith.constant dense<0.000000e+00> : vector<32x64xf32>
      %106 = tpu.matmul %104, %105, %cst_78 {dimension_numbers = #tpu.dot_dimension_numbers<[1], [0], [0], [1], [0, 0, 1, 1], [], []>} : vector<32x128xbf16>, vector<128x64xbf16>, vector<32x64xf32> -> vector<32x64xf32>
      %c0_79 = arith.constant 0 : index
      %c0_80 = arith.constant 0 : index
      %107 = vector.load %arg7[%c0_79, %c0_80] : memref<128x64xbf16, #tpu.memory_space<vmem>>, vector<128x64xbf16>
      %cst_81 = arith.constant dense<0.000000e+00> : vector<32x64xf32>
      %108 = tpu.matmul %104, %107, %cst_81 {dimension_numbers = #tpu.dot_dimension_numbers<[1], [0], [0], [1], [0, 0, 1, 1], [], []>} : vector<32x128xbf16>, vector<128x64xbf16>, vector<32x64xf32> -> vector<32x64xf32>
      %109 = arith.maximumf %106, %108 : vector<32x64xf32>
      %110 = arith.truncf %109 : vector<32x64xf32> to vector<32x64xbf16>
      %c0_82 = arith.constant 0 : index
      %111 = arith.index_cast %arg10 : i32 to index
      %c0_83 = arith.constant 0 : index
      %c0_84 = arith.constant 0 : index
      %112 = vector.load %arg8[%c0_82, %111, %c0_83, %c0_84] : memref<1x16x32x64xbf16, #tpu.memory_space<vmem>>, vector<1x1x32x64xbf16>
      %113 = vector.shape_cast %112 : vector<1x1x32x64xbf16> to vector<32x64xbf16>
      %114 = vector.shape_cast %110 : vector<32x64xbf16> to vector<1x1x32x64xbf16>
      tpu.vector_store %arg8[%c0_82, %111, %c0_83, %c0_84], %114 {strides = array<i32>} : memref<1x16x32x64xbf16, #tpu.memory_space<vmem>>, vector<1x1x32x64xbf16>,
    }
    %c16_i32_6 = arith.constant 16 : i32
    return
  }
  func.func @transform_0(%arg0: i32, %arg1: i32) -> (i32, i32, i32, i32) {
    %c0_i32 = arith.constant 0 : i32
    %c0_i32_0 = arith.constant 0 : i32
    %c0_i32_1 = arith.constant 0 : i32
    %c0_i32_2 = arith.constant 0 : i32
    return %arg0, %c0_i32, %c0_i32_0, %c0_i32_1 : i32, i32, i32, i32
  }
  func.func @transform_1(%arg0: i32, %arg1: i32) -> (i32, i32, i32) {
    %c0_i32 = arith.constant 0 : i32
    %c0_i32_0 = arith.constant 0 : i32
    %c0_i32_1 = arith.constant 0 : i32
    %c0_i32_2 = arith.constant 0 : i32
    return %c0_i32, %c0_i32_0, %c0_i32_1 : i32, i32, i32
  }
  func.func @transform_2(%arg0: i32, %arg1: i32) -> (i32, i32) {
    %c0_i32 = arith.constant 0 : i32
    %c0_i32_0 = arith.constant 0 : i32
    %c0_i32_1 = arith.constant 0 : i32
    return %c0_i32, %c0_i32_0 : i32, i32
  }
  func.func @transform_3(%arg0: i32, %arg1: i32) -> (i32, i32) {
    %c0_i32 = arith.constant 0 : i32
    %c0_i32_0 = arith.constant 0 : i32
    %c0_i32_1 = arith.constant 0 : i32
    return %c0_i32, %c0_i32_0 : i32, i32
  }
  func.func @transform_4(%arg0: i32, %arg1: i32) -> (i32, i32) {
    %c0_i32 = arith.constant 0 : i32
    %c0_i32_0 = arith.constant 0 : i32
    %c0_i32_1 = arith.constant 0 : i32
    return %c0_i32, %c0_i32_0 : i32, i32
  }
  func.func @transform_5(%arg0: i32, %arg1: i32) -> (i32, i32) {
    %c0_i32 = arith.constant 0 : i32
    %c0_i32_0 = arith.constant 0 : i32
    %c0_i32_1 = arith.constant 0 : i32
    return %c0_i32, %c0_i32_0 : i32, i32
  }
  func.func @transform_6(%arg0: i32, %arg1: i32) -> (i32, i32, i32, i32) {
    %c0_i32 = arith.constant 0 : i32
    %c0_i32_0 = arith.constant 0 : i32
    %c0_i32_1 = arith.constant 0 : i32
    return %arg0, %arg1, %c0_i32, %c0_i32_0 : i32, i32, i32, i32
  }
}

module attributes {stable_mosaic.version = 11 : i64} {
  func.func @fc_softmax_kernel(%arg0: i32, %arg1: memref<2x8192xbf16, #tpu.memory_space<vmem>>, %arg2: memref<10x8192xbf16, #tpu.memory_space<vmem>>, %arg3: memref<1x10xf32, #tpu.memory_space<vmem>>, %arg4: memref<2x10xf32, #tpu.memory_space<vmem>>, %arg5: memref<2x10xf32, #tpu.memory_space<vmem>>) attributes {dimension_semantics = [#tpu.dimension_semantics<arbitrary>], iteration_bounds = array<i64: 16>, scalar_prefetch = 0 : i64, scratch_operands = 1 : i64, tpu.core_type = #tpu.core_type<tc>, window_params = [{transform_indices = @transform_0, window_bounds = array<i64: 2, 8192>}, {transform_indices = @transform_1, window_bounds = array<i64: 10, 8192>}, {pipeline_mode = #tpu.pipeline_mode<synchronous>, transform_indices = @transform_2, window_bounds = array<i64: 1, 10>}, {pipeline_mode = #tpu.pipeline_mode<synchronous>, transform_indices = @transform_3, window_bounds = array<i64: 2, 10>}]} {
    %c0_i32 = arith.constant 0 : i32
    %0 = arith.cmpi eq, %arg0, %c0_i32 : i32
    %1 = arith.extui %0 : i1 to i32
    %c0_i32_0 = arith.constant 0 : i32
    %2 = arith.cmpi ne, %1, %c0_i32_0 : i32
    scf.if %2 {
      %cst_9 = arith.constant 0.000000e+00 : f32
      %12 = vector.broadcast %cst_9 : f32 to vector<2x10xf32>
      %c0_10 = arith.constant 0 : index
      %c0_11 = arith.constant 0 : index
      %13 = vector.load %arg5[%c0_10, %c0_11] : memref<2x10xf32, #tpu.memory_space<vmem>>, vector<2x10xf32>
      tpu.vector_store %arg5[%c0_10, %c0_11], %12 {strides = array<i32>} : memref<2x10xf32, #tpu.memory_space<vmem>>, vector<2x10xf32>,
    } else {
    }
    %c0 = arith.constant 0 : index
    %c0_1 = arith.constant 0 : index
    %3 = vector.load %arg5[%c0, %c0_1] : memref<2x10xf32, #tpu.memory_space<vmem>>, vector<2x10xf32>
    %c0_2 = arith.constant 0 : index
    %c0_3 = arith.constant 0 : index
    %4 = vector.load %arg1[%c0_2, %c0_3] : memref<2x8192xbf16, #tpu.memory_space<vmem>>, vector<2x8192xbf16>
    %c0_4 = arith.constant 0 : index
    %c0_5 = arith.constant 0 : index
    %5 = vector.load %arg2[%c0_4, %c0_5] : memref<10x8192xbf16, #tpu.memory_space<vmem>>, vector<10x8192xbf16>
    %cst = arith.constant dense<0.000000e+00> : vector<2x10xf32>
    %6 = tpu.matmul %4, %5, %cst {dimension_numbers = #tpu.dot_dimension_numbers<[1], [1], [0], [0], [0, 0, 1, 0], [], []>} : vector<2x8192xbf16>, vector<10x8192xbf16>, vector<2x10xf32> -> vector<2x10xf32>
    %7 = arith.addf %3, %6 : vector<2x10xf32>
    %c0_6 = arith.constant 0 : index
    %c0_7 = arith.constant 0 : index
    %8 = vector.load %arg5[%c0_6, %c0_7] : memref<2x10xf32, #tpu.memory_space<vmem>>, vector<2x10xf32>
    tpu.vector_store %arg5[%c0_6, %c0_7], %7 {strides = array<i32>} : memref<2x10xf32, #tpu.memory_space<vmem>>, vector<2x10xf32>,
    %c15_i32 = arith.constant 15 : i32
    %9 = arith.cmpi eq, %arg0, %c15_i32 : i32
    %10 = arith.extui %9 : i1 to i32
    %c0_i32_8 = arith.constant 0 : i32
    %11 = arith.cmpi ne, %10, %c0_i32_8 : i32
    scf.if %11 {
      %c0_9 = arith.constant 0 : index
      %c0_10 = arith.constant 0 : index
      %12 = vector.load %arg5[%c0_9, %c0_10] : memref<2x10xf32, #tpu.memory_space<vmem>>, vector<2x10xf32>
      %c0_11 = arith.constant 0 : index
      %c0_12 = arith.constant 0 : index
      %13 = vector.load %arg3[%c0_11, %c0_12] : memref<1x10xf32, #tpu.memory_space<vmem>>, vector<1x10xf32>
      %14 = vector.broadcast %13 : vector<1x10xf32> to vector<2x10xf32>
      %15 = arith.addf %12, %14 : vector<2x10xf32>
      %cst_13 = arith.constant dense<0xFF800000> : vector<2xf32>
      %16 = vector.multi_reduction <maximumf>, %15, %cst_13 [1] : vector<2x10xf32> to vector<2xf32>
      %17 = vector.shape_cast %16 : vector<2xf32> to vector<2x1xf32>
      %18 = vector.broadcast %17 : vector<2x1xf32> to vector<2x10xf32>
      %19 = arith.subf %15, %18 : vector<2x10xf32>
      %20 = math.exp %19 : vector<2x10xf32>
      %cst_14 = arith.constant dense<0.000000e+00> : vector<2xf32>
      %21 = vector.multi_reduction <add>, %20, %cst_14 [1] : vector<2x10xf32> to vector<2xf32>
      %22 = vector.shape_cast %21 : vector<2xf32> to vector<2x1xf32>
      %23 = vector.broadcast %22 : vector<2x1xf32> to vector<2x10xf32>
      %24 = arith.divf %20, %23 : vector<2x10xf32>
      %c0_15 = arith.constant 0 : index
      %c0_16 = arith.constant 0 : index
      %25 = vector.load %arg4[%c0_15, %c0_16] : memref<2x10xf32, #tpu.memory_space<vmem>>, vector<2x10xf32>
      tpu.vector_store %arg4[%c0_15, %c0_16], %24 {strides = array<i32>} : memref<2x10xf32, #tpu.memory_space<vmem>>, vector<2x10xf32>,
    } else {
    }
    return
  }
  func.func @transform_0(%arg0: i32) -> (i32, i32) {
    %c0_i32 = arith.constant 0 : i32
    %c0_i32_0 = arith.constant 0 : i32
    return %c0_i32, %arg0 : i32, i32
  }
  func.func @transform_1(%arg0: i32) -> (i32, i32) {
    %c0_i32 = arith.constant 0 : i32
    %c0_i32_0 = arith.constant 0 : i32
    return %c0_i32, %arg0 : i32, i32
  }
  func.func @transform_2(%arg0: i32) -> (i32, i32) {
    %c0_i32 = arith.constant 0 : i32
    %c0_i32_0 = arith.constant 0 : i32
    %c0_i32_1 = arith.constant 0 : i32
    return %c0_i32, %c0_i32_0 : i32, i32
  }
  func.func @transform_3(%arg0: i32) -> (i32, i32) {
    %c0_i32 = arith.constant 0 : i32
    %c0_i32_0 = arith.constant 0 : i32
    %c0_i32_1 = arith.constant 0 : i32
    return %c0_i32, %c0_i32_0 : i32, i32
  }
}

</mosaic_0001>

<llo_original>
// kernel: convnet_b_forward.5
$region0: #{convnet_b_forward.5}
  #allocation0 [shape = 'u32[]', space=smem, size = 0x4, offset = 0x4, fixed_abs, tag = 'smem constant byte address 0x4 - core index']
  #allocation1 [shape = 'u32[72,128]{1,0:T(1,128)}', space=vmem, size = 0x9000, scoped, tag = 'internal scratch']
  #allocation2 [shape = 'bf16[36,16,256]{2,1,0:T(8,128)(2,1)}', space=vmem, size = 0x48000, scoped, tag = 'scratch operand']
  %s0 = inlined_call_operand.vmem [shape: bf16[2,260,1,256], index: 0, kind: input, shape index: {}]
  %s1 = inlined_call_operand.vmem [shape: bf16[5,16,16], index: 1, kind: input, shape index: {}]
  %s2 = inlined_call_operand.vmem [shape: f32[16,1], index: 2, kind: input, shape index: {}]
  %s3 = inlined_call_operand.vmem [shape: bf16[2,256,16,256], index: 3, kind: output, shape index: {}]
  %s4 = sld [smem:[#allocation0]]
  $region59: #{convnet_b_forward.5} parent=0
    _
  %s6 = ssub.s32 1, %s4
  %s7 = scalar_select 0, %s6, %s4
  loop: start=0, step=1, limit=18
  $region2: #{convnet_b_forward.5} parent=0 // loop_pre_header
    _
  $region3: #{convnet_b_forward.5} parent=0 // loop_header
    %s9 = sphi 0, %s13
    %p10 = scmp.ge.s32.totalorder %s9, 18
    %s16 = sphi 0, %s28
    %s17 = sphi 0, %s24
    %s18 = sphi 0, %s16
    %s19 = sphi 0, %s17
    %s20 = sphi 0, %s18
    %s21 = sphi 0, %s19
    %s31 = sphi 0, %s33
    %s34 = sphi 0, %s31
    %s35 = sphi 0, %s34
    %s51 = sphi 0, %s35
    %s55 = sphi 0, %s55
    %s57 = sphi 0, %s55
    %s58 = sphi 0, %s57
    %s72 = sphi 0, %s58
    %s76 = sphi 0, %s76
    %s78 = sphi 0, %s76
    %s79 = sphi 0, %s78
    %s93 = sphi 0, %s79
    %s101 = sphi 0, %s103
    %s104 = sphi 0, %s101
    %s105 = sphi 0, %s104
    %s121 = sphi 0, %s105
  $region4: #{convnet_b_forward.5} parent=0 // loop_header_branch
    %12 = sbr.rel (%p10) target = $region8
  $region5: #{convnet_b_forward.5} parent=0 // loop_body
    %s14 = ssub.s32 %s9, 1
    %s15 = ssub.s32 %s9, 2
    %s22 = sadd.s32 1, %s17
    %p23 = scmp.ge.s32.totalorder %s22, 8
    %s24 = scalar_select %p23, 0, %s22
    %s25 = sadd.s32 1, %s16
    %s26 = scalar_select %p23, %s25, %s16
    %p27 = scmp.ge.s32.totalorder %s26, 2
    %s28 = scalar_select %p27, 0, %s26
    %s29 = ssub.s32 %s16, %s28
    %p30 = scmp.eq.s32.totalorder %s29, 0
    %s32 = sadd.s32 %s31, 1
    %s33 = scalar_select %p30, %s31, %s32
    %p36 = pneg %p30
    %p37 = scmp.eq.s32.totalorder %s9, 15
    %p38 = por %p36, %p37
    %p39 = scmp.ne.s32.totalorder %s31, %s34
    %p40 = scmp.eq.s32.totalorder %s9, 0
    %p41 = por %p39, %p40
    %p42 = scmp.ne.s32.totalorder %s31, %s34
    %p43 = scmp.eq.s32.totalorder %s14, 15
    %p44 = por %p42, %p43
    %p45 = scmp.ne.s32.totalorder %s34, %s35
    %p46 = scmp.eq.s32.totalorder %s14, 0
    %p47 = por %p45, %p46
    %p48 = scmp.ne.s32.totalorder %s34, %s35
    %p49 = scmp.eq.s32.totalorder %s15, 15
    %p50 = por %p48, %p49
    %p52 = scmp.ne.s32.totalorder %s35, %s51
    %p53 = scmp.eq.s32.totalorder %s15, 0
    %p54 = por %p52, %p53
    %s56 = sadd.s32 %s55, 1
    %p59 = scmp.eq.s32.totalorder %s9, 15
    %p60 = scmp.ne.s32.totalorder %s55, %s57
    %p61 = scmp.eq.s32.totalorder %s9, 0
    %p62 = por %p60, %p61
    %p63 = scmp.ne.s32.totalorder %s55, %s57
    %p64 = scmp.eq.s32.totalorder %s14, 15
    %p65 = por %p63, %p64
    %p66 = scmp.ne.s32.totalorder %s57, %s58
    %p67 = scmp.eq.s32.totalorder %s14, 0
    %p68 = por %p66, %p67
    %p69 = scmp.ne.s32.totalorder %s57, %s58
    %p70 = scmp.eq.s32.totalorder %s15, 15
    %p71 = por %p69, %p70
    %p73 = scmp.ne.s32.totalorder %s58, %s72
    %p74 = scmp.eq.s32.totalorder %s15, 0
    %p75 = por %p73, %p74
    %s77 = sadd.s32 %s76, 1
    %p80 = scmp.eq.s32.totalorder %s9, 15
    %p81 = scmp.ne.s32.totalorder %s76, %s78
    %p82 = scmp.eq.s32.totalorder %s9, 0
    %p83 = por %p81, %p82
    %p84 = scmp.ne.s32.totalorder %s76, %s78
    %p85 = scmp.eq.s32.totalorder %s14, 15
    %p86 = por %p84, %p85
    %p87 = scmp.ne.s32.totalorder %s78, %s79
    %p88 = scmp.eq.s32.totalorder %s14, 0
    %p89 = por %p87, %p88
    %p90 = scmp.ne.s32.totalorder %s78, %s79
    %p91 = scmp.eq.s32.totalorder %s15, 15
    %p92 = por %p90, %p91
    %p94 = scmp.ne.s32.totalorder %s79, %s93
    %p95 = scmp.eq.s32.totalorder %s15, 0
    %p96 = por %p94, %p95
    %s97 = ssub.s32 %s16, %s28
    %s98 = ssub.s32 %s17, %s24
    %s99 = sor.u32 %s97, %s98
    %p100 = scmp.eq.s32.totalorder %s99, 0
    %s102 = sadd.s32 %s101, 1
    %s103 = scalar_select %p100, %s101, %s102
    %p106 = pneg %p100
    %p107 = scmp.eq.s32.totalorder %s9, 15
    %p108 = por %p106, %p107
    %p109 = scmp.ne.s32.totalorder %s101, %s104
    %p110 = scmp.eq.s32.totalorder %s9, 0
    %p111 = por %p109, %p110
    %p112 = scmp.ne.s32.totalorder %s101, %s104
    %p113 = scmp.eq.s32.totalorder %s14, 15
    %p114 = por %p112, %p113
    %p115 = scmp.ne.s32.totalorder %s104, %s105
    %p116 = scmp.eq.s32.totalorder %s14, 0
    %p117 = por %p115, %p116
    %p118 = scmp.ne.s32.totalorder %s104, %s105
    %p119 = scmp.eq.s32.totalorder %s15, 15
    %p120 = por %p118, %p119
    %p122 = scmp.ne.s32.totalorder %s105, %s121
    %p123 = scmp.eq.s32.totalorder %s15, 0
    %p124 = por %p122, %p123
    %p125 = scmp.le.s32.totalorder 1, %s9
    %p126 = scmp.lt.s32.totalorder %s9, 17
    %p127 = pnand %p125, %p126
    %p128 = pneg %p127
    // Predicated region
    $region9: #{convnet_b_forward.5} parent=5 // pred_check
      _
    $region10: #{convnet_b_forward.5} parent=5 // pred_check_branch
      %130 = sbr.rel (%p127) target = $region12
    $region11: #{convnet_b_forward.5} parent=5 // pred_region
      %s131 = ssub.s32 %s9, 1
      // Predicated region
      $region13: #{convnet_b_forward.5} parent=11 // pred_check
        %p132 = pneg %p68
      $region14: #{convnet_b_forward.5} parent=11 // pred_check_branch
        %134 = sbr.rel (%p132) target = $region16
      $region15: #{convnet_b_forward.5} parent=11 // pred_region
        _
      $region16: #{convnet_b_forward.5} parent=11 // pred_fallthru
        _
      // Predicated region
      $region17: #{convnet_b_forward.5} parent=11 // pred_check
        %p135 = pneg %p89
      $region18: #{convnet_b_forward.5} parent=11 // pred_check_branch
        %137 = sbr.rel (%p135) target = $region20
      $region19: #{convnet_b_forward.5} parent=11 // pred_region
        _
      $region20: #{convnet_b_forward.5} parent=11 // pred_fallthru
        _
    $region12: #{convnet_b_forward.5} parent=5 // pred_fallthru
      _
    %p138 = scmp.lt.s32.totalorder %s9, 16
    // Predicated region
    $region21: #{convnet_b_forward.5} parent=5 // pred_check
      %p139 = pneg %p138
    $region22: #{convnet_b_forward.5} parent=5 // pred_check_branch
      %141 = sbr.rel (%p139) target = $region24
    $region23: #{convnet_b_forward.5} parent=5 // pred_region
      // Predicated region
      $region25: #{convnet_b_forward.5} parent=23 // pred_check
        %p142 = pneg %p41
      $region26: #{convnet_b_forward.5} parent=23 // pred_check_branch
        %144 = sbr.rel (%p142) target = $region28
      $region27: #{convnet_b_forward.5} parent=23 // pred_region
        %p145 = scmp.lt.s32.totalorder %s16, 1
        %s146 = scalar_select %p145, %s16, 1
        %s147 = smul.addr %s146, 520
        %s148 = scalar_lea.vmem %s0, %s147
      $region28: #{convnet_b_forward.5} parent=23 // pred_fallthru
        _
    $region24: #{convnet_b_forward.5} parent=5 // pred_fallthru
      _
    %p149 = scmp.le.s32.totalorder 1, %s9
    %p150 = scmp.lt.s32.totalorder %s9, 17
    %p151 = pnand %p149, %p150
    %p152 = pneg %p151
    // Predicated region
    $region29: #{convnet_b_forward.5} parent=5 // pred_check
      _
    $region30: #{convnet_b_forward.5} parent=5 // pred_check_branch
      %154 = sbr.rel (%p151) target = $region32
    $region31: #{convnet_b_forward.5} parent=5 // pred_region
      %s155 = ssub.s32 %s9, 1
      %p156 = scmp.lt.s32.totalorder %s18, 1
      %s157 = scalar_select %p156, %s18, 1
      %s158 = smul.addr %s157, 520
      %s159 = scalar_lea.vmem %s0, %s158
      %p160 = pneg %p47
      %p161 = pneg %p44
      %p162 = pneg %p68
      %p163 = pneg %p65
      %p164 = pneg %p89
      %p165 = pneg %p86
      %p166 = pneg %p117
      %p167 = pneg %p114
      %s168 = smul.u32 32, %s19
      %p169 = scmp.lt.s32.totalorder %s18, 1
      %s170 = scalar_select %p169, %s18, 1
      %p171 = scmp.lt.s32.totalorder %s168, 255
      %s172 = scalar_select %p171, %s168, 255
      %s173 = smul.addr %s172, 4
      %s174 = smul.addr %s170, 1024
      %s175 = sadd.s32 %s173, %s174
      %s176 = smul.addr %s175, 4
      %s177 = scalar_lea.vmem %s3, %s176
      %p178 = scmp.lt.s32.totalorder %s18, 1
      %s179 = scalar_select %p178, %s18, 1
      %s180 = smul.addr %s179, 520
      %s181 = scalar_lea.vmem %s0, %s180
      %s182 = smul.u32 32, %s19
      %p183 = scmp.lt.s32.totalorder %s18, 1
      %s184 = scalar_select %p183, %s18, 1
      %p185 = scmp.lt.s32.totalorder %s182, 255
      %s186 = scalar_select %p185, %s182, 255
      %s187 = smul.addr %s186, 4
      %s188 = smul.addr %s184, 1024
      %s189 = sadd.s32 %s187, %s188
      %s190 = smul.addr %s189, 4
      %s191 = scalar_lea.vmem %s3, %s190
      %s192 = smul.u32 32, %s19
      %s194 = smul.u32 %s19, 32
      %v195 = vlaneseq
      %v196 = vand.u32 %v195, 127
      %v197 = vadd.s32 %v196, 128
      loop: start=0, step=1, limit=36
      $region33: #{convnet_b_forward.5} parent=31 // loop_pre_header
        _
      $region34: #{convnet_b_forward.5} parent=31 // loop_header
        %s199 = sphi 0, %s203
        %p200 = scmp.ge.s32.totalorder %s199, 36
      $region35: #{convnet_b_forward.5} parent=31 // loop_header_branch
        %202 = sbr.rel (%p200) target = $region39
      $region36: #{convnet_b_forward.5} parent=31 // loop_body
        %s204 = sadd.s32 %s194, %s199
        %s205 = smul.u32 %s204, 2
        %s206 = scalar_lea.vmem %s181, %s205
        %v207 = vld [vmem:[%s206] sm:$0x3]
        %v208 = vunpack.c.l.bf16 %v207
        %v210 = vperm.slane %v208, 0
        %v211 = vperm.slane %v208, 2
        %214 = vrot.lane.b32.xlu0 %v210, 2
        %v215 = vpop.permute.xlu0 %214
        %216 = vrot.lane.b32.xlu0 %v211, 2
        %v217 = vpop.permute.xlu0 %216
        %vm218 = vcmp.lt.s32.totalorder %v196, 2
        %v219 = vsel %vm218, %v215, %v217
        %v220 = vsel %vm218, %v217, %v215
        %vm221 = vcmp.ge.s32.totalorder %v196, 2
        %vm222 = vcmp.ge.s32.totalorder %v197, 2
        %v223 = vsel %vm221, %v220, 0.0
        %v224 = vsel %vm222, %v219, 0.0
        %v225 = vpack.c.bf16 %v224, %v223
        %s226 = smul.u32 %s199, 4
        %s227 = smul.addr %s226, 4
        %s228 = scalar_lea.vmem [#allocation2], %s227
        %vm229 = vcmask 1040384
        %vm230 = vsmask.f32 256
        %vm231 = vmand %vm229, %vm230
        %vm232 = vcmask 1044484
        %vm233 = vsmask.f32 4352
        %vm234 = vmand %vm232, %vm233
        %vm235 = vmor %vm234, %vm231
        %v236 = vld [vmem:[%s228] sm:$0x11]
        %v237 = vsel %vm235, %v225, %v236
        %238 = vst [vmem:[%s228] sm:$0x11] %v237
        %239 = vrot.lane.b32.xlu0 %v210, 1
        %v240 = vpop.permute.xlu0 %239
        %241 = vrot.lane.b32.xlu0 %v211, 1
        %v242 = vpop.permute.xlu0 %241
        %vm243 = vcmp.lt.s32.totalorder %v196, 1
        %v244 = vsel %vm243, %v240, %v242
        %v245 = vsel %vm243, %v242, %v240
        %vm246 = vcmp.ge.s32.totalorder %v196, 1
        %vm247 = vcmp.ge.s32.totalorder %v197, 1
        %v248 = vsel %vm246, %v245, 0.0
        %v249 = vsel %vm247, %v244, 0.0
        %v250 = vpack.c.bf16 %v249, %v248
        %v252 = vshll.u32 %v250, 16
        %vm255 = vsmask.f32 7938
        %vm256 = vmand %vm229, %vm255
        %vm257 = vsmask.f32 7954
        %vm258 = vmand %vm232, %vm257
        %vm259 = vmor %vm258, %vm256
        %v260 = vld [vmem:[%s228] sm:$0x11]
        %v261 = vsel %vm259, %v252, %v260
        %262 = vst [vmem:[%s228] sm:$0x11] %v261
        %s264 = scalar_lea.vmem [#allocation1], 1
        %265 = vst [vmem:[%s264] ss:$4 sm:$0xff] %v207
        %v266 = vld [vmem:[#allocation1] sm:$0xff]
        %vm268 = vcmask 1041409
        %vm269 = vsmask.f32 1280
        %vm270 = vmand %vm268, %vm269
        %vm271 = vcmask 1045509
        %vm272 = vsmask.f32 5376
        %vm273 = vmand %vm271, %vm272
        %vm274 = vmor %vm273, %vm270
        %v275 = vld [vmem:[%s228] sm:$0x22]
        %v276 = vsel %vm274, %v266, %v275
        %277 = vst [vmem:[%s228] sm:$0x22] %v276
        %278 = vrot.lane.b32.xlu0 %v210, 127
        %v279 = vpop.permute.xlu0 %278
        %280 = vrot.lane.b32.xlu0 %v211, 127
        %v281 = vpop.permute.xlu0 %280
        %vm282 = vcmp.lt.s32.totalorder %v196, 127
        %v283 = vsel %vm282, %v279, %v281
        %v284 = vsel %vm282, %v281, %v279
        %vm285 = vcmp.lt.s32.totalorder %v196, 255
        %vm286 = vcmp.lt.s32.totalorder %v197, 255
        %v287 = vsel %vm285, %v283, 0.0
        %v288 = vsel %vm286, %v284, 0.0
        %v289 = vpack.c.bf16 %v288, %v287
        %v291 = vshll.u32 %v289, 16
        %v293 = vrot.slane %v291, 7
        %vm295 = vsmask.f32 7942
        %vm296 = vmand %vm268, %vm295
        %vm297 = vsmask.f32 7958
        %vm298 = vmand %vm271, %vm297
        %vm299 = vmor %vm298, %vm296
        %v300 = vld [vmem:[%s228] sm:$0x22]
        %v301 = vsel %vm299, %v293, %v300
        %302 = vst [vmem:[%s228] sm:$0x22] %v301
        %303 = vrot.lane.b32.xlu0 %v210, 126
        %v304 = vpop.permute.xlu0 %303
        %305 = vrot.lane.b32.xlu0 %v211, 126
        %v306 = vpop.permute.xlu0 %305
        %vm307 = vcmp.lt.s32.totalorder %v196, 126
        %v308 = vsel %vm307, %v304, %v306
        %v309 = vsel %vm307, %v306, %v304
        %vm310 = vcmp.lt.s32.totalorder %v196, 254
        %vm311 = vcmp.lt.s32.totalorder %v197, 254
        %v312 = vsel %vm310, %v308, 0.0
        %v313 = vsel %vm311, %v309, 0.0
        %v314 = vpack.c.bf16 %v313, %v312
        %v316 = vrot.slane %v314, 6
        %vm318 = vcmask 1042434
        %vm319 = vsmask.f32 2304
        %vm320 = vmand %vm318, %vm319
        %vm321 = vcmask 1046534
        %vm322 = vsmask.f32 6400
        %vm323 = vmand %vm321, %vm322
        %vm324 = vmor %vm323, %vm320
        %v325 = vld [vmem:[%s228] sm:$0x44]
        %v326 = vsel %vm324, %v316, %v325
        %327 = vst [vmem:[%s228] sm:$0x44] %v326
        %vm328 = vcmask 1043458
        %vm329 = vsmask.f32 7946
        %vm330 = vmand %vm328, %vm329
        %vm331 = vcmask 1047558
        %vm332 = vsmask.f32 7962
        %vm333 = vmand %vm331, %vm332
        %vm334 = vmor %vm333, %vm330
        %v335 = vld [vmem:[%s228] sm:$0xcc]
        %v336 = vsel %vm334, 0, %v335
        %337 = vst [vmem:[%s228] sm:$0xcc] %v336
        %338 = vst [vmem:[%s228 + $0x8] sm:$0xff] 0
      $region37: #{convnet_b_forward.5} parent=31 // loop_footer
        %s203 = sadd.s32 1, %s199
      $region38: #{convnet_b_forward.5} parent=31 // loop_footer_branch
        %198 = sbr.rel target = $region34
      $region39: #{convnet_b_forward.5} parent=31 // loop_exit
        _
      %v339 = vld [vmem:[%s2] sm:$0xff]
      %v340 = vld [vmem:[%s2 + $0x8] sm:$0xff]
      loop: start=0, step=1, limit=32
      $region40: #{convnet_b_forward.5} parent=31 // loop_pre_header
        _
      $region41: #{convnet_b_forward.5} parent=31 // loop_header
        %s342 = sphi 0, %s346
        %p343 = scmp.ge.s32.totalorder %s342, 32
      $region42: #{convnet_b_forward.5} parent=31 // loop_header_branch
        %345 = sbr.rel (%p343) target = $region46
      $region43: #{convnet_b_forward.5} parent=31 // loop_body
        %s347 = smul.u32 %s342, 4
        %s348 = smul.addr %s347, 4
        %s349 = scalar_lea.vmem [#allocation2], %s348
        %v350 = vld [vmem:[%s349] sm:$0xff]
        %v351 = vld [vmem:[%s349 + $0x8] sm:$0xff]
        %v352 = vld [vmem:[%s1] sm:$0xf]
        %v353 = vld [vmem:[%s1 + $0x4] sm:$0xf]
        %s354 = sadd.s32 %s342, 1
        %s355 = smul.u32 %s354, 4
        %s356 = smul.addr %s355, 4
        %s357 = scalar_lea.vmem [#allocation2], %s356
        %v358 = vld [vmem:[%s357] sm:$0xff]
        %v359 = vld [vmem:[%s357 + $0x8] sm:$0xff]
        %s360 = scalar_lea.vmem %s1, 8
        %v361 = vld [vmem:[%s360] sm:$0xf]
        %v362 = vld [vmem:[%s360 + $0x4] sm:$0xf]
        %v365 = vunpack.c.l.b16 %v361
        %v366 = vunpack.c.l.b16 %v362
        %v367 = vpack.c.b16 %v366, %v365
        %v370 = vunpack.c.l.b16 %v358
        %v371 = vunpack.c.h.b16 %v358
        %v372 = vunpack.c.l.b16 %v359
        %v373 = vunpack.c.h.b16 %v359
        %v374 = vpack.c.b16 %v372, %v370
        %v375 = vpack.c.b16 %v373, %v371
        %vm378 = vcmask 130048
        %v380 = vsel %vm378, %v367, 0
        %382 = vmatpush.bf16.msra.mxu0 0
        %383 = vmatpush.bf16.msra.mxu0 0
        %384 = vmatpush.bf16.msra.mxu0 0
        %385 = vmatpush.bf16.msra.mxu0 0
        %386 = vmatpush.bf16.msra.mxu0 0
        %387 = vmatpush.bf16.msra.mxu0 0
        %388 = vmatpush.bf16.msra.mxu0 0
        %389 = vmatpush.bf16.msra.mxu0 %v374
        %390 = vmatmul.bf16.gmra.mxu0 %v380
        %v391 = vpop.f32.mrf.mxu0
        %v392 = vadd.f32 0.0, %v391
        %v393 = vpop.f32.mrf.mxu0
        %v394 = vadd.f32 0.0, %v393
        %395 = vdwg.mxu0
        %396 = vmatpush.bf16.msra.mxu0 0
        %397 = vmatpush.bf16.msra.mxu0 0
        %398 = vmatpush.bf16.msra.mxu0 0
        %399 = vmatpush.bf16.msra.mxu0 0
        %400 = vmatpush.bf16.msra.mxu0 0
        %401 = vmatpush.bf16.msra.mxu0 0
        %402 = vmatpush.bf16.msra.mxu0 0
        %403 = vmatpush.bf16.msra.mxu0 %v375
        %404 = vmatmul.bf16.gmra.mxu0 %v380
        %v405 = vpop.f32.mrf.mxu0
        %v406 = vadd.f32 0.0, %v405
        %v407 = vpop.f32.mrf.mxu0
        %v408 = vadd.f32 0.0, %v407
        %409 = vdwg.mxu0
        %v412 = vunpack.c.l.b16 %v352
        %v413 = vunpack.c.l.b16 %v353
        %v414 = vpack.c.b16 %v413, %v412
        %v417 = vunpack.c.l.b16 %v350
        %v418 = vunpack.c.h.b16 %v350
        %v419 = vunpack.c.l.b16 %v351
        %v420 = vunpack.c.h.b16 %v351
        %v421 = vpack.c.b16 %v419, %v417
        %v422 = vpack.c.b16 %v420, %v418
        %v426 = vsel %vm378, %v414, 0
        %428 = vmatpush.bf16.msra.mxu0 0
        %429 = vmatpush.bf16.msra.mxu0 0
        %430 = vmatpush.bf16.msra.mxu0 0
        %431 = vmatpush.bf16.msra.mxu0 0
        %432 = vmatpush.bf16.msra.mxu0 0
        %433 = vmatpush.bf16.msra.mxu0 0
        %434 = vmatpush.bf16.msra.mxu0 0
        %435 = vmatpush.bf16.msra.mxu0 %v421
        %436 = vmatmul.bf16.gmra.mxu0 %v426
        %v437 = vpop.f32.mrf.mxu0
        %v438 = vadd.f32 %v392, %v437
        %v439 = vpop.f32.mrf.mxu0
        %v440 = vadd.f32 %v394, %v439
        %441 = vdwg.mxu0
        %442 = vmatpush.bf16.msra.mxu0 0
        %443 = vmatpush.bf16.msra.mxu0 0
        %444 = vmatpush.bf16.msra.mxu0 0
        %445 = vmatpush.bf16.msra.mxu0 0
        %446 = vmatpush.bf16.msra.mxu0 0
        %447 = vmatpush.bf16.msra.mxu0 0
        %448 = vmatpush.bf16.msra.mxu0 0
        %449 = vmatpush.bf16.msra.mxu0 %v422
        %450 = vmatmul.bf16.gmra.mxu0 %v426
        %v451 = vpop.f32.mrf.mxu0
        %v452 = vadd.f32 %v406, %v451
        %v453 = vpop.f32.mrf.mxu0
        %v454 = vadd.f32 %v408, %v453
        %455 = vdwg.mxu0
        %s456 = sadd.s32 %s342, 2
        %s457 = smul.u32 %s456, 4
        %s458 = smul.addr %s457, 4
        %s459 = scalar_lea.vmem [#allocation2], %s458
        %v460 = vld [vmem:[%s459] sm:$0xff]
        %v461 = vld [vmem:[%s459 + $0x8] sm:$0xff]
        %s462 = scalar_lea.vmem %s1, 16
        %v463 = vld [vmem:[%s462] sm:$0xf]
        %v464 = vld [vmem:[%s462 + $0x4] sm:$0xf]
        %v467 = vunpack.c.l.b16 %v463
        %v468 = vunpack.c.l.b16 %v464
        %v469 = vpack.c.b16 %v468, %v467
        %v472 = vunpack.c.l.b16 %v460
        %v473 = vunpack.c.h.b16 %v460
        %v474 = vunpack.c.l.b16 %v461
        %v475 = vunpack.c.h.b16 %v461
        %v476 = vpack.c.b16 %v474, %v472
        %v477 = vpack.c.b16 %v475, %v473
        %v481 = vsel %vm378, %v469, 0
        %483 = vmatpush.bf16.msra.mxu0 0
        %484 = vmatpush.bf16.msra.mxu0 0
        %485 = vmatpush.bf16.msra.mxu0 0
        %486 = vmatpush.bf16.msra.mxu0 0
        %487 = vmatpush.bf16.msra.mxu0 0
        %488 = vmatpush.bf16.msra.mxu0 0
        %489 = vmatpush.bf16.msra.mxu0 0
        %490 = vmatpush.bf16.msra.mxu0 %v476
        %491 = vmatmul.bf16.gmra.mxu0 %v481
        %v492 = vpop.f32.mrf.mxu0
        %v493 = vadd.f32 0.0, %v492
        %v494 = vpop.f32.mrf.mxu0
        %v495 = vadd.f32 0.0, %v494
        %496 = vdwg.mxu0
        %497 = vmatpush.bf16.msra.mxu0 0
        %498 = vmatpush.bf16.msra.mxu0 0
        %499 = vmatpush.bf16.msra.mxu0 0
        %500 = vmatpush.bf16.msra.mxu0 0
        %501 = vmatpush.bf16.msra.mxu0 0
        %502 = vmatpush.bf16.msra.mxu0 0
        %503 = vmatpush.bf16.msra.mxu0 0
        %504 = vmatpush.bf16.msra.mxu0 %v477
        %505 = vmatmul.bf16.gmra.mxu0 %v481
        %v506 = vpop.f32.mrf.mxu0
        %v507 = vadd.f32 0.0, %v506
        %v508 = vpop.f32.mrf.mxu0
        %v509 = vadd.f32 0.0, %v508
        %510 = vdwg.mxu0
        %v511 = vadd.f32 %v438, %v493
        %v512 = vadd.f32 %v452, %v507
        %v513 = vadd.f32 %v440, %v495
        %v514 = vadd.f32 %v454, %v509
        %s515 = sadd.s32 %s342, 3
        %s516 = smul.u32 %s515, 4
        %s517 = smul.addr %s516, 4
        %s518 = scalar_lea.vmem [#allocation2], %s517
        %v519 = vld [vmem:[%s518] sm:$0xff]
        %v520 = vld [vmem:[%s518 + $0x8] sm:$0xff]
        %s521 = scalar_lea.vmem %s1, 24
        %v522 = vld [vmem:[%s521] sm:$0xf]
        %v523 = vld [vmem:[%s521 + $0x4] sm:$0xf]
        %v526 = vunpack.c.l.b16 %v522
        %v527 = vunpack.c.l.b16 %v523
        %v528 = vpack.c.b16 %v527, %v526
        %v531 = vunpack.c.l.b16 %v519
        %v532 = vunpack.c.h.b16 %v519
        %v533 = vunpack.c.l.b16 %v520
        %v534 = vunpack.c.h.b16 %v520
        %v535 = vpack.c.b16 %v533, %v531
        %v536 = vpack.c.b16 %v534, %v532
        %v540 = vsel %vm378, %v528, 0
        %542 = vmatpush.bf16.msra.mxu0 0
        %543 = vmatpush.bf16.msra.mxu0 0
        %544 = vmatpush.bf16.msra.mxu0 0
        %545 = vmatpush.bf16.msra.mxu0 0
        %546 = vmatpush.bf16.msra.mxu0 0
        %547 = vmatpush.bf16.msra.mxu0 0
        %548 = vmatpush.bf16.msra.mxu0 0
        %549 = vmatpush.bf16.msra.mxu0 %v535
        %550 = vmatmul.bf16.gmra.mxu0 %v540
        %v551 = vpop.f32.mrf.mxu0
        %v552 = vadd.f32 0.0, %v551
        %v553 = vpop.f32.mrf.mxu0
        %v554 = vadd.f32 0.0, %v553
        %555 = vdwg.mxu0
        %556 = vmatpush.bf16.msra.mxu0 0
        %557 = vmatpush.bf16.msra.mxu0 0
        %558 = vmatpush.bf16.msra.mxu0 0
        %559 = vmatpush.bf16.msra.mxu0 0
        %560 = vmatpush.bf16.msra.mxu0 0
        %561 = vmatpush.bf16.msra.mxu0 0
        %562 = vmatpush.bf16.msra.mxu0 0
        %563 = vmatpush.bf16.msra.mxu0 %v536
        %564 = vmatmul.bf16.gmra.mxu0 %v540
        %v565 = vpop.f32.mrf.mxu0
        %v566 = vadd.f32 0.0, %v565
        %v567 = vpop.f32.mrf.mxu0
        %v568 = vadd.f32 0.0, %v567
        %569 = vdwg.mxu0
        %v570 = vadd.f32 %v511, %v552
        %v571 = vadd.f32 %v512, %v566
        %v572 = vadd.f32 %v513, %v554
        %v573 = vadd.f32 %v514, %v568
        %s574 = sadd.s32 %s342, 4
        %s575 = smul.u32 %s574, 4
        %s576 = smul.addr %s575, 4
        %s577 = scalar_lea.vmem [#allocation2], %s576
        %v578 = vld [vmem:[%s577] sm:$0xff]
        %v579 = vld [vmem:[%s577 + $0x8] sm:$0xff]
        %s580 = scalar_lea.vmem %s1, 32
        %v581 = vld [vmem:[%s580] sm:$0xf]
        %v582 = vld [vmem:[%s580 + $0x4] sm:$0xf]
        %v585 = vunpack.c.l.b16 %v581
        %v586 = vunpack.c.l.b16 %v582
        %v587 = vpack.c.b16 %v586, %v585
        %v590 = vunpack.c.l.b16 %v578
        %v591 = vunpack.c.h.b16 %v578
        %v592 = vunpack.c.l.b16 %v579
        %v593 = vunpack.c.h.b16 %v579
        %v594 = vpack.c.b16 %v592, %v590
        %v595 = vpack.c.b16 %v593, %v591
        %v599 = vsel %vm378, %v587, 0
        %601 = vmatpush.bf16.msra.mxu0 0
        %602 = vmatpush.bf16.msra.mxu0 0
        %603 = vmatpush.bf16.msra.mxu0 0
        %604 = vmatpush.bf16.msra.mxu0 0
        %605 = vmatpush.bf16.msra.mxu0 0
        %606 = vmatpush.bf16.msra.mxu0 0
        %607 = vmatpush.bf16.msra.mxu0 0
        %608 = vmatpush.bf16.msra.mxu0 %v594
        %609 = vmatmul.bf16.gmra.mxu0 %v599
        %v610 = vpop.f32.mrf.mxu0
        %v611 = vadd.f32 0.0, %v610
        %v612 = vpop.f32.mrf.mxu0
        %v613 = vadd.f32 0.0, %v612
        %614 = vdwg.mxu0
        %615 = vmatpush.bf16.msra.mxu0 0
        %616 = vmatpush.bf16.msra.mxu0 0
        %617 = vmatpush.bf16.msra.mxu0 0
        %618 = vmatpush.bf16.msra.mxu0 0
        %619 = vmatpush.bf16.msra.mxu0 0
        %620 = vmatpush.bf16.msra.mxu0 0
        %621 = vmatpush.bf16.msra.mxu0 0
        %622 = vmatpush.bf16.msra.mxu0 %v595
        %623 = vmatmul.bf16.gmra.mxu0 %v599
        %v624 = vpop.f32.mrf.mxu0
        %v625 = vadd.f32 0.0, %v624
        %v626 = vpop.f32.mrf.mxu0
        %v627 = vadd.f32 0.0, %v626
        %628 = vdwg.mxu0
        %v629 = vadd.f32 %v570, %v611
        %v630 = vadd.f32 %v571, %v625
        %v631 = vadd.f32 %v572, %v613
        %v632 = vadd.f32 %v573, %v627
        %634 = vset.pattern.permute.xlu0 0
        %635 = vperm.xlu0 %634, %v339
        %v636 = vpop.permute.xlu0 %635
        %639 = vset.pattern.permute.xlu0 0
        %640 = vperm.xlu0 %639, %v340
        %v641 = vpop.permute.xlu0 %640
        %v643 = vadd.f32 %v629, %v636
        %v644 = vadd.f32 %v630, %v636
        %v645 = vadd.f32 %v631, %v641
        %v646 = vadd.f32 %v632, %v641
        %v647 = vpack.c.bf16 %v644, %v643
        %v648 = vpack.c.bf16 %v646, %v645
        %s649 = smul.addr %s347, 4
        %s650 = scalar_lea.vmem %s191, %s649
        %651 = vst [vmem:[%s650] sm:$0xff] %v647
        %652 = vst [vmem:[%s650 + $0x8] sm:$0xff] %v648
      $region44: #{convnet_b_forward.5} parent=31 // loop_footer
        %s346 = sadd.s32 1, %s342
      $region45: #{convnet_b_forward.5} parent=31 // loop_footer_branch
        %341 = sbr.rel target = $region41
      $region46: #{convnet_b_forward.5} parent=31 // loop_exit
        _
      %s653 = smul.u32 32, %s19
      %p654 = scmp.lt.s32.totalorder %s18, 1
      %s655 = scalar_select %p654, %s18, 1
      %p656 = scmp.lt.s32.totalorder %s653, 255
      %s657 = scalar_select %p656, %s653, 255
      %s658 = smul.addr %s657, 4
      %s659 = smul.addr %s655, 1024
      %s660 = sadd.s32 %s658, %s659
      %s661 = smul.addr %s660, 4
      %s662 = scalar_lea.vmem %s3, %s661
      // Predicated region
      $region47: #{convnet_b_forward.5} parent=31 // pred_check
        %p663 = pneg %p114
      $region48: #{convnet_b_forward.5} parent=31 // pred_check_branch
        %665 = sbr.rel (%p663) target = $region50
      $region49: #{convnet_b_forward.5} parent=31 // pred_region
        %s666 = smul.u32 32, %s19
      $region50: #{convnet_b_forward.5} parent=31 // pred_fallthru
        _
    $region32: #{convnet_b_forward.5} parent=5 // pred_fallthru
      _
    %p667 = scmp.le.s32.totalorder 2, %s9
    // Predicated region
    $region51: #{convnet_b_forward.5} parent=5 // pred_check
      %p668 = pneg %p667
    $region52: #{convnet_b_forward.5} parent=5 // pred_check_branch
      %670 = sbr.rel (%p668) target = $region54
    $region53: #{convnet_b_forward.5} parent=5 // pred_region
      %s671 = ssub.s32 %s9, 2
      // Predicated region
      $region55: #{convnet_b_forward.5} parent=53 // pred_check
        %p672 = pneg %p120
      $region56: #{convnet_b_forward.5} parent=53 // pred_check_branch
        %674 = sbr.rel (%p672) target = $region58
      $region57: #{convnet_b_forward.5} parent=53 // pred_region
        %s675 = smul.u32 32, %s21
        %p676 = scmp.lt.s32.totalorder %s20, 1
        %s677 = scalar_select %p676, %s20, 1
        %p678 = scmp.lt.s32.totalorder %s675, 255
        %s679 = scalar_select %p678, %s675, 255
        %s680 = smul.addr %s679, 4
        %s681 = smul.addr %s677, 1024
        %s682 = sadd.s32 %s680, %s681
        %s683 = smul.addr %s682, 4
        %s684 = scalar_lea.vmem %s3, %s683
      $region58: #{convnet_b_forward.5} parent=53 // pred_fallthru
        _
    $region54: #{convnet_b_forward.5} parent=5 // pred_fallthru
      _
  $region6: #{convnet_b_forward.5} parent=0 // loop_footer
    %s13 = sadd.s32 1, %s9
  $region7: #{convnet_b_forward.5} parent=0 // loop_footer_branch
    %8 = sbr.rel target = $region3
  $region8: #{convnet_b_forward.5} parent=0 // loop_exit
    _

// kernel: convnet_b_forward.6
$region0: #{convnet_b_forward.6}
  #allocation0 [shape = 'u32[]', space=smem, size = 0x4, offset = 0x4, fixed_abs, tag = 'smem constant byte address 0x4 - core index']
  #allocation1 [shape = 'u32[72,128]{1,0:T(1,128)}', space=vmem, size = 0x9000, scoped, tag = 'internal scratch']
  #allocation2 [shape = 'bf16[36,80,256]{2,1,0:T(8,128)(2,1)}', space=vmem, size = 0x168000, scoped, tag = 'scratch operand']
  %s0 = inlined_call_operand.vmem [shape: bf16[2,260,16,256], index: 0, kind: input, shape index: {}]
  %s1 = inlined_call_operand.vmem [shape: bf16[5,16,80], index: 1, kind: input, shape index: {}]
  %s2 = inlined_call_operand.vmem [shape: f32[16,1], index: 2, kind: input, shape index: {}]
  %s3 = inlined_call_operand.vmem [shape: f32[16,1], index: 3, kind: input, shape index: {}]
  %s4 = inlined_call_operand.vmem [shape: bf16[256,128], index: 4, kind: input, shape index: {}]
  %s5 = inlined_call_operand.vmem [shape: bf16[256,128], index: 5, kind: input, shape index: {}]
  %s6 = inlined_call_operand.vmem [shape: bf16[2,128,16,128], index: 6, kind: output, shape index: {}]
  %s7 = sld [smem:[#allocation0]]
  $region71: #{convnet_b_forward.6} parent=0
    _
  %s9 = ssub.s32 1, %s7
  %s10 = scalar_select 0, %s9, %s7
  loop: start=0, step=1, limit=18
  $region2: #{convnet_b_forward.6} parent=0 // loop_pre_header
    _
  $region3: #{convnet_b_forward.6} parent=0 // loop_header
    %s12 = sphi 0, %s16
    %p13 = scmp.ge.s32.totalorder %s12, 18
    %s19 = sphi 0, %s31
    %s20 = sphi 0, %s27
    %s21 = sphi 0, %s19
    %s22 = sphi 0, %s20
    %s23 = sphi 0, %s21
    %s24 = sphi 0, %s22
    %s34 = sphi 0, %s36
    %s37 = sphi 0, %s34
    %s38 = sphi 0, %s37
    %s54 = sphi 0, %s38
    %s58 = sphi 0, %s58
    %s60 = sphi 0, %s58
    %s61 = sphi 0, %s60
    %s75 = sphi 0, %s61
    %s79 = sphi 0, %s79
    %s81 = sphi 0, %s79
    %s82 = sphi 0, %s81
    %s96 = sphi 0, %s82
    %s100 = sphi 0, %s100
    %s102 = sphi 0, %s100
    %s103 = sphi 0, %s102
    %s117 = sphi 0, %s103
    %s121 = sphi 0, %s121
    %s123 = sphi 0, %s121
    %s124 = sphi 0, %s123
    %s138 = sphi 0, %s124
    %s142 = sphi 0, %s142
    %s144 = sphi 0, %s142
    %s145 = sphi 0, %s144
    %s159 = sphi 0, %s145
    %s167 = sphi 0, %s169
    %s170 = sphi 0, %s167
    %s171 = sphi 0, %s170
    %s187 = sphi 0, %s171
  $region4: #{convnet_b_forward.6} parent=0 // loop_header_branch
    %15 = sbr.rel (%p13) target = $region8
  $region5: #{convnet_b_forward.6} parent=0 // loop_body
    %s17 = ssub.s32 %s12, 1
    %s18 = ssub.s32 %s12, 2
    %s25 = sadd.s32 1, %s20
    %p26 = scmp.ge.s32.totalorder %s25, 8
    %s27 = scalar_select %p26, 0, %s25
    %s28 = sadd.s32 1, %s19
    %s29 = scalar_select %p26, %s28, %s19
    %p30 = scmp.ge.s32.totalorder %s29, 2
    %s31 = scalar_select %p30, 0, %s29
    %s32 = ssub.s32 %s19, %s31
    %p33 = scmp.eq.s32.totalorder %s32, 0
    %s35 = sadd.s32 %s34, 1
    %s36 = scalar_select %p33, %s34, %s35
    %p39 = pneg %p33
    %p40 = scmp.eq.s32.totalorder %s12, 15
    %p41 = por %p39, %p40
    %p42 = scmp.ne.s32.totalorder %s34, %s37
    %p43 = scmp.eq.s32.totalorder %s12, 0
    %p44 = por %p42, %p43
    %p45 = scmp.ne.s32.totalorder %s34, %s37
    %p46 = scmp.eq.s32.totalorder %s17, 15
    %p47 = por %p45, %p46
    %p48 = scmp.ne.s32.totalorder %s37, %s38
    %p49 = scmp.eq.s32.totalorder %s17, 0
    %p50 = por %p48, %p49
    %p51 = scmp.ne.s32.totalorder %s37, %s38
    %p52 = scmp.eq.s32.totalorder %s18, 15
    %p53 = por %p51, %p52
    %p55 = scmp.ne.s32.totalorder %s38, %s54
    %p56 = scmp.eq.s32.totalorder %s18, 0
    %p57 = por %p55, %p56
    %s59 = sadd.s32 %s58, 1
    %p62 = scmp.eq.s32.totalorder %s12, 15
    %p63 = scmp.ne.s32.totalorder %s58, %s60
    %p64 = scmp.eq.s32.totalorder %s12, 0
    %p65 = por %p63, %p64
    %p66 = scmp.ne.s32.totalorder %s58, %s60
    %p67 = scmp.eq.s32.totalorder %s17, 15
    %p68 = por %p66, %p67
    %p69 = scmp.ne.s32.totalorder %s60, %s61
    %p70 = scmp.eq.s32.totalorder %s17, 0
    %p71 = por %p69, %p70
    %p72 = scmp.ne.s32.totalorder %s60, %s61
    %p73 = scmp.eq.s32.totalorder %s18, 15
    %p74 = por %p72, %p73
    %p76 = scmp.ne.s32.totalorder %s61, %s75
    %p77 = scmp.eq.s32.totalorder %s18, 0
    %p78 = por %p76, %p77
    %s80 = sadd.s32 %s79, 1
    %p83 = scmp.eq.s32.totalorder %s12, 15
    %p84 = scmp.ne.s32.totalorder %s79, %s81
    %p85 = scmp.eq.s32.totalorder %s12, 0
    %p86 = por %p84, %p85
    %p87 = scmp.ne.s32.totalorder %s79, %s81
    %p88 = scmp.eq.s32.totalorder %s17, 15
    %p89 = por %p87, %p88
    %p90 = scmp.ne.s32.totalorder %s81, %s82
    %p91 = scmp.eq.s32.totalorder %s17, 0
    %p92 = por %p90, %p91
    %p93 = scmp.ne.s32.totalorder %s81, %s82
    %p94 = scmp.eq.s32.totalorder %s18, 15
    %p95 = por %p93, %p94
    %p97 = scmp.ne.s32.totalorder %s82, %s96
    %p98 = scmp.eq.s32.totalorder %s18, 0
    %p99 = por %p97, %p98
    %s101 = sadd.s32 %s100, 1
    %p104 = scmp.eq.s32.totalorder %s12, 15
    %p105 = scmp.ne.s32.totalorder %s100, %s102
    %p106 = scmp.eq.s32.totalorder %s12, 0
    %p107 = por %p105, %p106
    %p108 = scmp.ne.s32.totalorder %s100, %s102
    %p109 = scmp.eq.s32.totalorder %s17, 15
    %p110 = por %p108, %p109
    %p111 = scmp.ne.s32.totalorder %s102, %s103
    %p112 = scmp.eq.s32.totalorder %s17, 0
    %p113 = por %p111, %p112
    %p114 = scmp.ne.s32.totalorder %s102, %s103
    %p115 = scmp.eq.s32.totalorder %s18, 15
    %p116 = por %p114, %p115
    %p118 = scmp.ne.s32.totalorder %s103, %s117
    %p119 = scmp.eq.s32.totalorder %s18, 0
    %p120 = por %p118, %p119
    %s122 = sadd.s32 %s121, 1
    %p125 = scmp.eq.s32.totalorder %s12, 15
    %p126 = scmp.ne.s32.totalorder %s121, %s123
    %p127 = scmp.eq.s32.totalorder %s12, 0
    %p128 = por %p126, %p127
    %p129 = scmp.ne.s32.totalorder %s121, %s123
    %p130 = scmp.eq.s32.totalorder %s17, 15
    %p131 = por %p129, %p130
    %p132 = scmp.ne.s32.totalorder %s123, %s124
    %p133 = scmp.eq.s32.totalorder %s17, 0
    %p134 = por %p132, %p133
    %p135 = scmp.ne.s32.totalorder %s123, %s124
    %p136 = scmp.eq.s32.totalorder %s18, 15
    %p137 = por %p135, %p136
    %p139 = scmp.ne.s32.totalorder %s124, %s138
    %p140 = scmp.eq.s32.totalorder %s18, 0
    %p141 = por %p139, %p140
    %s143 = sadd.s32 %s142, 1
    %p146 = scmp.eq.s32.totalorder %s12, 15
    %p147 = scmp.ne.s32.totalorder %s142, %s144
    %p148 = scmp.eq.s32.totalorder %s12, 0
    %p149 = por %p147, %p148
    %p150 = scmp.ne.s32.totalorder %s142, %s144
    %p151 = scmp.eq.s32.totalorder %s17, 15
    %p152 = por %p150, %p151
    %p153 = scmp.ne.s32.totalorder %s144, %s145
    %p154 = scmp.eq.s32.totalorder %s17, 0
    %p155 = por %p153, %p154
    %p156 = scmp.ne.s32.totalorder %s144, %s145
    %p157 = scmp.eq.s32.totalorder %s18, 15
    %p158 = por %p156, %p157
    %p160 = scmp.ne.s32.totalorder %s145, %s159
    %p161 = scmp.eq.s32.totalorder %s18, 0
    %p162 = por %p160, %p161
    %s163 = ssub.s32 %s19, %s31
    %s164 = ssub.s32 %s20, %s27
    %s165 = sor.u32 %s163, %s164
    %p166 = scmp.eq.s32.totalorder %s165, 0
    %s168 = sadd.s32 %s167, 1
    %s169 = scalar_select %p166, %s167, %s168
    %p172 = pneg %p166
    %p173 = scmp.eq.s32.totalorder %s12, 15
    %p174 = por %p172, %p173
    %p175 = scmp.ne.s32.totalorder %s167, %s170
    %p176 = scmp.eq.s32.totalorder %s12, 0
    %p177 = por %p175, %p176
    %p178 = scmp.ne.s32.totalorder %s167, %s170
    %p179 = scmp.eq.s32.totalorder %s17, 15
    %p180 = por %p178, %p179
    %p181 = scmp.ne.s32.totalorder %s170, %s171
    %p182 = scmp.eq.s32.totalorder %s17, 0
    %p183 = por %p181, %p182
    %p184 = scmp.ne.s32.totalorder %s170, %s171
    %p185 = scmp.eq.s32.totalorder %s18, 15
    %p186 = por %p184, %p185
    %p188 = scmp.ne.s32.totalorder %s171, %s187
    %p189 = scmp.eq.s32.totalorder %s18, 0
    %p190 = por %p188, %p189
    %p191 = scmp.le.s32.totalorder 1, %s12
    %p192 = scmp.lt.s32.totalorder %s12, 17
    %p193 = pnand %p191, %p192
    %p194 = pneg %p193
    // Predicated region
    $region9: #{convnet_b_forward.6} parent=5 // pred_check
      _
    $region10: #{convnet_b_forward.6} parent=5 // pred_check_branch
      %196 = sbr.rel (%p193) target = $region12
    $region11: #{convnet_b_forward.6} parent=5 // pred_region
      %s197 = ssub.s32 %s12, 1
      // Predicated region
      $region13: #{convnet_b_forward.6} parent=11 // pred_check
        %p198 = pneg %p71
      $region14: #{convnet_b_forward.6} parent=11 // pred_check_branch
        %200 = sbr.rel (%p198) target = $region16
      $region15: #{convnet_b_forward.6} parent=11 // pred_region
        _
      $region16: #{convnet_b_forward.6} parent=11 // pred_fallthru
        _
      // Predicated region
      $region17: #{convnet_b_forward.6} parent=11 // pred_check
        %p201 = pneg %p92
      $region18: #{convnet_b_forward.6} parent=11 // pred_check_branch
        %203 = sbr.rel (%p201) target = $region20
      $region19: #{convnet_b_forward.6} parent=11 // pred_region
        _
      $region20: #{convnet_b_forward.6} parent=11 // pred_fallthru
        _
      // Predicated region
      $region21: #{convnet_b_forward.6} parent=11 // pred_check
        %p204 = pneg %p113
      $region22: #{convnet_b_forward.6} parent=11 // pred_check_branch
        %206 = sbr.rel (%p204) target = $region24
      $region23: #{convnet_b_forward.6} parent=11 // pred_region
        _
      $region24: #{convnet_b_forward.6} parent=11 // pred_fallthru
        _
      // Predicated region
      $region25: #{convnet_b_forward.6} parent=11 // pred_check
        %p207 = pneg %p134
      $region26: #{convnet_b_forward.6} parent=11 // pred_check_branch
        %209 = sbr.rel (%p207) target = $region28
      $region27: #{convnet_b_forward.6} parent=11 // pred_region
        _
      $region28: #{convnet_b_forward.6} parent=11 // pred_fallthru
        _
      // Predicated region
      $region29: #{convnet_b_forward.6} parent=11 // pred_check
        %p210 = pneg %p155
      $region30: #{convnet_b_forward.6} parent=11 // pred_check_branch
        %212 = sbr.rel (%p210) target = $region32
      $region31: #{convnet_b_forward.6} parent=11 // pred_region
        _
      $region32: #{convnet_b_forward.6} parent=11 // pred_fallthru
        _
    $region12: #{convnet_b_forward.6} parent=5 // pred_fallthru
      _
    %p213 = scmp.lt.s32.totalorder %s12, 16
    // Predicated region
    $region33: #{convnet_b_forward.6} parent=5 // pred_check
      %p214 = pneg %p213
    $region34: #{convnet_b_forward.6} parent=5 // pred_check_branch
      %216 = sbr.rel (%p214) target = $region36
    $region35: #{convnet_b_forward.6} parent=5 // pred_region
      // Predicated region
      $region37: #{convnet_b_forward.6} parent=35 // pred_check
        %p217 = pneg %p44
      $region38: #{convnet_b_forward.6} parent=35 // pred_check_branch
        %219 = sbr.rel (%p217) target = $region40
      $region39: #{convnet_b_forward.6} parent=35 // pred_region
        %p220 = scmp.lt.s32.totalorder %s19, 1
        %s221 = scalar_select %p220, %s19, 1
        %s222 = smul.addr %s221, 1040
        %s223 = smul.addr %s222, 4
        %s224 = scalar_lea.vmem %s0, %s223
      $region40: #{convnet_b_forward.6} parent=35 // pred_fallthru
        _
    $region36: #{convnet_b_forward.6} parent=5 // pred_fallthru
      _
    %p225 = scmp.le.s32.totalorder 1, %s12
    %p226 = scmp.lt.s32.totalorder %s12, 17
    %p227 = pnand %p225, %p226
    %p228 = pneg %p227
    // Predicated region
    $region41: #{convnet_b_forward.6} parent=5 // pred_check
      _
    $region42: #{convnet_b_forward.6} parent=5 // pred_check_branch
      %230 = sbr.rel (%p227) target = $region44
    $region43: #{convnet_b_forward.6} parent=5 // pred_region
      %s231 = ssub.s32 %s12, 1
      %p232 = scmp.lt.s32.totalorder %s21, 1
      %s233 = scalar_select %p232, %s21, 1
      %s234 = smul.addr %s233, 1040
      %s235 = smul.addr %s234, 4
      %s236 = scalar_lea.vmem %s0, %s235
      %p237 = pneg %p50
      %p238 = pneg %p47
      %p239 = pneg %p71
      %p240 = pneg %p68
      %p241 = pneg %p92
      %p242 = pneg %p89
      %p243 = pneg %p113
      %p244 = pneg %p110
      %p245 = pneg %p134
      %p246 = pneg %p131
      %p247 = pneg %p155
      %p248 = pneg %p152
      %p249 = pneg %p183
      %p250 = pneg %p180
      %s251 = smul.u32 16, %s22
      %p252 = scmp.lt.s32.totalorder %s21, 1
      %s253 = scalar_select %p252, %s21, 1
      %p254 = scmp.lt.s32.totalorder %s251, 127
      %s255 = scalar_select %p254, %s251, 127
      %s256 = smul.addr %s255, 2
      %s257 = smul.addr %s253, 256
      %s258 = sadd.s32 %s256, %s257
      %s259 = smul.addr %s258, 4
      %s260 = scalar_lea.vmem %s6, %s259
      %p261 = scmp.lt.s32.totalorder %s21, 1
      %s262 = scalar_select %p261, %s21, 1
      %s263 = smul.addr %s262, 1040
      %s264 = smul.addr %s263, 4
      %s265 = scalar_lea.vmem %s0, %s264
      %s266 = smul.u32 16, %s22
      %p267 = scmp.lt.s32.totalorder %s21, 1
      %s268 = scalar_select %p267, %s21, 1
      %p269 = scmp.lt.s32.totalorder %s266, 127
      %s270 = scalar_select %p269, %s266, 127
      %s271 = smul.addr %s270, 2
      %s272 = smul.addr %s268, 256
      %s273 = sadd.s32 %s271, %s272
      %s274 = smul.addr %s273, 4
      %s275 = scalar_lea.vmem %s6, %s274
      %s276 = smul.u32 16, %s22
      %s278 = smul.u32 %s22, 32
      %v279 = vlaneseq
      %v280 = vand.u32 %v279, 127
      %v281 = vadd.s32 %v280, 128
      loop: start=0, step=1, limit=36
      $region45: #{convnet_b_forward.6} parent=43 // loop_pre_header
        _
      $region46: #{convnet_b_forward.6} parent=43 // loop_header
        %s283 = sphi 0, %s287
        %p284 = scmp.ge.s32.totalorder %s283, 36
      $region47: #{convnet_b_forward.6} parent=43 // loop_header_branch
        %286 = sbr.rel (%p284) target = $region51
      $region48: #{convnet_b_forward.6} parent=43 // loop_body
        %s288 = sadd.s32 %s278, %s283
        %s289 = smul.u32 %s288, 4
        %s290 = smul.addr %s289, 4
        %s291 = scalar_lea.vmem %s265, %s290
        %v292 = vld [vmem:[%s291] sm:$0xff]
        %v293 = vld [vmem:[%s291 + $0x8] sm:$0xff]
        %v294 = vunpack.c.l.bf16 %v292
        %v295 = vunpack.c.h.bf16 %v292
        %v296 = vunpack.c.l.bf16 %v293
        %v297 = vunpack.c.h.bf16 %v293
        %298 = vrot.lane.b32.xlu0 %v294, 2
        %v299 = vpop.permute.xlu0 %298
        %300 = vrot.lane.b32.xlu0 %v296, 2
        %v301 = vpop.permute.xlu0 %300
        %302 = vrot.lane.b32.xlu0 %v295, 2
        %v303 = vpop.permute.xlu0 %302
        %304 = vrot.lane.b32.xlu0 %v297, 2
        %v305 = vpop.permute.xlu0 %304
        %vm306 = vcmp.lt.s32.totalorder %v280, 2
        %v307 = vsel %vm306, %v299, %v303
        %v308 = vsel %vm306, %v301, %v305
        %v309 = vsel %vm306, %v303, %v299
        %v310 = vsel %vm306, %v305, %v301
        %vm311 = vcmp.ge.s32.totalorder %v280, 2
        %vm312 = vcmp.ge.s32.totalorder %v281, 2
        %v313 = vsel %vm311, %v309, 0.0
        %v314 = vsel %vm312, %v307, 0.0
        %v315 = vsel %vm311, %v310, 0.0
        %v316 = vsel %vm312, %v308, 0.0
        %v317 = vpack.c.bf16 %v314, %v313
        %v318 = vpack.c.bf16 %v316, %v315
        %s319 = smul.u32 %s283, 20
        %s320 = smul.addr %s319, 4
        %s321 = scalar_lea.vmem [#allocation2], %s320
        %322 = vst [vmem:[%s321] sm:$0xff] %v317
        %323 = vst [vmem:[%s321 + $0x8] sm:$0xff] %v318
        %324 = vrot.lane.b32.xlu0 %v294, 1
        %v325 = vpop.permute.xlu0 %324
        %326 = vrot.lane.b32.xlu0 %v296, 1
        %v327 = vpop.permute.xlu0 %326
        %328 = vrot.lane.b32.xlu0 %v295, 1
        %v329 = vpop.permute.xlu0 %328
        %330 = vrot.lane.b32.xlu0 %v297, 1
        %v331 = vpop.permute.xlu0 %330
        %vm332 = vcmp.lt.s32.totalorder %v280, 1
        %v333 = vsel %vm332, %v325, %v329
        %v334 = vsel %vm332, %v327, %v331
        %v335 = vsel %vm332, %v329, %v325
        %v336 = vsel %vm332, %v331, %v327
        %vm337 = vcmp.ge.s32.totalorder %v280, 1
        %vm338 = vcmp.ge.s32.totalorder %v281, 1
        %v339 = vsel %vm337, %v335, 0.0
        %v340 = vsel %vm338, %v333, 0.0
        %v341 = vsel %vm337, %v336, 0.0
        %v342 = vsel %vm338, %v334, 0.0
        %v343 = vpack.c.bf16 %v340, %v339
        %v344 = vpack.c.bf16 %v342, %v341
        %345 = vst [vmem:[%s321 + $0x10] sm:$0xff] %v343
        %346 = vst [vmem:[%s321 + $0x18] sm:$0xff] %v344
        %347 = vst [vmem:[%s321 + $0x20] sm:$0xff] %v292
        %348 = vst [vmem:[%s321 + $0x28] sm:$0xff] %v293
        %349 = vrot.lane.b32.xlu0 %v294, 127
        %v350 = vpop.permute.xlu0 %349
        %351 = vrot.lane.b32.xlu0 %v296, 127
        %v352 = vpop.permute.xlu0 %351
        %353 = vrot.lane.b32.xlu0 %v295, 127
        %v354 = vpop.permute.xlu0 %353
        %355 = vrot.lane.b32.xlu0 %v297, 127
        %v356 = vpop.permute.xlu0 %355
        %vm357 = vcmp.lt.s32.totalorder %v280, 127
        %v358 = vsel %vm357, %v350, %v354
        %v359 = vsel %vm357, %v352, %v356
        %v360 = vsel %vm357, %v354, %v350
        %v361 = vsel %vm357, %v356, %v352
        %vm362 = vcmp.lt.s32.totalorder %v280, 255
        %vm363 = vcmp.lt.s32.totalorder %v281, 255
        %v364 = vsel %vm362, %v358, 0.0
        %v365 = vsel %vm363, %v360, 0.0
        %v366 = vsel %vm362, %v359, 0.0
        %v367 = vsel %vm363, %v361, 0.0
        %v368 = vpack.c.bf16 %v365, %v364
        %v369 = vpack.c.bf16 %v367, %v366
        %370 = vst [vmem:[%s321 + $0x30] sm:$0xff] %v368
        %371 = vst [vmem:[%s321 + $0x38] sm:$0xff] %v369
        %372 = vrot.lane.b32.xlu0 %v294, 126
        %v373 = vpop.permute.xlu0 %372
        %374 = vrot.lane.b32.xlu0 %v296, 126
        %v375 = vpop.permute.xlu0 %374
        %376 = vrot.lane.b32.xlu0 %v295, 126
        %v377 = vpop.permute.xlu0 %376
        %378 = vrot.lane.b32.xlu0 %v297, 126
        %v379 = vpop.permute.xlu0 %378
        %vm380 = vcmp.lt.s32.totalorder %v280, 126
        %v381 = vsel %vm380, %v373, %v377
        %v382 = vsel %vm380, %v375, %v379
        %v383 = vsel %vm380, %v377, %v373
        %v384 = vsel %vm380, %v379, %v375
        %vm385 = vcmp.lt.s32.totalorder %v280, 254
        %vm386 = vcmp.lt.s32.totalorder %v281, 254
        %v387 = vsel %vm385, %v381, 0.0
        %v388 = vsel %vm386, %v383, 0.0
        %v389 = vsel %vm385, %v382, 0.0
        %v390 = vsel %vm386, %v384, 0.0
        %v391 = vpack.c.bf16 %v388, %v387
        %v392 = vpack.c.bf16 %v390, %v389
        %393 = vst [vmem:[%s321 + $0x40] sm:$0xff] %v391
        %394 = vst [vmem:[%s321 + $0x48] sm:$0xff] %v392
      $region49: #{convnet_b_forward.6} parent=43 // loop_footer
        %s287 = sadd.s32 1, %s283
      $region50: #{convnet_b_forward.6} parent=43 // loop_footer_branch
        %282 = sbr.rel target = $region46
      $region51: #{convnet_b_forward.6} parent=43 // loop_exit
        _
      %v395 = vld [vmem:[%s2] sm:$0xff]
      %v396 = vld [vmem:[%s2 + $0x8] sm:$0xff]
      %v397 = vld [vmem:[%s3] sm:$0xff]
      %v398 = vld [vmem:[%s3 + $0x8] sm:$0xff]
      loop: start=0, step=1, limit=16
      $region52: #{convnet_b_forward.6} parent=43 // loop_pre_header
        _
      $region53: #{convnet_b_forward.6} parent=43 // loop_header
        %s400 = sphi 0, %s404
        %p401 = scmp.ge.s32.totalorder %s400, 16
      $region54: #{convnet_b_forward.6} parent=43 // loop_header_branch
        %403 = sbr.rel (%p401) target = $region58
      $region55: #{convnet_b_forward.6} parent=43 // loop_body
        %s405 = smul.u32 %s400, 2
        %s406 = smul.u32 %s405, 20
        %s407 = smul.addr %s406, 4
        %s408 = scalar_lea.vmem [#allocation2], %s407
        %v409 = vld [vmem:[%s408] sm:$0xff]
        %v410 = vld [vmem:[%s408 + $0x8] sm:$0xff]
        %v411 = vld [vmem:[%s408 + $0x10] sm:$0xff]
        %v412 = vld [vmem:[%s408 + $0x18] sm:$0xff]
        %v413 = vld [vmem:[%s408 + $0x20] sm:$0xff]
        %v414 = vld [vmem:[%s408 + $0x28] sm:$0xff]
        %v415 = vld [vmem:[%s408 + $0x30] sm:$0xff]
        %v416 = vld [vmem:[%s408 + $0x38] sm:$0xff]
        %v417 = vld [vmem:[%s408 + $0x40] sm:$0xff]
        %v418 = vld [vmem:[%s408 + $0x48] sm:$0xff]
        %v419 = vld [vmem:[%s1] sm:$0xf]
        %v420 = vld [vmem:[%s1 + $0x4] sm:$0xf]
        %s421 = sadd.s32 %s405, 1
        %s422 = smul.u32 %s421, 20
        %s423 = smul.addr %s422, 4
        %s424 = scalar_lea.vmem [#allocation2], %s423
        %v425 = vld [vmem:[%s424] sm:$0xff]
        %v426 = vld [vmem:[%s424 + $0x8] sm:$0xff]
        %v427 = vld [vmem:[%s424 + $0x10] sm:$0xff]
        %v428 = vld [vmem:[%s424 + $0x18] sm:$0xff]
        %v429 = vld [vmem:[%s424 + $0x20] sm:$0xff]
        %v430 = vld [vmem:[%s424 + $0x28] sm:$0xff]
        %v431 = vld [vmem:[%s424 + $0x30] sm:$0xff]
        %v432 = vld [vmem:[%s424 + $0x38] sm:$0xff]
        %v433 = vld [vmem:[%s424 + $0x40] sm:$0xff]
        %v434 = vld [vmem:[%s424 + $0x48] sm:$0xff]
        %s435 = scalar_lea.vmem %s1, 8
        %v436 = vld [vmem:[%s435] sm:$0xf]
        %v437 = vld [vmem:[%s435 + $0x4] sm:$0xf]
        %v440 = vunpack.c.l.b16 %v436
        %v441 = vunpack.c.l.b16 %v437
        %v442 = vpack.c.b16 %v441, %v440
        %v453 = vunpack.c.l.b16 %v425
        %v454 = vunpack.c.h.b16 %v425
        %v455 = vunpack.c.l.b16 %v426
        %v456 = vunpack.c.h.b16 %v426
        %v457 = vunpack.c.l.b16 %v427
        %v458 = vunpack.c.h.b16 %v427
        %v459 = vunpack.c.l.b16 %v428
        %v460 = vunpack.c.h.b16 %v428
        %v461 = vunpack.c.l.b16 %v429
        %v462 = vunpack.c.h.b16 %v429
        %v463 = vunpack.c.l.b16 %v430
        %v464 = vunpack.c.h.b16 %v430
        %v465 = vunpack.c.l.b16 %v431
        %v466 = vunpack.c.h.b16 %v431
        %v467 = vunpack.c.l.b16 %v432
        %v468 = vunpack.c.h.b16 %v432
        %v469 = vunpack.c.l.b16 %v433
        %v470 = vunpack.c.h.b16 %v433
        %v471 = vunpack.c.l.b16 %v434
        %v472 = vunpack.c.h.b16 %v434
        %v473 = vpack.c.b16 %v455, %v453
        %v474 = vpack.c.b16 %v456, %v454
        %v475 = vpack.c.b16 %v459, %v457
        %v476 = vpack.c.b16 %v460, %v458
        %v477 = vpack.c.b16 %v463, %v461
        %v478 = vpack.c.b16 %v464, %v462
        %v479 = vpack.c.b16 %v467, %v465
        %v480 = vpack.c.b16 %v468, %v466
        %v481 = vpack.c.b16 %v471, %v469
        %v482 = vpack.c.b16 %v472, %v470
        %vm493 = vcmask 654336
        %v495 = vsel %vm493, %v442, 0
        %497 = vmatpush.bf16.msra.mxu0 0
        %498 = vmatpush.bf16.msra.mxu0 0
        %499 = vmatpush.bf16.msra.mxu0 0
        %500 = vmatpush.bf16.msra.mxu0 %v481
        %501 = vmatpush.bf16.msra.mxu0 %v479
        %502 = vmatpush.bf16.msra.mxu0 %v477
        %503 = vmatpush.bf16.msra.mxu0 %v475
        %504 = vmatpush.bf16.msra.mxu0 %v473
        %505 = vmatmul.bf16.gmra.mxu0 %v495
        %v506 = vpop.f32.mrf.mxu0
        %v507 = vadd.f32 0.0, %v506
        %v508 = vpop.f32.mrf.mxu0
        %v509 = vadd.f32 0.0, %v508
        %510 = vdwg.mxu0
        %511 = vmatpush.bf16.msra.mxu0 0
        %512 = vmatpush.bf16.msra.mxu0 0
        %513 = vmatpush.bf16.msra.mxu0 0
        %514 = vmatpush.bf16.msra.mxu0 %v482
        %515 = vmatpush.bf16.msra.mxu0 %v480
        %516 = vmatpush.bf16.msra.mxu0 %v478
        %517 = vmatpush.bf16.msra.mxu0 %v476
        %518 = vmatpush.bf16.msra.mxu0 %v474
        %519 = vmatmul.bf16.gmra.mxu0 %v495
        %v520 = vpop.f32.mrf.mxu0
        %v521 = vadd.f32 0.0, %v520
        %v522 = vpop.f32.mrf.mxu0
        %v523 = vadd.f32 0.0, %v522
        %524 = vdwg.mxu0
        %v527 = vunpack.c.l.b16 %v419
        %v528 = vunpack.c.l.b16 %v420
        %v529 = vpack.c.b16 %v528, %v527
        %v540 = vunpack.c.l.b16 %v409
        %v541 = vunpack.c.h.b16 %v409
        %v542 = vunpack.c.l.b16 %v410
        %v543 = vunpack.c.h.b16 %v410
        %v544 = vunpack.c.l.b16 %v411
        %v545 = vunpack.c.h.b16 %v411
        %v546 = vunpack.c.l.b16 %v412
        %v547 = vunpack.c.h.b16 %v412
        %v548 = vunpack.c.l.b16 %v413
        %v549 = vunpack.c.h.b16 %v413
        %v550 = vunpack.c.l.b16 %v414
        %v551 = vunpack.c.h.b16 %v414
        %v552 = vunpack.c.l.b16 %v415
        %v553 = vunpack.c.h.b16 %v415
        %v554 = vunpack.c.l.b16 %v416
        %v555 = vunpack.c.h.b16 %v416
        %v556 = vunpack.c.l.b16 %v417
        %v557 = vunpack.c.h.b16 %v417
        %v558 = vunpack.c.l.b16 %v418
        %v559 = vunpack.c.h.b16 %v418
        %v560 = vpack.c.b16 %v542, %v540
        %v561 = vpack.c.b16 %v543, %v541
        %v562 = vpack.c.b16 %v546, %v544
        %v563 = vpack.c.b16 %v547, %v545
        %v564 = vpack.c.b16 %v550, %v548
        %v565 = vpack.c.b16 %v551, %v549
        %v566 = vpack.c.b16 %v554, %v552
        %v567 = vpack.c.b16 %v555, %v553
        %v568 = vpack.c.b16 %v558, %v556
        %v569 = vpack.c.b16 %v559, %v557
        %v581 = vsel %vm493, %v529, 0
        %583 = vmatpush.bf16.msra.mxu0 0
        %584 = vmatpush.bf16.msra.mxu0 0
        %585 = vmatpush.bf16.msra.mxu0 0
        %586 = vmatpush.bf16.msra.mxu0 %v568
        %587 = vmatpush.bf16.msra.mxu0 %v566
        %588 = vmatpush.bf16.msra.mxu0 %v564
        %589 = vmatpush.bf16.msra.mxu0 %v562
        %590 = vmatpush.bf16.msra.mxu0 %v560
        %591 = vmatmul.bf16.gmra.mxu0 %v581
        %v592 = vpop.f32.mrf.mxu0
        %v593 = vadd.f32 %v507, %v592
        %v594 = vpop.f32.mrf.mxu0
        %v595 = vadd.f32 %v509, %v594
        %596 = vdwg.mxu0
        %597 = vmatpush.bf16.msra.mxu0 0
        %598 = vmatpush.bf16.msra.mxu0 0
        %599 = vmatpush.bf16.msra.mxu0 0
        %600 = vmatpush.bf16.msra.mxu0 %v569
        %601 = vmatpush.bf16.msra.mxu0 %v567
        %602 = vmatpush.bf16.msra.mxu0 %v565
        %603 = vmatpush.bf16.msra.mxu0 %v563
        %604 = vmatpush.bf16.msra.mxu0 %v561
        %605 = vmatmul.bf16.gmra.mxu0 %v581
        %v606 = vpop.f32.mrf.mxu0
        %v607 = vadd.f32 %v521, %v606
        %v608 = vpop.f32.mrf.mxu0
        %v609 = vadd.f32 %v523, %v608
        %610 = vdwg.mxu0
        %s611 = sadd.s32 %s405, 2
        %s612 = smul.u32 %s611, 20
        %s613 = smul.addr %s612, 4
        %s614 = scalar_lea.vmem [#allocation2], %s613
        %v615 = vld [vmem:[%s614] sm:$0xff]
        %v616 = vld [vmem:[%s614 + $0x8] sm:$0xff]
        %v617 = vld [vmem:[%s614 + $0x10] sm:$0xff]
        %v618 = vld [vmem:[%s614 + $0x18] sm:$0xff]
        %v619 = vld [vmem:[%s614 + $0x20] sm:$0xff]
        %v620 = vld [vmem:[%s614 + $0x28] sm:$0xff]
        %v621 = vld [vmem:[%s614 + $0x30] sm:$0xff]
        %v622 = vld [vmem:[%s614 + $0x38] sm:$0xff]
        %v623 = vld [vmem:[%s614 + $0x40] sm:$0xff]
        %v624 = vld [vmem:[%s614 + $0x48] sm:$0xff]
        %s625 = scalar_lea.vmem %s1, 16
        %v626 = vld [vmem:[%s625] sm:$0xf]
        %v627 = vld [vmem:[%s625 + $0x4] sm:$0xf]
        %v630 = vunpack.c.l.b16 %v626
        %v631 = vunpack.c.l.b16 %v627
        %v632 = vpack.c.b16 %v631, %v630
        %v643 = vunpack.c.l.b16 %v615
        %v644 = vunpack.c.h.b16 %v615
        %v645 = vunpack.c.l.b16 %v616
        %v646 = vunpack.c.h.b16 %v616
        %v647 = vunpack.c.l.b16 %v617
        %v648 = vunpack.c.h.b16 %v617
        %v649 = vunpack.c.l.b16 %v618
        %v650 = vunpack.c.h.b16 %v618
        %v651 = vunpack.c.l.b16 %v619
        %v652 = vunpack.c.h.b16 %v619
        %v653 = vunpack.c.l.b16 %v620
        %v654 = vunpack.c.h.b16 %v620
        %v655 = vunpack.c.l.b16 %v621
        %v656 = vunpack.c.h.b16 %v621
        %v657 = vunpack.c.l.b16 %v622
        %v658 = vunpack.c.h.b16 %v622
        %v659 = vunpack.c.l.b16 %v623
        %v660 = vunpack.c.h.b16 %v623
        %v661 = vunpack.c.l.b16 %v624
        %v662 = vunpack.c.h.b16 %v624
        %v663 = vpack.c.b16 %v645, %v643
        %v664 = vpack.c.b16 %v646, %v644
        %v665 = vpack.c.b16 %v649, %v647
        %v666 = vpack.c.b16 %v650, %v648
        %v667 = vpack.c.b16 %v653, %v651
        %v668 = vpack.c.b16 %v654, %v652
        %v669 = vpack.c.b16 %v657, %v655
        %v670 = vpack.c.b16 %v658, %v656
        %v671 = vpack.c.b16 %v661, %v659
        %v672 = vpack.c.b16 %v662, %v660
        %v684 = vsel %vm493, %v632, 0
        %686 = vmatpush.bf16.msra.mxu0 0
        %687 = vmatpush.bf16.msra.mxu0 0
        %688 = vmatpush.bf16.msra.mxu0 0
        %689 = vmatpush.bf16.msra.mxu0 %v671
        %690 = vmatpush.bf16.msra.mxu0 %v669
        %691 = vmatpush.bf16.msra.mxu0 %v667
        %692 = vmatpush.bf16.msra.mxu0 %v665
        %693 = vmatpush.bf16.msra.mxu0 %v663
        %694 = vmatmul.bf16.gmra.mxu0 %v684
        %v695 = vpop.f32.mrf.mxu0
        %v696 = vadd.f32 0.0, %v695
        %v697 = vpop.f32.mrf.mxu0
        %v698 = vadd.f32 0.0, %v697
        %699 = vdwg.mxu0
        %700 = vmatpush.bf16.msra.mxu0 0
        %701 = vmatpush.bf16.msra.mxu0 0
        %702 = vmatpush.bf16.msra.mxu0 0
        %703 = vmatpush.bf16.msra.mxu0 %v672
        %704 = vmatpush.bf16.msra.mxu0 %v670
        %705 = vmatpush.bf16.msra.mxu0 %v668
        %706 = vmatpush.bf16.msra.mxu0 %v666
        %707 = vmatpush.bf16.msra.mxu0 %v664
        %708 = vmatmul.bf16.gmra.mxu0 %v684
        %v709 = vpop.f32.mrf.mxu0
        %v710 = vadd.f32 0.0, %v709
        %v711 = vpop.f32.mrf.mxu0
        %v712 = vadd.f32 0.0, %v711
        %713 = vdwg.mxu0
        %v714 = vadd.f32 %v593, %v696
        %v715 = vadd.f32 %v607, %v710
        %v716 = vadd.f32 %v595, %v698
        %v717 = vadd.f32 %v609, %v712
        %s718 = sadd.s32 %s405, 3
        %s719 = smul.u32 %s718, 20
        %s720 = smul.addr %s719, 4
        %s721 = scalar_lea.vmem [#allocation2], %s720
        %v722 = vld [vmem:[%s721] sm:$0xff]
        %v723 = vld [vmem:[%s721 + $0x8] sm:$0xff]
        %v724 = vld [vmem:[%s721 + $0x10] sm:$0xff]
        %v725 = vld [vmem:[%s721 + $0x18] sm:$0xff]
        %v726 = vld [vmem:[%s721 + $0x20] sm:$0xff]
        %v727 = vld [vmem:[%s721 + $0x28] sm:$0xff]
        %v728 = vld [vmem:[%s721 + $0x30] sm:$0xff]
        %v729 = vld [vmem:[%s721 + $0x38] sm:$0xff]
        %v730 = vld [vmem:[%s721 + $0x40] sm:$0xff]
        %v731 = vld [vmem:[%s721 + $0x48] sm:$0xff]
        %s732 = scalar_lea.vmem %s1, 24
        %v733 = vld [vmem:[%s732] sm:$0xf]
        %v734 = vld [vmem:[%s732 + $0x4] sm:$0xf]
        %v737 = vunpack.c.l.b16 %v733
        %v738 = vunpack.c.l.b16 %v734
        %v739 = vpack.c.b16 %v738, %v737
        %v750 = vunpack.c.l.b16 %v722
        %v751 = vunpack.c.h.b16 %v722
        %v752 = vunpack.c.l.b16 %v723
        %v753 = vunpack.c.h.b16 %v723
        %v754 = vunpack.c.l.b16 %v724
        %v755 = vunpack.c.h.b16 %v724
        %v756 = vunpack.c.l.b16 %v725
        %v757 = vunpack.c.h.b16 %v725
        %v758 = vunpack.c.l.b16 %v726
        %v759 = vunpack.c.h.b16 %v726
        %v760 = vunpack.c.l.b16 %v727
        %v761 = vunpack.c.h.b16 %v727
        %v762 = vunpack.c.l.b16 %v728
        %v763 = vunpack.c.h.b16 %v728
        %v764 = vunpack.c.l.b16 %v729
        %v765 = vunpack.c.h.b16 %v729
        %v766 = vunpack.c.l.b16 %v730
        %v767 = vunpack.c.h.b16 %v730
        %v768 = vunpack.c.l.b16 %v731
        %v769 = vunpack.c.h.b16 %v731
        %v770 = vpack.c.b16 %v752, %v750
        %v771 = vpack.c.b16 %v753, %v751
        %v772 = vpack.c.b16 %v756, %v754
        %v773 = vpack.c.b16 %v757, %v755
        %v774 = vpack.c.b16 %v760, %v758
        %v775 = vpack.c.b16 %v761, %v759
        %v776 = vpack.c.b16 %v764, %v762
        %v777 = vpack.c.b16 %v765, %v763
        %v778 = vpack.c.b16 %v768, %v766
        %v779 = vpack.c.b16 %v769, %v767
        %v791 = vsel %vm493, %v739, 0
        %793 = vmatpush.bf16.msra.mxu0 0
        %794 = vmatpush.bf16.msra.mxu0 0
        %795 = vmatpush.bf16.msra.mxu0 0
        %796 = vmatpush.bf16.msra.mxu0 %v778
        %797 = vmatpush.bf16.msra.mxu0 %v776
        %798 = vmatpush.bf16.msra.mxu0 %v774
        %799 = vmatpush.bf16.msra.mxu0 %v772
        %800 = vmatpush.bf16.msra.mxu0 %v770
        %801 = vmatmul.bf16.gmra.mxu0 %v791
        %v802 = vpop.f32.mrf.mxu0
        %v803 = vadd.f32 0.0, %v802
        %v804 = vpop.f32.mrf.mxu0
        %v805 = vadd.f32 0.0, %v804
        %806 = vdwg.mxu0
        %807 = vmatpush.bf16.msra.mxu0 0
        %808 = vmatpush.bf16.msra.mxu0 0
        %809 = vmatpush.bf16.msra.mxu0 0
        %810 = vmatpush.bf16.msra.mxu0 %v779
        %811 = vmatpush.bf16.msra.mxu0 %v777
        %812 = vmatpush.bf16.msra.mxu0 %v775
        %813 = vmatpush.bf16.msra.mxu0 %v773
        %814 = vmatpush.bf16.msra.mxu0 %v771
        %815 = vmatmul.bf16.gmra.mxu0 %v791
        %v816 = vpop.f32.mrf.mxu0
        %v817 = vadd.f32 0.0, %v816
        %v818 = vpop.f32.mrf.mxu0
        %v819 = vadd.f32 0.0, %v818
        %820 = vdwg.mxu0
        %v821 = vadd.f32 %v714, %v803
        %v822 = vadd.f32 %v715, %v817
        %v823 = vadd.f32 %v716, %v805
        %v824 = vadd.f32 %v717, %v819
        %s825 = sadd.s32 %s405, 4
        %s826 = smul.u32 %s825, 20
        %s827 = smul.addr %s826, 4
        %s828 = scalar_lea.vmem [#allocation2], %s827
        %v829 = vld [vmem:[%s828] sm:$0xff]
        %v830 = vld [vmem:[%s828 + $0x8] sm:$0xff]
        %v831 = vld [vmem:[%s828 + $0x10] sm:$0xff]
        %v832 = vld [vmem:[%s828 + $0x18] sm:$0xff]
        %v833 = vld [vmem:[%s828 + $0x20] sm:$0xff]
        %v834 = vld [vmem:[%s828 + $0x28] sm:$0xff]
        %v835 = vld [vmem:[%s828 + $0x30] sm:$0xff]
        %v836 = vld [vmem:[%s828 + $0x38] sm:$0xff]
        %v837 = vld [vmem:[%s828 + $0x40] sm:$0xff]
        %v838 = vld [vmem:[%s828 + $0x48] sm:$0xff]
        %s839 = scalar_lea.vmem %s1, 32
        %v840 = vld [vmem:[%s839] sm:$0xf]
        %v841 = vld [vmem:[%s839 + $0x4] sm:$0xf]
        %v844 = vunpack.c.l.b16 %v840
        %v845 = vunpack.c.l.b16 %v841
        %v846 = vpack.c.b16 %v845, %v844
        %v857 = vunpack.c.l.b16 %v829
        %v858 = vunpack.c.h.b16 %v829
        %v859 = vunpack.c.l.b16 %v830
        %v860 = vunpack.c.h.b16 %v830
        %v861 = vunpack.c.l.b16 %v831
        %v862 = vunpack.c.h.b16 %v831
        %v863 = vunpack.c.l.b16 %v832
        %v864 = vunpack.c.h.b16 %v832
        %v865 = vunpack.c.l.b16 %v833
        %v866 = vunpack.c.h.b16 %v833
        %v867 = vunpack.c.l.b16 %v834
        %v868 = vunpack.c.h.b16 %v834
        %v869 = vunpack.c.l.b16 %v835
        %v870 = vunpack.c.h.b16 %v835
        %v871 = vunpack.c.l.b16 %v836
        %v872 = vunpack.c.h.b16 %v836
        %v873 = vunpack.c.l.b16 %v837
        %v874 = vunpack.c.h.b16 %v837
        %v875 = vunpack.c.l.b16 %v838
        %v876 = vunpack.c.h.b16 %v838
        %v877 = vpack.c.b16 %v859, %v857
        %v878 = vpack.c.b16 %v860, %v858
        %v879 = vpack.c.b16 %v863, %v861
        %v880 = vpack.c.b16 %v864, %v862
        %v881 = vpack.c.b16 %v867, %v865
        %v882 = vpack.c.b16 %v868, %v866
        %v883 = vpack.c.b16 %v871, %v869
        %v884 = vpack.c.b16 %v872, %v870
        %v885 = vpack.c.b16 %v875, %v873
        %v886 = vpack.c.b16 %v876, %v874
        %v898 = vsel %vm493, %v846, 0
        %900 = vmatpush.bf16.msra.mxu0 0
        %901 = vmatpush.bf16.msra.mxu0 0
        %902 = vmatpush.bf16.msra.mxu0 0
        %903 = vmatpush.bf16.msra.mxu0 %v885
        %904 = vmatpush.bf16.msra.mxu0 %v883
        %905 = vmatpush.bf16.msra.mxu0 %v881
        %906 = vmatpush.bf16.msra.mxu0 %v879
        %907 = vmatpush.bf16.msra.mxu0 %v877
        %908 = vmatmul.bf16.gmra.mxu0 %v898
        %v909 = vpop.f32.mrf.mxu0
        %v910 = vadd.f32 0.0, %v909
        %v911 = vpop.f32.mrf.mxu0
        %v912 = vadd.f32 0.0, %v911
        %913 = vdwg.mxu0
        %914 = vmatpush.bf16.msra.mxu0 0
        %915 = vmatpush.bf16.msra.mxu0 0
        %916 = vmatpush.bf16.msra.mxu0 0
        %917 = vmatpush.bf16.msra.mxu0 %v886
        %918 = vmatpush.bf16.msra.mxu0 %v884
        %919 = vmatpush.bf16.msra.mxu0 %v882
        %920 = vmatpush.bf16.msra.mxu0 %v880
        %921 = vmatpush.bf16.msra.mxu0 %v878
        %922 = vmatmul.bf16.gmra.mxu0 %v898
        %v923 = vpop.f32.mrf.mxu0
        %v924 = vadd.f32 0.0, %v923
        %v925 = vpop.f32.mrf.mxu0
        %v926 = vadd.f32 0.0, %v925
        %927 = vdwg.mxu0
        %v928 = vadd.f32 %v821, %v910
        %v929 = vadd.f32 %v822, %v924
        %v930 = vadd.f32 %v823, %v912
        %v931 = vadd.f32 %v824, %v926
        %933 = vset.pattern.permute.xlu0 0
        %934 = vperm.xlu0 %933, %v395
        %v935 = vpop.permute.xlu0 %934
        %938 = vset.pattern.permute.xlu0 0
        %939 = vperm.xlu0 %938, %v396
        %v940 = vpop.permute.xlu0 %939
        %v942 = vmul.f32 %v928, %v935
        %v943 = vmul.f32 %v929, %v935
        %v944 = vmul.f32 %v930, %v940
        %v945 = vmul.f32 %v931, %v940
        %947 = vset.pattern.permute.xlu0 0
        %948 = vperm.xlu0 %947, %v397
        %v949 = vpop.permute.xlu0 %948
        %952 = vset.pattern.permute.xlu0 0
        %953 = vperm.xlu0 %952, %v398
        %v954 = vpop.permute.xlu0 %953
        %v956 = vadd.f32 %v942, %v949
        %v957 = vadd.f32 %v943, %v949
        %v958 = vadd.f32 %v944, %v954
        %v959 = vadd.f32 %v945, %v954
        %v960 = vmax.f32 %v956, 0.0
        %v961 = vmax.f32 %v957, 0.0
        %v962 = vmax.f32 %v958, 0.0
        %v963 = vmax.f32 %v959, 0.0
        %964 = vmatpush.bf16.msra.mxu0 0
        %965 = vmatpush.bf16.msra.mxu0 0
        %966 = vmatpush.bf16.msra.mxu0 0
        %967 = vmatpush.bf16.msra.mxu0 %v671
        %968 = vmatpush.bf16.msra.mxu0 %v669
        %969 = vmatpush.bf16.msra.mxu0 %v667
        %970 = vmatpush.bf16.msra.mxu0 %v665
        %971 = vmatpush.bf16.msra.mxu0 %v663
        %972 = vmatmul.bf16.gmra.mxu0 %v495
        %v973 = vpop.f32.mrf.mxu0
        %v974 = vadd.f32 0.0, %v973
        %v975 = vpop.f32.mrf.mxu0
        %v976 = vadd.f32 0.0, %v975
        %977 = vdwg.mxu0
        %978 = vmatpush.bf16.msra.mxu0 0
        %979 = vmatpush.bf16.msra.mxu0 0
        %980 = vmatpush.bf16.msra.mxu0 0
        %981 = vmatpush.bf16.msra.mxu0 %v672
        %982 = vmatpush.bf16.msra.mxu0 %v670
        %983 = vmatpush.bf16.msra.mxu0 %v668
        %984 = vmatpush.bf16.msra.mxu0 %v666
        %985 = vmatpush.bf16.msra.mxu0 %v664
        %986 = vmatmul.bf16.gmra.mxu0 %v495
        %v987 = vpop.f32.mrf.mxu0
        %v988 = vadd.f32 0.0, %v987
        %v989 = vpop.f32.mrf.mxu0
        %v990 = vadd.f32 0.0, %v989
        %991 = vdwg.mxu0
        %992 = vmatpush.bf16.msra.mxu0 0
        %993 = vmatpush.bf16.msra.mxu0 0
        %994 = vmatpush.bf16.msra.mxu0 0
        %995 = vmatpush.bf16.msra.mxu0 %v481
        %996 = vmatpush.bf16.msra.mxu0 %v479
        %997 = vmatpush.bf16.msra.mxu0 %v477
        %998 = vmatpush.bf16.msra.mxu0 %v475
        %999 = vmatpush.bf16.msra.mxu0 %v473
        %1000 = vmatmul.bf16.gmra.mxu0 %v581
        %v1001 = vpop.f32.mrf.mxu0
        %v1002 = vadd.f32 %v974, %v1001
        %v1003 = vpop.f32.mrf.mxu0
        %v1004 = vadd.f32 %v976, %v1003
        %1005 = vdwg.mxu0
        %1006 = vmatpush.bf16.msra.mxu0 0
        %1007 = vmatpush.bf16.msra.mxu0 0
        %1008 = vmatpush.bf16.msra.mxu0 0
        %1009 = vmatpush.bf16.msra.mxu0 %v482
        %1010 = vmatpush.bf16.msra.mxu0 %v480
        %1011 = vmatpush.bf16.msra.mxu0 %v478
        %1012 = vmatpush.bf16.msra.mxu0 %v476
        %1013 = vmatpush.bf16.msra.mxu0 %v474
        %1014 = vmatmul.bf16.gmra.mxu0 %v581
        %v1015 = vpop.f32.mrf.mxu0
        %v1016 = vadd.f32 %v988, %v1015
        %v1017 = vpop.f32.mrf.mxu0
        %v1018 = vadd.f32 %v990, %v1017
        %1019 = vdwg.mxu0
        %1020 = vmatpush.bf16.msra.mxu0 0
        %1021 = vmatpush.bf16.msra.mxu0 0
        %1022 = vmatpush.bf16.msra.mxu0 0
        %1023 = vmatpush.bf16.msra.mxu0 %v778
        %1024 = vmatpush.bf16.msra.mxu0 %v776
        %1025 = vmatpush.bf16.msra.mxu0 %v774
        %1026 = vmatpush.bf16.msra.mxu0 %v772
        %1027 = vmatpush.bf16.msra.mxu0 %v770
        %1028 = vmatmul.bf16.gmra.mxu0 %v684
        %v1029 = vpop.f32.mrf.mxu0
        %v1030 = vadd.f32 0.0, %v1029
        %v1031 = vpop.f32.mrf.mxu0
        %v1032 = vadd.f32 0.0, %v1031
        %1033 = vdwg.mxu0
        %1034 = vmatpush.bf16.msra.mxu0 0
        %1035 = vmatpush.bf16.msra.mxu0 0
        %1036 = vmatpush.bf16.msra.mxu0 0
        %1037 = vmatpush.bf16.msra.mxu0 %v779
        %1038 = vmatpush.bf16.msra.mxu0 %v777
        %1039 = vmatpush.bf16.msra.mxu0 %v775
        %1040 = vmatpush.bf16.msra.mxu0 %v773
        %1041 = vmatpush.bf16.msra.mxu0 %v771
        %1042 = vmatmul.bf16.gmra.mxu0 %v684
        %v1043 = vpop.f32.mrf.mxu0
        %v1044 = vadd.f32 0.0, %v1043
        %v1045 = vpop.f32.mrf.mxu0
        %v1046 = vadd.f32 0.0, %v1045
        %1047 = vdwg.mxu0
        %v1048 = vadd.f32 %v1002, %v1030
        %v1049 = vadd.f32 %v1016, %v1044
        %v1050 = vadd.f32 %v1004, %v1032
        %v1051 = vadd.f32 %v1018, %v1046
        %1052 = vmatpush.bf16.msra.mxu0 0
        %1053 = vmatpush.bf16.msra.mxu0 0
        %1054 = vmatpush.bf16.msra.mxu0 0
        %1055 = vmatpush.bf16.msra.mxu0 %v885
        %1056 = vmatpush.bf16.msra.mxu0 %v883
        %1057 = vmatpush.bf16.msra.mxu0 %v881
        %1058 = vmatpush.bf16.msra.mxu0 %v879
        %1059 = vmatpush.bf16.msra.mxu0 %v877
        %1060 = vmatmul.bf16.gmra.mxu0 %v791
        %v1061 = vpop.f32.mrf.mxu0
        %v1062 = vadd.f32 0.0, %v1061
        %v1063 = vpop.f32.mrf.mxu0
        %v1064 = vadd.f32 0.0, %v1063
        %1065 = vdwg.mxu0
        %1066 = vmatpush.bf16.msra.mxu0 0
        %1067 = vmatpush.bf16.msra.mxu0 0
        %1068 = vmatpush.bf16.msra.mxu0 0
        %1069 = vmatpush.bf16.msra.mxu0 %v886
        %1070 = vmatpush.bf16.msra.mxu0 %v884
        %1071 = vmatpush.bf16.msra.mxu0 %v882
        %1072 = vmatpush.bf16.msra.mxu0 %v880
        %1073 = vmatpush.bf16.msra.mxu0 %v878
        %1074 = vmatmul.bf16.gmra.mxu0 %v791
        %v1075 = vpop.f32.mrf.mxu0
        %v1076 = vadd.f32 0.0, %v1075
        %v1077 = vpop.f32.mrf.mxu0
        %v1078 = vadd.f32 0.0, %v1077
        %1079 = vdwg.mxu0
        %v1080 = vadd.f32 %v1048, %v1062
        %v1081 = vadd.f32 %v1049, %v1076
        %v1082 = vadd.f32 %v1050, %v1064
        %v1083 = vadd.f32 %v1051, %v1078
        %s1084 = sadd.s32 %s405, 5
        %s1085 = smul.u32 %s1084, 20
        %s1086 = smul.addr %s1085, 4
        %s1087 = scalar_lea.vmem [#allocation2], %s1086
        %v1088 = vld [vmem:[%s1087] sm:$0xff]
        %v1089 = vld [vmem:[%s1087 + $0x8] sm:$0xff]
        %v1090 = vld [vmem:[%s1087 + $0x10] sm:$0xff]
        %v1091 = vld [vmem:[%s1087 + $0x18] sm:$0xff]
        %v1092 = vld [vmem:[%s1087 + $0x20] sm:$0xff]
        %v1093 = vld [vmem:[%s1087 + $0x28] sm:$0xff]
        %v1094 = vld [vmem:[%s1087 + $0x30] sm:$0xff]
        %v1095 = vld [vmem:[%s1087 + $0x38] sm:$0xff]
        %v1096 = vld [vmem:[%s1087 + $0x40] sm:$0xff]
        %v1097 = vld [vmem:[%s1087 + $0x48] sm:$0xff]
        %v1108 = vunpack.c.l.b16 %v1088
        %v1109 = vunpack.c.h.b16 %v1088
        %v1110 = vunpack.c.l.b16 %v1089
        %v1111 = vunpack.c.h.b16 %v1089
        %v1112 = vunpack.c.l.b16 %v1090
        %v1113 = vunpack.c.h.b16 %v1090
        %v1114 = vunpack.c.l.b16 %v1091
        %v1115 = vunpack.c.h.b16 %v1091
        %v1116 = vunpack.c.l.b16 %v1092
        %v1117 = vunpack.c.h.b16 %v1092
        %v1118 = vunpack.c.l.b16 %v1093
        %v1119 = vunpack.c.h.b16 %v1093
        %v1120 = vunpack.c.l.b16 %v1094
        %v1121 = vunpack.c.h.b16 %v1094
        %v1122 = vunpack.c.l.b16 %v1095
        %v1123 = vunpack.c.h.b16 %v1095
        %v1124 = vunpack.c.l.b16 %v1096
        %v1125 = vunpack.c.h.b16 %v1096
        %v1126 = vunpack.c.l.b16 %v1097
        %v1127 = vunpack.c.h.b16 %v1097
        %v1128 = vpack.c.b16 %v1110, %v1108
        %v1129 = vpack.c.b16 %v1111, %v1109
        %v1130 = vpack.c.b16 %v1114, %v1112
        %v1131 = vpack.c.b16 %v1115, %v1113
        %v1132 = vpack.c.b16 %v1118, %v1116
        %v1133 = vpack.c.b16 %v1119, %v1117
        %v1134 = vpack.c.b16 %v1122, %v1120
        %v1135 = vpack.c.b16 %v1123, %v1121
        %v1136 = vpack.c.b16 %v1126, %v1124
        %v1137 = vpack.c.b16 %v1127, %v1125
        %1148 = vmatpush.bf16.msra.mxu0 0
        %1149 = vmatpush.bf16.msra.mxu0 0
        %1150 = vmatpush.bf16.msra.mxu0 0
        %1151 = vmatpush.bf16.msra.mxu0 %v1136
        %1152 = vmatpush.bf16.msra.mxu0 %v1134
        %1153 = vmatpush.bf16.msra.mxu0 %v1132
        %1154 = vmatpush.bf16.msra.mxu0 %v1130
        %1155 = vmatpush.bf16.msra.mxu0 %v1128
        %1156 = vmatmul.bf16.gmra.mxu0 %v898
        %v1157 = vpop.f32.mrf.mxu0
        %v1158 = vadd.f32 0.0, %v1157
        %v1159 = vpop.f32.mrf.mxu0
        %v1160 = vadd.f32 0.0, %v1159
        %1161 = vdwg.mxu0
        %1162 = vmatpush.bf16.msra.mxu0 0
        %1163 = vmatpush.bf16.msra.mxu0 0
        %1164 = vmatpush.bf16.msra.mxu0 0
        %1165 = vmatpush.bf16.msra.mxu0 %v1137
        %1166 = vmatpush.bf16.msra.mxu0 %v1135
        %1167 = vmatpush.bf16.msra.mxu0 %v1133
        %1168 = vmatpush.bf16.msra.mxu0 %v1131
        %1169 = vmatpush.bf16.msra.mxu0 %v1129
        %1170 = vmatmul.bf16.gmra.mxu0 %v898
        %v1171 = vpop.f32.mrf.mxu0
        %v1172 = vadd.f32 0.0, %v1171
        %v1173 = vpop.f32.mrf.mxu0
        %v1174 = vadd.f32 0.0, %v1173
        %1175 = vdwg.mxu0
        %v1176 = vadd.f32 %v1080, %v1158
        %v1177 = vadd.f32 %v1081, %v1172
        %v1178 = vadd.f32 %v1082, %v1160
        %v1179 = vadd.f32 %v1083, %v1174
        %v1180 = vmul.f32 %v1176, %v935
        %v1181 = vmul.f32 %v1177, %v935
        %v1182 = vmul.f32 %v1178, %v940
        %v1183 = vmul.f32 %v1179, %v940
        %v1184 = vadd.f32 %v1180, %v949
        %v1185 = vadd.f32 %v1181, %v949
        %v1186 = vadd.f32 %v1182, %v954
        %v1187 = vadd.f32 %v1183, %v954
        %v1188 = vmax.f32 %v1184, 0.0
        %v1189 = vmax.f32 %v1185, 0.0
        %v1190 = vmax.f32 %v1186, 0.0
        %v1191 = vmax.f32 %v1187, 0.0
        %v1192 = vmax.f32 %v960, %v1188
        %v1193 = vmax.f32 %v961, %v1189
        %v1194 = vmax.f32 %v962, %v1190
        %v1195 = vmax.f32 %v963, %v1191
        %v1196 = vpack.c.bf16 %v1194, %v1192
        %v1197 = vpack.c.bf16 %v1195, %v1193
        %v1198 = vld [vmem:[%s4] sm:$0xf]
        %v1199 = vld [vmem:[%s4 + $0x4] sm:$0xf]
        %v1200 = vld [vmem:[%s4 + $0x8] sm:$0xf]
        %v1201 = vld [vmem:[%s4 + $0xc] sm:$0xf]
        %v1202 = vld [vmem:[%s4 + $0x10] sm:$0xf]
        %v1203 = vld [vmem:[%s4 + $0x14] sm:$0xf]
        %v1204 = vld [vmem:[%s4 + $0x18] sm:$0xf]
        %v1205 = vld [vmem:[%s4 + $0x1c] sm:$0xf]
        %v1206 = vld [vmem:[%s4 + $0x20] sm:$0xf]
        %v1207 = vld [vmem:[%s4 + $0x24] sm:$0xf]
        %v1208 = vld [vmem:[%s4 + $0x28] sm:$0xf]
        %v1209 = vld [vmem:[%s4 + $0x2c] sm:$0xf]
        %v1210 = vld [vmem:[%s4 + $0x30] sm:$0xf]
        %v1211 = vld [vmem:[%s4 + $0x34] sm:$0xf]
        %v1212 = vld [vmem:[%s4 + $0x38] sm:$0xf]
        %v1213 = vld [vmem:[%s4 + $0x3c] sm:$0xf]
        %v1214 = vld [vmem:[%s4 + $0x40] sm:$0xf]
        %v1215 = vld [vmem:[%s4 + $0x44] sm:$0xf]
        %v1216 = vld [vmem:[%s4 + $0x48] sm:$0xf]
        %v1217 = vld [vmem:[%s4 + $0x4c] sm:$0xf]
        %v1218 = vld [vmem:[%s4 + $0x50] sm:$0xf]
        %v1219 = vld [vmem:[%s4 + $0x54] sm:$0xf]
        %v1220 = vld [vmem:[%s4 + $0x58] sm:$0xf]
        %v1221 = vld [vmem:[%s4 + $0x5c] sm:$0xf]
        %v1222 = vld [vmem:[%s4 + $0x60] sm:$0xf]
        %v1223 = vld [vmem:[%s4 + $0x64] sm:$0xf]
        %v1224 = vld [vmem:[%s4 + $0x68] sm:$0xf]
        %v1225 = vld [vmem:[%s4 + $0x6c] sm:$0xf]
        %v1226 = vld [vmem:[%s4 + $0x70] sm:$0xf]
        %v1227 = vld [vmem:[%s4 + $0x74] sm:$0xf]
        %v1228 = vld [vmem:[%s4 + $0x78] sm:$0xf]
        %v1229 = vld [vmem:[%s4 + $0x7c] sm:$0xf]
        %v1262 = vunpack.c.l.b16 %v1198
        %v1263 = vunpack.c.l.b16 %v1199
        %v1264 = vunpack.c.l.b16 %v1200
        %v1265 = vunpack.c.l.b16 %v1201
        %v1266 = vunpack.c.l.b16 %v1202
        %v1267 = vunpack.c.l.b16 %v1203
        %v1268 = vunpack.c.l.b16 %v1204
        %v1269 = vunpack.c.l.b16 %v1205
        %v1270 = vunpack.c.l.b16 %v1206
        %v1271 = vunpack.c.l.b16 %v1207
        %v1272 = vunpack.c.l.b16 %v1208
        %v1273 = vunpack.c.l.b16 %v1209
        %v1274 = vunpack.c.l.b16 %v1210
        %v1275 = vunpack.c.l.b16 %v1211
        %v1276 = vunpack.c.l.b16 %v1212
        %v1277 = vunpack.c.l.b16 %v1213
        %v1278 = vunpack.c.l.b16 %v1214
        %v1279 = vunpack.c.l.b16 %v1215
        %v1280 = vunpack.c.l.b16 %v1216
        %v1281 = vunpack.c.l.b16 %v1217
        %v1282 = vunpack.c.l.b16 %v1218
        %v1283 = vunpack.c.l.b16 %v1219
        %v1284 = vunpack.c.l.b16 %v1220
        %v1285 = vunpack.c.l.b16 %v1221
        %v1286 = vunpack.c.l.b16 %v1222
        %v1287 = vunpack.c.l.b16 %v1223
        %v1288 = vunpack.c.l.b16 %v1224
        %v1289 = vunpack.c.l.b16 %v1225
        %v1290 = vunpack.c.l.b16 %v1226
        %v1291 = vunpack.c.l.b16 %v1227
        %v1292 = vunpack.c.l.b16 %v1228
        %v1293 = vunpack.c.l.b16 %v1229
        %v1294 = vpack.c.b16 %v1263, %v1262
        %v1295 = vpack.c.b16 %v1265, %v1264
        %v1296 = vpack.c.b16 %v1267, %v1266
        %v1297 = vpack.c.b16 %v1269, %v1268
        %v1298 = vpack.c.b16 %v1271, %v1270
        %v1299 = vpack.c.b16 %v1273, %v1272
        %v1300 = vpack.c.b16 %v1275, %v1274
        %v1301 = vpack.c.b16 %v1277, %v1276
        %v1302 = vpack.c.b16 %v1279, %v1278
        %v1303 = vpack.c.b16 %v1281, %v1280
        %v1304 = vpack.c.b16 %v1283, %v1282
        %v1305 = vpack.c.b16 %v1285, %v1284
        %v1306 = vpack.c.b16 %v1287, %v1286
        %v1307 = vpack.c.b16 %v1289, %v1288
        %v1308 = vpack.c.b16 %v1291, %v1290
        %v1309 = vpack.c.b16 %v1293, %v1292
        %1326 = vmatpush.bf16.msra.mxu0 %v1301
        %1327 = vmatpush.bf16.msra.mxu0 %v1300
        %1328 = vmatpush.bf16.msra.mxu0 %v1299
        %1329 = vmatpush.bf16.msra.mxu0 %v1298
        %1330 = vmatpush.bf16.msra.mxu0 %v1297
        %1331 = vmatpush.bf16.msra.mxu0 %v1296
        %1332 = vmatpush.bf16.msra.mxu0 %v1295
        %1333 = vmatpush.bf16.msra.mxu0 %v1294
        %1334 = vmatmul.bf16.gmra.mxu0 %v1196
        %v1335 = vpop.f32.mrf.mxu0
        %v1336 = vadd.f32 0.0, %v1335
        %v1337 = vpop.f32.mrf.mxu0
        %v1338 = vadd.f32 0.0, %v1337
        %1339 = vdwg.mxu0
        %1340 = vmatpush.bf16.msra.mxu0 %v1309
        %1341 = vmatpush.bf16.msra.mxu0 %v1308
        %1342 = vmatpush.bf16.msra.mxu0 %v1307
        %1343 = vmatpush.bf16.msra.mxu0 %v1306
        %1344 = vmatpush.bf16.msra.mxu0 %v1305
        %1345 = vmatpush.bf16.msra.mxu0 %v1304
        %1346 = vmatpush.bf16.msra.mxu0 %v1303
        %1347 = vmatpush.bf16.msra.mxu0 %v1302
        %1348 = vmatmul.bf16.gmra.mxu0 %v1197
        %v1349 = vpop.f32.mrf.mxu0
        %v1350 = vadd.f32 %v1336, %v1349
        %v1351 = vpop.f32.mrf.mxu0
        %v1352 = vadd.f32 %v1338, %v1351
        %1353 = vdwg.mxu0
        %v1354 = vld [vmem:[%s5] sm:$0xf]
        %v1355 = vld [vmem:[%s5 + $0x4] sm:$0xf]
        %v1356 = vld [vmem:[%s5 + $0x8] sm:$0xf]
        %v1357 = vld [vmem:[%s5 + $0xc] sm:$0xf]
        %v1358 = vld [vmem:[%s5 + $0x10] sm:$0xf]
        %v1359 = vld [vmem:[%s5 + $0x14] sm:$0xf]
        %v1360 = vld [vmem:[%s5 + $0x18] sm:$0xf]
        %v1361 = vld [vmem:[%s5 + $0x1c] sm:$0xf]
        %v1362 = vld [vmem:[%s5 + $0x20] sm:$0xf]
        %v1363 = vld [vmem:[%s5 + $0x24] sm:$0xf]
        %v1364 = vld [vmem:[%s5 + $0x28] sm:$0xf]
        %v1365 = vld [vmem:[%s5 + $0x2c] sm:$0xf]
        %v1366 = vld [vmem:[%s5 + $0x30] sm:$0xf]
        %v1367 = vld [vmem:[%s5 + $0x34] sm:$0xf]
        %v1368 = vld [vmem:[%s5 + $0x38] sm:$0xf]
        %v1369 = vld [vmem:[%s5 + $0x3c] sm:$0xf]
        %v1370 = vld [vmem:[%s5 + $0x40] sm:$0xf]
        %v1371 = vld [vmem:[%s5 + $0x44] sm:$0xf]
        %v1372 = vld [vmem:[%s5 + $0x48] sm:$0xf]
        %v1373 = vld [vmem:[%s5 + $0x4c] sm:$0xf]
        %v1374 = vld [vmem:[%s5 + $0x50] sm:$0xf]
        %v1375 = vld [vmem:[%s5 + $0x54] sm:$0xf]
        %v1376 = vld [vmem:[%s5 + $0x58] sm:$0xf]
        %v1377 = vld [vmem:[%s5 + $0x5c] sm:$0xf]
        %v1378 = vld [vmem:[%s5 + $0x60] sm:$0xf]
        %v1379 = vld [vmem:[%s5 + $0x64] sm:$0xf]
        %v1380 = vld [vmem:[%s5 + $0x68] sm:$0xf]
        %v1381 = vld [vmem:[%s5 + $0x6c] sm:$0xf]
        %v1382 = vld [vmem:[%s5 + $0x70] sm:$0xf]
        %v1383 = vld [vmem:[%s5 + $0x74] sm:$0xf]
        %v1384 = vld [vmem:[%s5 + $0x78] sm:$0xf]
        %v1385 = vld [vmem:[%s5 + $0x7c] sm:$0xf]
        %v1418 = vunpack.c.l.b16 %v1354
        %v1419 = vunpack.c.l.b16 %v1355
        %v1420 = vunpack.c.l.b16 %v1356
        %v1421 = vunpack.c.l.b16 %v1357
        %v1422 = vunpack.c.l.b16 %v1358
        %v1423 = vunpack.c.l.b16 %v1359
        %v1424 = vunpack.c.l.b16 %v1360
        %v1425 = vunpack.c.l.b16 %v1361
        %v1426 = vunpack.c.l.b16 %v1362
        %v1427 = vunpack.c.l.b16 %v1363
        %v1428 = vunpack.c.l.b16 %v1364
        %v1429 = vunpack.c.l.b16 %v1365
        %v1430 = vunpack.c.l.b16 %v1366
        %v1431 = vunpack.c.l.b16 %v1367
        %v1432 = vunpack.c.l.b16 %v1368
        %v1433 = vunpack.c.l.b16 %v1369
        %v1434 = vunpack.c.l.b16 %v1370
        %v1435 = vunpack.c.l.b16 %v1371
        %v1436 = vunpack.c.l.b16 %v1372
        %v1437 = vunpack.c.l.b16 %v1373
        %v1438 = vunpack.c.l.b16 %v1374
        %v1439 = vunpack.c.l.b16 %v1375
        %v1440 = vunpack.c.l.b16 %v1376
        %v1441 = vunpack.c.l.b16 %v1377
        %v1442 = vunpack.c.l.b16 %v1378
        %v1443 = vunpack.c.l.b16 %v1379
        %v1444 = vunpack.c.l.b16 %v1380
        %v1445 = vunpack.c.l.b16 %v1381
        %v1446 = vunpack.c.l.b16 %v1382
        %v1447 = vunpack.c.l.b16 %v1383
        %v1448 = vunpack.c.l.b16 %v1384
        %v1449 = vunpack.c.l.b16 %v1385
        %v1450 = vpack.c.b16 %v1419, %v1418
        %v1451 = vpack.c.b16 %v1421, %v1420
        %v1452 = vpack.c.b16 %v1423, %v1422
        %v1453 = vpack.c.b16 %v1425, %v1424
        %v1454 = vpack.c.b16 %v1427, %v1426
        %v1455 = vpack.c.b16 %v1429, %v1428
        %v1456 = vpack.c.b16 %v1431, %v1430
        %v1457 = vpack.c.b16 %v1433, %v1432
        %v1458 = vpack.c.b16 %v1435, %v1434
        %v1459 = vpack.c.b16 %v1437, %v1436
        %v1460 = vpack.c.b16 %v1439, %v1438
        %v1461 = vpack.c.b16 %v1441, %v1440
        %v1462 = vpack.c.b16 %v1443, %v1442
        %v1463 = vpack.c.b16 %v1445, %v1444
        %v1464 = vpack.c.b16 %v1447, %v1446
        %v1465 = vpack.c.b16 %v1449, %v1448
        %1482 = vmatpush.bf16.msra.mxu0 %v1457
        %1483 = vmatpush.bf16.msra.mxu0 %v1456
        %1484 = vmatpush.bf16.msra.mxu0 %v1455
        %1485 = vmatpush.bf16.msra.mxu0 %v1454
        %1486 = vmatpush.bf16.msra.mxu0 %v1453
        %1487 = vmatpush.bf16.msra.mxu0 %v1452
        %1488 = vmatpush.bf16.msra.mxu0 %v1451
        %1489 = vmatpush.bf16.msra.mxu0 %v1450
        %1490 = vmatmul.bf16.gmra.mxu0 %v1196
        %v1491 = vpop.f32.mrf.mxu0
        %v1492 = vadd.f32 0.0, %v1491
        %v1493 = vpop.f32.mrf.mxu0
        %v1494 = vadd.f32 0.0, %v1493
        %1495 = vdwg.mxu0
        %1496 = vmatpush.bf16.msra.mxu0 %v1465
        %1497 = vmatpush.bf16.msra.mxu0 %v1464
        %1498 = vmatpush.bf16.msra.mxu0 %v1463
        %1499 = vmatpush.bf16.msra.mxu0 %v1462
        %1500 = vmatpush.bf16.msra.mxu0 %v1461
        %1501 = vmatpush.bf16.msra.mxu0 %v1460
        %1502 = vmatpush.bf16.msra.mxu0 %v1459
        %1503 = vmatpush.bf16.msra.mxu0 %v1458
        %1504 = vmatmul.bf16.gmra.mxu0 %v1197
        %v1505 = vpop.f32.mrf.mxu0
        %v1506 = vadd.f32 %v1492, %v1505
        %v1507 = vpop.f32.mrf.mxu0
        %v1508 = vadd.f32 %v1494, %v1507
        %1509 = vdwg.mxu0
        %v1510 = vmax.f32 %v1350, %v1506
        %v1511 = vmax.f32 %v1352, %v1508
        %v1512 = vpack.c.bf16 %v1510, %v1510
        %v1513 = vpack.c.bf16 %v1511, %v1511
        %s1514 = smul.addr %s405, 4
        %s1515 = scalar_lea.vmem %s275, %s1514
        %1516 = vst [vmem:[%s1515] sm:$0xf] %v1512
        %1517 = vst [vmem:[%s1515 + $0x4] sm:$0xf] %v1513
      $region56: #{convnet_b_forward.6} parent=43 // loop_footer
        %s404 = sadd.s32 1, %s400
      $region57: #{convnet_b_forward.6} parent=43 // loop_footer_branch
        %399 = sbr.rel target = $region53
      $region58: #{convnet_b_forward.6} parent=43 // loop_exit
        _
      %s1518 = smul.u32 16, %s22
      %p1519 = scmp.lt.s32.totalorder %s21, 1
      %s1520 = scalar_select %p1519, %s21, 1
      %p1521 = scmp.lt.s32.totalorder %s1518, 127
      %s1522 = scalar_select %p1521, %s1518, 127
      %s1523 = smul.addr %s1522, 2
      %s1524 = smul.addr %s1520, 256
      %s1525 = sadd.s32 %s1523, %s1524
      %s1526 = smul.addr %s1525, 4
      %s1527 = scalar_lea.vmem %s6, %s1526
      // Predicated region
      $region59: #{convnet_b_forward.6} parent=43 // pred_check
        %p1528 = pneg %p180
      $region60: #{convnet_b_forward.6} parent=43 // pred_check_branch
        %1530 = sbr.rel (%p1528) target = $region62
      $region61: #{convnet_b_forward.6} parent=43 // pred_region
        %s1531 = smul.u32 16, %s22
      $region62: #{convnet_b_forward.6} parent=43 // pred_fallthru
        _
    $region44: #{convnet_b_forward.6} parent=5 // pred_fallthru
      _
    %p1532 = scmp.le.s32.totalorder 2, %s12
    // Predicated region
    $region63: #{convnet_b_forward.6} parent=5 // pred_check
      %p1533 = pneg %p1532
    $region64: #{convnet_b_forward.6} parent=5 // pred_check_branch
      %1535 = sbr.rel (%p1533) target = $region66
    $region65: #{convnet_b_forward.6} parent=5 // pred_region
      %s1536 = ssub.s32 %s12, 2
      // Predicated region
      $region67: #{convnet_b_forward.6} parent=65 // pred_check
        %p1537 = pneg %p186
      $region68: #{convnet_b_forward.6} parent=65 // pred_check_branch
        %1539 = sbr.rel (%p1537) target = $region70
      $region69: #{convnet_b_forward.6} parent=65 // pred_region
        %s1540 = smul.u32 16, %s24
        %p1541 = scmp.lt.s32.totalorder %s23, 1
        %s1542 = scalar_select %p1541, %s23, 1
        %p1543 = scmp.lt.s32.totalorder %s1540, 127
        %s1544 = scalar_select %p1543, %s1540, 127
        %s1545 = smul.addr %s1544, 2
        %s1546 = smul.addr %s1542, 256
        %s1547 = sadd.s32 %s1545, %s1546
        %s1548 = smul.addr %s1547, 4
        %s1549 = scalar_lea.vmem %s6, %s1548
      $region70: #{convnet_b_forward.6} parent=65 // pred_fallthru
        _
    $region66: #{convnet_b_forward.6} parent=5 // pred_fallthru
      _
  $region6: #{convnet_b_forward.6} parent=0 // loop_footer
    %s16 = sadd.s32 1, %s12
  $region7: #{convnet_b_forward.6} parent=0 // loop_footer_branch
    %11 = sbr.rel target = $region3
  $region8: #{convnet_b_forward.6} parent=0 // loop_exit
    _

// kernel: convnet_b_forward.7
$region0: #{convnet_b_forward.7}
  #allocation0 [shape = 'u32[]', space=smem, size = 0x4, offset = 0x4, fixed_abs, tag = 'smem constant byte address 0x4 - core index']
  #allocation1 [shape = 'u32[72,128]{1,0:T(1,128)}', space=vmem, size = 0x9000, scoped, tag = 'internal scratch']
  #allocation2 [shape = 'bf16[36,80,128]{2,1,0:T(8,128)(2,1)}', space=vmem, size = 0xb4000, scoped, tag = 'scratch operand']
  %s0 = inlined_call_operand.vmem [shape: bf16[2,132,16,128], index: 0, kind: input, shape index: {}]
  %s1 = inlined_call_operand.vmem [shape: bf16[5,32,80], index: 1, kind: input, shape index: {}]
  %s2 = inlined_call_operand.vmem [shape: f32[32,1], index: 2, kind: input, shape index: {}]
  %s3 = inlined_call_operand.vmem [shape: bf16[2,128,32,128], index: 3, kind: output, shape index: {}]
  %s4 = sld [smem:[#allocation0]]
  $region59: #{convnet_b_forward.7} parent=0
    _
  %s6 = ssub.s32 1, %s4
  %s7 = scalar_select 0, %s6, %s4
  loop: start=0, step=1, limit=10
  $region2: #{convnet_b_forward.7} parent=0 // loop_pre_header
    _
  $region3: #{convnet_b_forward.7} parent=0 // loop_header
    %s9 = sphi 0, %s13
    %p10 = scmp.ge.s32.totalorder %s9, 10
    %s16 = sphi 0, %s28
    %s17 = sphi 0, %s24
    %s18 = sphi 0, %s16
    %s19 = sphi 0, %s17
    %s20 = sphi 0, %s18
    %s21 = sphi 0, %s19
    %s31 = sphi 0, %s33
    %s34 = sphi 0, %s31
    %s35 = sphi 0, %s34
    %s51 = sphi 0, %s35
    %s55 = sphi 0, %s55
    %s57 = sphi 0, %s55
    %s58 = sphi 0, %s57
    %s72 = sphi 0, %s58
    %s76 = sphi 0, %s76
    %s78 = sphi 0, %s76
    %s79 = sphi 0, %s78
    %s93 = sphi 0, %s79
    %s101 = sphi 0, %s103
    %s104 = sphi 0, %s101
    %s105 = sphi 0, %s104
    %s121 = sphi 0, %s105
  $region4: #{convnet_b_forward.7} parent=0 // loop_header_branch
    %12 = sbr.rel (%p10) target = $region8
  $region5: #{convnet_b_forward.7} parent=0 // loop_body
    %s14 = ssub.s32 %s9, 1
    %s15 = ssub.s32 %s9, 2
    %s22 = sadd.s32 1, %s17
    %p23 = scmp.ge.s32.totalorder %s22, 4
    %s24 = scalar_select %p23, 0, %s22
    %s25 = sadd.s32 1, %s16
    %s26 = scalar_select %p23, %s25, %s16
    %p27 = scmp.ge.s32.totalorder %s26, 2
    %s28 = scalar_select %p27, 0, %s26
    %s29 = ssub.s32 %s16, %s28
    %p30 = scmp.eq.s32.totalorder %s29, 0
    %s32 = sadd.s32 %s31, 1
    %s33 = scalar_select %p30, %s31, %s32
    %p36 = pneg %p30
    %p37 = scmp.eq.s32.totalorder %s9, 7
    %p38 = por %p36, %p37
    %p39 = scmp.ne.s32.totalorder %s31, %s34
    %p40 = scmp.eq.s32.totalorder %s9, 0
    %p41 = por %p39, %p40
    %p42 = scmp.ne.s32.totalorder %s31, %s34
    %p43 = scmp.eq.s32.totalorder %s14, 7
    %p44 = por %p42, %p43
    %p45 = scmp.ne.s32.totalorder %s34, %s35
    %p46 = scmp.eq.s32.totalorder %s14, 0
    %p47 = por %p45, %p46
    %p48 = scmp.ne.s32.totalorder %s34, %s35
    %p49 = scmp.eq.s32.totalorder %s15, 7
    %p50 = por %p48, %p49
    %p52 = scmp.ne.s32.totalorder %s35, %s51
    %p53 = scmp.eq.s32.totalorder %s15, 0
    %p54 = por %p52, %p53
    %s56 = sadd.s32 %s55, 1
    %p59 = scmp.eq.s32.totalorder %s9, 7
    %p60 = scmp.ne.s32.totalorder %s55, %s57
    %p61 = scmp.eq.s32.totalorder %s9, 0
    %p62 = por %p60, %p61
    %p63 = scmp.ne.s32.totalorder %s55, %s57
    %p64 = scmp.eq.s32.totalorder %s14, 7
    %p65 = por %p63, %p64
    %p66 = scmp.ne.s32.totalorder %s57, %s58
    %p67 = scmp.eq.s32.totalorder %s14, 0
    %p68 = por %p66, %p67
    %p69 = scmp.ne.s32.totalorder %s57, %s58
    %p70 = scmp.eq.s32.totalorder %s15, 7
    %p71 = por %p69, %p70
    %p73 = scmp.ne.s32.totalorder %s58, %s72
    %p74 = scmp.eq.s32.totalorder %s15, 0
    %p75 = por %p73, %p74
    %s77 = sadd.s32 %s76, 1
    %p80 = scmp.eq.s32.totalorder %s9, 7
    %p81 = scmp.ne.s32.totalorder %s76, %s78
    %p82 = scmp.eq.s32.totalorder %s9, 0
    %p83 = por %p81, %p82
    %p84 = scmp.ne.s32.totalorder %s76, %s78
    %p85 = scmp.eq.s32.totalorder %s14, 7
    %p86 = por %p84, %p85
    %p87 = scmp.ne.s32.totalorder %s78, %s79
    %p88 = scmp.eq.s32.totalorder %s14, 0
    %p89 = por %p87, %p88
    %p90 = scmp.ne.s32.totalorder %s78, %s79
    %p91 = scmp.eq.s32.totalorder %s15, 7
    %p92 = por %p90, %p91
    %p94 = scmp.ne.s32.totalorder %s79, %s93
    %p95 = scmp.eq.s32.totalorder %s15, 0
    %p96 = por %p94, %p95
    %s97 = ssub.s32 %s16, %s28
    %s98 = ssub.s32 %s17, %s24
    %s99 = sor.u32 %s97, %s98
    %p100 = scmp.eq.s32.totalorder %s99, 0
    %s102 = sadd.s32 %s101, 1
    %s103 = scalar_select %p100, %s101, %s102
    %p106 = pneg %p100
    %p107 = scmp.eq.s32.totalorder %s9, 7
    %p108 = por %p106, %p107
    %p109 = scmp.ne.s32.totalorder %s101, %s104
    %p110 = scmp.eq.s32.totalorder %s9, 0
    %p111 = por %p109, %p110
    %p112 = scmp.ne.s32.totalorder %s101, %s104
    %p113 = scmp.eq.s32.totalorder %s14, 7
    %p114 = por %p112, %p113
    %p115 = scmp.ne.s32.totalorder %s104, %s105
    %p116 = scmp.eq.s32.totalorder %s14, 0
    %p117 = por %p115, %p116
    %p118 = scmp.ne.s32.totalorder %s104, %s105
    %p119 = scmp.eq.s32.totalorder %s15, 7
    %p120 = por %p118, %p119
    %p122 = scmp.ne.s32.totalorder %s105, %s121
    %p123 = scmp.eq.s32.totalorder %s15, 0
    %p124 = por %p122, %p123
    %p125 = scmp.le.s32.totalorder 1, %s9
    %p126 = scmp.lt.s32.totalorder %s9, 9
    %p127 = pnand %p125, %p126
    %p128 = pneg %p127
    // Predicated region
    $region9: #{convnet_b_forward.7} parent=5 // pred_check
      _
    $region10: #{convnet_b_forward.7} parent=5 // pred_check_branch
      %130 = sbr.rel (%p127) target = $region12
    $region11: #{convnet_b_forward.7} parent=5 // pred_region
      %s131 = ssub.s32 %s9, 1
      // Predicated region
      $region13: #{convnet_b_forward.7} parent=11 // pred_check
        %p132 = pneg %p68
      $region14: #{convnet_b_forward.7} parent=11 // pred_check_branch
        %134 = sbr.rel (%p132) target = $region16
      $region15: #{convnet_b_forward.7} parent=11 // pred_region
        _
      $region16: #{convnet_b_forward.7} parent=11 // pred_fallthru
        _
      // Predicated region
      $region17: #{convnet_b_forward.7} parent=11 // pred_check
        %p135 = pneg %p89
      $region18: #{convnet_b_forward.7} parent=11 // pred_check_branch
        %137 = sbr.rel (%p135) target = $region20
      $region19: #{convnet_b_forward.7} parent=11 // pred_region
        _
      $region20: #{convnet_b_forward.7} parent=11 // pred_fallthru
        _
    $region12: #{convnet_b_forward.7} parent=5 // pred_fallthru
      _
    %p138 = scmp.lt.s32.totalorder %s9, 8
    // Predicated region
    $region21: #{convnet_b_forward.7} parent=5 // pred_check
      %p139 = pneg %p138
    $region22: #{convnet_b_forward.7} parent=5 // pred_check_branch
      %141 = sbr.rel (%p139) target = $region24
    $region23: #{convnet_b_forward.7} parent=5 // pred_region
      // Predicated region
      $region25: #{convnet_b_forward.7} parent=23 // pred_check
        %p142 = pneg %p41
      $region26: #{convnet_b_forward.7} parent=23 // pred_check_branch
        %144 = sbr.rel (%p142) target = $region28
      $region27: #{convnet_b_forward.7} parent=23 // pred_region
        %p145 = scmp.lt.s32.totalorder %s16, 1
        %s146 = scalar_select %p145, %s16, 1
        %s147 = smul.addr %s146, 264
        %s148 = smul.addr %s147, 4
        %s149 = scalar_lea.vmem %s0, %s148
      $region28: #{convnet_b_forward.7} parent=23 // pred_fallthru
        _
    $region24: #{convnet_b_forward.7} parent=5 // pred_fallthru
      _
    %p150 = scmp.le.s32.totalorder 1, %s9
    %p151 = scmp.lt.s32.totalorder %s9, 9
    %p152 = pnand %p150, %p151
    %p153 = pneg %p152
    // Predicated region
    $region29: #{convnet_b_forward.7} parent=5 // pred_check
      _
    $region30: #{convnet_b_forward.7} parent=5 // pred_check_branch
      %155 = sbr.rel (%p152) target = $region32
    $region31: #{convnet_b_forward.7} parent=5 // pred_region
      %s156 = ssub.s32 %s9, 1
      %p157 = scmp.lt.s32.totalorder %s18, 1
      %s158 = scalar_select %p157, %s18, 1
      %s159 = smul.addr %s158, 264
      %s160 = smul.addr %s159, 4
      %s161 = scalar_lea.vmem %s0, %s160
      %p162 = pneg %p47
      %p163 = pneg %p44
      %p164 = pneg %p68
      %p165 = pneg %p65
      %p166 = pneg %p89
      %p167 = pneg %p86
      %p168 = pneg %p117
      %p169 = pneg %p114
      %s170 = smul.u32 32, %s19
      %p171 = scmp.lt.s32.totalorder %s18, 1
      %s172 = scalar_select %p171, %s18, 1
      %p173 = scmp.lt.s32.totalorder %s170, 127
      %s174 = scalar_select %p173, %s170, 127
      %s175 = smul.addr %s174, 4
      %s176 = smul.addr %s172, 512
      %s177 = sadd.s32 %s175, %s176
      %s178 = smul.addr %s177, 4
      %s179 = scalar_lea.vmem %s3, %s178
      %p180 = scmp.lt.s32.totalorder %s18, 1
      %s181 = scalar_select %p180, %s18, 1
      %s182 = smul.addr %s181, 264
      %s183 = smul.addr %s182, 4
      %s184 = scalar_lea.vmem %s0, %s183
      %s185 = smul.u32 32, %s19
      %p186 = scmp.lt.s32.totalorder %s18, 1
      %s187 = scalar_select %p186, %s18, 1
      %p188 = scmp.lt.s32.totalorder %s185, 127
      %s189 = scalar_select %p188, %s185, 127
      %s190 = smul.addr %s189, 4
      %s191 = smul.addr %s187, 512
      %s192 = sadd.s32 %s190, %s191
      %s193 = smul.addr %s192, 4
      %s194 = scalar_lea.vmem %s3, %s193
      %s195 = smul.u32 32, %s19
      %s197 = smul.u32 %s19, 32
      %v198 = vlaneseq
      %v199 = vand.u32 %v198, 127
      loop: start=0, step=1, limit=36
      $region33: #{convnet_b_forward.7} parent=31 // loop_pre_header
        _
      $region34: #{convnet_b_forward.7} parent=31 // loop_header
        %s201 = sphi 0, %s205
        %p202 = scmp.ge.s32.totalorder %s201, 36
      $region35: #{convnet_b_forward.7} parent=31 // loop_header_branch
        %204 = sbr.rel (%p202) target = $region39
      $region36: #{convnet_b_forward.7} parent=31 // loop_body
        %s206 = sadd.s32 %s197, %s201
        %s207 = smul.u32 %s206, 2
        %s208 = smul.addr %s207, 4
        %s209 = scalar_lea.vmem %s184, %s208
        %v210 = vld [vmem:[%s209] sm:$0xf]
        %v211 = vld [vmem:[%s209 + $0x4] sm:$0xf]
        %v212 = vunpack.c.l.bf16 %v210
        %v213 = vunpack.c.l.bf16 %v211
        %214 = vrot.lane.b32.xlu0 %v212, 2
        %v215 = vpop.permute.xlu0 %214
        %216 = vrot.lane.b32.xlu0 %v213, 2
        %v217 = vpop.permute.xlu0 %216
        %vm218 = vcmp.ge.s32.totalorder %v199, 2
        %v219 = vsel %vm218, %v215, 0.0
        %v220 = vsel %vm218, %v217, 0.0
        %v221 = vpack.c.bf16 %v219, %v219
        %v222 = vpack.c.bf16 %v220, %v220
        %s223 = smul.u32 %s201, 10
        %s224 = smul.addr %s223, 4
        %s225 = scalar_lea.vmem [#allocation2], %s224
        %226 = vst [vmem:[%s225] sm:$0xf] %v221
        %227 = vst [vmem:[%s225 + $0x4] sm:$0xf] %v222
        %228 = vrot.lane.b32.xlu0 %v212, 1
        %v229 = vpop.permute.xlu0 %228
        %230 = vrot.lane.b32.xlu0 %v213, 1
        %v231 = vpop.permute.xlu0 %230
        %vm232 = vcmp.ge.s32.totalorder %v199, 1
        %v233 = vsel %vm232, %v229, 0.0
        %v234 = vsel %vm232, %v231, 0.0
        %v235 = vpack.c.bf16 %v233, %v233
        %v236 = vpack.c.bf16 %v234, %v234
        %237 = vst [vmem:[%s225 + $0x8] sm:$0xf] %v235
        %238 = vst [vmem:[%s225 + $0xc] sm:$0xf] %v236
        %239 = vst [vmem:[%s225 + $0x10] sm:$0xf] %v210
        %240 = vst [vmem:[%s225 + $0x14] sm:$0xf] %v211
        %241 = vrot.lane.b32.xlu0 %v212, 127
        %v242 = vpop.permute.xlu0 %241
        %243 = vrot.lane.b32.xlu0 %v213, 127
        %v244 = vpop.permute.xlu0 %243
        %vm245 = vcmp.lt.s32.totalorder %v199, 127
        %v246 = vsel %vm245, %v242, 0.0
        %v247 = vsel %vm245, %v244, 0.0
        %v248 = vpack.c.bf16 %v246, %v246
        %v249 = vpack.c.bf16 %v247, %v247
        %250 = vst [vmem:[%s225 + $0x18] sm:$0xf] %v248
        %251 = vst [vmem:[%s225 + $0x1c] sm:$0xf] %v249
        %252 = vrot.lane.b32.xlu0 %v212, 126
        %v253 = vpop.permute.xlu0 %252
        %254 = vrot.lane.b32.xlu0 %v213, 126
        %v255 = vpop.permute.xlu0 %254
        %vm256 = vcmp.lt.s32.totalorder %v199, 126
        %v257 = vsel %vm256, %v253, 0.0
        %v258 = vsel %vm256, %v255, 0.0
        %v259 = vpack.c.bf16 %v257, %v257
        %v260 = vpack.c.bf16 %v258, %v258
        %261 = vst [vmem:[%s225 + $0x20] sm:$0xf] %v259
        %262 = vst [vmem:[%s225 + $0x24] sm:$0xf] %v260
      $region37: #{convnet_b_forward.7} parent=31 // loop_footer
        %s205 = sadd.s32 1, %s201
      $region38: #{convnet_b_forward.7} parent=31 // loop_footer_branch
        %200 = sbr.rel target = $region34
      $region39: #{convnet_b_forward.7} parent=31 // loop_exit
        _
      %v263 = vld [vmem:[%s2] sm:$0xff]
      %v264 = vld [vmem:[%s2 + $0x8] sm:$0xff]
      %v265 = vld [vmem:[%s2 + $0x10] sm:$0xff]
      %v266 = vld [vmem:[%s2 + $0x18] sm:$0xff]
      loop: start=0, step=1, limit=32
      $region40: #{convnet_b_forward.7} parent=31 // loop_pre_header
        _
      $region41: #{convnet_b_forward.7} parent=31 // loop_header
        %s268 = sphi 0, %s272
        %p269 = scmp.ge.s32.totalorder %s268, 32
      $region42: #{convnet_b_forward.7} parent=31 // loop_header_branch
        %271 = sbr.rel (%p269) target = $region46
      $region43: #{convnet_b_forward.7} parent=31 // loop_body
        %s273 = smul.u32 %s268, 10
        %s274 = smul.addr %s273, 4
        %s275 = scalar_lea.vmem [#allocation2], %s274
        %v276 = vld [vmem:[%s275] sm:$0xf]
        %v277 = vld [vmem:[%s275 + $0x4] sm:$0xf]
        %v278 = vld [vmem:[%s275 + $0x8] sm:$0xf]
        %v279 = vld [vmem:[%s275 + $0xc] sm:$0xf]
        %v280 = vld [vmem:[%s275 + $0x10] sm:$0xf]
        %v281 = vld [vmem:[%s275 + $0x14] sm:$0xf]
        %v282 = vld [vmem:[%s275 + $0x18] sm:$0xf]
        %v283 = vld [vmem:[%s275 + $0x1c] sm:$0xf]
        %v284 = vld [vmem:[%s275 + $0x20] sm:$0xf]
        %v285 = vld [vmem:[%s275 + $0x24] sm:$0xf]
        %v286 = vld [vmem:[%s1] sm:$0xf]
        %v287 = vld [vmem:[%s1 + $0x4] sm:$0xf]
        %v288 = vld [vmem:[%s1 + $0x8] sm:$0xf]
        %v289 = vld [vmem:[%s1 + $0xc] sm:$0xf]
        %s290 = sadd.s32 %s268, 1
        %s291 = smul.u32 %s290, 10
        %s292 = smul.addr %s291, 4
        %s293 = scalar_lea.vmem [#allocation2], %s292
        %v294 = vld [vmem:[%s293] sm:$0xf]
        %v295 = vld [vmem:[%s293 + $0x4] sm:$0xf]
        %v296 = vld [vmem:[%s293 + $0x8] sm:$0xf]
        %v297 = vld [vmem:[%s293 + $0xc] sm:$0xf]
        %v298 = vld [vmem:[%s293 + $0x10] sm:$0xf]
        %v299 = vld [vmem:[%s293 + $0x14] sm:$0xf]
        %v300 = vld [vmem:[%s293 + $0x18] sm:$0xf]
        %v301 = vld [vmem:[%s293 + $0x1c] sm:$0xf]
        %v302 = vld [vmem:[%s293 + $0x20] sm:$0xf]
        %v303 = vld [vmem:[%s293 + $0x24] sm:$0xf]
        %s304 = scalar_lea.vmem %s1, 16
        %v305 = vld [vmem:[%s304] sm:$0xf]
        %v306 = vld [vmem:[%s304 + $0x4] sm:$0xf]
        %v307 = vld [vmem:[%s304 + $0x8] sm:$0xf]
        %v308 = vld [vmem:[%s304 + $0xc] sm:$0xf]
        %v313 = vunpack.c.l.b16 %v305
        %v314 = vunpack.c.l.b16 %v306
        %v315 = vunpack.c.l.b16 %v307
        %v316 = vunpack.c.l.b16 %v308
        %v317 = vpack.c.b16 %v314, %v313
        %v318 = vpack.c.b16 %v316, %v315
        %v329 = vunpack.c.l.b16 %v294
        %v330 = vunpack.c.l.b16 %v295
        %v331 = vunpack.c.l.b16 %v296
        %v332 = vunpack.c.l.b16 %v297
        %v333 = vunpack.c.l.b16 %v298
        %v334 = vunpack.c.l.b16 %v299
        %v335 = vunpack.c.l.b16 %v300
        %v336 = vunpack.c.l.b16 %v301
        %v337 = vunpack.c.l.b16 %v302
        %v338 = vunpack.c.l.b16 %v303
        %v339 = vpack.c.b16 %v330, %v329
        %v340 = vpack.c.b16 %v332, %v331
        %v341 = vpack.c.b16 %v334, %v333
        %v342 = vpack.c.b16 %v336, %v335
        %v343 = vpack.c.b16 %v338, %v337
        %vm349 = vcmask 654336
        %v351 = vsel %vm349, %v317, 0
        %v354 = vsel %vm349, %v318, 0
        %356 = vmatpush.bf16.msra.mxu0 0
        %357 = vmatpush.bf16.msra.mxu0 0
        %358 = vmatpush.bf16.msra.mxu0 0
        %359 = vmatpush.bf16.msra.mxu0 %v343
        %360 = vmatpush.bf16.msra.mxu0 %v342
        %361 = vmatpush.bf16.msra.mxu0 %v341
        %362 = vmatpush.bf16.msra.mxu0 %v340
        %363 = vmatpush.bf16.msra.mxu0 %v339
        %364 = vmatmul.bf16.gmra.mxu0 %v351
        %v365 = vpop.f32.mrf.mxu0
        %v366 = vadd.f32 0.0, %v365
        %v367 = vpop.f32.mrf.mxu0
        %v368 = vadd.f32 0.0, %v367
        %369 = vmatmul.bf16.gmra.mxu0 %v354
        %v370 = vpop.f32.mrf.mxu0
        %v371 = vadd.f32 0.0, %v370
        %v372 = vpop.f32.mrf.mxu0
        %v373 = vadd.f32 0.0, %v372
        %374 = vdwg.mxu0
        %v379 = vunpack.c.l.b16 %v286
        %v380 = vunpack.c.l.b16 %v287
        %v381 = vunpack.c.l.b16 %v288
        %v382 = vunpack.c.l.b16 %v289
        %v383 = vpack.c.b16 %v380, %v379
        %v384 = vpack.c.b16 %v382, %v381
        %v395 = vunpack.c.l.b16 %v276
        %v396 = vunpack.c.l.b16 %v277
        %v397 = vunpack.c.l.b16 %v278
        %v398 = vunpack.c.l.b16 %v279
        %v399 = vunpack.c.l.b16 %v280
        %v400 = vunpack.c.l.b16 %v281
        %v401 = vunpack.c.l.b16 %v282
        %v402 = vunpack.c.l.b16 %v283
        %v403 = vunpack.c.l.b16 %v284
        %v404 = vunpack.c.l.b16 %v285
        %v405 = vpack.c.b16 %v396, %v395
        %v406 = vpack.c.b16 %v398, %v397
        %v407 = vpack.c.b16 %v400, %v399
        %v408 = vpack.c.b16 %v402, %v401
        %v409 = vpack.c.b16 %v404, %v403
        %v416 = vsel %vm349, %v383, 0
        %v419 = vsel %vm349, %v384, 0
        %421 = vmatpush.bf16.msra.mxu0 0
        %422 = vmatpush.bf16.msra.mxu0 0
        %423 = vmatpush.bf16.msra.mxu0 0
        %424 = vmatpush.bf16.msra.mxu0 %v409
        %425 = vmatpush.bf16.msra.mxu0 %v408
        %426 = vmatpush.bf16.msra.mxu0 %v407
        %427 = vmatpush.bf16.msra.mxu0 %v406
        %428 = vmatpush.bf16.msra.mxu0 %v405
        %429 = vmatmul.bf16.gmra.mxu0 %v416
        %v430 = vpop.f32.mrf.mxu0
        %v431 = vadd.f32 %v366, %v430
        %v432 = vpop.f32.mrf.mxu0
        %v433 = vadd.f32 %v368, %v432
        %434 = vmatmul.bf16.gmra.mxu0 %v419
        %v435 = vpop.f32.mrf.mxu0
        %v436 = vadd.f32 %v371, %v435
        %v437 = vpop.f32.mrf.mxu0
        %v438 = vadd.f32 %v373, %v437
        %439 = vdwg.mxu0
        %s440 = sadd.s32 %s268, 2
        %s441 = smul.u32 %s440, 10
        %s442 = smul.addr %s441, 4
        %s443 = scalar_lea.vmem [#allocation2], %s442
        %v444 = vld [vmem:[%s443] sm:$0xf]
        %v445 = vld [vmem:[%s443 + $0x4] sm:$0xf]
        %v446 = vld [vmem:[%s443 + $0x8] sm:$0xf]
        %v447 = vld [vmem:[%s443 + $0xc] sm:$0xf]
        %v448 = vld [vmem:[%s443 + $0x10] sm:$0xf]
        %v449 = vld [vmem:[%s443 + $0x14] sm:$0xf]
        %v450 = vld [vmem:[%s443 + $0x18] sm:$0xf]
        %v451 = vld [vmem:[%s443 + $0x1c] sm:$0xf]
        %v452 = vld [vmem:[%s443 + $0x20] sm:$0xf]
        %v453 = vld [vmem:[%s443 + $0x24] sm:$0xf]
        %s454 = scalar_lea.vmem %s1, 32
        %v455 = vld [vmem:[%s454] sm:$0xf]
        %v456 = vld [vmem:[%s454 + $0x4] sm:$0xf]
        %v457 = vld [vmem:[%s454 + $0x8] sm:$0xf]
        %v458 = vld [vmem:[%s454 + $0xc] sm:$0xf]
        %v463 = vunpack.c.l.b16 %v455
        %v464 = vunpack.c.l.b16 %v456
        %v465 = vunpack.c.l.b16 %v457
        %v466 = vunpack.c.l.b16 %v458
        %v467 = vpack.c.b16 %v464, %v463
        %v468 = vpack.c.b16 %v466, %v465
        %v479 = vunpack.c.l.b16 %v444
        %v480 = vunpack.c.l.b16 %v445
        %v481 = vunpack.c.l.b16 %v446
        %v482 = vunpack.c.l.b16 %v447
        %v483 = vunpack.c.l.b16 %v448
        %v484 = vunpack.c.l.b16 %v449
        %v485 = vunpack.c.l.b16 %v450
        %v486 = vunpack.c.l.b16 %v451
        %v487 = vunpack.c.l.b16 %v452
        %v488 = vunpack.c.l.b16 %v453
        %v489 = vpack.c.b16 %v480, %v479
        %v490 = vpack.c.b16 %v482, %v481
        %v491 = vpack.c.b16 %v484, %v483
        %v492 = vpack.c.b16 %v486, %v485
        %v493 = vpack.c.b16 %v488, %v487
        %v500 = vsel %vm349, %v467, 0
        %v503 = vsel %vm349, %v468, 0
        %505 = vmatpush.bf16.msra.mxu0 0
        %506 = vmatpush.bf16.msra.mxu0 0
        %507 = vmatpush.bf16.msra.mxu0 0
        %508 = vmatpush.bf16.msra.mxu0 %v493
        %509 = vmatpush.bf16.msra.mxu0 %v492
        %510 = vmatpush.bf16.msra.mxu0 %v491
        %511 = vmatpush.bf16.msra.mxu0 %v490
        %512 = vmatpush.bf16.msra.mxu0 %v489
        %513 = vmatmul.bf16.gmra.mxu0 %v500
        %v514 = vpop.f32.mrf.mxu0
        %v515 = vadd.f32 0.0, %v514
        %v516 = vpop.f32.mrf.mxu0
        %v517 = vadd.f32 0.0, %v516
        %518 = vmatmul.bf16.gmra.mxu0 %v503
        %v519 = vpop.f32.mrf.mxu0
        %v520 = vadd.f32 0.0, %v519
        %v521 = vpop.f32.mrf.mxu0
        %v522 = vadd.f32 0.0, %v521
        %523 = vdwg.mxu0
        %v524 = vadd.f32 %v431, %v515
        %v525 = vadd.f32 %v433, %v517
        %v526 = vadd.f32 %v436, %v520
        %v527 = vadd.f32 %v438, %v522
        %s528 = sadd.s32 %s268, 3
        %s529 = smul.u32 %s528, 10
        %s530 = smul.addr %s529, 4
        %s531 = scalar_lea.vmem [#allocation2], %s530
        %v532 = vld [vmem:[%s531] sm:$0xf]
        %v533 = vld [vmem:[%s531 + $0x4] sm:$0xf]
        %v534 = vld [vmem:[%s531 + $0x8] sm:$0xf]
        %v535 = vld [vmem:[%s531 + $0xc] sm:$0xf]
        %v536 = vld [vmem:[%s531 + $0x10] sm:$0xf]
        %v537 = vld [vmem:[%s531 + $0x14] sm:$0xf]
        %v538 = vld [vmem:[%s531 + $0x18] sm:$0xf]
        %v539 = vld [vmem:[%s531 + $0x1c] sm:$0xf]
        %v540 = vld [vmem:[%s531 + $0x20] sm:$0xf]
        %v541 = vld [vmem:[%s531 + $0x24] sm:$0xf]
        %s542 = scalar_lea.vmem %s1, 48
        %v543 = vld [vmem:[%s542] sm:$0xf]
        %v544 = vld [vmem:[%s542 + $0x4] sm:$0xf]
        %v545 = vld [vmem:[%s542 + $0x8] sm:$0xf]
        %v546 = vld [vmem:[%s542 + $0xc] sm:$0xf]
        %v551 = vunpack.c.l.b16 %v543
        %v552 = vunpack.c.l.b16 %v544
        %v553 = vunpack.c.l.b16 %v545
        %v554 = vunpack.c.l.b16 %v546
        %v555 = vpack.c.b16 %v552, %v551
        %v556 = vpack.c.b16 %v554, %v553
        %v567 = vunpack.c.l.b16 %v532
        %v568 = vunpack.c.l.b16 %v533
        %v569 = vunpack.c.l.b16 %v534
        %v570 = vunpack.c.l.b16 %v535
        %v571 = vunpack.c.l.b16 %v536
        %v572 = vunpack.c.l.b16 %v537
        %v573 = vunpack.c.l.b16 %v538
        %v574 = vunpack.c.l.b16 %v539
        %v575 = vunpack.c.l.b16 %v540
        %v576 = vunpack.c.l.b16 %v541
        %v577 = vpack.c.b16 %v568, %v567
        %v578 = vpack.c.b16 %v570, %v569
        %v579 = vpack.c.b16 %v572, %v571
        %v580 = vpack.c.b16 %v574, %v573
        %v581 = vpack.c.b16 %v576, %v575
        %v588 = vsel %vm349, %v555, 0
        %v591 = vsel %vm349, %v556, 0
        %593 = vmatpush.bf16.msra.mxu0 0
        %594 = vmatpush.bf16.msra.mxu0 0
        %595 = vmatpush.bf16.msra.mxu0 0
        %596 = vmatpush.bf16.msra.mxu0 %v581
        %597 = vmatpush.bf16.msra.mxu0 %v580
        %598 = vmatpush.bf16.msra.mxu0 %v579
        %599 = vmatpush.bf16.msra.mxu0 %v578
        %600 = vmatpush.bf16.msra.mxu0 %v577
        %601 = vmatmul.bf16.gmra.mxu0 %v588
        %v602 = vpop.f32.mrf.mxu0
        %v603 = vadd.f32 0.0, %v602
        %v604 = vpop.f32.mrf.mxu0
        %v605 = vadd.f32 0.0, %v604
        %606 = vmatmul.bf16.gmra.mxu0 %v591
        %v607 = vpop.f32.mrf.mxu0
        %v608 = vadd.f32 0.0, %v607
        %v609 = vpop.f32.mrf.mxu0
        %v610 = vadd.f32 0.0, %v609
        %611 = vdwg.mxu0
        %v612 = vadd.f32 %v524, %v603
        %v613 = vadd.f32 %v525, %v605
        %v614 = vadd.f32 %v526, %v608
        %v615 = vadd.f32 %v527, %v610
        %s616 = sadd.s32 %s268, 4
        %s617 = smul.u32 %s616, 10
        %s618 = smul.addr %s617, 4
        %s619 = scalar_lea.vmem [#allocation2], %s618
        %v620 = vld [vmem:[%s619] sm:$0xf]
        %v621 = vld [vmem:[%s619 + $0x4] sm:$0xf]
        %v622 = vld [vmem:[%s619 + $0x8] sm:$0xf]
        %v623 = vld [vmem:[%s619 + $0xc] sm:$0xf]
        %v624 = vld [vmem:[%s619 + $0x10] sm:$0xf]
        %v625 = vld [vmem:[%s619 + $0x14] sm:$0xf]
        %v626 = vld [vmem:[%s619 + $0x18] sm:$0xf]
        %v627 = vld [vmem:[%s619 + $0x1c] sm:$0xf]
        %v628 = vld [vmem:[%s619 + $0x20] sm:$0xf]
        %v629 = vld [vmem:[%s619 + $0x24] sm:$0xf]
        %s630 = scalar_lea.vmem %s1, 64
        %v631 = vld [vmem:[%s630] sm:$0xf]
        %v632 = vld [vmem:[%s630 + $0x4] sm:$0xf]
        %v633 = vld [vmem:[%s630 + $0x8] sm:$0xf]
        %v634 = vld [vmem:[%s630 + $0xc] sm:$0xf]
        %v639 = vunpack.c.l.b16 %v631
        %v640 = vunpack.c.l.b16 %v632
        %v641 = vunpack.c.l.b16 %v633
        %v642 = vunpack.c.l.b16 %v634
        %v643 = vpack.c.b16 %v640, %v639
        %v644 = vpack.c.b16 %v642, %v641
        %v655 = vunpack.c.l.b16 %v620
        %v656 = vunpack.c.l.b16 %v621
        %v657 = vunpack.c.l.b16 %v622
        %v658 = vunpack.c.l.b16 %v623
        %v659 = vunpack.c.l.b16 %v624
        %v660 = vunpack.c.l.b16 %v625
        %v661 = vunpack.c.l.b16 %v626
        %v662 = vunpack.c.l.b16 %v627
        %v663 = vunpack.c.l.b16 %v628
        %v664 = vunpack.c.l.b16 %v629
        %v665 = vpack.c.b16 %v656, %v655
        %v666 = vpack.c.b16 %v658, %v657
        %v667 = vpack.c.b16 %v660, %v659
        %v668 = vpack.c.b16 %v662, %v661
        %v669 = vpack.c.b16 %v664, %v663
        %v676 = vsel %vm349, %v643, 0
        %v679 = vsel %vm349, %v644, 0
        %681 = vmatpush.bf16.msra.mxu0 0
        %682 = vmatpush.bf16.msra.mxu0 0
        %683 = vmatpush.bf16.msra.mxu0 0
        %684 = vmatpush.bf16.msra.mxu0 %v669
        %685 = vmatpush.bf16.msra.mxu0 %v668
        %686 = vmatpush.bf16.msra.mxu0 %v667
        %687 = vmatpush.bf16.msra.mxu0 %v666
        %688 = vmatpush.bf16.msra.mxu0 %v665
        %689 = vmatmul.bf16.gmra.mxu0 %v676
        %v690 = vpop.f32.mrf.mxu0
        %v691 = vadd.f32 0.0, %v690
        %v692 = vpop.f32.mrf.mxu0
        %v693 = vadd.f32 0.0, %v692
        %694 = vmatmul.bf16.gmra.mxu0 %v679
        %v695 = vpop.f32.mrf.mxu0
        %v696 = vadd.f32 0.0, %v695
        %v697 = vpop.f32.mrf.mxu0
        %v698 = vadd.f32 0.0, %v697
        %699 = vdwg.mxu0
        %v700 = vadd.f32 %v612, %v691
        %v701 = vadd.f32 %v613, %v693
        %v702 = vadd.f32 %v614, %v696
        %v703 = vadd.f32 %v615, %v698
        %705 = vset.pattern.permute.xlu0 0
        %706 = vperm.xlu0 %705, %v263
        %v707 = vpop.permute.xlu0 %706
        %710 = vset.pattern.permute.xlu0 0
        %711 = vperm.xlu0 %710, %v264
        %v712 = vpop.permute.xlu0 %711
        %715 = vset.pattern.permute.xlu0 0
        %716 = vperm.xlu0 %715, %v265
        %v717 = vpop.permute.xlu0 %716
        %720 = vset.pattern.permute.xlu0 0
        %721 = vperm.xlu0 %720, %v266
        %v722 = vpop.permute.xlu0 %721
        %v724 = vadd.f32 %v700, %v707
        %v725 = vadd.f32 %v701, %v712
        %v726 = vadd.f32 %v702, %v717
        %v727 = vadd.f32 %v703, %v722
        %v728 = vpack.c.bf16 %v724, %v724
        %v729 = vpack.c.bf16 %v725, %v725
        %v730 = vpack.c.bf16 %v726, %v726
        %v731 = vpack.c.bf16 %v727, %v727
        %s732 = smul.u32 %s268, 4
        %s733 = smul.addr %s732, 4
        %s734 = scalar_lea.vmem %s194, %s733
        %735 = vst [vmem:[%s734] sm:$0xf] %v728
        %736 = vst [vmem:[%s734 + $0x4] sm:$0xf] %v729
        %737 = vst [vmem:[%s734 + $0x8] sm:$0xf] %v730
        %738 = vst [vmem:[%s734 + $0xc] sm:$0xf] %v731
      $region44: #{convnet_b_forward.7} parent=31 // loop_footer
        %s272 = sadd.s32 1, %s268
      $region45: #{convnet_b_forward.7} parent=31 // loop_footer_branch
        %267 = sbr.rel target = $region41
      $region46: #{convnet_b_forward.7} parent=31 // loop_exit
        _
      %s739 = smul.u32 32, %s19
      %p740 = scmp.lt.s32.totalorder %s18, 1
      %s741 = scalar_select %p740, %s18, 1
      %p742 = scmp.lt.s32.totalorder %s739, 127
      %s743 = scalar_select %p742, %s739, 127
      %s744 = smul.addr %s743, 4
      %s745 = smul.addr %s741, 512
      %s746 = sadd.s32 %s744, %s745
      %s747 = smul.addr %s746, 4
      %s748 = scalar_lea.vmem %s3, %s747
      // Predicated region
      $region47: #{convnet_b_forward.7} parent=31 // pred_check
        %p749 = pneg %p114
      $region48: #{convnet_b_forward.7} parent=31 // pred_check_branch
        %751 = sbr.rel (%p749) target = $region50
      $region49: #{convnet_b_forward.7} parent=31 // pred_region
        %s752 = smul.u32 32, %s19
      $region50: #{convnet_b_forward.7} parent=31 // pred_fallthru
        _
    $region32: #{convnet_b_forward.7} parent=5 // pred_fallthru
      _
    %p753 = scmp.le.s32.totalorder 2, %s9
    // Predicated region
    $region51: #{convnet_b_forward.7} parent=5 // pred_check
      %p754 = pneg %p753
    $region52: #{convnet_b_forward.7} parent=5 // pred_check_branch
      %756 = sbr.rel (%p754) target = $region54
    $region53: #{convnet_b_forward.7} parent=5 // pred_region
      %s757 = ssub.s32 %s9, 2
      // Predicated region
      $region55: #{convnet_b_forward.7} parent=53 // pred_check
        %p758 = pneg %p120
      $region56: #{convnet_b_forward.7} parent=53 // pred_check_branch
        %760 = sbr.rel (%p758) target = $region58
      $region57: #{convnet_b_forward.7} parent=53 // pred_region
        %s761 = smul.u32 32, %s21
        %p762 = scmp.lt.s32.totalorder %s20, 1
        %s763 = scalar_select %p762, %s20, 1
        %p764 = scmp.lt.s32.totalorder %s761, 127
        %s765 = scalar_select %p764, %s761, 127
        %s766 = smul.addr %s765, 4
        %s767 = smul.addr %s763, 512
        %s768 = sadd.s32 %s766, %s767
        %s769 = smul.addr %s768, 4
        %s770 = scalar_lea.vmem %s3, %s769
      $region58: #{convnet_b_forward.7} parent=53 // pred_fallthru
        _
    $region54: #{convnet_b_forward.7} parent=5 // pred_fallthru
      _
  $region6: #{convnet_b_forward.7} parent=0 // loop_footer
    %s13 = sadd.s32 1, %s9
  $region7: #{convnet_b_forward.7} parent=0 // loop_footer_branch
    %8 = sbr.rel target = $region3
  $region8: #{convnet_b_forward.7} parent=0 // loop_exit
    _

// kernel: convnet_b_forward.8
$region0: #{convnet_b_forward.8}
  #allocation0 [shape = 'u32[]', space=smem, size = 0x4, offset = 0x4, fixed_abs, tag = 'smem constant byte address 0x4 - core index']
  #allocation1 [shape = 'u32[72,128]{1,0:T(1,128)}', space=vmem, size = 0x9000, scoped, tag = 'internal scratch']
  #allocation2 [shape = 'bf16[36,160,128]{2,1,0:T(8,128)(2,1)}', space=vmem, size = 0x168000, scoped, tag = 'scratch operand']
  %s0 = inlined_call_operand.vmem [shape: bf16[2,132,32,128], index: 0, kind: input, shape index: {}]
  %s1 = inlined_call_operand.vmem [shape: bf16[5,32,160], index: 1, kind: input, shape index: {}]
  %s2 = inlined_call_operand.vmem [shape: f32[32,1], index: 2, kind: input, shape index: {}]
  %s3 = inlined_call_operand.vmem [shape: f32[32,1], index: 3, kind: input, shape index: {}]
  %s4 = inlined_call_operand.vmem [shape: bf16[128,64], index: 4, kind: input, shape index: {}]
  %s5 = inlined_call_operand.vmem [shape: bf16[128,64], index: 5, kind: input, shape index: {}]
  %s6 = inlined_call_operand.vmem [shape: bf16[2,64,32,64], index: 6, kind: output, shape index: {}]
  %s7 = sld [smem:[#allocation0]]
  $region71: #{convnet_b_forward.8} parent=0
    _
  %s9 = ssub.s32 1, %s7
  %s10 = scalar_select 0, %s9, %s7
  loop: start=0, step=1, limit=10
  $region2: #{convnet_b_forward.8} parent=0 // loop_pre_header
    _
  $region3: #{convnet_b_forward.8} parent=0 // loop_header
    %s12 = sphi 0, %s16
    %p13 = scmp.ge.s32.totalorder %s12, 10
    %s19 = sphi 0, %s31
    %s20 = sphi 0, %s27
    %s21 = sphi 0, %s19
    %s22 = sphi 0, %s20
    %s23 = sphi 0, %s21
    %s24 = sphi 0, %s22
    %s34 = sphi 0, %s36
    %s37 = sphi 0, %s34
    %s38 = sphi 0, %s37
    %s54 = sphi 0, %s38
    %s58 = sphi 0, %s58
    %s60 = sphi 0, %s58
    %s61 = sphi 0, %s60
    %s75 = sphi 0, %s61
    %s79 = sphi 0, %s79
    %s81 = sphi 0, %s79
    %s82 = sphi 0, %s81
    %s96 = sphi 0, %s82
    %s100 = sphi 0, %s100
    %s102 = sphi 0, %s100
    %s103 = sphi 0, %s102
    %s117 = sphi 0, %s103
    %s121 = sphi 0, %s121
    %s123 = sphi 0, %s121
    %s124 = sphi 0, %s123
    %s138 = sphi 0, %s124
    %s142 = sphi 0, %s142
    %s144 = sphi 0, %s142
    %s145 = sphi 0, %s144
    %s159 = sphi 0, %s145
    %s167 = sphi 0, %s169
    %s170 = sphi 0, %s167
    %s171 = sphi 0, %s170
    %s187 = sphi 0, %s171
  $region4: #{convnet_b_forward.8} parent=0 // loop_header_branch
    %15 = sbr.rel (%p13) target = $region8
  $region5: #{convnet_b_forward.8} parent=0 // loop_body
    %s17 = ssub.s32 %s12, 1
    %s18 = ssub.s32 %s12, 2
    %s25 = sadd.s32 1, %s20
    %p26 = scmp.ge.s32.totalorder %s25, 4
    %s27 = scalar_select %p26, 0, %s25
    %s28 = sadd.s32 1, %s19
    %s29 = scalar_select %p26, %s28, %s19
    %p30 = scmp.ge.s32.totalorder %s29, 2
    %s31 = scalar_select %p30, 0, %s29
    %s32 = ssub.s32 %s19, %s31
    %p33 = scmp.eq.s32.totalorder %s32, 0
    %s35 = sadd.s32 %s34, 1
    %s36 = scalar_select %p33, %s34, %s35
    %p39 = pneg %p33
    %p40 = scmp.eq.s32.totalorder %s12, 7
    %p41 = por %p39, %p40
    %p42 = scmp.ne.s32.totalorder %s34, %s37
    %p43 = scmp.eq.s32.totalorder %s12, 0
    %p44 = por %p42, %p43
    %p45 = scmp.ne.s32.totalorder %s34, %s37
    %p46 = scmp.eq.s32.totalorder %s17, 7
    %p47 = por %p45, %p46
    %p48 = scmp.ne.s32.totalorder %s37, %s38
    %p49 = scmp.eq.s32.totalorder %s17, 0
    %p50 = por %p48, %p49
    %p51 = scmp.ne.s32.totalorder %s37, %s38
    %p52 = scmp.eq.s32.totalorder %s18, 7
    %p53 = por %p51, %p52
    %p55 = scmp.ne.s32.totalorder %s38, %s54
    %p56 = scmp.eq.s32.totalorder %s18, 0
    %p57 = por %p55, %p56
    %s59 = sadd.s32 %s58, 1
    %p62 = scmp.eq.s32.totalorder %s12, 7
    %p63 = scmp.ne.s32.totalorder %s58, %s60
    %p64 = scmp.eq.s32.totalorder %s12, 0
    %p65 = por %p63, %p64
    %p66 = scmp.ne.s32.totalorder %s58, %s60
    %p67 = scmp.eq.s32.totalorder %s17, 7
    %p68 = por %p66, %p67
    %p69 = scmp.ne.s32.totalorder %s60, %s61
    %p70 = scmp.eq.s32.totalorder %s17, 0
    %p71 = por %p69, %p70
    %p72 = scmp.ne.s32.totalorder %s60, %s61
    %p73 = scmp.eq.s32.totalorder %s18, 7
    %p74 = por %p72, %p73
    %p76 = scmp.ne.s32.totalorder %s61, %s75
    %p77 = scmp.eq.s32.totalorder %s18, 0
    %p78 = por %p76, %p77
    %s80 = sadd.s32 %s79, 1
    %p83 = scmp.eq.s32.totalorder %s12, 7
    %p84 = scmp.ne.s32.totalorder %s79, %s81
    %p85 = scmp.eq.s32.totalorder %s12, 0
    %p86 = por %p84, %p85
    %p87 = scmp.ne.s32.totalorder %s79, %s81
    %p88 = scmp.eq.s32.totalorder %s17, 7
    %p89 = por %p87, %p88
    %p90 = scmp.ne.s32.totalorder %s81, %s82
    %p91 = scmp.eq.s32.totalorder %s17, 0
    %p92 = por %p90, %p91
    %p93 = scmp.ne.s32.totalorder %s81, %s82
    %p94 = scmp.eq.s32.totalorder %s18, 7
    %p95 = por %p93, %p94
    %p97 = scmp.ne.s32.totalorder %s82, %s96
    %p98 = scmp.eq.s32.totalorder %s18, 0
    %p99 = por %p97, %p98
    %s101 = sadd.s32 %s100, 1
    %p104 = scmp.eq.s32.totalorder %s12, 7
    %p105 = scmp.ne.s32.totalorder %s100, %s102
    %p106 = scmp.eq.s32.totalorder %s12, 0
    %p107 = por %p105, %p106
    %p108 = scmp.ne.s32.totalorder %s100, %s102
    %p109 = scmp.eq.s32.totalorder %s17, 7
    %p110 = por %p108, %p109
    %p111 = scmp.ne.s32.totalorder %s102, %s103
    %p112 = scmp.eq.s32.totalorder %s17, 0
    %p113 = por %p111, %p112
    %p114 = scmp.ne.s32.totalorder %s102, %s103
    %p115 = scmp.eq.s32.totalorder %s18, 7
    %p116 = por %p114, %p115
    %p118 = scmp.ne.s32.totalorder %s103, %s117
    %p119 = scmp.eq.s32.totalorder %s18, 0
    %p120 = por %p118, %p119
    %s122 = sadd.s32 %s121, 1
    %p125 = scmp.eq.s32.totalorder %s12, 7
    %p126 = scmp.ne.s32.totalorder %s121, %s123
    %p127 = scmp.eq.s32.totalorder %s12, 0
    %p128 = por %p126, %p127
    %p129 = scmp.ne.s32.totalorder %s121, %s123
    %p130 = scmp.eq.s32.totalorder %s17, 7
    %p131 = por %p129, %p130
    %p132 = scmp.ne.s32.totalorder %s123, %s124
    %p133 = scmp.eq.s32.totalorder %s17, 0
    %p134 = por %p132, %p133
    %p135 = scmp.ne.s32.totalorder %s123, %s124
    %p136 = scmp.eq.s32.totalorder %s18, 7
    %p137 = por %p135, %p136
    %p139 = scmp.ne.s32.totalorder %s124, %s138
    %p140 = scmp.eq.s32.totalorder %s18, 0
    %p141 = por %p139, %p140
    %s143 = sadd.s32 %s142, 1
    %p146 = scmp.eq.s32.totalorder %s12, 7
    %p147 = scmp.ne.s32.totalorder %s142, %s144
    %p148 = scmp.eq.s32.totalorder %s12, 0
    %p149 = por %p147, %p148
    %p150 = scmp.ne.s32.totalorder %s142, %s144
    %p151 = scmp.eq.s32.totalorder %s17, 7
    %p152 = por %p150, %p151
    %p153 = scmp.ne.s32.totalorder %s144, %s145
    %p154 = scmp.eq.s32.totalorder %s17, 0
    %p155 = por %p153, %p154
    %p156 = scmp.ne.s32.totalorder %s144, %s145
    %p157 = scmp.eq.s32.totalorder %s18, 7
    %p158 = por %p156, %p157
    %p160 = scmp.ne.s32.totalorder %s145, %s159
    %p161 = scmp.eq.s32.totalorder %s18, 0
    %p162 = por %p160, %p161
    %s163 = ssub.s32 %s19, %s31
    %s164 = ssub.s32 %s20, %s27
    %s165 = sor.u32 %s163, %s164
    %p166 = scmp.eq.s32.totalorder %s165, 0
    %s168 = sadd.s32 %s167, 1
    %s169 = scalar_select %p166, %s167, %s168
    %p172 = pneg %p166
    %p173 = scmp.eq.s32.totalorder %s12, 7
    %p174 = por %p172, %p173
    %p175 = scmp.ne.s32.totalorder %s167, %s170
    %p176 = scmp.eq.s32.totalorder %s12, 0
    %p177 = por %p175, %p176
    %p178 = scmp.ne.s32.totalorder %s167, %s170
    %p179 = scmp.eq.s32.totalorder %s17, 7
    %p180 = por %p178, %p179
    %p181 = scmp.ne.s32.totalorder %s170, %s171
    %p182 = scmp.eq.s32.totalorder %s17, 0
    %p183 = por %p181, %p182
    %p184 = scmp.ne.s32.totalorder %s170, %s171
    %p185 = scmp.eq.s32.totalorder %s18, 7
    %p186 = por %p184, %p185
    %p188 = scmp.ne.s32.totalorder %s171, %s187
    %p189 = scmp.eq.s32.totalorder %s18, 0
    %p190 = por %p188, %p189
    %p191 = scmp.le.s32.totalorder 1, %s12
    %p192 = scmp.lt.s32.totalorder %s12, 9
    %p193 = pnand %p191, %p192
    %p194 = pneg %p193
    // Predicated region
    $region9: #{convnet_b_forward.8} parent=5 // pred_check
      _
    $region10: #{convnet_b_forward.8} parent=5 // pred_check_branch
      %196 = sbr.rel (%p193) target = $region12
    $region11: #{convnet_b_forward.8} parent=5 // pred_region
      %s197 = ssub.s32 %s12, 1
      // Predicated region
      $region13: #{convnet_b_forward.8} parent=11 // pred_check
        %p198 = pneg %p71
      $region14: #{convnet_b_forward.8} parent=11 // pred_check_branch
        %200 = sbr.rel (%p198) target = $region16
      $region15: #{convnet_b_forward.8} parent=11 // pred_region
        _
      $region16: #{convnet_b_forward.8} parent=11 // pred_fallthru
        _
      // Predicated region
      $region17: #{convnet_b_forward.8} parent=11 // pred_check
        %p201 = pneg %p92
      $region18: #{convnet_b_forward.8} parent=11 // pred_check_branch
        %203 = sbr.rel (%p201) target = $region20
      $region19: #{convnet_b_forward.8} parent=11 // pred_region
        _
      $region20: #{convnet_b_forward.8} parent=11 // pred_fallthru
        _
      // Predicated region
      $region21: #{convnet_b_forward.8} parent=11 // pred_check
        %p204 = pneg %p113
      $region22: #{convnet_b_forward.8} parent=11 // pred_check_branch
        %206 = sbr.rel (%p204) target = $region24
      $region23: #{convnet_b_forward.8} parent=11 // pred_region
        _
      $region24: #{convnet_b_forward.8} parent=11 // pred_fallthru
        _
      // Predicated region
      $region25: #{convnet_b_forward.8} parent=11 // pred_check
        %p207 = pneg %p134
      $region26: #{convnet_b_forward.8} parent=11 // pred_check_branch
        %209 = sbr.rel (%p207) target = $region28
      $region27: #{convnet_b_forward.8} parent=11 // pred_region
        _
      $region28: #{convnet_b_forward.8} parent=11 // pred_fallthru
        _
      // Predicated region
      $region29: #{convnet_b_forward.8} parent=11 // pred_check
        %p210 = pneg %p155
      $region30: #{convnet_b_forward.8} parent=11 // pred_check_branch
        %212 = sbr.rel (%p210) target = $region32
      $region31: #{convnet_b_forward.8} parent=11 // pred_region
        _
      $region32: #{convnet_b_forward.8} parent=11 // pred_fallthru
        _
    $region12: #{convnet_b_forward.8} parent=5 // pred_fallthru
      _
    %p213 = scmp.lt.s32.totalorder %s12, 8
    // Predicated region
    $region33: #{convnet_b_forward.8} parent=5 // pred_check
      %p214 = pneg %p213
    $region34: #{convnet_b_forward.8} parent=5 // pred_check_branch
      %216 = sbr.rel (%p214) target = $region36
    $region35: #{convnet_b_forward.8} parent=5 // pred_region
      // Predicated region
      $region37: #{convnet_b_forward.8} parent=35 // pred_check
        %p217 = pneg %p44
      $region38: #{convnet_b_forward.8} parent=35 // pred_check_branch
        %219 = sbr.rel (%p217) target = $region40
      $region39: #{convnet_b_forward.8} parent=35 // pred_region
        %p220 = scmp.lt.s32.totalorder %s19, 1
        %s221 = scalar_select %p220, %s19, 1
        %s222 = smul.addr %s221, 528
        %s223 = smul.addr %s222, 4
        %s224 = scalar_lea.vmem %s0, %s223
      $region40: #{convnet_b_forward.8} parent=35 // pred_fallthru
        _
    $region36: #{convnet_b_forward.8} parent=5 // pred_fallthru
      _
    %p225 = scmp.le.s32.totalorder 1, %s12
    %p226 = scmp.lt.s32.totalorder %s12, 9
    %p227 = pnand %p225, %p226
    %p228 = pneg %p227
    // Predicated region
    $region41: #{convnet_b_forward.8} parent=5 // pred_check
      _
    $region42: #{convnet_b_forward.8} parent=5 // pred_check_branch
      %230 = sbr.rel (%p227) target = $region44
    $region43: #{convnet_b_forward.8} parent=5 // pred_region
      %s231 = ssub.s32 %s12, 1
      %p232 = scmp.lt.s32.totalorder %s21, 1
      %s233 = scalar_select %p232, %s21, 1
      %s234 = smul.addr %s233, 528
      %s235 = smul.addr %s234, 4
      %s236 = scalar_lea.vmem %s0, %s235
      %p237 = pneg %p50
      %p238 = pneg %p47
      %p239 = pneg %p71
      %p240 = pneg %p68
      %p241 = pneg %p92
      %p242 = pneg %p89
      %p243 = pneg %p113
      %p244 = pneg %p110
      %p245 = pneg %p134
      %p246 = pneg %p131
      %p247 = pneg %p155
      %p248 = pneg %p152
      %p249 = pneg %p183
      %p250 = pneg %p180
      %s251 = smul.u32 16, %s22
      %p252 = scmp.lt.s32.totalorder %s21, 1
      %s253 = scalar_select %p252, %s21, 1
      %p254 = scmp.lt.s32.totalorder %s251, 63
      %s255 = scalar_select %p254, %s251, 63
      %s256 = smul.addr %s255, 4
      %s257 = smul.addr %s253, 256
      %s258 = sadd.s32 %s256, %s257
      %s259 = smul.addr %s258, 4
      %s260 = scalar_lea.vmem %s6, %s259
      %p261 = scmp.lt.s32.totalorder %s21, 1
      %s262 = scalar_select %p261, %s21, 1
      %s263 = smul.addr %s262, 528
      %s264 = smul.addr %s263, 4
      %s265 = scalar_lea.vmem %s0, %s264
      %s266 = smul.u32 16, %s22
      %p267 = scmp.lt.s32.totalorder %s21, 1
      %s268 = scalar_select %p267, %s21, 1
      %p269 = scmp.lt.s32.totalorder %s266, 63
      %s270 = scalar_select %p269, %s266, 63
      %s271 = smul.addr %s270, 4
      %s272 = smul.addr %s268, 256
      %s273 = sadd.s32 %s271, %s272
      %s274 = smul.addr %s273, 4
      %s275 = scalar_lea.vmem %s6, %s274
      %s276 = smul.u32 16, %s22
      %s278 = smul.u32 %s22, 32
      %v279 = vlaneseq
      %v280 = vand.u32 %v279, 127
      loop: start=0, step=1, limit=36
      $region45: #{convnet_b_forward.8} parent=43 // loop_pre_header
        _
      $region46: #{convnet_b_forward.8} parent=43 // loop_header
        %s282 = sphi 0, %s286
        %p283 = scmp.ge.s32.totalorder %s282, 36
      $region47: #{convnet_b_forward.8} parent=43 // loop_header_branch
        %285 = sbr.rel (%p283) target = $region51
      $region48: #{convnet_b_forward.8} parent=43 // loop_body
        %s287 = sadd.s32 %s278, %s282
        %s288 = smul.u32 %s287, 4
        %s289 = smul.addr %s288, 4
        %s290 = scalar_lea.vmem %s265, %s289
        %v291 = vld [vmem:[%s290] sm:$0xf]
        %v292 = vld [vmem:[%s290 + $0x4] sm:$0xf]
        %v293 = vld [vmem:[%s290 + $0x8] sm:$0xf]
        %v294 = vld [vmem:[%s290 + $0xc] sm:$0xf]
        %v295 = vunpack.c.l.bf16 %v291
        %v296 = vunpack.c.l.bf16 %v292
        %v297 = vunpack.c.l.bf16 %v293
        %v298 = vunpack.c.l.bf16 %v294
        %299 = vrot.lane.b32.xlu0 %v295, 2
        %v300 = vpop.permute.xlu0 %299
        %301 = vrot.lane.b32.xlu0 %v296, 2
        %v302 = vpop.permute.xlu0 %301
        %303 = vrot.lane.b32.xlu0 %v297, 2
        %v304 = vpop.permute.xlu0 %303
        %305 = vrot.lane.b32.xlu0 %v298, 2
        %v306 = vpop.permute.xlu0 %305
        %vm307 = vcmp.ge.s32.totalorder %v280, 2
        %v308 = vsel %vm307, %v300, 0.0
        %v309 = vsel %vm307, %v302, 0.0
        %v310 = vsel %vm307, %v304, 0.0
        %v311 = vsel %vm307, %v306, 0.0
        %v312 = vpack.c.bf16 %v308, %v308
        %v313 = vpack.c.bf16 %v309, %v309
        %v314 = vpack.c.bf16 %v310, %v310
        %v315 = vpack.c.bf16 %v311, %v311
        %s316 = smul.u32 %s282, 20
        %s317 = smul.addr %s316, 4
        %s318 = scalar_lea.vmem [#allocation2], %s317
        %319 = vst [vmem:[%s318] sm:$0xf] %v312
        %320 = vst [vmem:[%s318 + $0x4] sm:$0xf] %v313
        %321 = vst [vmem:[%s318 + $0x8] sm:$0xf] %v314
        %322 = vst [vmem:[%s318 + $0xc] sm:$0xf] %v315
        %323 = vrot.lane.b32.xlu0 %v295, 1
        %v324 = vpop.permute.xlu0 %323
        %325 = vrot.lane.b32.xlu0 %v296, 1
        %v326 = vpop.permute.xlu0 %325
        %327 = vrot.lane.b32.xlu0 %v297, 1
        %v328 = vpop.permute.xlu0 %327
        %329 = vrot.lane.b32.xlu0 %v298, 1
        %v330 = vpop.permute.xlu0 %329
        %vm331 = vcmp.ge.s32.totalorder %v280, 1
        %v332 = vsel %vm331, %v324, 0.0
        %v333 = vsel %vm331, %v326, 0.0
        %v334 = vsel %vm331, %v328, 0.0
        %v335 = vsel %vm331, %v330, 0.0
        %v336 = vpack.c.bf16 %v332, %v332
        %v337 = vpack.c.bf16 %v333, %v333
        %v338 = vpack.c.bf16 %v334, %v334
        %v339 = vpack.c.bf16 %v335, %v335
        %340 = vst [vmem:[%s318 + $0x10] sm:$0xf] %v336
        %341 = vst [vmem:[%s318 + $0x14] sm:$0xf] %v337
        %342 = vst [vmem:[%s318 + $0x18] sm:$0xf] %v338
        %343 = vst [vmem:[%s318 + $0x1c] sm:$0xf] %v339
        %344 = vst [vmem:[%s318 + $0x20] sm:$0xf] %v291
        %345 = vst [vmem:[%s318 + $0x24] sm:$0xf] %v292
        %346 = vst [vmem:[%s318 + $0x28] sm:$0xf] %v293
        %347 = vst [vmem:[%s318 + $0x2c] sm:$0xf] %v294
        %348 = vrot.lane.b32.xlu0 %v295, 127
        %v349 = vpop.permute.xlu0 %348
        %350 = vrot.lane.b32.xlu0 %v296, 127
        %v351 = vpop.permute.xlu0 %350
        %352 = vrot.lane.b32.xlu0 %v297, 127
        %v353 = vpop.permute.xlu0 %352
        %354 = vrot.lane.b32.xlu0 %v298, 127
        %v355 = vpop.permute.xlu0 %354
        %vm356 = vcmp.lt.s32.totalorder %v280, 127
        %v357 = vsel %vm356, %v349, 0.0
        %v358 = vsel %vm356, %v351, 0.0
        %v359 = vsel %vm356, %v353, 0.0
        %v360 = vsel %vm356, %v355, 0.0
        %v361 = vpack.c.bf16 %v357, %v357
        %v362 = vpack.c.bf16 %v358, %v358
        %v363 = vpack.c.bf16 %v359, %v359
        %v364 = vpack.c.bf16 %v360, %v360
        %365 = vst [vmem:[%s318 + $0x30] sm:$0xf] %v361
        %366 = vst [vmem:[%s318 + $0x34] sm:$0xf] %v362
        %367 = vst [vmem:[%s318 + $0x38] sm:$0xf] %v363
        %368 = vst [vmem:[%s318 + $0x3c] sm:$0xf] %v364
        %369 = vrot.lane.b32.xlu0 %v295, 126
        %v370 = vpop.permute.xlu0 %369
        %371 = vrot.lane.b32.xlu0 %v296, 126
        %v372 = vpop.permute.xlu0 %371
        %373 = vrot.lane.b32.xlu0 %v297, 126
        %v374 = vpop.permute.xlu0 %373
        %375 = vrot.lane.b32.xlu0 %v298, 126
        %v376 = vpop.permute.xlu0 %375
        %vm377 = vcmp.lt.s32.totalorder %v280, 126
        %v378 = vsel %vm377, %v370, 0.0
        %v379 = vsel %vm377, %v372, 0.0
        %v380 = vsel %vm377, %v374, 0.0
        %v381 = vsel %vm377, %v376, 0.0
        %v382 = vpack.c.bf16 %v378, %v378
        %v383 = vpack.c.bf16 %v379, %v379
        %v384 = vpack.c.bf16 %v380, %v380
        %v385 = vpack.c.bf16 %v381, %v381
        %386 = vst [vmem:[%s318 + $0x40] sm:$0xf] %v382
        %387 = vst [vmem:[%s318 + $0x44] sm:$0xf] %v383
        %388 = vst [vmem:[%s318 + $0x48] sm:$0xf] %v384
        %389 = vst [vmem:[%s318 + $0x4c] sm:$0xf] %v385
      $region49: #{convnet_b_forward.8} parent=43 // loop_footer
        %s286 = sadd.s32 1, %s282
      $region50: #{convnet_b_forward.8} parent=43 // loop_footer_branch
        %281 = sbr.rel target = $region46
      $region51: #{convnet_b_forward.8} parent=43 // loop_exit
        _
      %v390 = vld [vmem:[%s2] sm:$0xff]
      %v391 = vld [vmem:[%s2 + $0x8] sm:$0xff]
      %v392 = vld [vmem:[%s2 + $0x10] sm:$0xff]
      %v393 = vld [vmem:[%s2 + $0x18] sm:$0xff]
      %v394 = vld [vmem:[%s3] sm:$0xff]
      %v395 = vld [vmem:[%s3 + $0x8] sm:$0xff]
      %v396 = vld [vmem:[%s3 + $0x10] sm:$0xff]
      %v397 = vld [vmem:[%s3 + $0x18] sm:$0xff]
      loop: start=0, step=1, limit=16
      $region52: #{convnet_b_forward.8} parent=43 // loop_pre_header
        _
      $region53: #{convnet_b_forward.8} parent=43 // loop_header
        %s399 = sphi 0, %s403
        %p400 = scmp.ge.s32.totalorder %s399, 16
      $region54: #{convnet_b_forward.8} parent=43 // loop_header_branch
        %402 = sbr.rel (%p400) target = $region58
      $region55: #{convnet_b_forward.8} parent=43 // loop_body
        %s404 = smul.u32 %s399, 2
        %s405 = smul.u32 %s404, 20
        %s406 = smul.addr %s405, 4
        %s407 = scalar_lea.vmem [#allocation2], %s406
        %v408 = vld [vmem:[%s407] sm:$0xf]
        %v409 = vld [vmem:[%s407 + $0x4] sm:$0xf]
        %v410 = vld [vmem:[%s407 + $0x8] sm:$0xf]
        %v411 = vld [vmem:[%s407 + $0xc] sm:$0xf]
        %v412 = vld [vmem:[%s407 + $0x10] sm:$0xf]
        %v413 = vld [vmem:[%s407 + $0x14] sm:$0xf]
        %v414 = vld [vmem:[%s407 + $0x18] sm:$0xf]
        %v415 = vld [vmem:[%s407 + $0x1c] sm:$0xf]
        %v416 = vld [vmem:[%s407 + $0x20] sm:$0xf]
        %v417 = vld [vmem:[%s407 + $0x24] sm:$0xf]
        %v418 = vld [vmem:[%s407 + $0x28] sm:$0xf]
        %v419 = vld [vmem:[%s407 + $0x2c] sm:$0xf]
        %v420 = vld [vmem:[%s407 + $0x30] sm:$0xf]
        %v421 = vld [vmem:[%s407 + $0x34] sm:$0xf]
        %v422 = vld [vmem:[%s407 + $0x38] sm:$0xf]
        %v423 = vld [vmem:[%s407 + $0x3c] sm:$0xf]
        %v424 = vld [vmem:[%s407 + $0x40] sm:$0xf]
        %v425 = vld [vmem:[%s407 + $0x44] sm:$0xf]
        %v426 = vld [vmem:[%s407 + $0x48] sm:$0xf]
        %v427 = vld [vmem:[%s407 + $0x4c] sm:$0xf]
        %v428 = vld [vmem:[%s1] sm:$0xff]
        %v429 = vld [vmem:[%s1 + $0x8] sm:$0xff]
        %v430 = vld [vmem:[%s1 + $0x10] sm:$0xff]
        %v431 = vld [vmem:[%s1 + $0x18] sm:$0xff]
        %s432 = sadd.s32 %s404, 1
        %s433 = smul.u32 %s432, 20
        %s434 = smul.addr %s433, 4
        %s435 = scalar_lea.vmem [#allocation2], %s434
        %v436 = vld [vmem:[%s435] sm:$0xf]
        %v437 = vld [vmem:[%s435 + $0x4] sm:$0xf]
        %v438 = vld [vmem:[%s435 + $0x8] sm:$0xf]
        %v439 = vld [vmem:[%s435 + $0xc] sm:$0xf]
        %v440 = vld [vmem:[%s435 + $0x10] sm:$0xf]
        %v441 = vld [vmem:[%s435 + $0x14] sm:$0xf]
        %v442 = vld [vmem:[%s435 + $0x18] sm:$0xf]
        %v443 = vld [vmem:[%s435 + $0x1c] sm:$0xf]
        %v444 = vld [vmem:[%s435 + $0x20] sm:$0xf]
        %v445 = vld [vmem:[%s435 + $0x24] sm:$0xf]
        %v446 = vld [vmem:[%s435 + $0x28] sm:$0xf]
        %v447 = vld [vmem:[%s435 + $0x2c] sm:$0xf]
        %v448 = vld [vmem:[%s435 + $0x30] sm:$0xf]
        %v449 = vld [vmem:[%s435 + $0x34] sm:$0xf]
        %v450 = vld [vmem:[%s435 + $0x38] sm:$0xf]
        %v451 = vld [vmem:[%s435 + $0x3c] sm:$0xf]
        %v452 = vld [vmem:[%s435 + $0x40] sm:$0xf]
        %v453 = vld [vmem:[%s435 + $0x44] sm:$0xf]
        %v454 = vld [vmem:[%s435 + $0x48] sm:$0xf]
        %v455 = vld [vmem:[%s435 + $0x4c] sm:$0xf]
        %s456 = scalar_lea.vmem %s1, 32
        %v457 = vld [vmem:[%s456] sm:$0xff]
        %v458 = vld [vmem:[%s456 + $0x8] sm:$0xff]
        %v459 = vld [vmem:[%s456 + $0x10] sm:$0xff]
        %v460 = vld [vmem:[%s456 + $0x18] sm:$0xff]
        %v465 = vunpack.c.l.b16 %v457
        %v466 = vunpack.c.h.b16 %v457
        %v467 = vunpack.c.l.b16 %v458
        %v468 = vunpack.c.h.b16 %v458
        %v469 = vunpack.c.l.b16 %v459
        %v470 = vunpack.c.h.b16 %v459
        %v471 = vunpack.c.l.b16 %v460
        %v472 = vunpack.c.h.b16 %v460
        %v473 = vpack.c.b16 %v467, %v465
        %v474 = vpack.c.b16 %v468, %v466
        %v475 = vpack.c.b16 %v471, %v469
        %v476 = vpack.c.b16 %v472, %v470
        %v499 = vunpack.c.l.b16 %v436
        %v500 = vunpack.c.l.b16 %v437
        %v501 = vunpack.c.l.b16 %v438
        %v502 = vunpack.c.l.b16 %v439
        %v503 = vunpack.c.l.b16 %v440
        %v504 = vunpack.c.l.b16 %v441
        %v505 = vunpack.c.l.b16 %v442
        %v506 = vunpack.c.l.b16 %v443
        %v507 = vunpack.c.l.b16 %v444
        %v508 = vunpack.c.l.b16 %v445
        %v509 = vunpack.c.l.b16 %v446
        %v510 = vunpack.c.l.b16 %v447
        %v511 = vunpack.c.l.b16 %v448
        %v512 = vunpack.c.l.b16 %v449
        %v513 = vunpack.c.l.b16 %v450
        %v514 = vunpack.c.l.b16 %v451
        %v515 = vunpack.c.l.b16 %v452
        %v516 = vunpack.c.l.b16 %v453
        %v517 = vunpack.c.l.b16 %v454
        %v518 = vunpack.c.l.b16 %v455
        %v519 = vpack.c.b16 %v500, %v499
        %v520 = vpack.c.b16 %v502, %v501
        %v521 = vpack.c.b16 %v504, %v503
        %v522 = vpack.c.b16 %v506, %v505
        %v523 = vpack.c.b16 %v508, %v507
        %v524 = vpack.c.b16 %v510, %v509
        %v525 = vpack.c.b16 %v512, %v511
        %v526 = vpack.c.b16 %v514, %v513
        %v527 = vpack.c.b16 %v516, %v515
        %v528 = vpack.c.b16 %v518, %v517
        %vm539 = vcmask 261120
        %v541 = vsel %vm539, %v474, 0
        %v544 = vsel %vm539, %v476, 0
        %546 = vmatpush.bf16.msra.mxu0 %v526
        %547 = vmatpush.bf16.msra.mxu0 %v525
        %548 = vmatpush.bf16.msra.mxu0 %v524
        %549 = vmatpush.bf16.msra.mxu0 %v523
        %550 = vmatpush.bf16.msra.mxu0 %v522
        %551 = vmatpush.bf16.msra.mxu0 %v521
        %552 = vmatpush.bf16.msra.mxu0 %v520
        %553 = vmatpush.bf16.msra.mxu0 %v519
        %554 = vmatmul.bf16.gmra.mxu0 %v473
        %v555 = vpop.f32.mrf.mxu0
        %v556 = vadd.f32 0.0, %v555
        %v557 = vpop.f32.mrf.mxu0
        %v558 = vadd.f32 0.0, %v557
        %559 = vmatmul.bf16.gmra.mxu0 %v475
        %v560 = vpop.f32.mrf.mxu0
        %v561 = vadd.f32 0.0, %v560
        %v562 = vpop.f32.mrf.mxu0
        %v563 = vadd.f32 0.0, %v562
        %564 = vdwg.mxu0
        %565 = vmatpush.bf16.msra.mxu0 0
        %566 = vmatpush.bf16.msra.mxu0 0
        %567 = vmatpush.bf16.msra.mxu0 0
        %568 = vmatpush.bf16.msra.mxu0 0
        %569 = vmatpush.bf16.msra.mxu0 0
        %570 = vmatpush.bf16.msra.mxu0 0
        %571 = vmatpush.bf16.msra.mxu0 %v528
        %572 = vmatpush.bf16.msra.mxu0 %v527
        %573 = vmatmul.bf16.gmra.mxu0 %v541
        %v574 = vpop.f32.mrf.mxu0
        %v575 = vadd.f32 %v556, %v574
        %v576 = vpop.f32.mrf.mxu0
        %v577 = vadd.f32 %v558, %v576
        %578 = vmatmul.bf16.gmra.mxu0 %v544
        %v579 = vpop.f32.mrf.mxu0
        %v580 = vadd.f32 %v561, %v579
        %v581 = vpop.f32.mrf.mxu0
        %v582 = vadd.f32 %v563, %v581
        %583 = vdwg.mxu0
        %v588 = vunpack.c.l.b16 %v428
        %v589 = vunpack.c.h.b16 %v428
        %v590 = vunpack.c.l.b16 %v429
        %v591 = vunpack.c.h.b16 %v429
        %v592 = vunpack.c.l.b16 %v430
        %v593 = vunpack.c.h.b16 %v430
        %v594 = vunpack.c.l.b16 %v431
        %v595 = vunpack.c.h.b16 %v431
        %v596 = vpack.c.b16 %v590, %v588
        %v597 = vpack.c.b16 %v591, %v589
        %v598 = vpack.c.b16 %v594, %v592
        %v599 = vpack.c.b16 %v595, %v593
        %v622 = vunpack.c.l.b16 %v408
        %v623 = vunpack.c.l.b16 %v409
        %v624 = vunpack.c.l.b16 %v410
        %v625 = vunpack.c.l.b16 %v411
        %v626 = vunpack.c.l.b16 %v412
        %v627 = vunpack.c.l.b16 %v413
        %v628 = vunpack.c.l.b16 %v414
        %v629 = vunpack.c.l.b16 %v415
        %v630 = vunpack.c.l.b16 %v416
        %v631 = vunpack.c.l.b16 %v417
        %v632 = vunpack.c.l.b16 %v418
        %v633 = vunpack.c.l.b16 %v419
        %v634 = vunpack.c.l.b16 %v420
        %v635 = vunpack.c.l.b16 %v421
        %v636 = vunpack.c.l.b16 %v422
        %v637 = vunpack.c.l.b16 %v423
        %v638 = vunpack.c.l.b16 %v424
        %v639 = vunpack.c.l.b16 %v425
        %v640 = vunpack.c.l.b16 %v426
        %v641 = vunpack.c.l.b16 %v427
        %v642 = vpack.c.b16 %v623, %v622
        %v643 = vpack.c.b16 %v625, %v624
        %v644 = vpack.c.b16 %v627, %v626
        %v645 = vpack.c.b16 %v629, %v628
        %v646 = vpack.c.b16 %v631, %v630
        %v647 = vpack.c.b16 %v633, %v632
        %v648 = vpack.c.b16 %v635, %v634
        %v649 = vpack.c.b16 %v637, %v636
        %v650 = vpack.c.b16 %v639, %v638
        %v651 = vpack.c.b16 %v641, %v640
        %v663 = vsel %vm539, %v597, 0
        %v666 = vsel %vm539, %v599, 0
        %668 = vmatpush.bf16.msra.mxu0 %v649
        %669 = vmatpush.bf16.msra.mxu0 %v648
        %670 = vmatpush.bf16.msra.mxu0 %v647
        %671 = vmatpush.bf16.msra.mxu0 %v646
        %672 = vmatpush.bf16.msra.mxu0 %v645
        %673 = vmatpush.bf16.msra.mxu0 %v644
        %674 = vmatpush.bf16.msra.mxu0 %v643
        %675 = vmatpush.bf16.msra.mxu0 %v642
        %676 = vmatmul.bf16.gmra.mxu0 %v596
        %v677 = vpop.f32.mrf.mxu0
        %v678 = vadd.f32 %v575, %v677
        %v679 = vpop.f32.mrf.mxu0
        %v680 = vadd.f32 %v577, %v679
        %681 = vmatmul.bf16.gmra.mxu0 %v598
        %v682 = vpop.f32.mrf.mxu0
        %v683 = vadd.f32 %v580, %v682
        %v684 = vpop.f32.mrf.mxu0
        %v685 = vadd.f32 %v582, %v684
        %686 = vdwg.mxu0
        %687 = vmatpush.bf16.msra.mxu0 0
        %688 = vmatpush.bf16.msra.mxu0 0
        %689 = vmatpush.bf16.msra.mxu0 0
        %690 = vmatpush.bf16.msra.mxu0 0
        %691 = vmatpush.bf16.msra.mxu0 0
        %692 = vmatpush.bf16.msra.mxu0 0
        %693 = vmatpush.bf16.msra.mxu0 %v651
        %694 = vmatpush.bf16.msra.mxu0 %v650
        %695 = vmatmul.bf16.gmra.mxu0 %v663
        %v696 = vpop.f32.mrf.mxu0
        %v697 = vadd.f32 %v678, %v696
        %v698 = vpop.f32.mrf.mxu0
        %v699 = vadd.f32 %v680, %v698
        %700 = vmatmul.bf16.gmra.mxu0 %v666
        %v701 = vpop.f32.mrf.mxu0
        %v702 = vadd.f32 %v683, %v701
        %v703 = vpop.f32.mrf.mxu0
        %v704 = vadd.f32 %v685, %v703
        %705 = vdwg.mxu0
        %s706 = sadd.s32 %s404, 2
        %s707 = smul.u32 %s706, 20
        %s708 = smul.addr %s707, 4
        %s709 = scalar_lea.vmem [#allocation2], %s708
        %v710 = vld [vmem:[%s709] sm:$0xf]
        %v711 = vld [vmem:[%s709 + $0x4] sm:$0xf]
        %v712 = vld [vmem:[%s709 + $0x8] sm:$0xf]
        %v713 = vld [vmem:[%s709 + $0xc] sm:$0xf]
        %v714 = vld [vmem:[%s709 + $0x10] sm:$0xf]
        %v715 = vld [vmem:[%s709 + $0x14] sm:$0xf]
        %v716 = vld [vmem:[%s709 + $0x18] sm:$0xf]
        %v717 = vld [vmem:[%s709 + $0x1c] sm:$0xf]
        %v718 = vld [vmem:[%s709 + $0x20] sm:$0xf]
        %v719 = vld [vmem:[%s709 + $0x24] sm:$0xf]
        %v720 = vld [vmem:[%s709 + $0x28] sm:$0xf]
        %v721 = vld [vmem:[%s709 + $0x2c] sm:$0xf]
        %v722 = vld [vmem:[%s709 + $0x30] sm:$0xf]
        %v723 = vld [vmem:[%s709 + $0x34] sm:$0xf]
        %v724 = vld [vmem:[%s709 + $0x38] sm:$0xf]
        %v725 = vld [vmem:[%s709 + $0x3c] sm:$0xf]
        %v726 = vld [vmem:[%s709 + $0x40] sm:$0xf]
        %v727 = vld [vmem:[%s709 + $0x44] sm:$0xf]
        %v728 = vld [vmem:[%s709 + $0x48] sm:$0xf]
        %v729 = vld [vmem:[%s709 + $0x4c] sm:$0xf]
        %s730 = scalar_lea.vmem %s1, 64
        %v731 = vld [vmem:[%s730] sm:$0xff]
        %v732 = vld [vmem:[%s730 + $0x8] sm:$0xff]
        %v733 = vld [vmem:[%s730 + $0x10] sm:$0xff]
        %v734 = vld [vmem:[%s730 + $0x18] sm:$0xff]
        %v739 = vunpack.c.l.b16 %v731
        %v740 = vunpack.c.h.b16 %v731
        %v741 = vunpack.c.l.b16 %v732
        %v742 = vunpack.c.h.b16 %v732
        %v743 = vunpack.c.l.b16 %v733
        %v744 = vunpack.c.h.b16 %v733
        %v745 = vunpack.c.l.b16 %v734
        %v746 = vunpack.c.h.b16 %v734
        %v747 = vpack.c.b16 %v741, %v739
        %v748 = vpack.c.b16 %v742, %v740
        %v749 = vpack.c.b16 %v745, %v743
        %v750 = vpack.c.b16 %v746, %v744
        %v773 = vunpack.c.l.b16 %v710
        %v774 = vunpack.c.l.b16 %v711
        %v775 = vunpack.c.l.b16 %v712
        %v776 = vunpack.c.l.b16 %v713
        %v777 = vunpack.c.l.b16 %v714
        %v778 = vunpack.c.l.b16 %v715
        %v779 = vunpack.c.l.b16 %v716
        %v780 = vunpack.c.l.b16 %v717
        %v781 = vunpack.c.l.b16 %v718
        %v782 = vunpack.c.l.b16 %v719
        %v783 = vunpack.c.l.b16 %v720
        %v784 = vunpack.c.l.b16 %v721
        %v785 = vunpack.c.l.b16 %v722
        %v786 = vunpack.c.l.b16 %v723
        %v787 = vunpack.c.l.b16 %v724
        %v788 = vunpack.c.l.b16 %v725
        %v789 = vunpack.c.l.b16 %v726
        %v790 = vunpack.c.l.b16 %v727
        %v791 = vunpack.c.l.b16 %v728
        %v792 = vunpack.c.l.b16 %v729
        %v793 = vpack.c.b16 %v774, %v773
        %v794 = vpack.c.b16 %v776, %v775
        %v795 = vpack.c.b16 %v778, %v777
        %v796 = vpack.c.b16 %v780, %v779
        %v797 = vpack.c.b16 %v782, %v781
        %v798 = vpack.c.b16 %v784, %v783
        %v799 = vpack.c.b16 %v786, %v785
        %v800 = vpack.c.b16 %v788, %v787
        %v801 = vpack.c.b16 %v790, %v789
        %v802 = vpack.c.b16 %v792, %v791
        %v814 = vsel %vm539, %v748, 0
        %v817 = vsel %vm539, %v750, 0
        %819 = vmatpush.bf16.msra.mxu0 %v800
        %820 = vmatpush.bf16.msra.mxu0 %v799
        %821 = vmatpush.bf16.msra.mxu0 %v798
        %822 = vmatpush.bf16.msra.mxu0 %v797
        %823 = vmatpush.bf16.msra.mxu0 %v796
        %824 = vmatpush.bf16.msra.mxu0 %v795
        %825 = vmatpush.bf16.msra.mxu0 %v794
        %826 = vmatpush.bf16.msra.mxu0 %v793
        %827 = vmatmul.bf16.gmra.mxu0 %v747
        %v828 = vpop.f32.mrf.mxu0
        %v829 = vadd.f32 0.0, %v828
        %v830 = vpop.f32.mrf.mxu0
        %v831 = vadd.f32 0.0, %v830
        %832 = vmatmul.bf16.gmra.mxu0 %v749
        %v833 = vpop.f32.mrf.mxu0
        %v834 = vadd.f32 0.0, %v833
        %v835 = vpop.f32.mrf.mxu0
        %v836 = vadd.f32 0.0, %v835
        %837 = vdwg.mxu0
        %838 = vmatpush.bf16.msra.mxu0 0
        %839 = vmatpush.bf16.msra.mxu0 0
        %840 = vmatpush.bf16.msra.mxu0 0
        %841 = vmatpush.bf16.msra.mxu0 0
        %842 = vmatpush.bf16.msra.mxu0 0
        %843 = vmatpush.bf16.msra.mxu0 0
        %844 = vmatpush.bf16.msra.mxu0 %v802
        %845 = vmatpush.bf16.msra.mxu0 %v801
        %846 = vmatmul.bf16.gmra.mxu0 %v814
        %v847 = vpop.f32.mrf.mxu0
        %v848 = vadd.f32 %v829, %v847
        %v849 = vpop.f32.mrf.mxu0
        %v850 = vadd.f32 %v831, %v849
        %851 = vmatmul.bf16.gmra.mxu0 %v817
        %v852 = vpop.f32.mrf.mxu0
        %v853 = vadd.f32 %v834, %v852
        %v854 = vpop.f32.mrf.mxu0
        %v855 = vadd.f32 %v836, %v854
        %856 = vdwg.mxu0
        %v857 = vadd.f32 %v697, %v848
        %v858 = vadd.f32 %v699, %v850
        %v859 = vadd.f32 %v702, %v853
        %v860 = vadd.f32 %v704, %v855
        %s861 = sadd.s32 %s404, 3
        %s862 = smul.u32 %s861, 20
        %s863 = smul.addr %s862, 4
        %s864 = scalar_lea.vmem [#allocation2], %s863
        %v865 = vld [vmem:[%s864] sm:$0xf]
        %v866 = vld [vmem:[%s864 + $0x4] sm:$0xf]
        %v867 = vld [vmem:[%s864 + $0x8] sm:$0xf]
        %v868 = vld [vmem:[%s864 + $0xc] sm:$0xf]
        %v869 = vld [vmem:[%s864 + $0x10] sm:$0xf]
        %v870 = vld [vmem:[%s864 + $0x14] sm:$0xf]
        %v871 = vld [vmem:[%s864 + $0x18] sm:$0xf]
        %v872 = vld [vmem:[%s864 + $0x1c] sm:$0xf]
        %v873 = vld [vmem:[%s864 + $0x20] sm:$0xf]
        %v874 = vld [vmem:[%s864 + $0x24] sm:$0xf]
        %v875 = vld [vmem:[%s864 + $0x28] sm:$0xf]
        %v876 = vld [vmem:[%s864 + $0x2c] sm:$0xf]
        %v877 = vld [vmem:[%s864 + $0x30] sm:$0xf]
        %v878 = vld [vmem:[%s864 + $0x34] sm:$0xf]
        %v879 = vld [vmem:[%s864 + $0x38] sm:$0xf]
        %v880 = vld [vmem:[%s864 + $0x3c] sm:$0xf]
        %v881 = vld [vmem:[%s864 + $0x40] sm:$0xf]
        %v882 = vld [vmem:[%s864 + $0x44] sm:$0xf]
        %v883 = vld [vmem:[%s864 + $0x48] sm:$0xf]
        %v884 = vld [vmem:[%s864 + $0x4c] sm:$0xf]
        %s885 = scalar_lea.vmem %s1, 96
        %v886 = vld [vmem:[%s885] sm:$0xff]
        %v887 = vld [vmem:[%s885 + $0x8] sm:$0xff]
        %v888 = vld [vmem:[%s885 + $0x10] sm:$0xff]
        %v889 = vld [vmem:[%s885 + $0x18] sm:$0xff]
        %v894 = vunpack.c.l.b16 %v886
        %v895 = vunpack.c.h.b16 %v886
        %v896 = vunpack.c.l.b16 %v887
        %v897 = vunpack.c.h.b16 %v887
        %v898 = vunpack.c.l.b16 %v888
        %v899 = vunpack.c.h.b16 %v888
        %v900 = vunpack.c.l.b16 %v889
        %v901 = vunpack.c.h.b16 %v889
        %v902 = vpack.c.b16 %v896, %v894
        %v903 = vpack.c.b16 %v897, %v895
        %v904 = vpack.c.b16 %v900, %v898
        %v905 = vpack.c.b16 %v901, %v899
        %v928 = vunpack.c.l.b16 %v865
        %v929 = vunpack.c.l.b16 %v866
        %v930 = vunpack.c.l.b16 %v867
        %v931 = vunpack.c.l.b16 %v868
        %v932 = vunpack.c.l.b16 %v869
        %v933 = vunpack.c.l.b16 %v870
        %v934 = vunpack.c.l.b16 %v871
        %v935 = vunpack.c.l.b16 %v872
        %v936 = vunpack.c.l.b16 %v873
        %v937 = vunpack.c.l.b16 %v874
        %v938 = vunpack.c.l.b16 %v875
        %v939 = vunpack.c.l.b16 %v876
        %v940 = vunpack.c.l.b16 %v877
        %v941 = vunpack.c.l.b16 %v878
        %v942 = vunpack.c.l.b16 %v879
        %v943 = vunpack.c.l.b16 %v880
        %v944 = vunpack.c.l.b16 %v881
        %v945 = vunpack.c.l.b16 %v882
        %v946 = vunpack.c.l.b16 %v883
        %v947 = vunpack.c.l.b16 %v884
        %v948 = vpack.c.b16 %v929, %v928
        %v949 = vpack.c.b16 %v931, %v930
        %v950 = vpack.c.b16 %v933, %v932
        %v951 = vpack.c.b16 %v935, %v934
        %v952 = vpack.c.b16 %v937, %v936
        %v953 = vpack.c.b16 %v939, %v938
        %v954 = vpack.c.b16 %v941, %v940
        %v955 = vpack.c.b16 %v943, %v942
        %v956 = vpack.c.b16 %v945, %v944
        %v957 = vpack.c.b16 %v947, %v946
        %v969 = vsel %vm539, %v903, 0
        %v972 = vsel %vm539, %v905, 0
        %974 = vmatpush.bf16.msra.mxu0 %v955
        %975 = vmatpush.bf16.msra.mxu0 %v954
        %976 = vmatpush.bf16.msra.mxu0 %v953
        %977 = vmatpush.bf16.msra.mxu0 %v952
        %978 = vmatpush.bf16.msra.mxu0 %v951
        %979 = vmatpush.bf16.msra.mxu0 %v950
        %980 = vmatpush.bf16.msra.mxu0 %v949
        %981 = vmatpush.bf16.msra.mxu0 %v948
        %982 = vmatmul.bf16.gmra.mxu0 %v902
        %v983 = vpop.f32.mrf.mxu0
        %v984 = vadd.f32 0.0, %v983
        %v985 = vpop.f32.mrf.mxu0
        %v986 = vadd.f32 0.0, %v985
        %987 = vmatmul.bf16.gmra.mxu0 %v904
        %v988 = vpop.f32.mrf.mxu0
        %v989 = vadd.f32 0.0, %v988
        %v990 = vpop.f32.mrf.mxu0
        %v991 = vadd.f32 0.0, %v990
        %992 = vdwg.mxu0
        %993 = vmatpush.bf16.msra.mxu0 0
        %994 = vmatpush.bf16.msra.mxu0 0
        %995 = vmatpush.bf16.msra.mxu0 0
        %996 = vmatpush.bf16.msra.mxu0 0
        %997 = vmatpush.bf16.msra.mxu0 0
        %998 = vmatpush.bf16.msra.mxu0 0
        %999 = vmatpush.bf16.msra.mxu0 %v957
        %1000 = vmatpush.bf16.msra.mxu0 %v956
        %1001 = vmatmul.bf16.gmra.mxu0 %v969
        %v1002 = vpop.f32.mrf.mxu0
        %v1003 = vadd.f32 %v984, %v1002
        %v1004 = vpop.f32.mrf.mxu0
        %v1005 = vadd.f32 %v986, %v1004
        %1006 = vmatmul.bf16.gmra.mxu0 %v972
        %v1007 = vpop.f32.mrf.mxu0
        %v1008 = vadd.f32 %v989, %v1007
        %v1009 = vpop.f32.mrf.mxu0
        %v1010 = vadd.f32 %v991, %v1009
        %1011 = vdwg.mxu0
        %v1012 = vadd.f32 %v857, %v1003
        %v1013 = vadd.f32 %v858, %v1005
        %v1014 = vadd.f32 %v859, %v1008
        %v1015 = vadd.f32 %v860, %v1010
        %s1016 = sadd.s32 %s404, 4
        %s1017 = smul.u32 %s1016, 20
        %s1018 = smul.addr %s1017, 4
        %s1019 = scalar_lea.vmem [#allocation2], %s1018
        %v1020 = vld [vmem:[%s1019] sm:$0xf]
        %v1021 = vld [vmem:[%s1019 + $0x4] sm:$0xf]
        %v1022 = vld [vmem:[%s1019 + $0x8] sm:$0xf]
        %v1023 = vld [vmem:[%s1019 + $0xc] sm:$0xf]
        %v1024 = vld [vmem:[%s1019 + $0x10] sm:$0xf]
        %v1025 = vld [vmem:[%s1019 + $0x14] sm:$0xf]
        %v1026 = vld [vmem:[%s1019 + $0x18] sm:$0xf]
        %v1027 = vld [vmem:[%s1019 + $0x1c] sm:$0xf]
        %v1028 = vld [vmem:[%s1019 + $0x20] sm:$0xf]
        %v1029 = vld [vmem:[%s1019 + $0x24] sm:$0xf]
        %v1030 = vld [vmem:[%s1019 + $0x28] sm:$0xf]
        %v1031 = vld [vmem:[%s1019 + $0x2c] sm:$0xf]
        %v1032 = vld [vmem:[%s1019 + $0x30] sm:$0xf]
        %v1033 = vld [vmem:[%s1019 + $0x34] sm:$0xf]
        %v1034 = vld [vmem:[%s1019 + $0x38] sm:$0xf]
        %v1035 = vld [vmem:[%s1019 + $0x3c] sm:$0xf]
        %v1036 = vld [vmem:[%s1019 + $0x40] sm:$0xf]
        %v1037 = vld [vmem:[%s1019 + $0x44] sm:$0xf]
        %v1038 = vld [vmem:[%s1019 + $0x48] sm:$0xf]
        %v1039 = vld [vmem:[%s1019 + $0x4c] sm:$0xf]
        %s1040 = scalar_lea.vmem %s1, 128
        %v1041 = vld [vmem:[%s1040] sm:$0xff]
        %v1042 = vld [vmem:[%s1040 + $0x8] sm:$0xff]
        %v1043 = vld [vmem:[%s1040 + $0x10] sm:$0xff]
        %v1044 = vld [vmem:[%s1040 + $0x18] sm:$0xff]
        %v1049 = vunpack.c.l.b16 %v1041
        %v1050 = vunpack.c.h.b16 %v1041
        %v1051 = vunpack.c.l.b16 %v1042
        %v1052 = vunpack.c.h.b16 %v1042
        %v1053 = vunpack.c.l.b16 %v1043
        %v1054 = vunpack.c.h.b16 %v1043
        %v1055 = vunpack.c.l.b16 %v1044
        %v1056 = vunpack.c.h.b16 %v1044
        %v1057 = vpack.c.b16 %v1051, %v1049
        %v1058 = vpack.c.b16 %v1052, %v1050
        %v1059 = vpack.c.b16 %v1055, %v1053
        %v1060 = vpack.c.b16 %v1056, %v1054
        %v1083 = vunpack.c.l.b16 %v1020
        %v1084 = vunpack.c.l.b16 %v1021
        %v1085 = vunpack.c.l.b16 %v1022
        %v1086 = vunpack.c.l.b16 %v1023
        %v1087 = vunpack.c.l.b16 %v1024
        %v1088 = vunpack.c.l.b16 %v1025
        %v1089 = vunpack.c.l.b16 %v1026
        %v1090 = vunpack.c.l.b16 %v1027
        %v1091 = vunpack.c.l.b16 %v1028
        %v1092 = vunpack.c.l.b16 %v1029
        %v1093 = vunpack.c.l.b16 %v1030
        %v1094 = vunpack.c.l.b16 %v1031
        %v1095 = vunpack.c.l.b16 %v1032
        %v1096 = vunpack.c.l.b16 %v1033
        %v1097 = vunpack.c.l.b16 %v1034
        %v1098 = vunpack.c.l.b16 %v1035
        %v1099 = vunpack.c.l.b16 %v1036
        %v1100 = vunpack.c.l.b16 %v1037
        %v1101 = vunpack.c.l.b16 %v1038
        %v1102 = vunpack.c.l.b16 %v1039
        %v1103 = vpack.c.b16 %v1084, %v1083
        %v1104 = vpack.c.b16 %v1086, %v1085
        %v1105 = vpack.c.b16 %v1088, %v1087
        %v1106 = vpack.c.b16 %v1090, %v1089
        %v1107 = vpack.c.b16 %v1092, %v1091
        %v1108 = vpack.c.b16 %v1094, %v1093
        %v1109 = vpack.c.b16 %v1096, %v1095
        %v1110 = vpack.c.b16 %v1098, %v1097
        %v1111 = vpack.c.b16 %v1100, %v1099
        %v1112 = vpack.c.b16 %v1102, %v1101
        %v1124 = vsel %vm539, %v1058, 0
        %v1127 = vsel %vm539, %v1060, 0
        %1129 = vmatpush.bf16.msra.mxu0 %v1110
        %1130 = vmatpush.bf16.msra.mxu0 %v1109
        %1131 = vmatpush.bf16.msra.mxu0 %v1108
        %1132 = vmatpush.bf16.msra.mxu0 %v1107
        %1133 = vmatpush.bf16.msra.mxu0 %v1106
        %1134 = vmatpush.bf16.msra.mxu0 %v1105
        %1135 = vmatpush.bf16.msra.mxu0 %v1104
        %1136 = vmatpush.bf16.msra.mxu0 %v1103
        %1137 = vmatmul.bf16.gmra.mxu0 %v1057
        %v1138 = vpop.f32.mrf.mxu0
        %v1139 = vadd.f32 0.0, %v1138
        %v1140 = vpop.f32.mrf.mxu0
        %v1141 = vadd.f32 0.0, %v1140
        %1142 = vmatmul.bf16.gmra.mxu0 %v1059
        %v1143 = vpop.f32.mrf.mxu0
        %v1144 = vadd.f32 0.0, %v1143
        %v1145 = vpop.f32.mrf.mxu0
        %v1146 = vadd.f32 0.0, %v1145
        %1147 = vdwg.mxu0
        %1148 = vmatpush.bf16.msra.mxu0 0
        %1149 = vmatpush.bf16.msra.mxu0 0
        %1150 = vmatpush.bf16.msra.mxu0 0
        %1151 = vmatpush.bf16.msra.mxu0 0
        %1152 = vmatpush.bf16.msra.mxu0 0
        %1153 = vmatpush.bf16.msra.mxu0 0
        %1154 = vmatpush.bf16.msra.mxu0 %v1112
        %1155 = vmatpush.bf16.msra.mxu0 %v1111
        %1156 = vmatmul.bf16.gmra.mxu0 %v1124
        %v1157 = vpop.f32.mrf.mxu0
        %v1158 = vadd.f32 %v1139, %v1157
        %v1159 = vpop.f32.mrf.mxu0
        %v1160 = vadd.f32 %v1141, %v1159
        %1161 = vmatmul.bf16.gmra.mxu0 %v1127
        %v1162 = vpop.f32.mrf.mxu0
        %v1163 = vadd.f32 %v1144, %v1162
        %v1164 = vpop.f32.mrf.mxu0
        %v1165 = vadd.f32 %v1146, %v1164
        %1166 = vdwg.mxu0
        %v1167 = vadd.f32 %v1012, %v1158
        %v1168 = vadd.f32 %v1013, %v1160
        %v1169 = vadd.f32 %v1014, %v1163
        %v1170 = vadd.f32 %v1015, %v1165
        %1172 = vset.pattern.permute.xlu0 0
        %1173 = vperm.xlu0 %1172, %v390
        %v1174 = vpop.permute.xlu0 %1173
        %1177 = vset.pattern.permute.xlu0 0
        %1178 = vperm.xlu0 %1177, %v391
        %v1179 = vpop.permute.xlu0 %1178
        %1182 = vset.pattern.permute.xlu0 0
        %1183 = vperm.xlu0 %1182, %v392
        %v1184 = vpop.permute.xlu0 %1183
        %1187 = vset.pattern.permute.xlu0 0
        %1188 = vperm.xlu0 %1187, %v393
        %v1189 = vpop.permute.xlu0 %1188
        %v1191 = vmul.f32 %v1167, %v1174
        %v1192 = vmul.f32 %v1168, %v1179
        %v1193 = vmul.f32 %v1169, %v1184
        %v1194 = vmul.f32 %v1170, %v1189
        %1196 = vset.pattern.permute.xlu0 0
        %1197 = vperm.xlu0 %1196, %v394
        %v1198 = vpop.permute.xlu0 %1197
        %1201 = vset.pattern.permute.xlu0 0
        %1202 = vperm.xlu0 %1201, %v395
        %v1203 = vpop.permute.xlu0 %1202
        %1206 = vset.pattern.permute.xlu0 0
        %1207 = vperm.xlu0 %1206, %v396
        %v1208 = vpop.permute.xlu0 %1207
        %1211 = vset.pattern.permute.xlu0 0
        %1212 = vperm.xlu0 %1211, %v397
        %v1213 = vpop.permute.xlu0 %1212
        %v1215 = vadd.f32 %v1191, %v1198
        %v1216 = vadd.f32 %v1192, %v1203
        %v1217 = vadd.f32 %v1193, %v1208
        %v1218 = vadd.f32 %v1194, %v1213
        %v1219 = vmax.f32 %v1215, 0.0
        %v1220 = vmax.f32 %v1216, 0.0
        %v1221 = vmax.f32 %v1217, 0.0
        %v1222 = vmax.f32 %v1218, 0.0
        %1223 = vmatpush.bf16.msra.mxu0 %v800
        %1224 = vmatpush.bf16.msra.mxu0 %v799
        %1225 = vmatpush.bf16.msra.mxu0 %v798
        %1226 = vmatpush.bf16.msra.mxu0 %v797
        %1227 = vmatpush.bf16.msra.mxu0 %v796
        %1228 = vmatpush.bf16.msra.mxu0 %v795
        %1229 = vmatpush.bf16.msra.mxu0 %v794
        %1230 = vmatpush.bf16.msra.mxu0 %v793
        %1231 = vmatmul.bf16.gmra.mxu0 %v473
        %v1232 = vpop.f32.mrf.mxu0
        %v1233 = vadd.f32 0.0, %v1232
        %v1234 = vpop.f32.mrf.mxu0
        %v1235 = vadd.f32 0.0, %v1234
        %1236 = vmatmul.bf16.gmra.mxu0 %v475
        %v1237 = vpop.f32.mrf.mxu0
        %v1238 = vadd.f32 0.0, %v1237
        %v1239 = vpop.f32.mrf.mxu0
        %v1240 = vadd.f32 0.0, %v1239
        %1241 = vdwg.mxu0
        %1242 = vmatpush.bf16.msra.mxu0 0
        %1243 = vmatpush.bf16.msra.mxu0 0
        %1244 = vmatpush.bf16.msra.mxu0 0
        %1245 = vmatpush.bf16.msra.mxu0 0
        %1246 = vmatpush.bf16.msra.mxu0 0
        %1247 = vmatpush.bf16.msra.mxu0 0
        %1248 = vmatpush.bf16.msra.mxu0 %v802
        %1249 = vmatpush.bf16.msra.mxu0 %v801
        %1250 = vmatmul.bf16.gmra.mxu0 %v541
        %v1251 = vpop.f32.mrf.mxu0
        %v1252 = vadd.f32 %v1233, %v1251
        %v1253 = vpop.f32.mrf.mxu0
        %v1254 = vadd.f32 %v1235, %v1253
        %1255 = vmatmul.bf16.gmra.mxu0 %v544
        %v1256 = vpop.f32.mrf.mxu0
        %v1257 = vadd.f32 %v1238, %v1256
        %v1258 = vpop.f32.mrf.mxu0
        %v1259 = vadd.f32 %v1240, %v1258
        %1260 = vdwg.mxu0
        %1261 = vmatpush.bf16.msra.mxu0 %v526
        %1262 = vmatpush.bf16.msra.mxu0 %v525
        %1263 = vmatpush.bf16.msra.mxu0 %v524
        %1264 = vmatpush.bf16.msra.mxu0 %v523
        %1265 = vmatpush.bf16.msra.mxu0 %v522
        %1266 = vmatpush.bf16.msra.mxu0 %v521
        %1267 = vmatpush.bf16.msra.mxu0 %v520
        %1268 = vmatpush.bf16.msra.mxu0 %v519
        %1269 = vmatmul.bf16.gmra.mxu0 %v596
        %v1270 = vpop.f32.mrf.mxu0
        %v1271 = vadd.f32 %v1252, %v1270
        %v1272 = vpop.f32.mrf.mxu0
        %v1273 = vadd.f32 %v1254, %v1272
        %1274 = vmatmul.bf16.gmra.mxu0 %v598
        %v1275 = vpop.f32.mrf.mxu0
        %v1276 = vadd.f32 %v1257, %v1275
        %v1277 = vpop.f32.mrf.mxu0
        %v1278 = vadd.f32 %v1259, %v1277
        %1279 = vdwg.mxu0
        %1280 = vmatpush.bf16.msra.mxu0 0
        %1281 = vmatpush.bf16.msra.mxu0 0
        %1282 = vmatpush.bf16.msra.mxu0 0
        %1283 = vmatpush.bf16.msra.mxu0 0
        %1284 = vmatpush.bf16.msra.mxu0 0
        %1285 = vmatpush.bf16.msra.mxu0 0
        %1286 = vmatpush.bf16.msra.mxu0 %v528
        %1287 = vmatpush.bf16.msra.mxu0 %v527
        %1288 = vmatmul.bf16.gmra.mxu0 %v663
        %v1289 = vpop.f32.mrf.mxu0
        %v1290 = vadd.f32 %v1271, %v1289
        %v1291 = vpop.f32.mrf.mxu0
        %v1292 = vadd.f32 %v1273, %v1291
        %1293 = vmatmul.bf16.gmra.mxu0 %v666
        %v1294 = vpop.f32.mrf.mxu0
        %v1295 = vadd.f32 %v1276, %v1294
        %v1296 = vpop.f32.mrf.mxu0
        %v1297 = vadd.f32 %v1278, %v1296
        %1298 = vdwg.mxu0
        %1299 = vmatpush.bf16.msra.mxu0 %v955
        %1300 = vmatpush.bf16.msra.mxu0 %v954
        %1301 = vmatpush.bf16.msra.mxu0 %v953
        %1302 = vmatpush.bf16.msra.mxu0 %v952
        %1303 = vmatpush.bf16.msra.mxu0 %v951
        %1304 = vmatpush.bf16.msra.mxu0 %v950
        %1305 = vmatpush.bf16.msra.mxu0 %v949
        %1306 = vmatpush.bf16.msra.mxu0 %v948
        %1307 = vmatmul.bf16.gmra.mxu0 %v747
        %v1308 = vpop.f32.mrf.mxu0
        %v1309 = vadd.f32 0.0, %v1308
        %v1310 = vpop.f32.mrf.mxu0
        %v1311 = vadd.f32 0.0, %v1310
        %1312 = vmatmul.bf16.gmra.mxu0 %v749
        %v1313 = vpop.f32.mrf.mxu0
        %v1314 = vadd.f32 0.0, %v1313
        %v1315 = vpop.f32.mrf.mxu0
        %v1316 = vadd.f32 0.0, %v1315
        %1317 = vdwg.mxu0
        %1318 = vmatpush.bf16.msra.mxu0 0
        %1319 = vmatpush.bf16.msra.mxu0 0
        %1320 = vmatpush.bf16.msra.mxu0 0
        %1321 = vmatpush.bf16.msra.mxu0 0
        %1322 = vmatpush.bf16.msra.mxu0 0
        %1323 = vmatpush.bf16.msra.mxu0 0
        %1324 = vmatpush.bf16.msra.mxu0 %v957
        %1325 = vmatpush.bf16.msra.mxu0 %v956
        %1326 = vmatmul.bf16.gmra.mxu0 %v814
        %v1327 = vpop.f32.mrf.mxu0
        %v1328 = vadd.f32 %v1309, %v1327
        %v1329 = vpop.f32.mrf.mxu0
        %v1330 = vadd.f32 %v1311, %v1329
        %1331 = vmatmul.bf16.gmra.mxu0 %v817
        %v1332 = vpop.f32.mrf.mxu0
        %v1333 = vadd.f32 %v1314, %v1332
        %v1334 = vpop.f32.mrf.mxu0
        %v1335 = vadd.f32 %v1316, %v1334
        %1336 = vdwg.mxu0
        %v1337 = vadd.f32 %v1290, %v1328
        %v1338 = vadd.f32 %v1292, %v1330
        %v1339 = vadd.f32 %v1295, %v1333
        %v1340 = vadd.f32 %v1297, %v1335
        %1341 = vmatpush.bf16.msra.mxu0 %v1110
        %1342 = vmatpush.bf16.msra.mxu0 %v1109
        %1343 = vmatpush.bf16.msra.mxu0 %v1108
        %1344 = vmatpush.bf16.msra.mxu0 %v1107
        %1345 = vmatpush.bf16.msra.mxu0 %v1106
        %1346 = vmatpush.bf16.msra.mxu0 %v1105
        %1347 = vmatpush.bf16.msra.mxu0 %v1104
        %1348 = vmatpush.bf16.msra.mxu0 %v1103
        %1349 = vmatmul.bf16.gmra.mxu0 %v902
        %v1350 = vpop.f32.mrf.mxu0
        %v1351 = vadd.f32 0.0, %v1350
        %v1352 = vpop.f32.mrf.mxu0
        %v1353 = vadd.f32 0.0, %v1352
        %1354 = vmatmul.bf16.gmra.mxu0 %v904
        %v1355 = vpop.f32.mrf.mxu0
        %v1356 = vadd.f32 0.0, %v1355
        %v1357 = vpop.f32.mrf.mxu0
        %v1358 = vadd.f32 0.0, %v1357
        %1359 = vdwg.mxu0
        %1360 = vmatpush.bf16.msra.mxu0 0
        %1361 = vmatpush.bf16.msra.mxu0 0
        %1362 = vmatpush.bf16.msra.mxu0 0
        %1363 = vmatpush.bf16.msra.mxu0 0
        %1364 = vmatpush.bf16.msra.mxu0 0
        %1365 = vmatpush.bf16.msra.mxu0 0
        %1366 = vmatpush.bf16.msra.mxu0 %v1112
        %1367 = vmatpush.bf16.msra.mxu0 %v1111
        %1368 = vmatmul.bf16.gmra.mxu0 %v969
        %v1369 = vpop.f32.mrf.mxu0
        %v1370 = vadd.f32 %v1351, %v1369
        %v1371 = vpop.f32.mrf.mxu0
        %v1372 = vadd.f32 %v1353, %v1371
        %1373 = vmatmul.bf16.gmra.mxu0 %v972
        %v1374 = vpop.f32.mrf.mxu0
        %v1375 = vadd.f32 %v1356, %v1374
        %v1376 = vpop.f32.mrf.mxu0
        %v1377 = vadd.f32 %v1358, %v1376
        %1378 = vdwg.mxu0
        %v1379 = vadd.f32 %v1337, %v1370
        %v1380 = vadd.f32 %v1338, %v1372
        %v1381 = vadd.f32 %v1339, %v1375
        %v1382 = vadd.f32 %v1340, %v1377
        %s1383 = sadd.s32 %s404, 5
        %s1384 = smul.u32 %s1383, 20
        %s1385 = smul.addr %s1384, 4
        %s1386 = scalar_lea.vmem [#allocation2], %s1385
        %v1387 = vld [vmem:[%s1386] sm:$0xf]
        %v1388 = vld [vmem:[%s1386 + $0x4] sm:$0xf]
        %v1389 = vld [vmem:[%s1386 + $0x8] sm:$0xf]
        %v1390 = vld [vmem:[%s1386 + $0xc] sm:$0xf]
        %v1391 = vld [vmem:[%s1386 + $0x10] sm:$0xf]
        %v1392 = vld [vmem:[%s1386 + $0x14] sm:$0xf]
        %v1393 = vld [vmem:[%s1386 + $0x18] sm:$0xf]
        %v1394 = vld [vmem:[%s1386 + $0x1c] sm:$0xf]
        %v1395 = vld [vmem:[%s1386 + $0x20] sm:$0xf]
        %v1396 = vld [vmem:[%s1386 + $0x24] sm:$0xf]
        %v1397 = vld [vmem:[%s1386 + $0x28] sm:$0xf]
        %v1398 = vld [vmem:[%s1386 + $0x2c] sm:$0xf]
        %v1399 = vld [vmem:[%s1386 + $0x30] sm:$0xf]
        %v1400 = vld [vmem:[%s1386 + $0x34] sm:$0xf]
        %v1401 = vld [vmem:[%s1386 + $0x38] sm:$0xf]
        %v1402 = vld [vmem:[%s1386 + $0x3c] sm:$0xf]
        %v1403 = vld [vmem:[%s1386 + $0x40] sm:$0xf]
        %v1404 = vld [vmem:[%s1386 + $0x44] sm:$0xf]
        %v1405 = vld [vmem:[%s1386 + $0x48] sm:$0xf]
        %v1406 = vld [vmem:[%s1386 + $0x4c] sm:$0xf]
        %v1427 = vunpack.c.l.b16 %v1387
        %v1428 = vunpack.c.l.b16 %v1388
        %v1429 = vunpack.c.l.b16 %v1389
        %v1430 = vunpack.c.l.b16 %v1390
        %v1431 = vunpack.c.l.b16 %v1391
        %v1432 = vunpack.c.l.b16 %v1392
        %v1433 = vunpack.c.l.b16 %v1393
        %v1434 = vunpack.c.l.b16 %v1394
        %v1435 = vunpack.c.l.b16 %v1395
        %v1436 = vunpack.c.l.b16 %v1396
        %v1437 = vunpack.c.l.b16 %v1397
        %v1438 = vunpack.c.l.b16 %v1398
        %v1439 = vunpack.c.l.b16 %v1399
        %v1440 = vunpack.c.l.b16 %v1400
        %v1441 = vunpack.c.l.b16 %v1401
        %v1442 = vunpack.c.l.b16 %v1402
        %v1443 = vunpack.c.l.b16 %v1403
        %v1444 = vunpack.c.l.b16 %v1404
        %v1445 = vunpack.c.l.b16 %v1405
        %v1446 = vunpack.c.l.b16 %v1406
        %v1447 = vpack.c.b16 %v1428, %v1427
        %v1448 = vpack.c.b16 %v1430, %v1429
        %v1449 = vpack.c.b16 %v1432, %v1431
        %v1450 = vpack.c.b16 %v1434, %v1433
        %v1451 = vpack.c.b16 %v1436, %v1435
        %v1452 = vpack.c.b16 %v1438, %v1437
        %v1453 = vpack.c.b16 %v1440, %v1439
        %v1454 = vpack.c.b16 %v1442, %v1441
        %v1455 = vpack.c.b16 %v1444, %v1443
        %v1456 = vpack.c.b16 %v1446, %v1445
        %1467 = vmatpush.bf16.msra.mxu0 %v1454
        %1468 = vmatpush.bf16.msra.mxu0 %v1453
        %1469 = vmatpush.bf16.msra.mxu0 %v1452
        %1470 = vmatpush.bf16.msra.mxu0 %v1451
        %1471 = vmatpush.bf16.msra.mxu0 %v1450
        %1472 = vmatpush.bf16.msra.mxu0 %v1449
        %1473 = vmatpush.bf16.msra.mxu0 %v1448
        %1474 = vmatpush.bf16.msra.mxu0 %v1447
        %1475 = vmatmul.bf16.gmra.mxu0 %v1057
        %v1476 = vpop.f32.mrf.mxu0
        %v1477 = vadd.f32 0.0, %v1476
        %v1478 = vpop.f32.mrf.mxu0
        %v1479 = vadd.f32 0.0, %v1478
        %1480 = vmatmul.bf16.gmra.mxu0 %v1059
        %v1481 = vpop.f32.mrf.mxu0
        %v1482 = vadd.f32 0.0, %v1481
        %v1483 = vpop.f32.mrf.mxu0
        %v1484 = vadd.f32 0.0, %v1483
        %1485 = vdwg.mxu0
        %1486 = vmatpush.bf16.msra.mxu0 0
        %1487 = vmatpush.bf16.msra.mxu0 0
        %1488 = vmatpush.bf16.msra.mxu0 0
        %1489 = vmatpush.bf16.msra.mxu0 0
        %1490 = vmatpush.bf16.msra.mxu0 0
        %1491 = vmatpush.bf16.msra.mxu0 0
        %1492 = vmatpush.bf16.msra.mxu0 %v1456
        %1493 = vmatpush.bf16.msra.mxu0 %v1455
        %1494 = vmatmul.bf16.gmra.mxu0 %v1124
        %v1495 = vpop.f32.mrf.mxu0
        %v1496 = vadd.f32 %v1477, %v1495
        %v1497 = vpop.f32.mrf.mxu0
        %v1498 = vadd.f32 %v1479, %v1497
        %1499 = vmatmul.bf16.gmra.mxu0 %v1127
        %v1500 = vpop.f32.mrf.mxu0
        %v1501 = vadd.f32 %v1482, %v1500
        %v1502 = vpop.f32.mrf.mxu0
        %v1503 = vadd.f32 %v1484, %v1502
        %1504 = vdwg.mxu0
        %v1505 = vadd.f32 %v1379, %v1496
        %v1506 = vadd.f32 %v1380, %v1498
        %v1507 = vadd.f32 %v1381, %v1501
        %v1508 = vadd.f32 %v1382, %v1503
        %v1509 = vmul.f32 %v1505, %v1174
        %v1510 = vmul.f32 %v1506, %v1179
        %v1511 = vmul.f32 %v1507, %v1184
        %v1512 = vmul.f32 %v1508, %v1189
        %v1513 = vadd.f32 %v1509, %v1198
        %v1514 = vadd.f32 %v1510, %v1203
        %v1515 = vadd.f32 %v1511, %v1208
        %v1516 = vadd.f32 %v1512, %v1213
        %v1517 = vmax.f32 %v1513, 0.0
        %v1518 = vmax.f32 %v1514, 0.0
        %v1519 = vmax.f32 %v1515, 0.0
        %v1520 = vmax.f32 %v1516, 0.0
        %v1521 = vmax.f32 %v1219, %v1517
        %v1522 = vmax.f32 %v1220, %v1518
        %v1523 = vmax.f32 %v1221, %v1519
        %v1524 = vmax.f32 %v1222, %v1520
        %v1525 = vpack.c.bf16 %v1522, %v1521
        %v1526 = vpack.c.bf16 %v1524, %v1523
        %v1527 = vld [vmem:[%s4] sm:$0xf]
        %v1528 = vld [vmem:[%s4 + $0x4] sm:$0xf]
        %v1529 = vld [vmem:[%s4 + $0x8] sm:$0xf]
        %v1530 = vld [vmem:[%s4 + $0xc] sm:$0xf]
        %v1531 = vld [vmem:[%s4 + $0x10] sm:$0xf]
        %v1532 = vld [vmem:[%s4 + $0x14] sm:$0xf]
        %v1533 = vld [vmem:[%s4 + $0x18] sm:$0xf]
        %v1534 = vld [vmem:[%s4 + $0x1c] sm:$0xf]
        %v1535 = vld [vmem:[%s4 + $0x20] sm:$0xf]
        %v1536 = vld [vmem:[%s4 + $0x24] sm:$0xf]
        %v1537 = vld [vmem:[%s4 + $0x28] sm:$0xf]
        %v1538 = vld [vmem:[%s4 + $0x2c] sm:$0xf]
        %v1539 = vld [vmem:[%s4 + $0x30] sm:$0xf]
        %v1540 = vld [vmem:[%s4 + $0x34] sm:$0xf]
        %v1541 = vld [vmem:[%s4 + $0x38] sm:$0xf]
        %v1542 = vld [vmem:[%s4 + $0x3c] sm:$0xf]
        %v1559 = vunpack.c.l.b16 %v1527
        %v1560 = vunpack.c.l.b16 %v1528
        %v1561 = vunpack.c.l.b16 %v1529
        %v1562 = vunpack.c.l.b16 %v1530
        %v1563 = vunpack.c.l.b16 %v1531
        %v1564 = vunpack.c.l.b16 %v1532
        %v1565 = vunpack.c.l.b16 %v1533
        %v1566 = vunpack.c.l.b16 %v1534
        %v1567 = vunpack.c.l.b16 %v1535
        %v1568 = vunpack.c.l.b16 %v1536
        %v1569 = vunpack.c.l.b16 %v1537
        %v1570 = vunpack.c.l.b16 %v1538
        %v1571 = vunpack.c.l.b16 %v1539
        %v1572 = vunpack.c.l.b16 %v1540
        %v1573 = vunpack.c.l.b16 %v1541
        %v1574 = vunpack.c.l.b16 %v1542
        %v1575 = vpack.c.b16 %v1560, %v1559
        %v1576 = vpack.c.b16 %v1562, %v1561
        %v1577 = vpack.c.b16 %v1564, %v1563
        %v1578 = vpack.c.b16 %v1566, %v1565
        %v1579 = vpack.c.b16 %v1568, %v1567
        %v1580 = vpack.c.b16 %v1570, %v1569
        %v1581 = vpack.c.b16 %v1572, %v1571
        %v1582 = vpack.c.b16 %v1574, %v1573
        %1591 = vmatpush.bf16.msra.mxu0 %v1582
        %1592 = vmatpush.bf16.msra.mxu0 %v1581
        %1593 = vmatpush.bf16.msra.mxu0 %v1580
        %1594 = vmatpush.bf16.msra.mxu0 %v1579
        %1595 = vmatpush.bf16.msra.mxu0 %v1578
        %1596 = vmatpush.bf16.msra.mxu0 %v1577
        %1597 = vmatpush.bf16.msra.mxu0 %v1576
        %1598 = vmatpush.bf16.msra.mxu0 %v1575
        %1599 = vmatmul.bf16.gmra.mxu0 %v1525
        %v1600 = vpop.f32.mrf.mxu0
        %v1601 = vadd.f32 0.0, %v1600
        %v1602 = vpop.f32.mrf.mxu0
        %v1603 = vadd.f32 0.0, %v1602
        %1604 = vmatmul.bf16.gmra.mxu0 %v1526
        %v1605 = vpop.f32.mrf.mxu0
        %v1606 = vadd.f32 0.0, %v1605
        %v1607 = vpop.f32.mrf.mxu0
        %v1608 = vadd.f32 0.0, %v1607
        %1609 = vdwg.mxu0
        %v1610 = vld [vmem:[%s5] sm:$0xf]
        %v1611 = vld [vmem:[%s5 + $0x4] sm:$0xf]
        %v1612 = vld [vmem:[%s5 + $0x8] sm:$0xf]
        %v1613 = vld [vmem:[%s5 + $0xc] sm:$0xf]
        %v1614 = vld [vmem:[%s5 + $0x10] sm:$0xf]
        %v1615 = vld [vmem:[%s5 + $0x14] sm:$0xf]
        %v1616 = vld [vmem:[%s5 + $0x18] sm:$0xf]
        %v1617 = vld [vmem:[%s5 + $0x1c] sm:$0xf]
        %v1618 = vld [vmem:[%s5 + $0x20] sm:$0xf]
        %v1619 = vld [vmem:[%s5 + $0x24] sm:$0xf]
        %v1620 = vld [vmem:[%s5 + $0x28] sm:$0xf]
        %v1621 = vld [vmem:[%s5 + $0x2c] sm:$0xf]
        %v1622 = vld [vmem:[%s5 + $0x30] sm:$0xf]
        %v1623 = vld [vmem:[%s5 + $0x34] sm:$0xf]
        %v1624 = vld [vmem:[%s5 + $0x38] sm:$0xf]
        %v1625 = vld [vmem:[%s5 + $0x3c] sm:$0xf]
        %v1642 = vunpack.c.l.b16 %v1610
        %v1643 = vunpack.c.l.b16 %v1611
        %v1644 = vunpack.c.l.b16 %v1612
        %v1645 = vunpack.c.l.b16 %v1613
        %v1646 = vunpack.c.l.b16 %v1614
        %v1647 = vunpack.c.l.b16 %v1615
        %v1648 = vunpack.c.l.b16 %v1616
        %v1649 = vunpack.c.l.b16 %v1617
        %v1650 = vunpack.c.l.b16 %v1618
        %v1651 = vunpack.c.l.b16 %v1619
        %v1652 = vunpack.c.l.b16 %v1620
        %v1653 = vunpack.c.l.b16 %v1621
        %v1654 = vunpack.c.l.b16 %v1622
        %v1655 = vunpack.c.l.b16 %v1623
        %v1656 = vunpack.c.l.b16 %v1624
        %v1657 = vunpack.c.l.b16 %v1625
        %v1658 = vpack.c.b16 %v1643, %v1642
        %v1659 = vpack.c.b16 %v1645, %v1644
        %v1660 = vpack.c.b16 %v1647, %v1646
        %v1661 = vpack.c.b16 %v1649, %v1648
        %v1662 = vpack.c.b16 %v1651, %v1650
        %v1663 = vpack.c.b16 %v1653, %v1652
        %v1664 = vpack.c.b16 %v1655, %v1654
        %v1665 = vpack.c.b16 %v1657, %v1656
        %1674 = vmatpush.bf16.msra.mxu0 %v1665
        %1675 = vmatpush.bf16.msra.mxu0 %v1664
        %1676 = vmatpush.bf16.msra.mxu0 %v1663
        %1677 = vmatpush.bf16.msra.mxu0 %v1662
        %1678 = vmatpush.bf16.msra.mxu0 %v1661
        %1679 = vmatpush.bf16.msra.mxu0 %v1660
        %1680 = vmatpush.bf16.msra.mxu0 %v1659
        %1681 = vmatpush.bf16.msra.mxu0 %v1658
        %1682 = vmatmul.bf16.gmra.mxu0 %v1525
        %v1683 = vpop.f32.mrf.mxu0
        %v1684 = vadd.f32 0.0, %v1683
        %v1685 = vpop.f32.mrf.mxu0
        %v1686 = vadd.f32 0.0, %v1685
        %1687 = vmatmul.bf16.gmra.mxu0 %v1526
        %v1688 = vpop.f32.mrf.mxu0
        %v1689 = vadd.f32 0.0, %v1688
        %v1690 = vpop.f32.mrf.mxu0
        %v1691 = vadd.f32 0.0, %v1690
        %1692 = vdwg.mxu0
        %v1693 = vmax.f32 %v1601, %v1684
        %v1694 = vmax.f32 %v1603, %v1686
        %v1695 = vmax.f32 %v1606, %v1689
        %v1696 = vmax.f32 %v1608, %v1691
        %v1697 = vpack.c.bf16 %v1693, %v1693
        %v1698 = vpack.c.bf16 %v1694, %v1694
        %v1699 = vpack.c.bf16 %v1695, %v1695
        %v1700 = vpack.c.bf16 %v1696, %v1696
        %s1701 = smul.u32 %s399, 4
        %s1702 = smul.addr %s1701, 4
        %s1703 = scalar_lea.vmem %s275, %s1702
        %vm1704 = vcmask 519168
        %1705 = vst.msk [vmem:[%s1703] sm:$0xf] %vm1704, %v1697
        %1706 = vst.msk [vmem:[%s1703 + $0x4] sm:$0xf] %vm1704, %v1698
        %1707 = vst.msk [vmem:[%s1703 + $0x8] sm:$0xf] %vm1704, %v1699
        %1708 = vst.msk [vmem:[%s1703 + $0xc] sm:$0xf] %vm1704, %v1700
      $region56: #{convnet_b_forward.8} parent=43 // loop_footer
        %s403 = sadd.s32 1, %s399
      $region57: #{convnet_b_forward.8} parent=43 // loop_footer_branch
        %398 = sbr.rel target = $region53
      $region58: #{convnet_b_forward.8} parent=43 // loop_exit
        _
      %s1709 = smul.u32 16, %s22
      %p1710 = scmp.lt.s32.totalorder %s21, 1
      %s1711 = scalar_select %p1710, %s21, 1
      %p1712 = scmp.lt.s32.totalorder %s1709, 63
      %s1713 = scalar_select %p1712, %s1709, 63
      %s1714 = smul.addr %s1713, 4
      %s1715 = smul.addr %s1711, 256
      %s1716 = sadd.s32 %s1714, %s1715
      %s1717 = smul.addr %s1716, 4
      %s1718 = scalar_lea.vmem %s6, %s1717
      // Predicated region
      $region59: #{convnet_b_forward.8} parent=43 // pred_check
        %p1719 = pneg %p180
      $region60: #{convnet_b_forward.8} parent=43 // pred_check_branch
        %1721 = sbr.rel (%p1719) target = $region62
      $region61: #{convnet_b_forward.8} parent=43 // pred_region
        %s1722 = smul.u32 16, %s22
      $region62: #{convnet_b_forward.8} parent=43 // pred_fallthru
        _
    $region44: #{convnet_b_forward.8} parent=5 // pred_fallthru
      _
    %p1723 = scmp.le.s32.totalorder 2, %s12
    // Predicated region
    $region63: #{convnet_b_forward.8} parent=5 // pred_check
      %p1724 = pneg %p1723
    $region64: #{convnet_b_forward.8} parent=5 // pred_check_branch
      %1726 = sbr.rel (%p1724) target = $region66
    $region65: #{convnet_b_forward.8} parent=5 // pred_region
      %s1727 = ssub.s32 %s12, 2
      // Predicated region
      $region67: #{convnet_b_forward.8} parent=65 // pred_check
        %p1728 = pneg %p186
      $region68: #{convnet_b_forward.8} parent=65 // pred_check_branch
        %1730 = sbr.rel (%p1728) target = $region70
      $region69: #{convnet_b_forward.8} parent=65 // pred_region
        %s1731 = smul.u32 16, %s24
        %p1732 = scmp.lt.s32.totalorder %s23, 1
        %s1733 = scalar_select %p1732, %s23, 1
        %p1734 = scmp.lt.s32.totalorder %s1731, 63
        %s1735 = scalar_select %p1734, %s1731, 63
        %s1736 = smul.addr %s1735, 4
        %s1737 = smul.addr %s1733, 256
        %s1738 = sadd.s32 %s1736, %s1737
        %s1739 = smul.addr %s1738, 4
        %s1740 = scalar_lea.vmem %s6, %s1739
      $region70: #{convnet_b_forward.8} parent=65 // pred_fallthru
        _
    $region66: #{convnet_b_forward.8} parent=5 // pred_fallthru
      _
  $region6: #{convnet_b_forward.8} parent=0 // loop_footer
    %s16 = sadd.s32 1, %s12
  $region7: #{convnet_b_forward.8} parent=0 // loop_footer_branch
    %11 = sbr.rel target = $region3
  $region8: #{convnet_b_forward.8} parent=0 // loop_exit
    _

// kernel: convnet_b_forward.9
$region0: #{convnet_b_forward.9}
  #allocation0 [shape = 'u32[]', space=smem, size = 0x4, offset = 0x4, fixed_abs, tag = 'smem constant byte address 0x4 - core index']
  #allocation1 [shape = 'u32[72,128]{1,0:T(1,128)}', space=vmem, size = 0x9000, scoped, tag = 'internal scratch']
  #allocation2 [shape = 'f32[2,10]{1,0:T(2,128)}', space=vmem, size = 0x400, scoped, tag = 'scratch operand']
  %s0 = inlined_call_operand.vmem [shape: bf16[2,131072], index: 0, kind: input, shape index: {}]
  %s1 = inlined_call_operand.vmem [shape: bf16[10,131072], index: 1, kind: input, shape index: {}]
  %s2 = inlined_call_operand.vmem [shape: f32[1,10], index: 2, kind: input, shape index: {}]
  %s3 = inlined_call_operand.hbm [shape: f32[2,10], index: 3, kind: output, shape index: {}]
  %s4 = sld [smem:[#allocation0]]
  $region76: #{convnet_b_forward.9} parent=0
    _
  %s6 = ssub.s32 1, %s4
  %s7 = scalar_select 0, %s6, %s4
  $region1: #{convnet_b_forward.9} parent=0
    #allocation3 [shape = 'u8[524288]{0}', space=vmem, size = 0x80000, scoped, tag = 'input window, operand 1']
    #allocation4 [shape = 'u8[1024]{0}', space=vmem, size = 0x400, scoped, tag = 'output window, operand 0, single buffered']
    #allocation5 [shape = 's32[2]{0}', space=sflag, size = 0x8, scoped, tag = 'scoped memory for convnet_b_forward.9']
    %8 = vsyncpa [#allocation5], 0
    loop: start=0, step=1, limit=18
    $region2: #{convnet_b_forward.9} parent=1 // loop_pre_header
      _
    $region3: #{convnet_b_forward.9} parent=1 // loop_header
      %s10 = sphi 0, %s14
      %p11 = scmp.ge.s32.totalorder %s10, 18
      %s20 = sphi 0, %s22
      %s23 = sphi 0, %s20
      %s24 = sphi 0, %s23
      %s40 = sphi 0, %s24
      %s46 = sphi 0, %s48
      %s49 = sphi 0, %s46
      %s50 = sphi 0, %s49
      %s66 = sphi 0, %s50
      %s70 = sphi 0, %s70
      %s72 = sphi 0, %s70
      %s73 = sphi 0, %s72
      %s87 = sphi 0, %s73
      %s91 = sphi 0, %s91
      %s93 = sphi 0, %s91
      %s94 = sphi 0, %s93
      %s108 = sphi 0, %s94
    $region4: #{convnet_b_forward.9} parent=1 // loop_header_branch
      %13 = sbr.rel (%p11) target = $region8
    $region5: #{convnet_b_forward.9} parent=1 // loop_body
      %s15 = ssub.s32 %s10, 1
      %s16 = ssub.s32 %s10, 2
      %s17 = sadd.s32 %s10, 1
      %s18 = ssub.s32 %s10, %s17
      %p19 = scmp.eq.s32.totalorder %s18, 0
      %s21 = sadd.s32 %s20, 1
      %s22 = scalar_select %p19, %s20, %s21
      %p25 = pneg %p19
      %p26 = scmp.eq.s32.totalorder %s10, 15
      %p27 = por %p25, %p26
      %p28 = scmp.ne.s32.totalorder %s20, %s23
      %p29 = scmp.eq.s32.totalorder %s10, 0
      %p30 = por %p28, %p29
      %p31 = scmp.ne.s32.totalorder %s20, %s23
      %p32 = scmp.eq.s32.totalorder %s15, 15
      %p33 = por %p31, %p32
      %p34 = scmp.ne.s32.totalorder %s23, %s24
      %p35 = scmp.eq.s32.totalorder %s15, 0
      %p36 = por %p34, %p35
      %p37 = scmp.ne.s32.totalorder %s23, %s24
      %p38 = scmp.eq.s32.totalorder %s16, 15
      %p39 = por %p37, %p38
      %p41 = scmp.ne.s32.totalorder %s24, %s40
      %p42 = scmp.eq.s32.totalorder %s16, 0
      %p43 = por %p41, %p42
      %s44 = ssub.s32 %s10, %s17
      %p45 = scmp.eq.s32.totalorder %s44, 0
      %s47 = sadd.s32 %s46, 1
      %s48 = scalar_select %p45, %s46, %s47
      %p51 = pneg %p45
      %p52 = scmp.eq.s32.totalorder %s10, 15
      %p53 = por %p51, %p52
      %p54 = scmp.ne.s32.totalorder %s46, %s49
      %p55 = scmp.eq.s32.totalorder %s10, 0
      %p56 = por %p54, %p55
      %p57 = scmp.ne.s32.totalorder %s46, %s49
      %p58 = scmp.eq.s32.totalorder %s15, 15
      %p59 = por %p57, %p58
      %p60 = scmp.ne.s32.totalorder %s49, %s50
      %p61 = scmp.eq.s32.totalorder %s15, 0
      %p62 = por %p60, %p61
      %p63 = scmp.ne.s32.totalorder %s49, %s50
      %p64 = scmp.eq.s32.totalorder %s16, 15
      %p65 = por %p63, %p64
      %p67 = scmp.ne.s32.totalorder %s50, %s66
      %p68 = scmp.eq.s32.totalorder %s16, 0
      %p69 = por %p67, %p68
      %s71 = sadd.s32 %s70, 1
      %p74 = scmp.eq.s32.totalorder %s10, 15
      %p75 = scmp.ne.s32.totalorder %s70, %s72
      %p76 = scmp.eq.s32.totalorder %s10, 0
      %p77 = por %p75, %p76
      %p78 = scmp.ne.s32.totalorder %s70, %s72
      %p79 = scmp.eq.s32.totalorder %s15, 15
      %p80 = por %p78, %p79
      %p81 = scmp.ne.s32.totalorder %s72, %s73
      %p82 = scmp.eq.s32.totalorder %s15, 0
      %p83 = por %p81, %p82
      %p84 = scmp.ne.s32.totalorder %s72, %s73
      %p85 = scmp.eq.s32.totalorder %s16, 15
      %p86 = por %p84, %p85
      %p88 = scmp.ne.s32.totalorder %s73, %s87
      %p89 = scmp.eq.s32.totalorder %s16, 0
      %p90 = por %p88, %p89
      %s92 = sadd.s32 %s91, 1
      %p95 = scmp.eq.s32.totalorder %s10, 15
      %p96 = scmp.ne.s32.totalorder %s91, %s93
      %p97 = scmp.eq.s32.totalorder %s10, 0
      %p98 = por %p96, %p97
      %p99 = scmp.ne.s32.totalorder %s91, %s93
      %p100 = scmp.eq.s32.totalorder %s15, 15
      %p101 = por %p99, %p100
      %p102 = scmp.ne.s32.totalorder %s93, %s94
      %p103 = scmp.eq.s32.totalorder %s15, 0
      %p104 = por %p102, %p103
      %p105 = scmp.ne.s32.totalorder %s93, %s94
      %p106 = scmp.eq.s32.totalorder %s16, 15
      %p107 = por %p105, %p106
      %p109 = scmp.ne.s32.totalorder %s94, %s108
      %p110 = scmp.eq.s32.totalorder %s16, 0
      %p111 = por %p109, %p110
      %p112 = scmp.le.s32.totalorder 1, %s10
      %p113 = scmp.lt.s32.totalorder %s10, 17
      %p114 = pnand %p112, %p113
      %p115 = pneg %p114
      // Predicated region
      $region9: #{convnet_b_forward.9} parent=5 // pred_check
        _
      $region10: #{convnet_b_forward.9} parent=5 // pred_check_branch
        %117 = sbr.rel (%p114) target = $region12
      $region11: #{convnet_b_forward.9} parent=5 // pred_region
        %s118 = ssub.s32 %s10, 1
        // Predicated region
        $region13: #{convnet_b_forward.9} parent=11 // pred_check
          %p119 = pneg %p83
        $region14: #{convnet_b_forward.9} parent=11 // pred_check_branch
          %121 = sbr.rel (%p119) target = $region16
        $region15: #{convnet_b_forward.9} parent=11 // pred_region
          _
        $region16: #{convnet_b_forward.9} parent=11 // pred_fallthru
          _
      $region12: #{convnet_b_forward.9} parent=5 // pred_fallthru
        _
      %p122 = scmp.lt.s32.totalorder %s10, 16
      // Predicated region
      $region17: #{convnet_b_forward.9} parent=5 // pred_check
        %p123 = pneg %p122
      $region18: #{convnet_b_forward.9} parent=5 // pred_check_branch
        %125 = sbr.rel (%p123) target = $region20
      $region19: #{convnet_b_forward.9} parent=5 // pred_region
        // Predicated region
        $region21: #{convnet_b_forward.9} parent=19 // pred_check
          %p126 = pneg %p30
        $region22: #{convnet_b_forward.9} parent=19 // pred_check_branch
          %128 = sbr.rel (%p126) target = $region24
        $region23: #{convnet_b_forward.9} parent=19 // pred_region
          %s129 = smul.u32 64, %s10
          %p130 = scmp.lt.s32.totalorder %s129, 1023
          %s131 = scalar_select %p130, %s129, 1023
          %s132 = scalar_lea.vmem %s0, %s131
          %s133 = smul.u32 64, %s10
        $region24: #{convnet_b_forward.9} parent=19 // pred_fallthru
          _
        // Predicated region
        $region25: #{convnet_b_forward.9} parent=19 // pred_check
          %p134 = pneg %p56
        $region26: #{convnet_b_forward.9} parent=19 // pred_check_branch
          %136 = sbr.rel (%p134) target = $region28
        $region27: #{convnet_b_forward.9} parent=19 // pred_region
          %s137 = sand.u32 %s46, 1
          %s138 = sand.u32 %s46, 1
          %s139 = smul.addr %s138, 512
          %s140 = scalar_lea.vmem [#allocation3], %s139
          %s141 = smul.u32 64, %s10
          %s142 = smul.addr %s141, 4
          %s143 = scalar_lea.vmem %s1, %s142
          // Predicated region
          $region29: #{convnet_b_forward.9} parent=27 // pred_check
            _
          $region30: #{convnet_b_forward.9} parent=27 // pred_check_branch
            %145 = sbr.rel (0) target = $region32
          $region31: #{convnet_b_forward.9} parent=27 // pred_region
            // Predicated region
            $region33: #{convnet_b_forward.9} parent=31 // pred_check
              _
            $region34: #{convnet_b_forward.9} parent=31 // pred_check_branch
              %147 = sbr.rel (0) target = $region36
            $region35: #{convnet_b_forward.9} parent=31 // pred_region
              loop: start=0, step=1, limit=1
              $region37: #{convnet_b_forward.9} parent=35 // loop_pre_header
                _
              $region38: #{convnet_b_forward.9} parent=35 // loop_header
                %s149 = sphi 0, %s153
                %p150 = scmp.ge.s32.totalorder %s149, 1
                %s154 = sphi %s143, %s143
                %s155 = sphi %s140, %s140
              $region39: #{convnet_b_forward.9} parent=35 // loop_header_branch
                %152 = sbr.rel (%p150) target = $region43
              $region40: #{convnet_b_forward.9} parent=35 // loop_body
                %v156 = vld [vmem:[%s154] sm:$0xff]
                %157 = vst [vmem:[%s155] sm:$0xff] %v156
                %v158 = vld [vmem:[%s154 + $0x8] sm:$0xff]
                %159 = vst [vmem:[%s155 + $0x8] sm:$0xff] %v158
                %v160 = vld [vmem:[%s154 + $0x10] sm:$0xff]
                %161 = vst [vmem:[%s155 + $0x10] sm:$0xff] %v160
                %v162 = vld [vmem:[%s154 + $0x18] sm:$0xff]
                %163 = vst [vmem:[%s155 + $0x18] sm:$0xff] %v162
                %v164 = vld [vmem:[%s154 + $0x20] sm:$0xff]
                %165 = vst [vmem:[%s155 + $0x20] sm:$0xff] %v164
                %v166 = vld [vmem:[%s154 + $0x28] sm:$0xff]
                %167 = vst [vmem:[%s155 + $0x28] sm:$0xff] %v166
                %v168 = vld [vmem:[%s154 + $0x30] sm:$0xff]
                %169 = vst [vmem:[%s155 + $0x30] sm:$0xff] %v168
                %v170 = vld [vmem:[%s154 + $0x38] sm:$0xff]
                %171 = vst [vmem:[%s155 + $0x38] sm:$0xff] %v170
                %v172 = vld [vmem:[%s154 + $0x40] sm:$0xff]
                %173 = vst [vmem:[%s155 + $0x40] sm:$0xff] %v172
                %v174 = vld [vmem:[%s154 + $0x48] sm:$0xff]
                %175 = vst [vmem:[%s155 + $0x48] sm:$0xff] %v174
                %v176 = vld [vmem:[%s154 + $0x50] sm:$0xff]
                %177 = vst [vmem:[%s155 + $0x50] sm:$0xff] %v176
                %v178 = vld [vmem:[%s154 + $0x58] sm:$0xff]
                %179 = vst [vmem:[%s155 + $0x58] sm:$0xff] %v178
                %v180 = vld [vmem:[%s154 + $0x60] sm:$0xff]
                %181 = vst [vmem:[%s155 + $0x60] sm:$0xff] %v180
                %v182 = vld [vmem:[%s154 + $0x68] sm:$0xff]
                %183 = vst [vmem:[%s155 + $0x68] sm:$0xff] %v182
                %v184 = vld [vmem:[%s154 + $0x70] sm:$0xff]
                %185 = vst [vmem:[%s155 + $0x70] sm:$0xff] %v184
                %v186 = vld [vmem:[%s154 + $0x78] sm:$0xff]
                %187 = vst [vmem:[%s155 + $0x78] sm:$0xff] %v186
                %v188 = vld [vmem:[%s154 + $0x80] sm:$0xff]
                %189 = vst [vmem:[%s155 + $0x80] sm:$0xff] %v188
                %v190 = vld [vmem:[%s154 + $0x88] sm:$0xff]
                %191 = vst [vmem:[%s155 + $0x88] sm:$0xff] %v190
                %v192 = vld [vmem:[%s154 + $0x90] sm:$0xff]
                %193 = vst [vmem:[%s155 + $0x90] sm:$0xff] %v192
                %v194 = vld [vmem:[%s154 + $0x98] sm:$0xff]
                %195 = vst [vmem:[%s155 + $0x98] sm:$0xff] %v194
                %v196 = vld [vmem:[%s154 + $0xa0] sm:$0xff]
                %197 = vst [vmem:[%s155 + $0xa0] sm:$0xff] %v196
                %v198 = vld [vmem:[%s154 + $0xa8] sm:$0xff]
                %199 = vst [vmem:[%s155 + $0xa8] sm:$0xff] %v198
                %v200 = vld [vmem:[%s154 + $0xb0] sm:$0xff]
                %201 = vst [vmem:[%s155 + $0xb0] sm:$0xff] %v200
                %v202 = vld [vmem:[%s154 + $0xb8] sm:$0xff]
                %203 = vst [vmem:[%s155 + $0xb8] sm:$0xff] %v202
                %v204 = vld [vmem:[%s154 + $0xc0] sm:$0xff]
                %205 = vst [vmem:[%s155 + $0xc0] sm:$0xff] %v204
                %v206 = vld [vmem:[%s154 + $0xc8] sm:$0xff]
                %207 = vst [vmem:[%s155 + $0xc8] sm:$0xff] %v206
                %v208 = vld [vmem:[%s154 + $0xd0] sm:$0xff]
                %209 = vst [vmem:[%s155 + $0xd0] sm:$0xff] %v208
                %v210 = vld [vmem:[%s154 + $0xd8] sm:$0xff]
                %211 = vst [vmem:[%s155 + $0xd8] sm:$0xff] %v210
                %v212 = vld [vmem:[%s154 + $0xe0] sm:$0xff]
                %213 = vst [vmem:[%s155 + $0xe0] sm:$0xff] %v212
                %v214 = vld [vmem:[%s154 + $0xe8] sm:$0xff]
                %215 = vst [vmem:[%s155 + $0xe8] sm:$0xff] %v214
                %v216 = vld [vmem:[%s154 + $0xf0] sm:$0xff]
                %217 = vst [vmem:[%s155 + $0xf0] sm:$0xff] %v216
                %v218 = vld [vmem:[%s154 + $0xf8] sm:$0xff]
                %219 = vst [vmem:[%s155 + $0xf8] sm:$0xff] %v218
                %v220 = vld [vmem:[%s154 + $0x1000] sm:$0xff]
                %221 = vst [vmem:[%s155 + $0x100] sm:$0xff] %v220
                %v222 = vld [vmem:[%s154 + $0x1008] sm:$0xff]
                %223 = vst [vmem:[%s155 + $0x108] sm:$0xff] %v222
                %v224 = vld [vmem:[%s154 + $0x1010] sm:$0xff]
                %225 = vst [vmem:[%s155 + $0x110] sm:$0xff] %v224
                %v226 = vld [vmem:[%s154 + $0x1018] sm:$0xff]
                %227 = vst [vmem:[%s155 + $0x118] sm:$0xff] %v226
                %v228 = vld [vmem:[%s154 + $0x1020] sm:$0xff]
                %229 = vst [vmem:[%s155 + $0x120] sm:$0xff] %v228
                %v230 = vld [vmem:[%s154 + $0x1028] sm:$0xff]
                %231 = vst [vmem:[%s155 + $0x128] sm:$0xff] %v230
                %v232 = vld [vmem:[%s154 + $0x1030] sm:$0xff]
                %233 = vst [vmem:[%s155 + $0x130] sm:$0xff] %v232
                %v234 = vld [vmem:[%s154 + $0x1038] sm:$0xff]
                %235 = vst [vmem:[%s155 + $0x138] sm:$0xff] %v234
                %v236 = vld [vmem:[%s154 + $0x1040] sm:$0xff]
                %237 = vst [vmem:[%s155 + $0x140] sm:$0xff] %v236
                %v238 = vld [vmem:[%s154 + $0x1048] sm:$0xff]
                %239 = vst [vmem:[%s155 + $0x148] sm:$0xff] %v238
                %v240 = vld [vmem:[%s154 + $0x1050] sm:$0xff]
                %241 = vst [vmem:[%s155 + $0x150] sm:$0xff] %v240
                %v242 = vld [vmem:[%s154 + $0x1058] sm:$0xff]
                %243 = vst [vmem:[%s155 + $0x158] sm:$0xff] %v242
                %v244 = vld [vmem:[%s154 + $0x1060] sm:$0xff]
                %245 = vst [vmem:[%s155 + $0x160] sm:$0xff] %v244
                %v246 = vld [vmem:[%s154 + $0x1068] sm:$0xff]
                %247 = vst [vmem:[%s155 + $0x168] sm:$0xff] %v246
                %v248 = vld [vmem:[%s154 + $0x1070] sm:$0xff]
                %249 = vst [vmem:[%s155 + $0x170] sm:$0xff] %v248
                %v250 = vld [vmem:[%s154 + $0x1078] sm:$0xff]
                %251 = vst [vmem:[%s155 + $0x178] sm:$0xff] %v250
                %v252 = vld [vmem:[%s154 + $0x1080] sm:$0xff]
                %253 = vst [vmem:[%s155 + $0x180] sm:$0xff] %v252
                %v254 = vld [vmem:[%s154 + $0x1088] sm:$0xff]
                %255 = vst [vmem:[%s155 + $0x188] sm:$0xff] %v254
                %v256 = vld [vmem:[%s154 + $0x1090] sm:$0xff]
                %257 = vst [vmem:[%s155 + $0x190] sm:$0xff] %v256
                %v258 = vld [vmem:[%s154 + $0x1098] sm:$0xff]
                %259 = vst [vmem:[%s155 + $0x198] sm:$0xff] %v258
                %v260 = vld [vmem:[%s154 + $0x10a0] sm:$0xff]
                %261 = vst [vmem:[%s155 + $0x1a0] sm:$0xff] %v260
                %v262 = vld [vmem:[%s154 + $0x10a8] sm:$0xff]
                %263 = vst [vmem:[%s155 + $0x1a8] sm:$0xff] %v262
                %v264 = vld [vmem:[%s154 + $0x10b0] sm:$0xff]
                %265 = vst [vmem:[%s155 + $0x1b0] sm:$0xff] %v264
                %v266 = vld [vmem:[%s154 + $0x10b8] sm:$0xff]
                %267 = vst [vmem:[%s155 + $0x1b8] sm:$0xff] %v266
                %v268 = vld [vmem:[%s154 + $0x10c0] sm:$0xff]
                %269 = vst [vmem:[%s155 + $0x1c0] sm:$0xff] %v268
                %v270 = vld [vmem:[%s154 + $0x10c8] sm:$0xff]
                %271 = vst [vmem:[%s155 + $0x1c8] sm:$0xff] %v270
                %v272 = vld [vmem:[%s154 + $0x10d0] sm:$0xff]
                %273 = vst [vmem:[%s155 + $0x1d0] sm:$0xff] %v272
                %v274 = vld [vmem:[%s154 + $0x10d8] sm:$0xff]
                %275 = vst [vmem:[%s155 + $0x1d8] sm:$0xff] %v274
                %v276 = vld [vmem:[%s154 + $0x10e0] sm:$0xff]
                %277 = vst [vmem:[%s155 + $0x1e0] sm:$0xff] %v276
                %v278 = vld [vmem:[%s154 + $0x10e8] sm:$0xff]
                %279 = vst [vmem:[%s155 + $0x1e8] sm:$0xff] %v278
                %v280 = vld [vmem:[%s154 + $0x10f0] sm:$0xff]
                %281 = vst [vmem:[%s155 + $0x1f0] sm:$0xff] %v280
                %v282 = vld [vmem:[%s154 + $0x10f8] sm:$0xff]
                %283 = vst [vmem:[%s155 + $0x1f8] sm:$0xff] %v282
              $region41: #{convnet_b_forward.9} parent=35 // loop_footer
                %s153 = sadd.s32 1, %s149
              $region42: #{convnet_b_forward.9} parent=35 // loop_footer_branch
                %148 = sbr.rel target = $region38
              $region43: #{convnet_b_forward.9} parent=35 // loop_exit
                _
            $region36: #{convnet_b_forward.9} parent=31 // pred_fallthru
              _
            // Predicated region
            $region44: #{convnet_b_forward.9} parent=31 // pred_check
              _
            $region45: #{convnet_b_forward.9} parent=31 // pred_check_branch
              %285 = sbr.rel target = $region47
            $region46: #{convnet_b_forward.9} parent=31 // pred_region
              _
            $region47: #{convnet_b_forward.9} parent=31 // pred_fallthru
              _
          $region32: #{convnet_b_forward.9} parent=27 // pred_fallthru
            _
          %286 = vnop
        $region28: #{convnet_b_forward.9} parent=19 // pred_fallthru
          _
      $region20: #{convnet_b_forward.9} parent=5 // pred_fallthru
        _
      %p287 = scmp.le.s32.totalorder 1, %s10
      %p288 = scmp.lt.s32.totalorder %s10, 17
      %p289 = pnand %p287, %p288
      %p290 = pneg %p289
      // Predicated region
      $region48: #{convnet_b_forward.9} parent=5 // pred_check
        _
      $region49: #{convnet_b_forward.9} parent=5 // pred_check_branch
        %292 = sbr.rel (%p289) target = $region51
      $region50: #{convnet_b_forward.9} parent=5 // pred_region
        %s293 = ssub.s32 %s10, 1
        %s294 = sand.u32 %s49, 1
        %s295 = sand.u32 %s49, 1
        %s296 = smul.addr %s295, 512
        %s297 = scalar_lea.vmem [#allocation3], %s296
        // Predicated region
        $region52: #{convnet_b_forward.9} parent=50 // pred_check
          %p298 = pneg %p62
        $region53: #{convnet_b_forward.9} parent=50 // pred_check_branch
          %300 = sbr.rel (%p298) target = $region55
        $region54: #{convnet_b_forward.9} parent=50 // pred_region
          _
        $region55: #{convnet_b_forward.9} parent=50 // pred_fallthru
          _
        %s301 = smul.u32 64, %s15
        %p302 = scmp.lt.s32.totalorder %s301, 1023
        %s303 = scalar_select %p302, %s301, 1023
        %s304 = scalar_lea.vmem %s0, %s303
        %p305 = pneg %p36
        %p306 = pneg %p33
        %s307 = sand.u32 %s49, 1
        %s308 = sand.u32 %s49, 1
        %s309 = smul.addr %s308, 512
        %s310 = scalar_lea.vmem [#allocation3], %s309
        %p311 = pneg %p62
        %p312 = pneg %p59
        %p313 = pneg %p83
        %p314 = pneg %p80
        %p315 = pneg %p104
        %p316 = pneg %p101
        %s317 = smul.u32 64, %s15
        %p318 = scmp.lt.s32.totalorder %s317, 1023
        %s319 = scalar_select %p318, %s317, 1023
        %s320 = scalar_lea.vmem %s0, %s319
        %s321 = smul.u32 64, %s15
        %s322 = smul.u32 64, %s15
        %p324 = scmp.eq.s32.totalorder %s15, 0
        // Predicated region
        $region56: #{convnet_b_forward.9} parent=50 // pred_check
          %p325 = pneg %p324
        $region57: #{convnet_b_forward.9} parent=50 // pred_check_branch
          %327 = sbr.rel (%p325) target = $region59
        $region58: #{convnet_b_forward.9} parent=50 // pred_region
          %vm328 = vcmask 74752
          %329 = vst.msk [vmem:[#allocation2] sm:$0x3] %vm328, 0.0
        $region59: #{convnet_b_forward.9} parent=50 // pred_fallthru
          _
        %v330 = vld [vmem:[#allocation2] sm:$0x3]
        %v331 = vld [vmem:[%s320] sm:$0xff]
        %v332 = vld [vmem:[%s320 + $0x8] sm:$0xff]
        %v333 = vld [vmem:[%s320 + $0x10] sm:$0xff]
        %v334 = vld [vmem:[%s320 + $0x18] sm:$0xff]
        %v335 = vld [vmem:[%s320 + $0x20] sm:$0xff]
        %v336 = vld [vmem:[%s320 + $0x28] sm:$0xff]
        %v337 = vld [vmem:[%s320 + $0x30] sm:$0xff]
        %v338 = vld [vmem:[%s320 + $0x38] sm:$0xff]
        %v339 = vld [vmem:[%s297] sm:$0xff]
        %v340 = vld [vmem:[%s297 + $0x8] sm:$0xff]
        %v341 = vld [vmem:[%s297 + $0x10] sm:$0xff]
        %v342 = vld [vmem:[%s297 + $0x18] sm:$0xff]
        %v343 = vld [vmem:[%s297 + $0x20] sm:$0xff]
        %v344 = vld [vmem:[%s297 + $0x28] sm:$0xff]
        %v345 = vld [vmem:[%s297 + $0x30] sm:$0xff]
        %v346 = vld [vmem:[%s297 + $0x38] sm:$0xff]
        %v347 = vld [vmem:[%s297 + $0x40] sm:$0xff]
        %v348 = vld [vmem:[%s297 + $0x48] sm:$0xff]
        %v349 = vld [vmem:[%s297 + $0x50] sm:$0xff]
        %v350 = vld [vmem:[%s297 + $0x58] sm:$0xff]
        %v351 = vld [vmem:[%s297 + $0x60] sm:$0xff]
        %v352 = vld [vmem:[%s297 + $0x68] sm:$0xff]
        %v353 = vld [vmem:[%s297 + $0x70] sm:$0xff]
        %v354 = vld [vmem:[%s297 + $0x78] sm:$0xff]
        %v355 = vld [vmem:[%s297 + $0x80] sm:$0xff]
        %v356 = vld [vmem:[%s297 + $0x88] sm:$0xff]
        %v357 = vld [vmem:[%s297 + $0x90] sm:$0xff]
        %v358 = vld [vmem:[%s297 + $0x98] sm:$0xff]
        %v359 = vld [vmem:[%s297 + $0xa0] sm:$0xff]
        %v360 = vld [vmem:[%s297 + $0xa8] sm:$0xff]
        %v361 = vld [vmem:[%s297 + $0xb0] sm:$0xff]
        %v362 = vld [vmem:[%s297 + $0xb8] sm:$0xff]
        %v363 = vld [vmem:[%s297 + $0xc0] sm:$0xff]
        %v364 = vld [vmem:[%s297 + $0xc8] sm:$0xff]
        %v365 = vld [vmem:[%s297 + $0xd0] sm:$0xff]
        %v366 = vld [vmem:[%s297 + $0xd8] sm:$0xff]
        %v367 = vld [vmem:[%s297 + $0xe0] sm:$0xff]
        %v368 = vld [vmem:[%s297 + $0xe8] sm:$0xff]
        %v369 = vld [vmem:[%s297 + $0xf0] sm:$0xff]
        %v370 = vld [vmem:[%s297 + $0xf8] sm:$0xff]
        %v371 = vld [vmem:[%s297 + $0x100] sm:$0x11]
        %v372 = vld [vmem:[%s297 + $0x108] sm:$0x11]
        %v373 = vld [vmem:[%s297 + $0x110] sm:$0x11]
        %v374 = vld [vmem:[%s297 + $0x118] sm:$0x11]
        %v375 = vld [vmem:[%s297 + $0x120] sm:$0x11]
        %v376 = vld [vmem:[%s297 + $0x128] sm:$0x11]
        %v377 = vld [vmem:[%s297 + $0x130] sm:$0x11]
        %v378 = vld [vmem:[%s297 + $0x138] sm:$0x11]
        %v379 = vld [vmem:[%s297 + $0x140] sm:$0x11]
        %v380 = vld [vmem:[%s297 + $0x148] sm:$0x11]
        %v381 = vld [vmem:[%s297 + $0x150] sm:$0x11]
        %v382 = vld [vmem:[%s297 + $0x158] sm:$0x11]
        %v383 = vld [vmem:[%s297 + $0x160] sm:$0x11]
        %v384 = vld [vmem:[%s297 + $0x168] sm:$0x11]
        %v385 = vld [vmem:[%s297 + $0x170] sm:$0x11]
        %v386 = vld [vmem:[%s297 + $0x178] sm:$0x11]
        %v387 = vld [vmem:[%s297 + $0x180] sm:$0x11]
        %v388 = vld [vmem:[%s297 + $0x188] sm:$0x11]
        %v389 = vld [vmem:[%s297 + $0x190] sm:$0x11]
        %v390 = vld [vmem:[%s297 + $0x198] sm:$0x11]
        %v391 = vld [vmem:[%s297 + $0x1a0] sm:$0x11]
        %v392 = vld [vmem:[%s297 + $0x1a8] sm:$0x11]
        %v393 = vld [vmem:[%s297 + $0x1b0] sm:$0x11]
        %v394 = vld [vmem:[%s297 + $0x1b8] sm:$0x11]
        %v395 = vld [vmem:[%s297 + $0x1c0] sm:$0x11]
        %v396 = vld [vmem:[%s297 + $0x1c8] sm:$0x11]
        %v397 = vld [vmem:[%s297 + $0x1d0] sm:$0x11]
        %v398 = vld [vmem:[%s297 + $0x1d8] sm:$0x11]
        %v399 = vld [vmem:[%s297 + $0x1e0] sm:$0x11]
        %v400 = vld [vmem:[%s297 + $0x1e8] sm:$0x11]
        %v401 = vld [vmem:[%s297 + $0x1f0] sm:$0x11]
        %v402 = vld [vmem:[%s297 + $0x1f8] sm:$0x11]
        %404 = vst [vmem:[#allocation1] ss:$9 sm:$0xff] %v331
        %v405 = vld [vmem:[#allocation1] sm:$0xff]
        %v406 = vld [vmem:[#allocation1 + $0x9] sm:$0xff]
        %v407 = vld [vmem:[#allocation1 + $0x12] sm:$0xff]
        %v408 = vld [vmem:[#allocation1 + $0x1b] sm:$0xff]
        %v409 = vld [vmem:[#allocation1 + $0x24] sm:$0xff]
        %v410 = vld [vmem:[#allocation1 + $0x2d] sm:$0xff]
        %v411 = vld [vmem:[#allocation1 + $0x36] sm:$0xff]
        %v412 = vld [vmem:[#allocation1 + $0x3f] sm:$0xff]
        %414 = vst [vmem:[#allocation1] ss:$9 sm:$0xff] %v332
        %v415 = vld [vmem:[#allocation1] sm:$0xff]
        %v416 = vld [vmem:[#allocation1 + $0x9] sm:$0xff]
        %v417 = vld [vmem:[#allocation1 + $0x12] sm:$0xff]
        %v418 = vld [vmem:[#allocation1 + $0x1b] sm:$0xff]
        %v419 = vld [vmem:[#allocation1 + $0x24] sm:$0xff]
        %v420 = vld [vmem:[#allocation1 + $0x2d] sm:$0xff]
        %v421 = vld [vmem:[#allocation1 + $0x36] sm:$0xff]
        %v422 = vld [vmem:[#allocation1 + $0x3f] sm:$0xff]
        %424 = vst [vmem:[#allocation1] ss:$9 sm:$0xff] %v333
        %v425 = vld [vmem:[#allocation1] sm:$0xff]
        %v426 = vld [vmem:[#allocation1 + $0x9] sm:$0xff]
        %v427 = vld [vmem:[#allocation1 + $0x12] sm:$0xff]
        %v428 = vld [vmem:[#allocation1 + $0x1b] sm:$0xff]
        %v429 = vld [vmem:[#allocation1 + $0x24] sm:$0xff]
        %v430 = vld [vmem:[#allocation1 + $0x2d] sm:$0xff]
        %v431 = vld [vmem:[#allocation1 + $0x36] sm:$0xff]
        %v432 = vld [vmem:[#allocation1 + $0x3f] sm:$0xff]
        %434 = vst [vmem:[#allocation1] ss:$9 sm:$0xff] %v334
        %v435 = vld [vmem:[#allocation1] sm:$0xff]
        %v436 = vld [vmem:[#allocation1 + $0x9] sm:$0xff]
        %v437 = vld [vmem:[#allocation1 + $0x12] sm:$0xff]
        %v438 = vld [vmem:[#allocation1 + $0x1b] sm:$0xff]
        %v439 = vld [vmem:[#allocation1 + $0x24] sm:$0xff]
        %v440 = vld [vmem:[#allocation1 + $0x2d] sm:$0xff]
        %v441 = vld [vmem:[#allocation1 + $0x36] sm:$0xff]
        %v442 = vld [vmem:[#allocation1 + $0x3f] sm:$0xff]
        %444 = vst [vmem:[#allocation1] ss:$9 sm:$0xff] %v335
        %v445 = vld [vmem:[#allocation1] sm:$0xff]
        %v446 = vld [vmem:[#allocation1 + $0x9] sm:$0xff]
        %v447 = vld [vmem:[#allocation1 + $0x12] sm:$0xff]
        %v448 = vld [vmem:[#allocation1 + $0x1b] sm:$0xff]
        %v449 = vld [vmem:[#allocation1 + $0x24] sm:$0xff]
        %v450 = vld [vmem:[#allocation1 + $0x2d] sm:$0xff]
        %v451 = vld [vmem:[#allocation1 + $0x36] sm:$0xff]
        %v452 = vld [vmem:[#allocation1 + $0x3f] sm:$0xff]
        %454 = vst [vmem:[#allocation1] ss:$9 sm:$0xff] %v336
        %v455 = vld [vmem:[#allocation1] sm:$0xff]
        %v456 = vld [vmem:[#allocation1 + $0x9] sm:$0xff]
        %v457 = vld [vmem:[#allocation1 + $0x12] sm:$0xff]
        %v458 = vld [vmem:[#allocation1 + $0x1b] sm:$0xff]
        %v459 = vld [vmem:[#allocation1 + $0x24] sm:$0xff]
        %v460 = vld [vmem:[#allocation1 + $0x2d] sm:$0xff]
        %v461 = vld [vmem:[#allocation1 + $0x36] sm:$0xff]
        %v462 = vld [vmem:[#allocation1 + $0x3f] sm:$0xff]
        %464 = vst [vmem:[#allocation1] ss:$9 sm:$0xff] %v337
        %v465 = vld [vmem:[#allocation1] sm:$0xff]
        %v466 = vld [vmem:[#allocation1 + $0x9] sm:$0xff]
        %v467 = vld [vmem:[#allocation1 + $0x12] sm:$0xff]
        %v468 = vld [vmem:[#allocation1 + $0x1b] sm:$0xff]
        %v469 = vld [vmem:[#allocation1 + $0x24] sm:$0xff]
        %v470 = vld [vmem:[#allocation1 + $0x2d] sm:$0xff]
        %v471 = vld [vmem:[#allocation1 + $0x36] sm:$0xff]
        %v472 = vld [vmem:[#allocation1 + $0x3f] sm:$0xff]
        %474 = vst [vmem:[#allocation1] ss:$9 sm:$0xff] %v338
        %v475 = vld [vmem:[#allocation1] sm:$0xff]
        %v476 = vld [vmem:[#allocation1 + $0x9] sm:$0xff]
        %v477 = vld [vmem:[#allocation1 + $0x12] sm:$0xff]
        %v478 = vld [vmem:[#allocation1 + $0x1b] sm:$0xff]
        %v479 = vld [vmem:[#allocation1 + $0x24] sm:$0xff]
        %v480 = vld [vmem:[#allocation1 + $0x2d] sm:$0xff]
        %v481 = vld [vmem:[#allocation1 + $0x36] sm:$0xff]
        %v482 = vld [vmem:[#allocation1 + $0x3f] sm:$0xff]
        %v611 = vunpack.c.l.b16 %v339
        %v612 = vunpack.c.h.b16 %v339
        %v613 = vunpack.c.l.b16 %v340
        %v614 = vunpack.c.h.b16 %v340
        %v615 = vunpack.c.l.b16 %v341
        %v616 = vunpack.c.h.b16 %v341
        %v617 = vunpack.c.l.b16 %v342
        %v618 = vunpack.c.h.b16 %v342
        %v619 = vunpack.c.l.b16 %v343
        %v620 = vunpack.c.h.b16 %v343
        %v621 = vunpack.c.l.b16 %v344
        %v622 = vunpack.c.h.b16 %v344
        %v623 = vunpack.c.l.b16 %v345
        %v624 = vunpack.c.h.b16 %v345
        %v625 = vunpack.c.l.b16 %v346
        %v626 = vunpack.c.h.b16 %v346
        %v627 = vunpack.c.l.b16 %v347
        %v628 = vunpack.c.h.b16 %v347
        %v629 = vunpack.c.l.b16 %v348
        %v630 = vunpack.c.h.b16 %v348
        %v631 = vunpack.c.l.b16 %v349
        %v632 = vunpack.c.h.b16 %v349
        %v633 = vunpack.c.l.b16 %v350
        %v634 = vunpack.c.h.b16 %v350
        %v635 = vunpack.c.l.b16 %v351
        %v636 = vunpack.c.h.b16 %v351
        %v637 = vunpack.c.l.b16 %v352
        %v638 = vunpack.c.h.b16 %v352
        %v639 = vunpack.c.l.b16 %v353
        %v640 = vunpack.c.h.b16 %v353
        %v641 = vunpack.c.l.b16 %v354
        %v642 = vunpack.c.h.b16 %v354
        %v643 = vunpack.c.l.b16 %v355
        %v644 = vunpack.c.h.b16 %v355
        %v645 = vunpack.c.l.b16 %v356
        %v646 = vunpack.c.h.b16 %v356
        %v647 = vunpack.c.l.b16 %v357
        %v648 = vunpack.c.h.b16 %v357
        %v649 = vunpack.c.l.b16 %v358
        %v650 = vunpack.c.h.b16 %v358
        %v651 = vunpack.c.l.b16 %v359
        %v652 = vunpack.c.h.b16 %v359
        %v653 = vunpack.c.l.b16 %v360
        %v654 = vunpack.c.h.b16 %v360
        %v655 = vunpack.c.l.b16 %v361
        %v656 = vunpack.c.h.b16 %v361
        %v657 = vunpack.c.l.b16 %v362
        %v658 = vunpack.c.h.b16 %v362
        %v659 = vunpack.c.l.b16 %v363
        %v660 = vunpack.c.h.b16 %v363
        %v661 = vunpack.c.l.b16 %v364
        %v662 = vunpack.c.h.b16 %v364
        %v663 = vunpack.c.l.b16 %v365
        %v664 = vunpack.c.h.b16 %v365
        %v665 = vunpack.c.l.b16 %v366
        %v666 = vunpack.c.h.b16 %v366
        %v667 = vunpack.c.l.b16 %v367
        %v668 = vunpack.c.h.b16 %v367
        %v669 = vunpack.c.l.b16 %v368
        %v670 = vunpack.c.h.b16 %v368
        %v671 = vunpack.c.l.b16 %v369
        %v672 = vunpack.c.h.b16 %v369
        %v673 = vunpack.c.l.b16 %v370
        %v674 = vunpack.c.h.b16 %v370
        %v675 = vunpack.c.l.b16 %v371
        %v676 = vunpack.c.h.b16 %v371
        %v677 = vunpack.c.l.b16 %v372
        %v678 = vunpack.c.h.b16 %v372
        %v679 = vunpack.c.l.b16 %v373
        %v680 = vunpack.c.h.b16 %v373
        %v681 = vunpack.c.l.b16 %v374
        %v682 = vunpack.c.h.b16 %v374
        %v683 = vunpack.c.l.b16 %v375
        %v684 = vunpack.c.h.b16 %v375
        %v685 = vunpack.c.l.b16 %v376
        %v686 = vunpack.c.h.b16 %v376
        %v687 = vunpack.c.l.b16 %v377
        %v688 = vunpack.c.h.b16 %v377
        %v689 = vunpack.c.l.b16 %v378
        %v690 = vunpack.c.h.b16 %v378
        %v691 = vunpack.c.l.b16 %v379
        %v692 = vunpack.c.h.b16 %v379
        %v693 = vunpack.c.l.b16 %v380
        %v694 = vunpack.c.h.b16 %v380
        %v695 = vunpack.c.l.b16 %v381
        %v696 = vunpack.c.h.b16 %v381
        %v697 = vunpack.c.l.b16 %v382
        %v698 = vunpack.c.h.b16 %v382
        %v699 = vunpack.c.l.b16 %v383
        %v700 = vunpack.c.h.b16 %v383
        %v701 = vunpack.c.l.b16 %v384
        %v702 = vunpack.c.h.b16 %v384
        %v703 = vunpack.c.l.b16 %v385
        %v704 = vunpack.c.h.b16 %v385
        %v705 = vunpack.c.l.b16 %v386
        %v706 = vunpack.c.h.b16 %v386
        %v707 = vunpack.c.l.b16 %v387
        %v708 = vunpack.c.h.b16 %v387
        %v709 = vunpack.c.l.b16 %v388
        %v710 = vunpack.c.h.b16 %v388
        %v711 = vunpack.c.l.b16 %v389
        %v712 = vunpack.c.h.b16 %v389
        %v713 = vunpack.c.l.b16 %v390
        %v714 = vunpack.c.h.b16 %v390
        %v715 = vunpack.c.l.b16 %v391
        %v716 = vunpack.c.h.b16 %v391
        %v717 = vunpack.c.l.b16 %v392
        %v718 = vunpack.c.h.b16 %v392
        %v719 = vunpack.c.l.b16 %v393
        %v720 = vunpack.c.h.b16 %v393
        %v721 = vunpack.c.l.b16 %v394
        %v722 = vunpack.c.h.b16 %v394
        %v723 = vunpack.c.l.b16 %v395
        %v724 = vunpack.c.h.b16 %v395
        %v725 = vunpack.c.l.b16 %v396
        %v726 = vunpack.c.h.b16 %v396
        %v727 = vunpack.c.l.b16 %v397
        %v728 = vunpack.c.h.b16 %v397
        %v729 = vunpack.c.l.b16 %v398
        %v730 = vunpack.c.h.b16 %v398
        %v731 = vunpack.c.l.b16 %v399
        %v732 = vunpack.c.h.b16 %v399
        %v733 = vunpack.c.l.b16 %v400
        %v734 = vunpack.c.h.b16 %v400
        %v735 = vunpack.c.l.b16 %v401
        %v736 = vunpack.c.h.b16 %v401
        %v737 = vunpack.c.l.b16 %v402
        %v738 = vunpack.c.h.b16 %v402
        %v739 = vpack.c.b16 %v675, %v611
        %v740 = vpack.c.b16 %v676, %v612
        %v741 = vpack.c.b16 %v677, %v613
        %v742 = vpack.c.b16 %v678, %v614
        %v743 = vpack.c.b16 %v679, %v615
        %v744 = vpack.c.b16 %v680, %v616
        %v745 = vpack.c.b16 %v681, %v617
        %v746 = vpack.c.b16 %v682, %v618
        %v747 = vpack.c.b16 %v683, %v619
        %v748 = vpack.c.b16 %v684, %v620
        %v749 = vpack.c.b16 %v685, %v621
        %v750 = vpack.c.b16 %v686, %v622
        %v751 = vpack.c.b16 %v687, %v623
        %v752 = vpack.c.b16 %v688, %v624
        %v753 = vpack.c.b16 %v689, %v625
        %v754 = vpack.c.b16 %v690, %v626
        %v755 = vpack.c.b16 %v691, %v627
        %v756 = vpack.c.b16 %v692, %v628
        %v757 = vpack.c.b16 %v693, %v629
        %v758 = vpack.c.b16 %v694, %v630
        %v759 = vpack.c.b16 %v695, %v631
        %v760 = vpack.c.b16 %v696, %v632
        %v761 = vpack.c.b16 %v697, %v633
        %v762 = vpack.c.b16 %v698, %v634
        %v763 = vpack.c.b16 %v699, %v635
        %v764 = vpack.c.b16 %v700, %v636
        %v765 = vpack.c.b16 %v701, %v637
        %v766 = vpack.c.b16 %v702, %v638
        %v767 = vpack.c.b16 %v703, %v639
        %v768 = vpack.c.b16 %v704, %v640
        %v769 = vpack.c.b16 %v705, %v641
        %v770 = vpack.c.b16 %v706, %v642
        %v771 = vpack.c.b16 %v707, %v643
        %v772 = vpack.c.b16 %v708, %v644
        %v773 = vpack.c.b16 %v709, %v645
        %v774 = vpack.c.b16 %v710, %v646
        %v775 = vpack.c.b16 %v711, %v647
        %v776 = vpack.c.b16 %v712, %v648
        %v777 = vpack.c.b16 %v713, %v649
        %v778 = vpack.c.b16 %v714, %v650
        %v779 = vpack.c.b16 %v715, %v651
        %v780 = vpack.c.b16 %v716, %v652
        %v781 = vpack.c.b16 %v717, %v653
        %v782 = vpack.c.b16 %v718, %v654
        %v783 = vpack.c.b16 %v719, %v655
        %v784 = vpack.c.b16 %v720, %v656
        %v785 = vpack.c.b16 %v721, %v657
        %v786 = vpack.c.b16 %v722, %v658
        %v787 = vpack.c.b16 %v723, %v659
        %v788 = vpack.c.b16 %v724, %v660
        %v789 = vpack.c.b16 %v725, %v661
        %v790 = vpack.c.b16 %v726, %v662
        %v791 = vpack.c.b16 %v727, %v663
        %v792 = vpack.c.b16 %v728, %v664
        %v793 = vpack.c.b16 %v729, %v665
        %v794 = vpack.c.b16 %v730, %v666
        %v795 = vpack.c.b16 %v731, %v667
        %v796 = vpack.c.b16 %v732, %v668
        %v797 = vpack.c.b16 %v733, %v669
        %v798 = vpack.c.b16 %v734, %v670
        %v799 = vpack.c.b16 %v735, %v671
        %v800 = vpack.c.b16 %v736, %v672
        %v801 = vpack.c.b16 %v737, %v673
        %v802 = vpack.c.b16 %v738, %v674
        %867 = vmatpush.bf16.xpose.msra.mxu0 0
        %868 = vmatpush.bf16.xpose.msra.mxu0 0
        %869 = vmatpush.bf16.xpose.msra.mxu0 0
        %870 = vmatpush.bf16.xpose.msra.mxu0 0
        %871 = vmatpush.bf16.xpose.msra.mxu0 0
        %872 = vmatpush.bf16.xpose.msra.mxu0 0
        %873 = vmatpush.bf16.xpose.msra.mxu0 0
        %874 = vmatpush.bf16.xpose.msra.mxu0 %v739
        %875 = vmatmul.bf16.gmra.mxu0 %v405
        %v876 = vpop.f32.mrf.mxu0
        %v877 = vadd.f32 0.0, %v876
        %v878 = vpop.f32.mrf.mxu0
        %879 = vdwg.mxu0
        %880 = vmatpush.bf16.xpose.msra.mxu0 0
        %881 = vmatpush.bf16.xpose.msra.mxu0 0
        %882 = vmatpush.bf16.xpose.msra.mxu0 0
        %883 = vmatpush.bf16.xpose.msra.mxu0 0
        %884 = vmatpush.bf16.xpose.msra.mxu0 0
        %885 = vmatpush.bf16.xpose.msra.mxu0 0
        %886 = vmatpush.bf16.xpose.msra.mxu0 0
        %887 = vmatpush.bf16.xpose.msra.mxu0 %v740
        %888 = vmatmul.bf16.gmra.mxu0 %v406
        %v889 = vpop.f32.mrf.mxu0
        %v890 = vadd.f32 %v877, %v889
        %v891 = vpop.f32.mrf.mxu0
        %892 = vdwg.mxu0
        %893 = vmatpush.bf16.xpose.msra.mxu0 0
        %894 = vmatpush.bf16.xpose.msra.mxu0 0
        %895 = vmatpush.bf16.xpose.msra.mxu0 0
        %896 = vmatpush.bf16.xpose.msra.mxu0 0
        %897 = vmatpush.bf16.xpose.msra.mxu0 0
        %898 = vmatpush.bf16.xpose.msra.mxu0 0
        %899 = vmatpush.bf16.xpose.msra.mxu0 0
        %900 = vmatpush.bf16.xpose.msra.mxu0 %v741
        %901 = vmatmul.bf16.gmra.mxu0 %v407
        %v902 = vpop.f32.mrf.mxu0
        %v903 = vadd.f32 %v890, %v902
        %v904 = vpop.f32.mrf.mxu0
        %905 = vdwg.mxu0
        %906 = vmatpush.bf16.xpose.msra.mxu0 0
        %907 = vmatpush.bf16.xpose.msra.mxu0 0
        %908 = vmatpush.bf16.xpose.msra.mxu0 0
        %909 = vmatpush.bf16.xpose.msra.mxu0 0
        %910 = vmatpush.bf16.xpose.msra.mxu0 0
        %911 = vmatpush.bf16.xpose.msra.mxu0 0
        %912 = vmatpush.bf16.xpose.msra.mxu0 0
        %913 = vmatpush.bf16.xpose.msra.mxu0 %v742
        %914 = vmatmul.bf16.gmra.mxu0 %v408
        %v915 = vpop.f32.mrf.mxu0
        %v916 = vadd.f32 %v903, %v915
        %v917 = vpop.f32.mrf.mxu0
        %918 = vdwg.mxu0
        %919 = vmatpush.bf16.xpose.msra.mxu0 0
        %920 = vmatpush.bf16.xpose.msra.mxu0 0
        %921 = vmatpush.bf16.xpose.msra.mxu0 0
        %922 = vmatpush.bf16.xpose.msra.mxu0 0
        %923 = vmatpush.bf16.xpose.msra.mxu0 0
        %924 = vmatpush.bf16.xpose.msra.mxu0 0
        %925 = vmatpush.bf16.xpose.msra.mxu0 0
        %926 = vmatpush.bf16.xpose.msra.mxu0 %v743
        %927 = vmatmul.bf16.gmra.mxu0 %v409
        %v928 = vpop.f32.mrf.mxu0
        %v929 = vadd.f32 %v916, %v928
        %v930 = vpop.f32.mrf.mxu0
        %931 = vdwg.mxu0
        %932 = vmatpush.bf16.xpose.msra.mxu0 0
        %933 = vmatpush.bf16.xpose.msra.mxu0 0
        %934 = vmatpush.bf16.xpose.msra.mxu0 0
        %935 = vmatpush.bf16.xpose.msra.mxu0 0
        %936 = vmatpush.bf16.xpose.msra.mxu0 0
        %937 = vmatpush.bf16.xpose.msra.mxu0 0
        %938 = vmatpush.bf16.xpose.msra.mxu0 0
        %939 = vmatpush.bf16.xpose.msra.mxu0 %v744
        %940 = vmatmul.bf16.gmra.mxu0 %v410
        %v941 = vpop.f32.mrf.mxu0
        %v942 = vadd.f32 %v929, %v941
        %v943 = vpop.f32.mrf.mxu0
        %944 = vdwg.mxu0
        %945 = vmatpush.bf16.xpose.msra.mxu0 0
        %946 = vmatpush.bf16.xpose.msra.mxu0 0
        %947 = vmatpush.bf16.xpose.msra.mxu0 0
        %948 = vmatpush.bf16.xpose.msra.mxu0 0
        %949 = vmatpush.bf16.xpose.msra.mxu0 0
        %950 = vmatpush.bf16.xpose.msra.mxu0 0
        %951 = vmatpush.bf16.xpose.msra.mxu0 0
        %952 = vmatpush.bf16.xpose.msra.mxu0 %v745
        %953 = vmatmul.bf16.gmra.mxu0 %v411
        %v954 = vpop.f32.mrf.mxu0
        %v955 = vadd.f32 %v942, %v954
        %v956 = vpop.f32.mrf.mxu0
        %957 = vdwg.mxu0
        %958 = vmatpush.bf16.xpose.msra.mxu0 0
        %959 = vmatpush.bf16.xpose.msra.mxu0 0
        %960 = vmatpush.bf16.xpose.msra.mxu0 0
        %961 = vmatpush.bf16.xpose.msra.mxu0 0
        %962 = vmatpush.bf16.xpose.msra.mxu0 0
        %963 = vmatpush.bf16.xpose.msra.mxu0 0
        %964 = vmatpush.bf16.xpose.msra.mxu0 0
        %965 = vmatpush.bf16.xpose.msra.mxu0 %v746
        %966 = vmatmul.bf16.gmra.mxu0 %v412
        %v967 = vpop.f32.mrf.mxu0
        %v968 = vadd.f32 %v955, %v967
        %v969 = vpop.f32.mrf.mxu0
        %970 = vdwg.mxu0
        %971 = vmatpush.bf16.xpose.msra.mxu0 0
        %972 = vmatpush.bf16.xpose.msra.mxu0 0
        %973 = vmatpush.bf16.xpose.msra.mxu0 0
        %974 = vmatpush.bf16.xpose.msra.mxu0 0
        %975 = vmatpush.bf16.xpose.msra.mxu0 0
        %976 = vmatpush.bf16.xpose.msra.mxu0 0
        %977 = vmatpush.bf16.xpose.msra.mxu0 0
        %978 = vmatpush.bf16.xpose.msra.mxu0 %v747
        %979 = vmatmul.bf16.gmra.mxu0 %v415
        %v980 = vpop.f32.mrf.mxu0
        %v981 = vadd.f32 %v968, %v980
        %v982 = vpop.f32.mrf.mxu0
        %983 = vdwg.mxu0
        %984 = vmatpush.bf16.xpose.msra.mxu0 0
        %985 = vmatpush.bf16.xpose.msra.mxu0 0
        %986 = vmatpush.bf16.xpose.msra.mxu0 0
        %987 = vmatpush.bf16.xpose.msra.mxu0 0
        %988 = vmatpush.bf16.xpose.msra.mxu0 0
        %989 = vmatpush.bf16.xpose.msra.mxu0 0
        %990 = vmatpush.bf16.xpose.msra.mxu0 0
        %991 = vmatpush.bf16.xpose.msra.mxu0 %v748
        %992 = vmatmul.bf16.gmra.mxu0 %v416
        %v993 = vpop.f32.mrf.mxu0
        %v994 = vadd.f32 %v981, %v993
        %v995 = vpop.f32.mrf.mxu0
        %996 = vdwg.mxu0
        %997 = vmatpush.bf16.xpose.msra.mxu0 0
        %998 = vmatpush.bf16.xpose.msra.mxu0 0
        %999 = vmatpush.bf16.xpose.msra.mxu0 0
        %1000 = vmatpush.bf16.xpose.msra.mxu0 0
        %1001 = vmatpush.bf16.xpose.msra.mxu0 0
        %1002 = vmatpush.bf16.xpose.msra.mxu0 0
        %1003 = vmatpush.bf16.xpose.msra.mxu0 0
        %1004 = vmatpush.bf16.xpose.msra.mxu0 %v749
        %1005 = vmatmul.bf16.gmra.mxu0 %v417
        %v1006 = vpop.f32.mrf.mxu0
        %v1007 = vadd.f32 %v994, %v1006
        %v1008 = vpop.f32.mrf.mxu0
        %1009 = vdwg.mxu0
        %1010 = vmatpush.bf16.xpose.msra.mxu0 0
        %1011 = vmatpush.bf16.xpose.msra.mxu0 0
        %1012 = vmatpush.bf16.xpose.msra.mxu0 0
        %1013 = vmatpush.bf16.xpose.msra.mxu0 0
        %1014 = vmatpush.bf16.xpose.msra.mxu0 0
        %1015 = vmatpush.bf16.xpose.msra.mxu0 0
        %1016 = vmatpush.bf16.xpose.msra.mxu0 0
        %1017 = vmatpush.bf16.xpose.msra.mxu0 %v750
        %1018 = vmatmul.bf16.gmra.mxu0 %v418
        %v1019 = vpop.f32.mrf.mxu0
        %v1020 = vadd.f32 %v1007, %v1019
        %v1021 = vpop.f32.mrf.mxu0
        %1022 = vdwg.mxu0
        %1023 = vmatpush.bf16.xpose.msra.mxu0 0
        %1024 = vmatpush.bf16.xpose.msra.mxu0 0
        %1025 = vmatpush.bf16.xpose.msra.mxu0 0
        %1026 = vmatpush.bf16.xpose.msra.mxu0 0
        %1027 = vmatpush.bf16.xpose.msra.mxu0 0
        %1028 = vmatpush.bf16.xpose.msra.mxu0 0
        %1029 = vmatpush.bf16.xpose.msra.mxu0 0
        %1030 = vmatpush.bf16.xpose.msra.mxu0 %v751
        %1031 = vmatmul.bf16.gmra.mxu0 %v419
        %v1032 = vpop.f32.mrf.mxu0
        %v1033 = vadd.f32 %v1020, %v1032
        %v1034 = vpop.f32.mrf.mxu0
        %1035 = vdwg.mxu0
        %1036 = vmatpush.bf16.xpose.msra.mxu0 0
        %1037 = vmatpush.bf16.xpose.msra.mxu0 0
        %1038 = vmatpush.bf16.xpose.msra.mxu0 0
        %1039 = vmatpush.bf16.xpose.msra.mxu0 0
        %1040 = vmatpush.bf16.xpose.msra.mxu0 0
        %1041 = vmatpush.bf16.xpose.msra.mxu0 0
        %1042 = vmatpush.bf16.xpose.msra.mxu0 0
        %1043 = vmatpush.bf16.xpose.msra.mxu0 %v752
        %1044 = vmatmul.bf16.gmra.mxu0 %v420
        %v1045 = vpop.f32.mrf.mxu0
        %v1046 = vadd.f32 %v1033, %v1045
        %v1047 = vpop.f32.mrf.mxu0
        %1048 = vdwg.mxu0
        %1049 = vmatpush.bf16.xpose.msra.mxu0 0
        %1050 = vmatpush.bf16.xpose.msra.mxu0 0
        %1051 = vmatpush.bf16.xpose.msra.mxu0 0
        %1052 = vmatpush.bf16.xpose.msra.mxu0 0
        %1053 = vmatpush.bf16.xpose.msra.mxu0 0
        %1054 = vmatpush.bf16.xpose.msra.mxu0 0
        %1055 = vmatpush.bf16.xpose.msra.mxu0 0
        %1056 = vmatpush.bf16.xpose.msra.mxu0 %v753
        %1057 = vmatmul.bf16.gmra.mxu0 %v421
        %v1058 = vpop.f32.mrf.mxu0
        %v1059 = vadd.f32 %v1046, %v1058
        %v1060 = vpop.f32.mrf.mxu0
        %1061 = vdwg.mxu0
        %1062 = vmatpush.bf16.xpose.msra.mxu0 0
        %1063 = vmatpush.bf16.xpose.msra.mxu0 0
        %1064 = vmatpush.bf16.xpose.msra.mxu0 0
        %1065 = vmatpush.bf16.xpose.msra.mxu0 0
        %1066 = vmatpush.bf16.xpose.msra.mxu0 0
        %1067 = vmatpush.bf16.xpose.msra.mxu0 0
        %1068 = vmatpush.bf16.xpose.msra.mxu0 0
        %1069 = vmatpush.bf16.xpose.msra.mxu0 %v754
        %1070 = vmatmul.bf16.gmra.mxu0 %v422
        %v1071 = vpop.f32.mrf.mxu0
        %v1072 = vadd.f32 %v1059, %v1071
        %v1073 = vpop.f32.mrf.mxu0
        %1074 = vdwg.mxu0
        %1075 = vmatpush.bf16.xpose.msra.mxu0 0
        %1076 = vmatpush.bf16.xpose.msra.mxu0 0
        %1077 = vmatpush.bf16.xpose.msra.mxu0 0
        %1078 = vmatpush.bf16.xpose.msra.mxu0 0
        %1079 = vmatpush.bf16.xpose.msra.mxu0 0
        %1080 = vmatpush.bf16.xpose.msra.mxu0 0
        %1081 = vmatpush.bf16.xpose.msra.mxu0 0
        %1082 = vmatpush.bf16.xpose.msra.mxu0 %v755
        %1083 = vmatmul.bf16.gmra.mxu0 %v425
        %v1084 = vpop.f32.mrf.mxu0
        %v1085 = vadd.f32 %v1072, %v1084
        %v1086 = vpop.f32.mrf.mxu0
        %1087 = vdwg.mxu0
        %1088 = vmatpush.bf16.xpose.msra.mxu0 0
        %1089 = vmatpush.bf16.xpose.msra.mxu0 0
        %1090 = vmatpush.bf16.xpose.msra.mxu0 0
        %1091 = vmatpush.bf16.xpose.msra.mxu0 0
        %1092 = vmatpush.bf16.xpose.msra.mxu0 0
        %1093 = vmatpush.bf16.xpose.msra.mxu0 0
        %1094 = vmatpush.bf16.xpose.msra.mxu0 0
        %1095 = vmatpush.bf16.xpose.msra.mxu0 %v756
        %1096 = vmatmul.bf16.gmra.mxu0 %v426
        %v1097 = vpop.f32.mrf.mxu0
        %v1098 = vadd.f32 %v1085, %v1097
        %v1099 = vpop.f32.mrf.mxu0
        %1100 = vdwg.mxu0
        %1101 = vmatpush.bf16.xpose.msra.mxu0 0
        %1102 = vmatpush.bf16.xpose.msra.mxu0 0
        %1103 = vmatpush.bf16.xpose.msra.mxu0 0
        %1104 = vmatpush.bf16.xpose.msra.mxu0 0
        %1105 = vmatpush.bf16.xpose.msra.mxu0 0
        %1106 = vmatpush.bf16.xpose.msra.mxu0 0
        %1107 = vmatpush.bf16.xpose.msra.mxu0 0
        %1108 = vmatpush.bf16.xpose.msra.mxu0 %v757
        %1109 = vmatmul.bf16.gmra.mxu0 %v427
        %v1110 = vpop.f32.mrf.mxu0
        %v1111 = vadd.f32 %v1098, %v1110
        %v1112 = vpop.f32.mrf.mxu0
        %1113 = vdwg.mxu0
        %1114 = vmatpush.bf16.xpose.msra.mxu0 0
        %1115 = vmatpush.bf16.xpose.msra.mxu0 0
        %1116 = vmatpush.bf16.xpose.msra.mxu0 0
        %1117 = vmatpush.bf16.xpose.msra.mxu0 0
        %1118 = vmatpush.bf16.xpose.msra.mxu0 0
        %1119 = vmatpush.bf16.xpose.msra.mxu0 0
        %1120 = vmatpush.bf16.xpose.msra.mxu0 0
        %1121 = vmatpush.bf16.xpose.msra.mxu0 %v758
        %1122 = vmatmul.bf16.gmra.mxu0 %v428
        %v1123 = vpop.f32.mrf.mxu0
        %v1124 = vadd.f32 %v1111, %v1123
        %v1125 = vpop.f32.mrf.mxu0
        %1126 = vdwg.mxu0
        %1127 = vmatpush.bf16.xpose.msra.mxu0 0
        %1128 = vmatpush.bf16.xpose.msra.mxu0 0
        %1129 = vmatpush.bf16.xpose.msra.mxu0 0
        %1130 = vmatpush.bf16.xpose.msra.mxu0 0
        %1131 = vmatpush.bf16.xpose.msra.mxu0 0
        %1132 = vmatpush.bf16.xpose.msra.mxu0 0
        %1133 = vmatpush.bf16.xpose.msra.mxu0 0
        %1134 = vmatpush.bf16.xpose.msra.mxu0 %v759
        %1135 = vmatmul.bf16.gmra.mxu0 %v429
        %v1136 = vpop.f32.mrf.mxu0
        %v1137 = vadd.f32 %v1124, %v1136
        %v1138 = vpop.f32.mrf.mxu0
        %1139 = vdwg.mxu0
        %1140 = vmatpush.bf16.xpose.msra.mxu0 0
        %1141 = vmatpush.bf16.xpose.msra.mxu0 0
        %1142 = vmatpush.bf16.xpose.msra.mxu0 0
        %1143 = vmatpush.bf16.xpose.msra.mxu0 0
        %1144 = vmatpush.bf16.xpose.msra.mxu0 0
        %1145 = vmatpush.bf16.xpose.msra.mxu0 0
        %1146 = vmatpush.bf16.xpose.msra.mxu0 0
        %1147 = vmatpush.bf16.xpose.msra.mxu0 %v760
        %1148 = vmatmul.bf16.gmra.mxu0 %v430
        %v1149 = vpop.f32.mrf.mxu0
        %v1150 = vadd.f32 %v1137, %v1149
        %v1151 = vpop.f32.mrf.mxu0
        %1152 = vdwg.mxu0
        %1153 = vmatpush.bf16.xpose.msra.mxu0 0
        %1154 = vmatpush.bf16.xpose.msra.mxu0 0
        %1155 = vmatpush.bf16.xpose.msra.mxu0 0
        %1156 = vmatpush.bf16.xpose.msra.mxu0 0
        %1157 = vmatpush.bf16.xpose.msra.mxu0 0
        %1158 = vmatpush.bf16.xpose.msra.mxu0 0
        %1159 = vmatpush.bf16.xpose.msra.mxu0 0
        %1160 = vmatpush.bf16.xpose.msra.mxu0 %v761
        %1161 = vmatmul.bf16.gmra.mxu0 %v431
        %v1162 = vpop.f32.mrf.mxu0
        %v1163 = vadd.f32 %v1150, %v1162
        %v1164 = vpop.f32.mrf.mxu0
        %1165 = vdwg.mxu0
        %1166 = vmatpush.bf16.xpose.msra.mxu0 0
        %1167 = vmatpush.bf16.xpose.msra.mxu0 0
        %1168 = vmatpush.bf16.xpose.msra.mxu0 0
        %1169 = vmatpush.bf16.xpose.msra.mxu0 0
        %1170 = vmatpush.bf16.xpose.msra.mxu0 0
        %1171 = vmatpush.bf16.xpose.msra.mxu0 0
        %1172 = vmatpush.bf16.xpose.msra.mxu0 0
        %1173 = vmatpush.bf16.xpose.msra.mxu0 %v762
        %1174 = vmatmul.bf16.gmra.mxu0 %v432
        %v1175 = vpop.f32.mrf.mxu0
        %v1176 = vadd.f32 %v1163, %v1175
        %v1177 = vpop.f32.mrf.mxu0
        %1178 = vdwg.mxu0
        %1179 = vmatpush.bf16.xpose.msra.mxu0 0
        %1180 = vmatpush.bf16.xpose.msra.mxu0 0
        %1181 = vmatpush.bf16.xpose.msra.mxu0 0
        %1182 = vmatpush.bf16.xpose.msra.mxu0 0
        %1183 = vmatpush.bf16.xpose.msra.mxu0 0
        %1184 = vmatpush.bf16.xpose.msra.mxu0 0
        %1185 = vmatpush.bf16.xpose.msra.mxu0 0
        %1186 = vmatpush.bf16.xpose.msra.mxu0 %v763
        %1187 = vmatmul.bf16.gmra.mxu0 %v435
        %v1188 = vpop.f32.mrf.mxu0
        %v1189 = vadd.f32 %v1176, %v1188
        %v1190 = vpop.f32.mrf.mxu0
        %1191 = vdwg.mxu0
        %1192 = vmatpush.bf16.xpose.msra.mxu0 0
        %1193 = vmatpush.bf16.xpose.msra.mxu0 0
        %1194 = vmatpush.bf16.xpose.msra.mxu0 0
        %1195 = vmatpush.bf16.xpose.msra.mxu0 0
        %1196 = vmatpush.bf16.xpose.msra.mxu0 0
        %1197 = vmatpush.bf16.xpose.msra.mxu0 0
        %1198 = vmatpush.bf16.xpose.msra.mxu0 0
        %1199 = vmatpush.bf16.xpose.msra.mxu0 %v764
        %1200 = vmatmul.bf16.gmra.mxu0 %v436
        %v1201 = vpop.f32.mrf.mxu0
        %v1202 = vadd.f32 %v1189, %v1201
        %v1203 = vpop.f32.mrf.mxu0
        %1204 = vdwg.mxu0
        %1205 = vmatpush.bf16.xpose.msra.mxu0 0
        %1206 = vmatpush.bf16.xpose.msra.mxu0 0
        %1207 = vmatpush.bf16.xpose.msra.mxu0 0
        %1208 = vmatpush.bf16.xpose.msra.mxu0 0
        %1209 = vmatpush.bf16.xpose.msra.mxu0 0
        %1210 = vmatpush.bf16.xpose.msra.mxu0 0
        %1211 = vmatpush.bf16.xpose.msra.mxu0 0
        %1212 = vmatpush.bf16.xpose.msra.mxu0 %v765
        %1213 = vmatmul.bf16.gmra.mxu0 %v437
        %v1214 = vpop.f32.mrf.mxu0
        %v1215 = vadd.f32 %v1202, %v1214
        %v1216 = vpop.f32.mrf.mxu0
        %1217 = vdwg.mxu0
        %1218 = vmatpush.bf16.xpose.msra.mxu0 0
        %1219 = vmatpush.bf16.xpose.msra.mxu0 0
        %1220 = vmatpush.bf16.xpose.msra.mxu0 0
        %1221 = vmatpush.bf16.xpose.msra.mxu0 0
        %1222 = vmatpush.bf16.xpose.msra.mxu0 0
        %1223 = vmatpush.bf16.xpose.msra.mxu0 0
        %1224 = vmatpush.bf16.xpose.msra.mxu0 0
        %1225 = vmatpush.bf16.xpose.msra.mxu0 %v766
        %1226 = vmatmul.bf16.gmra.mxu0 %v438
        %v1227 = vpop.f32.mrf.mxu0
        %v1228 = vadd.f32 %v1215, %v1227
        %v1229 = vpop.f32.mrf.mxu0
        %1230 = vdwg.mxu0
        %1231 = vmatpush.bf16.xpose.msra.mxu0 0
        %1232 = vmatpush.bf16.xpose.msra.mxu0 0
        %1233 = vmatpush.bf16.xpose.msra.mxu0 0
        %1234 = vmatpush.bf16.xpose.msra.mxu0 0
        %1235 = vmatpush.bf16.xpose.msra.mxu0 0
        %1236 = vmatpush.bf16.xpose.msra.mxu0 0
        %1237 = vmatpush.bf16.xpose.msra.mxu0 0
        %1238 = vmatpush.bf16.xpose.msra.mxu0 %v767
        %1239 = vmatmul.bf16.gmra.mxu0 %v439
        %v1240 = vpop.f32.mrf.mxu0
        %v1241 = vadd.f32 %v1228, %v1240
        %v1242 = vpop.f32.mrf.mxu0
        %1243 = vdwg.mxu0
        %1244 = vmatpush.bf16.xpose.msra.mxu0 0
        %1245 = vmatpush.bf16.xpose.msra.mxu0 0
        %1246 = vmatpush.bf16.xpose.msra.mxu0 0
        %1247 = vmatpush.bf16.xpose.msra.mxu0 0
        %1248 = vmatpush.bf16.xpose.msra.mxu0 0
        %1249 = vmatpush.bf16.xpose.msra.mxu0 0
        %1250 = vmatpush.bf16.xpose.msra.mxu0 0
        %1251 = vmatpush.bf16.xpose.msra.mxu0 %v768
        %1252 = vmatmul.bf16.gmra.mxu0 %v440
        %v1253 = vpop.f32.mrf.mxu0
        %v1254 = vadd.f32 %v1241, %v1253
        %v1255 = vpop.f32.mrf.mxu0
        %1256 = vdwg.mxu0
        %1257 = vmatpush.bf16.xpose.msra.mxu0 0
        %1258 = vmatpush.bf16.xpose.msra.mxu0 0
        %1259 = vmatpush.bf16.xpose.msra.mxu0 0
        %1260 = vmatpush.bf16.xpose.msra.mxu0 0
        %1261 = vmatpush.bf16.xpose.msra.mxu0 0
        %1262 = vmatpush.bf16.xpose.msra.mxu0 0
        %1263 = vmatpush.bf16.xpose.msra.mxu0 0
        %1264 = vmatpush.bf16.xpose.msra.mxu0 %v769
        %1265 = vmatmul.bf16.gmra.mxu0 %v441
        %v1266 = vpop.f32.mrf.mxu0
        %v1267 = vadd.f32 %v1254, %v1266
        %v1268 = vpop.f32.mrf.mxu0
        %1269 = vdwg.mxu0
        %1270 = vmatpush.bf16.xpose.msra.mxu0 0
        %1271 = vmatpush.bf16.xpose.msra.mxu0 0
        %1272 = vmatpush.bf16.xpose.msra.mxu0 0
        %1273 = vmatpush.bf16.xpose.msra.mxu0 0
        %1274 = vmatpush.bf16.xpose.msra.mxu0 0
        %1275 = vmatpush.bf16.xpose.msra.mxu0 0
        %1276 = vmatpush.bf16.xpose.msra.mxu0 0
        %1277 = vmatpush.bf16.xpose.msra.mxu0 %v770
        %1278 = vmatmul.bf16.gmra.mxu0 %v442
        %v1279 = vpop.f32.mrf.mxu0
        %v1280 = vadd.f32 %v1267, %v1279
        %v1281 = vpop.f32.mrf.mxu0
        %1282 = vdwg.mxu0
        %1283 = vmatpush.bf16.xpose.msra.mxu0 0
        %1284 = vmatpush.bf16.xpose.msra.mxu0 0
        %1285 = vmatpush.bf16.xpose.msra.mxu0 0
        %1286 = vmatpush.bf16.xpose.msra.mxu0 0
        %1287 = vmatpush.bf16.xpose.msra.mxu0 0
        %1288 = vmatpush.bf16.xpose.msra.mxu0 0
        %1289 = vmatpush.bf16.xpose.msra.mxu0 0
        %1290 = vmatpush.bf16.xpose.msra.mxu0 %v771
        %1291 = vmatmul.bf16.gmra.mxu0 %v445
        %v1292 = vpop.f32.mrf.mxu0
        %v1293 = vadd.f32 %v1280, %v1292
        %v1294 = vpop.f32.mrf.mxu0
        %1295 = vdwg.mxu0
        %1296 = vmatpush.bf16.xpose.msra.mxu0 0
        %1297 = vmatpush.bf16.xpose.msra.mxu0 0
        %1298 = vmatpush.bf16.xpose.msra.mxu0 0
        %1299 = vmatpush.bf16.xpose.msra.mxu0 0
        %1300 = vmatpush.bf16.xpose.msra.mxu0 0
        %1301 = vmatpush.bf16.xpose.msra.mxu0 0
        %1302 = vmatpush.bf16.xpose.msra.mxu0 0
        %1303 = vmatpush.bf16.xpose.msra.mxu0 %v772
        %1304 = vmatmul.bf16.gmra.mxu0 %v446
        %v1305 = vpop.f32.mrf.mxu0
        %v1306 = vadd.f32 %v1293, %v1305
        %v1307 = vpop.f32.mrf.mxu0
        %1308 = vdwg.mxu0
        %1309 = vmatpush.bf16.xpose.msra.mxu0 0
        %1310 = vmatpush.bf16.xpose.msra.mxu0 0
        %1311 = vmatpush.bf16.xpose.msra.mxu0 0
        %1312 = vmatpush.bf16.xpose.msra.mxu0 0
        %1313 = vmatpush.bf16.xpose.msra.mxu0 0
        %1314 = vmatpush.bf16.xpose.msra.mxu0 0
        %1315 = vmatpush.bf16.xpose.msra.mxu0 0
        %1316 = vmatpush.bf16.xpose.msra.mxu0 %v773
        %1317 = vmatmul.bf16.gmra.mxu0 %v447
        %v1318 = vpop.f32.mrf.mxu0
        %v1319 = vadd.f32 %v1306, %v1318
        %v1320 = vpop.f32.mrf.mxu0
        %1321 = vdwg.mxu0
        %1322 = vmatpush.bf16.xpose.msra.mxu0 0
        %1323 = vmatpush.bf16.xpose.msra.mxu0 0
        %1324 = vmatpush.bf16.xpose.msra.mxu0 0
        %1325 = vmatpush.bf16.xpose.msra.mxu0 0
        %1326 = vmatpush.bf16.xpose.msra.mxu0 0
        %1327 = vmatpush.bf16.xpose.msra.mxu0 0
        %1328 = vmatpush.bf16.xpose.msra.mxu0 0
        %1329 = vmatpush.bf16.xpose.msra.mxu0 %v774
        %1330 = vmatmul.bf16.gmra.mxu0 %v448
        %v1331 = vpop.f32.mrf.mxu0
        %v1332 = vadd.f32 %v1319, %v1331
        %v1333 = vpop.f32.mrf.mxu0
        %1334 = vdwg.mxu0
        %1335 = vmatpush.bf16.xpose.msra.mxu0 0
        %1336 = vmatpush.bf16.xpose.msra.mxu0 0
        %1337 = vmatpush.bf16.xpose.msra.mxu0 0
        %1338 = vmatpush.bf16.xpose.msra.mxu0 0
        %1339 = vmatpush.bf16.xpose.msra.mxu0 0
        %1340 = vmatpush.bf16.xpose.msra.mxu0 0
        %1341 = vmatpush.bf16.xpose.msra.mxu0 0
        %1342 = vmatpush.bf16.xpose.msra.mxu0 %v775
        %1343 = vmatmul.bf16.gmra.mxu0 %v449
        %v1344 = vpop.f32.mrf.mxu0
        %v1345 = vadd.f32 %v1332, %v1344
        %v1346 = vpop.f32.mrf.mxu0
        %1347 = vdwg.mxu0
        %1348 = vmatpush.bf16.xpose.msra.mxu0 0
        %1349 = vmatpush.bf16.xpose.msra.mxu0 0
        %1350 = vmatpush.bf16.xpose.msra.mxu0 0
        %1351 = vmatpush.bf16.xpose.msra.mxu0 0
        %1352 = vmatpush.bf16.xpose.msra.mxu0 0
        %1353 = vmatpush.bf16.xpose.msra.mxu0 0
        %1354 = vmatpush.bf16.xpose.msra.mxu0 0
        %1355 = vmatpush.bf16.xpose.msra.mxu0 %v776
        %1356 = vmatmul.bf16.gmra.mxu0 %v450
        %v1357 = vpop.f32.mrf.mxu0
        %v1358 = vadd.f32 %v1345, %v1357
        %v1359 = vpop.f32.mrf.mxu0
        %1360 = vdwg.mxu0
        %1361 = vmatpush.bf16.xpose.msra.mxu0 0
        %1362 = vmatpush.bf16.xpose.msra.mxu0 0
        %1363 = vmatpush.bf16.xpose.msra.mxu0 0
        %1364 = vmatpush.bf16.xpose.msra.mxu0 0
        %1365 = vmatpush.bf16.xpose.msra.mxu0 0
        %1366 = vmatpush.bf16.xpose.msra.mxu0 0
        %1367 = vmatpush.bf16.xpose.msra.mxu0 0
        %1368 = vmatpush.bf16.xpose.msra.mxu0 %v777
        %1369 = vmatmul.bf16.gmra.mxu0 %v451
        %v1370 = vpop.f32.mrf.mxu0
        %v1371 = vadd.f32 %v1358, %v1370
        %v1372 = vpop.f32.mrf.mxu0
        %1373 = vdwg.mxu0
        %1374 = vmatpush.bf16.xpose.msra.mxu0 0
        %1375 = vmatpush.bf16.xpose.msra.mxu0 0
        %1376 = vmatpush.bf16.xpose.msra.mxu0 0
        %1377 = vmatpush.bf16.xpose.msra.mxu0 0
        %1378 = vmatpush.bf16.xpose.msra.mxu0 0
        %1379 = vmatpush.bf16.xpose.msra.mxu0 0
        %1380 = vmatpush.bf16.xpose.msra.mxu0 0
        %1381 = vmatpush.bf16.xpose.msra.mxu0 %v778
        %1382 = vmatmul.bf16.gmra.mxu0 %v452
        %v1383 = vpop.f32.mrf.mxu0
        %v1384 = vadd.f32 %v1371, %v1383
        %v1385 = vpop.f32.mrf.mxu0
        %1386 = vdwg.mxu0
        %1387 = vmatpush.bf16.xpose.msra.mxu0 0
        %1388 = vmatpush.bf16.xpose.msra.mxu0 0
        %1389 = vmatpush.bf16.xpose.msra.mxu0 0
        %1390 = vmatpush.bf16.xpose.msra.mxu0 0
        %1391 = vmatpush.bf16.xpose.msra.mxu0 0
        %1392 = vmatpush.bf16.xpose.msra.mxu0 0
        %1393 = vmatpush.bf16.xpose.msra.mxu0 0
        %1394 = vmatpush.bf16.xpose.msra.mxu0 %v779
        %1395 = vmatmul.bf16.gmra.mxu0 %v455
        %v1396 = vpop.f32.mrf.mxu0
        %v1397 = vadd.f32 %v1384, %v1396
        %v1398 = vpop.f32.mrf.mxu0
        %1399 = vdwg.mxu0
        %1400 = vmatpush.bf16.xpose.msra.mxu0 0
        %1401 = vmatpush.bf16.xpose.msra.mxu0 0
        %1402 = vmatpush.bf16.xpose.msra.mxu0 0
        %1403 = vmatpush.bf16.xpose.msra.mxu0 0
        %1404 = vmatpush.bf16.xpose.msra.mxu0 0
        %1405 = vmatpush.bf16.xpose.msra.mxu0 0
        %1406 = vmatpush.bf16.xpose.msra.mxu0 0
        %1407 = vmatpush.bf16.xpose.msra.mxu0 %v780
        %1408 = vmatmul.bf16.gmra.mxu0 %v456
        %v1409 = vpop.f32.mrf.mxu0
        %v1410 = vadd.f32 %v1397, %v1409
        %v1411 = vpop.f32.mrf.mxu0
        %1412 = vdwg.mxu0
        %1413 = vmatpush.bf16.xpose.msra.mxu0 0
        %1414 = vmatpush.bf16.xpose.msra.mxu0 0
        %1415 = vmatpush.bf16.xpose.msra.mxu0 0
        %1416 = vmatpush.bf16.xpose.msra.mxu0 0
        %1417 = vmatpush.bf16.xpose.msra.mxu0 0
        %1418 = vmatpush.bf16.xpose.msra.mxu0 0
        %1419 = vmatpush.bf16.xpose.msra.mxu0 0
        %1420 = vmatpush.bf16.xpose.msra.mxu0 %v781
        %1421 = vmatmul.bf16.gmra.mxu0 %v457
        %v1422 = vpop.f32.mrf.mxu0
        %v1423 = vadd.f32 %v1410, %v1422
        %v1424 = vpop.f32.mrf.mxu0
        %1425 = vdwg.mxu0
        %1426 = vmatpush.bf16.xpose.msra.mxu0 0
        %1427 = vmatpush.bf16.xpose.msra.mxu0 0
        %1428 = vmatpush.bf16.xpose.msra.mxu0 0
        %1429 = vmatpush.bf16.xpose.msra.mxu0 0
        %1430 = vmatpush.bf16.xpose.msra.mxu0 0
        %1431 = vmatpush.bf16.xpose.msra.mxu0 0
        %1432 = vmatpush.bf16.xpose.msra.mxu0 0
        %1433 = vmatpush.bf16.xpose.msra.mxu0 %v782
        %1434 = vmatmul.bf16.gmra.mxu0 %v458
        %v1435 = vpop.f32.mrf.mxu0
        %v1436 = vadd.f32 %v1423, %v1435
        %v1437 = vpop.f32.mrf.mxu0
        %1438 = vdwg.mxu0
        %1439 = vmatpush.bf16.xpose.msra.mxu0 0
        %1440 = vmatpush.bf16.xpose.msra.mxu0 0
        %1441 = vmatpush.bf16.xpose.msra.mxu0 0
        %1442 = vmatpush.bf16.xpose.msra.mxu0 0
        %1443 = vmatpush.bf16.xpose.msra.mxu0 0
        %1444 = vmatpush.bf16.xpose.msra.mxu0 0
        %1445 = vmatpush.bf16.xpose.msra.mxu0 0
        %1446 = vmatpush.bf16.xpose.msra.mxu0 %v783
        %1447 = vmatmul.bf16.gmra.mxu0 %v459
        %v1448 = vpop.f32.mrf.mxu0
        %v1449 = vadd.f32 %v1436, %v1448
        %v1450 = vpop.f32.mrf.mxu0
        %1451 = vdwg.mxu0
        %1452 = vmatpush.bf16.xpose.msra.mxu0 0
        %1453 = vmatpush.bf16.xpose.msra.mxu0 0
        %1454 = vmatpush.bf16.xpose.msra.mxu0 0
        %1455 = vmatpush.bf16.xpose.msra.mxu0 0
        %1456 = vmatpush.bf16.xpose.msra.mxu0 0
        %1457 = vmatpush.bf16.xpose.msra.mxu0 0
        %1458 = vmatpush.bf16.xpose.msra.mxu0 0
        %1459 = vmatpush.bf16.xpose.msra.mxu0 %v784
        %1460 = vmatmul.bf16.gmra.mxu0 %v460
        %v1461 = vpop.f32.mrf.mxu0
        %v1462 = vadd.f32 %v1449, %v1461
        %v1463 = vpop.f32.mrf.mxu0
        %1464 = vdwg.mxu0
        %1465 = vmatpush.bf16.xpose.msra.mxu0 0
        %1466 = vmatpush.bf16.xpose.msra.mxu0 0
        %1467 = vmatpush.bf16.xpose.msra.mxu0 0
        %1468 = vmatpush.bf16.xpose.msra.mxu0 0
        %1469 = vmatpush.bf16.xpose.msra.mxu0 0
        %1470 = vmatpush.bf16.xpose.msra.mxu0 0
        %1471 = vmatpush.bf16.xpose.msra.mxu0 0
        %1472 = vmatpush.bf16.xpose.msra.mxu0 %v785
        %1473 = vmatmul.bf16.gmra.mxu0 %v461
        %v1474 = vpop.f32.mrf.mxu0
        %v1475 = vadd.f32 %v1462, %v1474
        %v1476 = vpop.f32.mrf.mxu0
        %1477 = vdwg.mxu0
        %1478 = vmatpush.bf16.xpose.msra.mxu0 0
        %1479 = vmatpush.bf16.xpose.msra.mxu0 0
        %1480 = vmatpush.bf16.xpose.msra.mxu0 0
        %1481 = vmatpush.bf16.xpose.msra.mxu0 0
        %1482 = vmatpush.bf16.xpose.msra.mxu0 0
        %1483 = vmatpush.bf16.xpose.msra.mxu0 0
        %1484 = vmatpush.bf16.xpose.msra.mxu0 0
        %1485 = vmatpush.bf16.xpose.msra.mxu0 %v786
        %1486 = vmatmul.bf16.gmra.mxu0 %v462
        %v1487 = vpop.f32.mrf.mxu0
        %v1488 = vadd.f32 %v1475, %v1487
        %v1489 = vpop.f32.mrf.mxu0
        %1490 = vdwg.mxu0
        %1491 = vmatpush.bf16.xpose.msra.mxu0 0
        %1492 = vmatpush.bf16.xpose.msra.mxu0 0
        %1493 = vmatpush.bf16.xpose.msra.mxu0 0
        %1494 = vmatpush.bf16.xpose.msra.mxu0 0
        %1495 = vmatpush.bf16.xpose.msra.mxu0 0
        %1496 = vmatpush.bf16.xpose.msra.mxu0 0
        %1497 = vmatpush.bf16.xpose.msra.mxu0 0
        %1498 = vmatpush.bf16.xpose.msra.mxu0 %v787
        %1499 = vmatmul.bf16.gmra.mxu0 %v465
        %v1500 = vpop.f32.mrf.mxu0
        %v1501 = vadd.f32 %v1488, %v1500
        %v1502 = vpop.f32.mrf.mxu0
        %1503 = vdwg.mxu0
        %1504 = vmatpush.bf16.xpose.msra.mxu0 0
        %1505 = vmatpush.bf16.xpose.msra.mxu0 0
        %1506 = vmatpush.bf16.xpose.msra.mxu0 0
        %1507 = vmatpush.bf16.xpose.msra.mxu0 0
        %1508 = vmatpush.bf16.xpose.msra.mxu0 0
        %1509 = vmatpush.bf16.xpose.msra.mxu0 0
        %1510 = vmatpush.bf16.xpose.msra.mxu0 0
        %1511 = vmatpush.bf16.xpose.msra.mxu0 %v788
        %1512 = vmatmul.bf16.gmra.mxu0 %v466
        %v1513 = vpop.f32.mrf.mxu0
        %v1514 = vadd.f32 %v1501, %v1513
        %v1515 = vpop.f32.mrf.mxu0
        %1516 = vdwg.mxu0
        %1517 = vmatpush.bf16.xpose.msra.mxu0 0
        %1518 = vmatpush.bf16.xpose.msra.mxu0 0
        %1519 = vmatpush.bf16.xpose.msra.mxu0 0
        %1520 = vmatpush.bf16.xpose.msra.mxu0 0
        %1521 = vmatpush.bf16.xpose.msra.mxu0 0
        %1522 = vmatpush.bf16.xpose.msra.mxu0 0
        %1523 = vmatpush.bf16.xpose.msra.mxu0 0
        %1524 = vmatpush.bf16.xpose.msra.mxu0 %v789
        %1525 = vmatmul.bf16.gmra.mxu0 %v467
        %v1526 = vpop.f32.mrf.mxu0
        %v1527 = vadd.f32 %v1514, %v1526
        %v1528 = vpop.f32.mrf.mxu0
        %1529 = vdwg.mxu0
        %1530 = vmatpush.bf16.xpose.msra.mxu0 0
        %1531 = vmatpush.bf16.xpose.msra.mxu0 0
        %1532 = vmatpush.bf16.xpose.msra.mxu0 0
        %1533 = vmatpush.bf16.xpose.msra.mxu0 0
        %1534 = vmatpush.bf16.xpose.msra.mxu0 0
        %1535 = vmatpush.bf16.xpose.msra.mxu0 0
        %1536 = vmatpush.bf16.xpose.msra.mxu0 0
        %1537 = vmatpush.bf16.xpose.msra.mxu0 %v790
        %1538 = vmatmul.bf16.gmra.mxu0 %v468
        %v1539 = vpop.f32.mrf.mxu0
        %v1540 = vadd.f32 %v1527, %v1539
        %v1541 = vpop.f32.mrf.mxu0
        %1542 = vdwg.mxu0
        %1543 = vmatpush.bf16.xpose.msra.mxu0 0
        %1544 = vmatpush.bf16.xpose.msra.mxu0 0
        %1545 = vmatpush.bf16.xpose.msra.mxu0 0
        %1546 = vmatpush.bf16.xpose.msra.mxu0 0
        %1547 = vmatpush.bf16.xpose.msra.mxu0 0
        %1548 = vmatpush.bf16.xpose.msra.mxu0 0
        %1549 = vmatpush.bf16.xpose.msra.mxu0 0
        %1550 = vmatpush.bf16.xpose.msra.mxu0 %v791
        %1551 = vmatmul.bf16.gmra.mxu0 %v469
        %v1552 = vpop.f32.mrf.mxu0
        %v1553 = vadd.f32 %v1540, %v1552
        %v1554 = vpop.f32.mrf.mxu0
        %1555 = vdwg.mxu0
        %1556 = vmatpush.bf16.xpose.msra.mxu0 0
        %1557 = vmatpush.bf16.xpose.msra.mxu0 0
        %1558 = vmatpush.bf16.xpose.msra.mxu0 0
        %1559 = vmatpush.bf16.xpose.msra.mxu0 0
        %1560 = vmatpush.bf16.xpose.msra.mxu0 0
        %1561 = vmatpush.bf16.xpose.msra.mxu0 0
        %1562 = vmatpush.bf16.xpose.msra.mxu0 0
        %1563 = vmatpush.bf16.xpose.msra.mxu0 %v792
        %1564 = vmatmul.bf16.gmra.mxu0 %v470
        %v1565 = vpop.f32.mrf.mxu0
        %v1566 = vadd.f32 %v1553, %v1565
        %v1567 = vpop.f32.mrf.mxu0
        %1568 = vdwg.mxu0
        %1569 = vmatpush.bf16.xpose.msra.mxu0 0
        %1570 = vmatpush.bf16.xpose.msra.mxu0 0
        %1571 = vmatpush.bf16.xpose.msra.mxu0 0
        %1572 = vmatpush.bf16.xpose.msra.mxu0 0
        %1573 = vmatpush.bf16.xpose.msra.mxu0 0
        %1574 = vmatpush.bf16.xpose.msra.mxu0 0
        %1575 = vmatpush.bf16.xpose.msra.mxu0 0
        %1576 = vmatpush.bf16.xpose.msra.mxu0 %v793
        %1577 = vmatmul.bf16.gmra.mxu0 %v471
        %v1578 = vpop.f32.mrf.mxu0
        %v1579 = vadd.f32 %v1566, %v1578
        %v1580 = vpop.f32.mrf.mxu0
        %1581 = vdwg.mxu0
        %1582 = vmatpush.bf16.xpose.msra.mxu0 0
        %1583 = vmatpush.bf16.xpose.msra.mxu0 0
        %1584 = vmatpush.bf16.xpose.msra.mxu0 0
        %1585 = vmatpush.bf16.xpose.msra.mxu0 0
        %1586 = vmatpush.bf16.xpose.msra.mxu0 0
        %1587 = vmatpush.bf16.xpose.msra.mxu0 0
        %1588 = vmatpush.bf16.xpose.msra.mxu0 0
        %1589 = vmatpush.bf16.xpose.msra.mxu0 %v794
        %1590 = vmatmul.bf16.gmra.mxu0 %v472
        %v1591 = vpop.f32.mrf.mxu0
        %v1592 = vadd.f32 %v1579, %v1591
        %v1593 = vpop.f32.mrf.mxu0
        %1594 = vdwg.mxu0
        %1595 = vmatpush.bf16.xpose.msra.mxu0 0
        %1596 = vmatpush.bf16.xpose.msra.mxu0 0
        %1597 = vmatpush.bf16.xpose.msra.mxu0 0
        %1598 = vmatpush.bf16.xpose.msra.mxu0 0
        %1599 = vmatpush.bf16.xpose.msra.mxu0 0
        %1600 = vmatpush.bf16.xpose.msra.mxu0 0
        %1601 = vmatpush.bf16.xpose.msra.mxu0 0
        %1602 = vmatpush.bf16.xpose.msra.mxu0 %v795
        %1603 = vmatmul.bf16.gmra.mxu0 %v475
        %v1604 = vpop.f32.mrf.mxu0
        %v1605 = vadd.f32 %v1592, %v1604
        %v1606 = vpop.f32.mrf.mxu0
        %1607 = vdwg.mxu0
        %1608 = vmatpush.bf16.xpose.msra.mxu0 0
        %1609 = vmatpush.bf16.xpose.msra.mxu0 0
        %1610 = vmatpush.bf16.xpose.msra.mxu0 0
        %1611 = vmatpush.bf16.xpose.msra.mxu0 0
        %1612 = vmatpush.bf16.xpose.msra.mxu0 0
        %1613 = vmatpush.bf16.xpose.msra.mxu0 0
        %1614 = vmatpush.bf16.xpose.msra.mxu0 0
        %1615 = vmatpush.bf16.xpose.msra.mxu0 %v796
        %1616 = vmatmul.bf16.gmra.mxu0 %v476
        %v1617 = vpop.f32.mrf.mxu0
        %v1618 = vadd.f32 %v1605, %v1617
        %v1619 = vpop.f32.mrf.mxu0
        %1620 = vdwg.mxu0
        %1621 = vmatpush.bf16.xpose.msra.mxu0 0
        %1622 = vmatpush.bf16.xpose.msra.mxu0 0
        %1623 = vmatpush.bf16.xpose.msra.mxu0 0
        %1624 = vmatpush.bf16.xpose.msra.mxu0 0
        %1625 = vmatpush.bf16.xpose.msra.mxu0 0
        %1626 = vmatpush.bf16.xpose.msra.mxu0 0
        %1627 = vmatpush.bf16.xpose.msra.mxu0 0
        %1628 = vmatpush.bf16.xpose.msra.mxu0 %v797
        %1629 = vmatmul.bf16.gmra.mxu0 %v477
        %v1630 = vpop.f32.mrf.mxu0
        %v1631 = vadd.f32 %v1618, %v1630
        %v1632 = vpop.f32.mrf.mxu0
        %1633 = vdwg.mxu0
        %1634 = vmatpush.bf16.xpose.msra.mxu0 0
        %1635 = vmatpush.bf16.xpose.msra.mxu0 0
        %1636 = vmatpush.bf16.xpose.msra.mxu0 0
        %1637 = vmatpush.bf16.xpose.msra.mxu0 0
        %1638 = vmatpush.bf16.xpose.msra.mxu0 0
        %1639 = vmatpush.bf16.xpose.msra.mxu0 0
        %1640 = vmatpush.bf16.xpose.msra.mxu0 0
        %1641 = vmatpush.bf16.xpose.msra.mxu0 %v798
        %1642 = vmatmul.bf16.gmra.mxu0 %v478
        %v1643 = vpop.f32.mrf.mxu0
        %v1644 = vadd.f32 %v1631, %v1643
        %v1645 = vpop.f32.mrf.mxu0
        %1646 = vdwg.mxu0
        %1647 = vmatpush.bf16.xpose.msra.mxu0 0
        %1648 = vmatpush.bf16.xpose.msra.mxu0 0
        %1649 = vmatpush.bf16.xpose.msra.mxu0 0
        %1650 = vmatpush.bf16.xpose.msra.mxu0 0
        %1651 = vmatpush.bf16.xpose.msra.mxu0 0
        %1652 = vmatpush.bf16.xpose.msra.mxu0 0
        %1653 = vmatpush.bf16.xpose.msra.mxu0 0
        %1654 = vmatpush.bf16.xpose.msra.mxu0 %v799
        %1655 = vmatmul.bf16.gmra.mxu0 %v479
        %v1656 = vpop.f32.mrf.mxu0
        %v1657 = vadd.f32 %v1644, %v1656
        %v1658 = vpop.f32.mrf.mxu0
        %1659 = vdwg.mxu0
        %1660 = vmatpush.bf16.xpose.msra.mxu0 0
        %1661 = vmatpush.bf16.xpose.msra.mxu0 0
        %1662 = vmatpush.bf16.xpose.msra.mxu0 0
        %1663 = vmatpush.bf16.xpose.msra.mxu0 0
        %1664 = vmatpush.bf16.xpose.msra.mxu0 0
        %1665 = vmatpush.bf16.xpose.msra.mxu0 0
        %1666 = vmatpush.bf16.xpose.msra.mxu0 0
        %1667 = vmatpush.bf16.xpose.msra.mxu0 %v800
        %1668 = vmatmul.bf16.gmra.mxu0 %v480
        %v1669 = vpop.f32.mrf.mxu0
        %v1670 = vadd.f32 %v1657, %v1669
        %v1671 = vpop.f32.mrf.mxu0
        %1672 = vdwg.mxu0
        %1673 = vmatpush.bf16.xpose.msra.mxu0 0
        %1674 = vmatpush.bf16.xpose.msra.mxu0 0
        %1675 = vmatpush.bf16.xpose.msra.mxu0 0
        %1676 = vmatpush.bf16.xpose.msra.mxu0 0
        %1677 = vmatpush.bf16.xpose.msra.mxu0 0
        %1678 = vmatpush.bf16.xpose.msra.mxu0 0
        %1679 = vmatpush.bf16.xpose.msra.mxu0 0
        %1680 = vmatpush.bf16.xpose.msra.mxu0 %v801
        %1681 = vmatmul.bf16.gmra.mxu0 %v481
        %v1682 = vpop.f32.mrf.mxu0
        %v1683 = vadd.f32 %v1670, %v1682
        %v1684 = vpop.f32.mrf.mxu0
        %1685 = vdwg.mxu0
        %1686 = vmatpush.bf16.xpose.msra.mxu0 0
        %1687 = vmatpush.bf16.xpose.msra.mxu0 0
        %1688 = vmatpush.bf16.xpose.msra.mxu0 0
        %1689 = vmatpush.bf16.xpose.msra.mxu0 0
        %1690 = vmatpush.bf16.xpose.msra.mxu0 0
        %1691 = vmatpush.bf16.xpose.msra.mxu0 0
        %1692 = vmatpush.bf16.xpose.msra.mxu0 0
        %1693 = vmatpush.bf16.xpose.msra.mxu0 %v802
        %1694 = vmatmul.bf16.gmra.mxu0 %v482
        %v1695 = vpop.f32.mrf.mxu0
        %v1696 = vadd.f32 %v1683, %v1695
        %v1697 = vpop.f32.mrf.mxu0
        %1698 = vdwg.mxu0
        %v1699 = vadd.f32 %v330, %v1696
        %vm1700 = vcmask 74752
        %1701 = vst.msk [vmem:[#allocation2] sm:$0x3] %vm1700, %v1699
        %p1702 = scmp.eq.s32.totalorder %s15, 15
        // Predicated region
        $region60: #{convnet_b_forward.9} parent=50 // pred_check
          %p1703 = pneg %p1702
        $region61: #{convnet_b_forward.9} parent=50 // pred_check_branch
          %1705 = sbr.rel (%p1703) target = $region63
        $region62: #{convnet_b_forward.9} parent=50 // pred_region
          %v1706 = vld [vmem:[#allocation2] sm:$0x3]
          %v1707 = vld [vmem:[%s2] sm:$0x1]
          %v1709 = vperm.slane %v1707, 0
          %v1711 = vadd.f32 %v1706, %v1709
          %v1712 = vsel %vm1700, %v1711, -inf
          %1713 = vmax.xlane.f32.xlu0 %v1712
          %v1714 = vpop.xlane.xlu0 %1713
          %v1715 = vsub.f32 %v1711, %v1714
          %v1716 = vmul.f32 %v1715, 1.442695
          %v1717 = vpow.pop %v1716
          %v1718 = vsel %vm1700, %v1717, 0.0
          %1719 = vadd.xlane.f32.xlu0 %v1718
          %v1720 = vpop.xlane.xlu0 %1719
          %v1721 = vrcp.pop %v1720
          %v1722 = vmul.f32 %v1720, %v1721
          %v1723 = vsub.f32 1.0, %v1722
          %v1724 = vmul.f32 %v1721, %v1723
          %v1725 = vadd.f32 %v1721, %v1724
          %vm1726 = vweird.f32 %v1720
          %vm1727 = vweird.f32 %v1721
          %vm1728 = vmor %vm1726, %vm1727
          %v1729 = vsel %vm1728, %v1721, %v1725
          %v1730 = vand.u32 2147483647, %v1720
          %vm1731 = vcmp.eq.f32.partialorder %v1730, 8.507059e+37
          %v1732 = vand.u32 %v1720, 2147483648
          %v1733 = vor.u32 1.1754944e-38, %v1732
          %v1734 = vsel %vm1731, %v1733, %v1729
          %v1735 = vmul.f32 %v1717, %v1734
          %1736 = vst.msk [vmem:[#allocation4] sm:$0x3] %vm1700, %v1735
        $region63: #{convnet_b_forward.9} parent=50 // pred_fallthru
          _
        // Predicated region
        $region64: #{convnet_b_forward.9} parent=50 // pred_check
          %p1737 = pneg %p101
        $region65: #{convnet_b_forward.9} parent=50 // pred_check_branch
          %1739 = sbr.rel (%p1737) target = $region67
        $region66: #{convnet_b_forward.9} parent=50 // pred_region
          %1741 = vsyncadd [#allocation5], 0
          %s1743 = sshll.u32 [#allocation4], 4
          %s1744 = int_to_ptr.vmem [resolvable:$true] %s1743
          %s1745 = sshll.u32 %s3, 4
          %s1746 = int_to_ptr.hbm [resolvable:$true] %s1745
          %1748 = dma.vmem_to_hbm [thread:$0]  %s1744, 32, %s1746, [#allocation5]
        $region67: #{convnet_b_forward.9} parent=50 // pred_fallthru
          _
        // Predicated region
        $region68: #{convnet_b_forward.9} parent=50 // pred_check
          %p1749 = pneg %p101
        $region69: #{convnet_b_forward.9} parent=50 // pred_check_branch
          %1751 = sbr.rel (%p1749) target = $region71
        $region70: #{convnet_b_forward.9} parent=50 // pred_region
          %1753 = dma.done [#allocation5], 32
        $region71: #{convnet_b_forward.9} parent=50 // pred_fallthru
          _
      $region51: #{convnet_b_forward.9} parent=5 // pred_fallthru
        _
      %p1754 = scmp.le.s32.totalorder 2, %s10
      // Predicated region
      $region72: #{convnet_b_forward.9} parent=5 // pred_check
        %p1755 = pneg %p1754
      $region73: #{convnet_b_forward.9} parent=5 // pred_check_branch
        %1757 = sbr.rel (%p1755) target = $region75
      $region74: #{convnet_b_forward.9} parent=5 // pred_region
        %s1758 = ssub.s32 %s10, 2
      $region75: #{convnet_b_forward.9} parent=5 // pred_fallthru
        _
    $region6: #{convnet_b_forward.9} parent=1 // loop_footer
      %s14 = sadd.s32 1, %s10
    $region7: #{convnet_b_forward.9} parent=1 // loop_footer_branch
      %9 = sbr.rel target = $region3
    $region8: #{convnet_b_forward.9} parent=1 // loop_exit
      _
    %1759 = vsyncpa [#allocation5], 1
    %s1760 = scalar_lea.sflag [#allocation5], 1
    %1761 = vsyncpa %s1760, 1

</llo_original>
